<compile_context>
chip_gen: v7x
topology: tpu7x:2x2x1
jax: 0.10.0
libtpu: 0.0.40
codegen_flags: <defaults>
</compile_context>

<pallas_src>
import functools

import jax
import jax.numpy as jnp
from jax.experimental import pallas as pl
from jax.experimental.pallas import tpu as pltpu

LANE = 128

CONFIG = {
    "text_vocab": 50,
    "emb_dim": 32,     # NOTE: forward() feeds GRU output back as GRU input,
    "hid_dim": 32,     #       which requires emb_dim == hid_dim (asserted below).
    "num_layers": 2,
    "enc_drop": 0.1,   # inference mode: nn.Dropout / inter-layer GRU dropout are identity.
}


def _round_up(n, m):
    return ((n + m - 1) // m) * m


# --------------------------- fused Pallas kernel ----------------------------

def _encoder_seq_kernel(ids_ref, emb_ref, wih_ref, whh_ref, bih_ref, bhhn_ref,
                        h_in_ref, out_ref, h_out_ref, *, n_layers, hp, h_dim):
    """Embedding lookup + (T x n_layers x n_layers) GRU-cell evaluations, all VMEM-resident.

    ids_ref : (T, B, 1) int32         emb_ref : (Vp, E)   bf16
    wih_ref : (L, E, 3*hp) bf16       whh_ref : (L, H, 3*hp) bf16   (gates r|z|n on lanes)
    bih_ref : (L, 1, 3*hp) f32  (b_ih all gates; b_hh folded in for r,z)
    bhhn_ref: (L, 1, hp)   f32  (b_hh of the n gate; stays inside r*(...))
    h_in_ref / h_out_ref : (L, B, hp) f32 (HBM-aliased)   out_ref : (T, B, hp) f32
    """
    t_steps = ids_ref.shape[0]
    b = ids_ref.shape[1]
    vp = emb_ref.shape[0]

    # Hoisted one-hot iota (reused every timestep; JAX does not CSE broadcasts).
    vocab_iota = jax.lax.broadcasted_iota(jnp.int32, (b, vp), 1)

    # Read initial hidden once, up front (h_in aliases h_out in HBM; all reads happen
    # before the final writes at the bottom of the kernel).
    h = [h_in_ref[l] for l in range(n_layers)]                           # each (B, hp) f32

    def gru_cell(x_in, h_prev, l):
        # Two lane-dense bf16 MXU matmuls per cell; gate math in f32.
        xb = x_in.astype(jnp.bfloat16)                                   # (B, h_dim)
        hb = h_prev[:, :h_dim].astype(jnp.bfloat16)                      # (B, h_dim)
        gi = jnp.dot(xb, wih_ref[l], preferred_element_type=jnp.float32) + bih_ref[l]
        gh = jnp.dot(hb, whh_ref[l], preferred_element_type=jnp.float32)
        r = jax.nn.sigmoid(gi[:, 0 * hp:1 * hp] + gh[:, 0 * hp:1 * hp])
        z = jax.nn.sigmoid(gi[:, 1 * hp:2 * hp] + gh[:, 1 * hp:2 * hp])
        # b_hh of the n-gate must stay inside the r*(...) term (PyTorch GRU semantics).
        n = jnp.tanh(gi[:, 2 * hp:3 * hp] + r * (gh[:, 2 * hp:3 * hp] + bhhn_ref[l]))
        return (1.0 - z) * n + z * h_prev

    for t in range(t_steps):
        # Embedding gather as a one-hot matmul: exact row select, MXU-friendly.
        ids_t = ids_ref[t]                                               # (B, 1) int32
        onehot = (vocab_iota == ids_t).astype(emb_ref.dtype)             # (B, Vp) bf16
        x = jnp.dot(onehot, emb_ref[...], preferred_element_type=jnp.float32)  # (B, E) f32

        # Encoder.forward re-runs the whole n_layers-deep GRU n_layers times per step.
        for _ in range(n_layers):
            inp = x
            for l in range(n_layers):
                h[l] = gru_cell(inp, h[l], l)
                inp = h[l][:, :h_dim]          # eval-mode inter-layer dropout == identity
            x = inp
        out_ref[t] = h[n_layers - 1]           # lane-dense (B, 128) store

    for l in range(n_layers):
        h_out_ref[l] = h[l]


@functools.partial(jax.jit, static_argnames=("n_layers", "hid_dim"))
def _encoder_seq_impl(packed, ids_tb, hidden_pad, *, n_layers, hid_dim):
    t_steps, b = ids_tb.shape
    hp = packed["whh"].shape[-1] // 3                         # padded hidden width (128)
    ids3 = ids_tb.reshape(t_steps, b, 1).astype(jnp.int32)

    # Advisory cost estimate: helps XLA schedule the small surrounding ops.
    cells = t_steps * n_layers * n_layers
    flops = cells * 2 * (2 * b * hid_dim * 3 * hp) \
        + t_steps * 2 * b * int(packed["emb"].shape[0]) * hid_dim
    transcendentals = cells * 3 * b * hp
    bytes_accessed = sum(int(a.size) * a.dtype.itemsize
                         for a in (ids3, packed["emb"], packed["wih"], packed["whh"],
                                   packed["bih"], packed["bhhn"], hidden_pad))
    bytes_accessed += (t_steps * b * hp + n_layers * b * hp) * 4

    vmem = pl.BlockSpec(memory_space=pltpu.MemorySpace.VMEM)  # whole array, VMEM-resident
    out_pad, h_new_pad = pl.pallas_call(
        functools.partial(_encoder_seq_kernel, n_layers=n_layers, hp=hp, h_dim=hid_dim),
        out_shape=(jax.ShapeDtypeStruct((t_steps, b, hp), jnp.float32),
                   jax.ShapeDtypeStruct((n_layers, b, hp), jnp.float32)),
        in_specs=[vmem] * 7,
        out_specs=(vmem, vmem),
        input_output_aliases={6: 1},     # hidden (input 6) written in place into output 1
        cost_estimate=pl.CostEstimate(flops=int(flops),
                                      transcendentals=int(transcendentals),
                                      bytes_accessed=int(bytes_accessed)),
    )(ids3, packed["emb"], packed["wih"], packed["whh"],
      packed["bih"], packed["bhhn"], hidden_pad)
    return out_pad, h_new_pad


# ------------------------------ public API ----------------------------------

def pad_hidden(hidden, hp=LANE):
    l, b, h = hidden.shape
    return jnp.zeros((l, b, hp), jnp.float32).at[:, :, :h].set(hidden)


def unpad_hidden(hidden_pad, hid_dim):
    return hidden_pad[:, :, :hid_dim]


def encoder_forward_padded(packed, ids_tb, hidden_pad, config):
    """Decode-loop friendly variant: carries the padded (L, B, 128) hidden across calls
    (slice with unpad_hidden only once, at the very end of decoding)."""
    return _encoder_seq_impl(packed, ids_tb, hidden_pad,
                             n_layers=config["num_layers"], hid_dim=config["hid_dim"])


def encoder_forward_seq(packed, ids_tb, hidden, config):
    """Run Encoder.forward for every timestep of ids_tb (T, B), hidden carried in VMEM.
    Returns (outputs (T, B, H), final hidden (L, B, H))."""
    hid = config["hid_dim"]
    out_pad, h_pad = encoder_forward_padded(packed, ids_tb, pad_hidden(hidden), config)
    return out_pad[:, :, :hid], unpad_hidden(h_pad, hid)


def encoder_forward(packed, input_ids, hidden, config):
    """Mirrors Encoder.forward exactly: input_ids (B,) -> (output (1, B, H), hidden (L, B, H))."""
    out, h = encoder_forward_seq(packed, input_ids[None, :], hidden, config)
    return out, h       # out already has shape (1, B, H)


# ----------------------------- parameters ----------------------------------

def init_encoder_params(key, config):
    V, E, H, L = (config["text_vocab"], config["emb_dim"],
                  config["hid_dim"], config["num_layers"])
    assert E == H, "Encoder.forward feeds GRU output back as GRU input: needs emb_dim == hid_dim"
    k_emb, k_w = jax.random.split(key)
    scale = 1.0 / jnp.sqrt(H)
    params = {
        # nn.Embedding default init: N(0, 1); frozen (forward-only anyway).
        "embedding": jax.random.normal(k_emb, (V, E), jnp.float32),
        "w_ih": [], "w_hh": [], "b_ih": [], "b_hh": [],
    }
    for l in range(L):
        in_dim = E if l == 0 else H
        ks = jax.random.split(jax.random.fold_in(k_w, l), 4)
        u = lambda k, shp: jax.random.uniform(k, shp, jnp.float32, -scale, scale)
        params["w_ih"].append(u(ks[0], (3, in_dim, H)))   # gate order r, z, n
        params["w_hh"].append(u(ks[1], (3, H, H)))
        params["b_ih"].append(u(ks[2], (3, 1, H)))
        params["b_hh"].append(u(ks[3], (3, 1, H)))
    return params


def pack_encoder_params(params, config):
    """Pack logical params into the fused kernel layout.

    K (contraction) dims kept at the true width (E/H = 32); only the gate/lane axis is
    padded to 3*128. Weights/embedding in bf16 (MXU operands), biases in f32.
    """
    V, E, H, L = (config["text_vocab"], config["emb_dim"],
                  config["hid_dim"], config["num_layers"])
    assert E == H
    hp = _round_up(H, LANE)                 # 128
    vp = _round_up(V, 16)                   # bf16 sublane-friendly vocab pad (64)
    emb = jnp.zeros((vp, E), jnp.bfloat16).at[:V, :].set(
        params["embedding"].astype(jnp.bfloat16))
    wih = jnp.zeros((L, E, 3 * hp), jnp.bfloat16)
    whh = jnp.zeros((L, H, 3 * hp), jnp.bfloat16)
    bih = jnp.zeros((L, 1, 3 * hp), jnp.float32)    # b_ih (all gates) + b_hh folded for r,z
    bhhn = jnp.zeros((L, 1, hp), jnp.float32)       # b_hh of the n gate (inside r*(...))
    for l in range(L):
        for g in range(3):                                   # gates r|z|n along lanes
            wih = wih.at[l, :, g * hp:g * hp + H].set(params["w_ih"][l][g].astype(jnp.bfloat16))
            whh = whh.at[l, :, g * hp:g * hp + H].set(params["w_hh"][l][g].astype(jnp.bfloat16))
        bih = bih.at[l, :, 0 * hp:0 * hp + H].set(params["b_ih"][l][0] + params["b_hh"][l][0])
        bih = bih.at[l, :, 1 * hp:1 * hp + H].set(params["b_ih"][l][1] + params["b_hh"][l][1])
        bih = bih.at[l, :, 2 * hp:2 * hp + H].set(params["b_ih"][l][2])
        bhhn = bhhn.at[l, :, :H].set(params["b_hh"][l][2])
    return {"emb": emb, "wih": wih, "whh": whh, "bih": bih, "bhhn": bhhn}


def init_hidden(batch_size, config):
    # Generalized initHidden: (num_layers, B, H) so the n_layers-deep GRU accepts it.
    return jnp.zeros((config["num_layers"], batch_size, config["hid_dim"]), jnp.float32)


# --------------------------- pure-JAX reference ----------------------------

def _q(a):
    # Quantize matmul operands to bf16 exactly as the kernel does (accumulation stays f32).
    return a.astype(jnp.bfloat16).astype(jnp.float32)


def _gru_cell_ref(x, h, w_ih, w_hh, b_ih, b_hh):
    xq, hq = _q(x), _q(h)
    i_r = xq @ _q(w_ih[0]) + b_ih[0]; h_r = hq @ _q(w_hh[0]) + b_hh[0]
    i_z = xq @ _q(w_ih[1]) + b_ih[1]; h_z = hq @ _q(w_hh[1]) + b_hh[1]
    i_n = xq @ _q(w_ih[2]) + b_ih[2]; h_n = hq @ _q(w_hh[2]) + b_hh[2]
    r = jax.nn.sigmoid(i_r + h_r)
    z = jax.nn.sigmoid(i_z + h_z)
    n = jnp.tanh(i_n + r * h_n)
    return (1.0 - z) * n + z * h


def encoder_forward_ref(params, input_ids, hidden, config):
    B = input_ids.shape[0]
    E, L = config["emb_dim"], config["num_layers"]
    embedded = jnp.take(_q(params["embedding"]), input_ids, axis=0).reshape(1, B, E)
    output = embedded
    for _ in range(L):                        # the (redundant) outer loop in the PyTorch forward
        x = output[0]
        new_hidden = []
        for l in range(L):
            h_new = _gru_cell_ref(x, hidden[l], params["w_ih"][l], params["w_hh"][l],
                                  params["b_ih"][l], params["b_hh"][l])
            new_hidden.append(h_new)
            x = h_new
        hidden = jnp.stack(new_hidden, axis=0)
        output = x[None]
    return output, hidden


def encoder_forward_seq_ref(params, ids_tb, hidden, config):
    outs = []
    for t in range(ids_tb.shape[0]):
        out, hidden = encoder_forward_ref(params, ids_tb[t], hidden, config)
        outs.append(out[0])
    return jnp.stack(outs, axis=0), hidden


# --------------------------------- main ------------------------------------

if __name__ == "__main__":
    key = jax.random.PRNGKey(0)
    k_params, k_ids = jax.random.split(key)

    params = init_encoder_params(k_params, CONFIG)
    packed = pack_encoder_params(params, CONFIG)

    B, T = 8, 6
    H, L = CONFIG["hid_dim"], CONFIG["num_layers"]
    ids = jax.random.randint(k_ids, (T, B), 0, CONFIG["text_vocab"], jnp.int32)
    hidden0 = init_hidden(B, CONFIG)

    # Fused full-sequence call: one kernel launch, weights DMA'd once, hidden in VMEM.
    outputs, hidden = encoder_forward_seq(packed, ids, hidden0, CONFIG)
    outputs, hidden = jax.block_until_ready((outputs, hidden))

    # Single-step API matching Encoder.forward's signature (output shape (1, B, H)).
    out1, h1 = encoder_forward(packed, ids[0], hidden0, CONFIG)
    out1, h1 = jax.block_until_ready((out1, h1))

    # Correctness check vs. pure-JAX reference on the original (unpadded, per-gate) params.
    outputs_ref, hidden_ref = encoder_forward_seq_ref(params, ids, hidden0, CONFIG)
    out1_ref, h1_ref = encoder_forward_ref(params, ids[0], hidden0, CONFIG)

    assert outputs.shape == (T, B, H)
    assert hidden.shape == (L, B, H)
    assert out1.shape == (1, B, H)
    assert h1.shape == (L, B, H)
    assert jnp.allclose(outputs, outputs_ref, atol=1e-3, rtol=1e-3), \
        float(jnp.max(jnp.abs(outputs - outputs_ref)))
    assert jnp.allclose(hidden, hidden_ref, atol=1e-3, rtol=1e-3), \
        float(jnp.max(jnp.abs(hidden - hidden_ref)))
    assert jnp.allclose(out1, out1_ref, atol=1e-3, rtol=1e-3), \
        float(jnp.max(jnp.abs(out1 - out1_ref)))
    assert jnp.allclose(h1, h1_ref, atol=1e-3, rtol=1e-3), \
        float(jnp.max(jnp.abs(h1 - h1_ref)))

    print("KERNEL_OK")
</pallas_src>

<mosaic_0001>
module attributes {stable_mosaic.version = 11 : i64} {
  func.func @_encoder_seq_kernel(%arg0: memref<6x8x1xi32, #tpu.memory_space<vmem>>, %arg1: memref<64x32xbf16, #tpu.memory_space<vmem>>, %arg2: memref<2x32x384xbf16, #tpu.memory_space<vmem>>, %arg3: memref<2x32x384xbf16, #tpu.memory_space<vmem>>, %arg4: memref<2x1x384xf32, #tpu.memory_space<vmem>>, %arg5: memref<2x1x128xf32, #tpu.memory_space<vmem>>, %arg6: memref<2x8x128xf32, #tpu.memory_space<vmem>>, %arg7: memref<6x8x128xf32, #tpu.memory_space<vmem>>, %arg8: memref<2x8x128xf32, #tpu.memory_space<vmem>>) attributes {dimension_semantics = [], scalar_prefetch = 0 : i64, scratch_operands = 0 : i64, tpu.core_type = #tpu.core_type<tc>} {
    %0 = tpu.iota {dimensions = array<i32: 1>} : vector<8x64xi32>
    %c0 = arith.constant 0 : index
    %c0_0 = arith.constant 0 : index
    %c0_1 = arith.constant 0 : index
    %1 = vector.load %arg6[%c0, %c0_0, %c0_1] : memref<2x8x128xf32, #tpu.memory_space<vmem>>, vector<1x8x128xf32>
    %2 = vector.shape_cast %1 : vector<1x8x128xf32> to vector<8x128xf32>
    %c1 = arith.constant 1 : index
    %c0_2 = arith.constant 0 : index
    %c0_3 = arith.constant 0 : index
    %3 = vector.load %arg6[%c1, %c0_2, %c0_3] : memref<2x8x128xf32, #tpu.memory_space<vmem>>, vector<1x8x128xf32>
    %4 = vector.shape_cast %3 : vector<1x8x128xf32> to vector<8x128xf32>
    %c0_4 = arith.constant 0 : index
    %c0_5 = arith.constant 0 : index
    %c0_6 = arith.constant 0 : index
    %5 = vector.load %arg0[%c0_4, %c0_5, %c0_6] : memref<6x8x1xi32, #tpu.memory_space<vmem>>, vector<1x8x1xi32>
    %6 = vector.shape_cast %5 : vector<1x8x1xi32> to vector<8x1xi32>
    %7 = vector.broadcast %6 : vector<8x1xi32> to vector<8x64xi32>
    %8 = arith.cmpi eq, %0, %7 : vector<8x64xi32>
    %9 = arith.extui %8 : vector<8x64xi1> to vector<8x64xi32>
    %10 = arith.sitofp %9 : vector<8x64xi32> to vector<8x64xf32>
    %11 = arith.truncf %10 : vector<8x64xf32> to vector<8x64xbf16>
    %c0_7 = arith.constant 0 : index
    %c0_8 = arith.constant 0 : index
    %12 = vector.load %arg1[%c0_7, %c0_8] : memref<64x32xbf16, #tpu.memory_space<vmem>>, vector<64x32xbf16>
    %cst = arith.constant dense<0.000000e+00> : vector<8x32xf32>
    %13 = tpu.matmul %11, %12, %cst {dimension_numbers = #tpu.dot_dimension_numbers<[1], [0], [0], [1], [0, 0, 1, 1], [], []>} : vector<8x64xbf16>, vector<64x32xbf16>, vector<8x32xf32> -> vector<8x32xf32>
    %14 = arith.truncf %13 : vector<8x32xf32> to vector<8x32xbf16>
    %15 = vector.extract_strided_slice %2 {offsets = [0, 0], sizes = [8, 32], strides = [1, 1]} : vector<8x128xf32> to vector<8x32xf32>
    %16 = arith.truncf %15 : vector<8x32xf32> to vector<8x32xbf16>
    %c0_9 = arith.constant 0 : index
    %c0_10 = arith.constant 0 : index
    %c0_11 = arith.constant 0 : index
    %17 = vector.load %arg2[%c0_9, %c0_10, %c0_11] : memref<2x32x384xbf16, #tpu.memory_space<vmem>>, vector<1x32x384xbf16>
    %18 = vector.shape_cast %17 : vector<1x32x384xbf16> to vector<32x384xbf16>
    %cst_12 = arith.constant dense<0.000000e+00> : vector<8x384xf32>
    %19 = tpu.matmul %14, %18, %cst_12 {dimension_numbers = #tpu.dot_dimension_numbers<[1], [0], [0], [1], [0, 0, 1, 1], [], []>} : vector<8x32xbf16>, vector<32x384xbf16>, vector<8x384xf32> -> vector<8x384xf32>
    %c0_13 = arith.constant 0 : index
    %c0_14 = arith.constant 0 : index
    %c0_15 = arith.constant 0 : index
    %20 = vector.load %arg4[%c0_13, %c0_14, %c0_15] : memref<2x1x384xf32, #tpu.memory_space<vmem>>, vector<1x1x384xf32>
    %21 = vector.shape_cast %20 : vector<1x1x384xf32> to vector<1x384xf32>
    %22 = vector.broadcast %21 : vector<1x384xf32> to vector<8x384xf32>
    %23 = arith.addf %19, %22 : vector<8x384xf32>
    %c0_16 = arith.constant 0 : index
    %c0_17 = arith.constant 0 : index
    %c0_18 = arith.constant 0 : index
    %24 = vector.load %arg3[%c0_16, %c0_17, %c0_18] : memref<2x32x384xbf16, #tpu.memory_space<vmem>>, vector<1x32x384xbf16>
    %25 = vector.shape_cast %24 : vector<1x32x384xbf16> to vector<32x384xbf16>
    %cst_19 = arith.constant dense<0.000000e+00> : vector<8x384xf32>
    %26 = tpu.matmul %16, %25, %cst_19 {dimension_numbers = #tpu.dot_dimension_numbers<[1], [0], [0], [1], [0, 0, 1, 1], [], []>} : vector<8x32xbf16>, vector<32x384xbf16>, vector<8x384xf32> -> vector<8x384xf32>
    %27 = vector.extract_strided_slice %23 {offsets = [0, 0], sizes = [8, 128], strides = [1, 1]} : vector<8x384xf32> to vector<8x128xf32>
    %28 = vector.extract_strided_slice %26 {offsets = [0, 0], sizes = [8, 128], strides = [1, 1]} : vector<8x384xf32> to vector<8x128xf32>
    %29 = arith.addf %27, %28 : vector<8x128xf32>
    %30 = arith.negf %29 : vector<8x128xf32>
    %31 = math.exp %30 : vector<8x128xf32>
    %cst_20 = arith.constant 1.000000e+00 : f32
    %32 = vector.broadcast %cst_20 : f32 to vector<8x128xf32>
    %33 = arith.addf %32, %31 : vector<8x128xf32>
    %34 = arith.divf %32, %33 : vector<8x128xf32>
    %35 = vector.extract_strided_slice %23 {offsets = [0, 128], sizes = [8, 128], strides = [1, 1]} : vector<8x384xf32> to vector<8x128xf32>
    %36 = vector.extract_strided_slice %26 {offsets = [0, 128], sizes = [8, 128], strides = [1, 1]} : vector<8x384xf32> to vector<8x128xf32>
    %37 = arith.addf %35, %36 : vector<8x128xf32>
    %38 = arith.negf %37 : vector<8x128xf32>
    %39 = math.exp %38 : vector<8x128xf32>
    %cst_21 = arith.constant 1.000000e+00 : f32
    %40 = vector.broadcast %cst_21 : f32 to vector<8x128xf32>
    %41 = arith.addf %40, %39 : vector<8x128xf32>
    %42 = arith.divf %40, %41 : vector<8x128xf32>
    %43 = vector.extract_strided_slice %23 {offsets = [0, 256], sizes = [8, 128], strides = [1, 1]} : vector<8x384xf32> to vector<8x128xf32>
    %44 = vector.extract_strided_slice %26 {offsets = [0, 256], sizes = [8, 128], strides = [1, 1]} : vector<8x384xf32> to vector<8x128xf32>
    %c0_22 = arith.constant 0 : index
    %c0_23 = arith.constant 0 : index
    %c0_24 = arith.constant 0 : index
    %45 = vector.load %arg5[%c0_22, %c0_23, %c0_24] : memref<2x1x128xf32, #tpu.memory_space<vmem>>, vector<1x1x128xf32>
    %46 = vector.shape_cast %45 : vector<1x1x128xf32> to vector<1x128xf32>
    %47 = vector.broadcast %46 : vector<1x128xf32> to vector<8x128xf32>
    %48 = arith.addf %44, %47 : vector<8x128xf32>
    %49 = arith.mulf %34, %48 : vector<8x128xf32>
    %50 = arith.addf %43, %49 : vector<8x128xf32>
    %51 = math.tanh %50 : vector<8x128xf32>
    %cst_25 = arith.constant 1.000000e+00 : f32
    %52 = vector.broadcast %cst_25 : f32 to vector<8x128xf32>
    %53 = arith.subf %52, %42 : vector<8x128xf32>
    %54 = arith.mulf %53, %51 : vector<8x128xf32>
    %55 = arith.mulf %42, %2 : vector<8x128xf32>
    %56 = arith.addf %54, %55 : vector<8x128xf32>
    %57 = vector.extract_strided_slice %56 {offsets = [0, 0], sizes = [8, 32], strides = [1, 1]} : vector<8x128xf32> to vector<8x32xf32>
    %58 = arith.truncf %57 : vector<8x32xf32> to vector<8x32xbf16>
    %59 = vector.extract_strided_slice %4 {offsets = [0, 0], sizes = [8, 32], strides = [1, 1]} : vector<8x128xf32> to vector<8x32xf32>
    %60 = arith.truncf %59 : vector<8x32xf32> to vector<8x32xbf16>
    %c1_26 = arith.constant 1 : index
    %c0_27 = arith.constant 0 : index
    %c0_28 = arith.constant 0 : index
    %61 = vector.load %arg2[%c1_26, %c0_27, %c0_28] : memref<2x32x384xbf16, #tpu.memory_space<vmem>>, vector<1x32x384xbf16>
    %62 = vector.shape_cast %61 : vector<1x32x384xbf16> to vector<32x384xbf16>
    %cst_29 = arith.constant dense<0.000000e+00> : vector<8x384xf32>
    %63 = tpu.matmul %58, %62, %cst_29 {dimension_numbers = #tpu.dot_dimension_numbers<[1], [0], [0], [1], [0, 0, 1, 1], [], []>} : vector<8x32xbf16>, vector<32x384xbf16>, vector<8x384xf32> -> vector<8x384xf32>
    %c1_30 = arith.constant 1 : index
    %c0_31 = arith.constant 0 : index
    %c0_32 = arith.constant 0 : index
    %64 = vector.load %arg4[%c1_30, %c0_31, %c0_32] : memref<2x1x384xf32, #tpu.memory_space<vmem>>, vector<1x1x384xf32>
    %65 = vector.shape_cast %64 : vector<1x1x384xf32> to vector<1x384xf32>
    %66 = vector.broadcast %65 : vector<1x384xf32> to vector<8x384xf32>
    %67 = arith.addf %63, %66 : vector<8x384xf32>
    %c1_33 = arith.constant 1 : index
    %c0_34 = arith.constant 0 : index
    %c0_35 = arith.constant 0 : index
    %68 = vector.load %arg3[%c1_33, %c0_34, %c0_35] : memref<2x32x384xbf16, #tpu.memory_space<vmem>>, vector<1x32x384xbf16>
    %69 = vector.shape_cast %68 : vector<1x32x384xbf16> to vector<32x384xbf16>
    %cst_36 = arith.constant dense<0.000000e+00> : vector<8x384xf32>
    %70 = tpu.matmul %60, %69, %cst_36 {dimension_numbers = #tpu.dot_dimension_numbers<[1], [0], [0], [1], [0, 0, 1, 1], [], []>} : vector<8x32xbf16>, vector<32x384xbf16>, vector<8x384xf32> -> vector<8x384xf32>
    %71 = vector.extract_strided_slice %67 {offsets = [0, 0], sizes = [8, 128], strides = [1, 1]} : vector<8x384xf32> to vector<8x128xf32>
    %72 = vector.extract_strided_slice %70 {offsets = [0, 0], sizes = [8, 128], strides = [1, 1]} : vector<8x384xf32> to vector<8x128xf32>
    %73 = arith.addf %71, %72 : vector<8x128xf32>
    %74 = arith.negf %73 : vector<8x128xf32>
    %75 = math.exp %74 : vector<8x128xf32>
    %cst_37 = arith.constant 1.000000e+00 : f32
    %76 = vector.broadcast %cst_37 : f32 to vector<8x128xf32>
    %77 = arith.addf %76, %75 : vector<8x128xf32>
    %78 = arith.divf %76, %77 : vector<8x128xf32>
    %79 = vector.extract_strided_slice %67 {offsets = [0, 128], sizes = [8, 128], strides = [1, 1]} : vector<8x384xf32> to vector<8x128xf32>
    %80 = vector.extract_strided_slice %70 {offsets = [0, 128], sizes = [8, 128], strides = [1, 1]} : vector<8x384xf32> to vector<8x128xf32>
    %81 = arith.addf %79, %80 : vector<8x128xf32>
    %82 = arith.negf %81 : vector<8x128xf32>
    %83 = math.exp %82 : vector<8x128xf32>
    %cst_38 = arith.constant 1.000000e+00 : f32
    %84 = vector.broadcast %cst_38 : f32 to vector<8x128xf32>
    %85 = arith.addf %84, %83 : vector<8x128xf32>
    %86 = arith.divf %84, %85 : vector<8x128xf32>
    %87 = vector.extract_strided_slice %67 {offsets = [0, 256], sizes = [8, 128], strides = [1, 1]} : vector<8x384xf32> to vector<8x128xf32>
    %88 = vector.extract_strided_slice %70 {offsets = [0, 256], sizes = [8, 128], strides = [1, 1]} : vector<8x384xf32> to vector<8x128xf32>
    %c1_39 = arith.constant 1 : index
    %c0_40 = arith.constant 0 : index
    %c0_41 = arith.constant 0 : index
    %89 = vector.load %arg5[%c1_39, %c0_40, %c0_41] : memref<2x1x128xf32, #tpu.memory_space<vmem>>, vector<1x1x128xf32>
    %90 = vector.shape_cast %89 : vector<1x1x128xf32> to vector<1x128xf32>
    %91 = vector.broadcast %90 : vector<1x128xf32> to vector<8x128xf32>
    %92 = arith.addf %88, %91 : vector<8x128xf32>
    %93 = arith.mulf %78, %92 : vector<8x128xf32>
    %94 = arith.addf %87, %93 : vector<8x128xf32>
    %95 = math.tanh %94 : vector<8x128xf32>
    %cst_42 = arith.constant 1.000000e+00 : f32
    %96 = vector.broadcast %cst_42 : f32 to vector<8x128xf32>
    %97 = arith.subf %96, %86 : vector<8x128xf32>
    %98 = arith.mulf %97, %95 : vector<8x128xf32>
    %99 = arith.mulf %86, %4 : vector<8x128xf32>
    %100 = arith.addf %98, %99 : vector<8x128xf32>
    %101 = vector.extract_strided_slice %100 {offsets = [0, 0], sizes = [8, 32], strides = [1, 1]} : vector<8x128xf32> to vector<8x32xf32>
    %102 = arith.truncf %101 : vector<8x32xf32> to vector<8x32xbf16>
    %103 = vector.extract_strided_slice %56 {offsets = [0, 0], sizes = [8, 32], strides = [1, 1]} : vector<8x128xf32> to vector<8x32xf32>
    %104 = arith.truncf %103 : vector<8x32xf32> to vector<8x32xbf16>
    %c0_43 = arith.constant 0 : index
    %c0_44 = arith.constant 0 : index
    %c0_45 = arith.constant 0 : index
    %105 = vector.load %arg2[%c0_43, %c0_44, %c0_45] : memref<2x32x384xbf16, #tpu.memory_space<vmem>>, vector<1x32x384xbf16>
    %106 = vector.shape_cast %105 : vector<1x32x384xbf16> to vector<32x384xbf16>
    %cst_46 = arith.constant dense<0.000000e+00> : vector<8x384xf32>
    %107 = tpu.matmul %102, %106, %cst_46 {dimension_numbers = #tpu.dot_dimension_numbers<[1], [0], [0], [1], [0, 0, 1, 1], [], []>} : vector<8x32xbf16>, vector<32x384xbf16>, vector<8x384xf32> -> vector<8x384xf32>
    %c0_47 = arith.constant 0 : index
    %c0_48 = arith.constant 0 : index
    %c0_49 = arith.constant 0 : index
    %108 = vector.load %arg4[%c0_47, %c0_48, %c0_49] : memref<2x1x384xf32, #tpu.memory_space<vmem>>, vector<1x1x384xf32>
    %109 = vector.shape_cast %108 : vector<1x1x384xf32> to vector<1x384xf32>
    %110 = vector.broadcast %109 : vector<1x384xf32> to vector<8x384xf32>
    %111 = arith.addf %107, %110 : vector<8x384xf32>
    %c0_50 = arith.constant 0 : index
    %c0_51 = arith.constant 0 : index
    %c0_52 = arith.constant 0 : index
    %112 = vector.load %arg3[%c0_50, %c0_51, %c0_52] : memref<2x32x384xbf16, #tpu.memory_space<vmem>>, vector<1x32x384xbf16>
    %113 = vector.shape_cast %112 : vector<1x32x384xbf16> to vector<32x384xbf16>
    %cst_53 = arith.constant dense<0.000000e+00> : vector<8x384xf32>
    %114 = tpu.matmul %104, %113, %cst_53 {dimension_numbers = #tpu.dot_dimension_numbers<[1], [0], [0], [1], [0, 0, 1, 1], [], []>} : vector<8x32xbf16>, vector<32x384xbf16>, vector<8x384xf32> -> vector<8x384xf32>
    %115 = vector.extract_strided_slice %111 {offsets = [0, 0], sizes = [8, 128], strides = [1, 1]} : vector<8x384xf32> to vector<8x128xf32>
    %116 = vector.extract_strided_slice %114 {offsets = [0, 0], sizes = [8, 128], strides = [1, 1]} : vector<8x384xf32> to vector<8x128xf32>
    %117 = arith.addf %115, %116 : vector<8x128xf32>
    %118 = arith.negf %117 : vector<8x128xf32>
    %119 = math.exp %118 : vector<8x128xf32>
    %cst_54 = arith.constant 1.000000e+00 : f32
    %120 = vector.broadcast %cst_54 : f32 to vector<8x128xf32>
    %121 = arith.addf %120, %119 : vector<8x128xf32>
    %122 = arith.divf %120, %121 : vector<8x128xf32>
    %123 = vector.extract_strided_slice %111 {offsets = [0, 128], sizes = [8, 128], strides = [1, 1]} : vector<8x384xf32> to vector<8x128xf32>
    %124 = vector.extract_strided_slice %114 {offsets = [0, 128], sizes = [8, 128], strides = [1, 1]} : vector<8x384xf32> to vector<8x128xf32>
    %125 = arith.addf %123, %124 : vector<8x128xf32>
    %126 = arith.negf %125 : vector<8x128xf32>
    %127 = math.exp %126 : vector<8x128xf32>
    %cst_55 = arith.constant 1.000000e+00 : f32
    %128 = vector.broadcast %cst_55 : f32 to vector<8x128xf32>
    %129 = arith.addf %128, %127 : vector<8x128xf32>
    %130 = arith.divf %128, %129 : vector<8x128xf32>
    %131 = vector.extract_strided_slice %111 {offsets = [0, 256], sizes = [8, 128], strides = [1, 1]} : vector<8x384xf32> to vector<8x128xf32>
    %132 = vector.extract_strided_slice %114 {offsets = [0, 256], sizes = [8, 128], strides = [1, 1]} : vector<8x384xf32> to vector<8x128xf32>
    %c0_56 = arith.constant 0 : index
    %c0_57 = arith.constant 0 : index
    %c0_58 = arith.constant 0 : index
    %133 = vector.load %arg5[%c0_56, %c0_57, %c0_58] : memref<2x1x128xf32, #tpu.memory_space<vmem>>, vector<1x1x128xf32>
    %134 = vector.shape_cast %133 : vector<1x1x128xf32> to vector<1x128xf32>
    %135 = vector.broadcast %134 : vector<1x128xf32> to vector<8x128xf32>
    %136 = arith.addf %132, %135 : vector<8x128xf32>
    %137 = arith.mulf %122, %136 : vector<8x128xf32>
    %138 = arith.addf %131, %137 : vector<8x128xf32>
    %139 = math.tanh %138 : vector<8x128xf32>
    %cst_59 = arith.constant 1.000000e+00 : f32
    %140 = vector.broadcast %cst_59 : f32 to vector<8x128xf32>
    %141 = arith.subf %140, %130 : vector<8x128xf32>
    %142 = arith.mulf %141, %139 : vector<8x128xf32>
    %143 = arith.mulf %130, %56 : vector<8x128xf32>
    %144 = arith.addf %142, %143 : vector<8x128xf32>
    %145 = vector.extract_strided_slice %144 {offsets = [0, 0], sizes = [8, 32], strides = [1, 1]} : vector<8x128xf32> to vector<8x32xf32>
    %146 = arith.truncf %145 : vector<8x32xf32> to vector<8x32xbf16>
    %147 = vector.extract_strided_slice %100 {offsets = [0, 0], sizes = [8, 32], strides = [1, 1]} : vector<8x128xf32> to vector<8x32xf32>
    %148 = arith.truncf %147 : vector<8x32xf32> to vector<8x32xbf16>
    %c1_60 = arith.constant 1 : index
    %c0_61 = arith.constant 0 : index
    %c0_62 = arith.constant 0 : index
    %149 = vector.load %arg2[%c1_60, %c0_61, %c0_62] : memref<2x32x384xbf16, #tpu.memory_space<vmem>>, vector<1x32x384xbf16>
    %150 = vector.shape_cast %149 : vector<1x32x384xbf16> to vector<32x384xbf16>
    %cst_63 = arith.constant dense<0.000000e+00> : vector<8x384xf32>
    %151 = tpu.matmul %146, %150, %cst_63 {dimension_numbers = #tpu.dot_dimension_numbers<[1], [0], [0], [1], [0, 0, 1, 1], [], []>} : vector<8x32xbf16>, vector<32x384xbf16>, vector<8x384xf32> -> vector<8x384xf32>
    %c1_64 = arith.constant 1 : index
    %c0_65 = arith.constant 0 : index
    %c0_66 = arith.constant 0 : index
    %152 = vector.load %arg4[%c1_64, %c0_65, %c0_66] : memref<2x1x384xf32, #tpu.memory_space<vmem>>, vector<1x1x384xf32>
    %153 = vector.shape_cast %152 : vector<1x1x384xf32> to vector<1x384xf32>
    %154 = vector.broadcast %153 : vector<1x384xf32> to vector<8x384xf32>
    %155 = arith.addf %151, %154 : vector<8x384xf32>
    %c1_67 = arith.constant 1 : index
    %c0_68 = arith.constant 0 : index
    %c0_69 = arith.constant 0 : index
    %156 = vector.load %arg3[%c1_67, %c0_68, %c0_69] : memref<2x32x384xbf16, #tpu.memory_space<vmem>>, vector<1x32x384xbf16>
    %157 = vector.shape_cast %156 : vector<1x32x384xbf16> to vector<32x384xbf16>
    %cst_70 = arith.constant dense<0.000000e+00> : vector<8x384xf32>
    %158 = tpu.matmul %148, %157, %cst_70 {dimension_numbers = #tpu.dot_dimension_numbers<[1], [0], [0], [1], [0, 0, 1, 1], [], []>} : vector<8x32xbf16>, vector<32x384xbf16>, vector<8x384xf32> -> vector<8x384xf32>
    %159 = vector.extract_strided_slice %155 {offsets = [0, 0], sizes = [8, 128], strides = [1, 1]} : vector<8x384xf32> to vector<8x128xf32>
    %160 = vector.extract_strided_slice %158 {offsets = [0, 0], sizes = [8, 128], strides = [1, 1]} : vector<8x384xf32> to vector<8x128xf32>
    %161 = arith.addf %159, %160 : vector<8x128xf32>
    %162 = arith.negf %161 : vector<8x128xf32>
    %163 = math.exp %162 : vector<8x128xf32>
    %cst_71 = arith.constant 1.000000e+00 : f32
    %164 = vector.broadcast %cst_71 : f32 to vector<8x128xf32>
    %165 = arith.addf %164, %163 : vector<8x128xf32>
    %166 = arith.divf %164, %165 : vector<8x128xf32>
    %167 = vector.extract_strided_slice %155 {offsets = [0, 128], sizes = [8, 128], strides = [1, 1]} : vector<8x384xf32> to vector<8x128xf32>
    %168 = vector.extract_strided_slice %158 {offsets = [0, 128], sizes = [8, 128], strides = [1, 1]} : vector<8x384xf32> to vector<8x128xf32>
    %169 = arith.addf %167, %168 : vector<8x128xf32>
    %170 = arith.negf %169 : vector<8x128xf32>
    %171 = math.exp %170 : vector<8x128xf32>
    %cst_72 = arith.constant 1.000000e+00 : f32
    %172 = vector.broadcast %cst_72 : f32 to vector<8x128xf32>
    %173 = arith.addf %172, %171 : vector<8x128xf32>
    %174 = arith.divf %172, %173 : vector<8x128xf32>
    %175 = vector.extract_strided_slice %155 {offsets = [0, 256], sizes = [8, 128], strides = [1, 1]} : vector<8x384xf32> to vector<8x128xf32>
    %176 = vector.extract_strided_slice %158 {offsets = [0, 256], sizes = [8, 128], strides = [1, 1]} : vector<8x384xf32> to vector<8x128xf32>
    %c1_73 = arith.constant 1 : index
    %c0_74 = arith.constant 0 : index
    %c0_75 = arith.constant 0 : index
    %177 = vector.load %arg5[%c1_73, %c0_74, %c0_75] : memref<2x1x128xf32, #tpu.memory_space<vmem>>, vector<1x1x128xf32>
    %178 = vector.shape_cast %177 : vector<1x1x128xf32> to vector<1x128xf32>
    %179 = vector.broadcast %178 : vector<1x128xf32> to vector<8x128xf32>
    %180 = arith.addf %176, %179 : vector<8x128xf32>
    %181 = arith.mulf %166, %180 : vector<8x128xf32>
    %182 = arith.addf %175, %181 : vector<8x128xf32>
    %183 = math.tanh %182 : vector<8x128xf32>
    %cst_76 = arith.constant 1.000000e+00 : f32
    %184 = vector.broadcast %cst_76 : f32 to vector<8x128xf32>
    %185 = arith.subf %184, %174 : vector<8x128xf32>
    %186 = arith.mulf %185, %183 : vector<8x128xf32>
    %187 = arith.mulf %174, %100 : vector<8x128xf32>
    %188 = arith.addf %186, %187 : vector<8x128xf32>
    %c0_77 = arith.constant 0 : index
    %c0_78 = arith.constant 0 : index
    %c0_79 = arith.constant 0 : index
    %189 = vector.load %arg7[%c0_77, %c0_78, %c0_79] : memref<6x8x128xf32, #tpu.memory_space<vmem>>, vector<1x8x128xf32>
    %190 = vector.shape_cast %189 : vector<1x8x128xf32> to vector<8x128xf32>
    %191 = vector.shape_cast %188 : vector<8x128xf32> to vector<1x8x128xf32>
    tpu.vector_store %arg7[%c0_77, %c0_78, %c0_79], %191 {strides = array<i32>} : memref<6x8x128xf32, #tpu.memory_space<vmem>>, vector<1x8x128xf32>,
    %c1_80 = arith.constant 1 : index
    %c0_81 = arith.constant 0 : index
    %c0_82 = arith.constant 0 : index
    %192 = vector.load %arg0[%c1_80, %c0_81, %c0_82] : memref<6x8x1xi32, #tpu.memory_space<vmem>>, vector<1x8x1xi32>
    %193 = vector.shape_cast %192 : vector<1x8x1xi32> to vector<8x1xi32>
    %194 = vector.broadcast %193 : vector<8x1xi32> to vector<8x64xi32>
    %195 = arith.cmpi eq, %0, %194 : vector<8x64xi32>
    %196 = arith.extui %195 : vector<8x64xi1> to vector<8x64xi32>
    %197 = arith.sitofp %196 : vector<8x64xi32> to vector<8x64xf32>
    %198 = arith.truncf %197 : vector<8x64xf32> to vector<8x64xbf16>
    %c0_83 = arith.constant 0 : index
    %c0_84 = arith.constant 0 : index
    %199 = vector.load %arg1[%c0_83, %c0_84] : memref<64x32xbf16, #tpu.memory_space<vmem>>, vector<64x32xbf16>
    %cst_85 = arith.constant dense<0.000000e+00> : vector<8x32xf32>
    %200 = tpu.matmul %198, %199, %cst_85 {dimension_numbers = #tpu.dot_dimension_numbers<[1], [0], [0], [1], [0, 0, 1, 1], [], []>} : vector<8x64xbf16>, vector<64x32xbf16>, vector<8x32xf32> -> vector<8x32xf32>
    %201 = arith.truncf %200 : vector<8x32xf32> to vector<8x32xbf16>
    %202 = vector.extract_strided_slice %144 {offsets = [0, 0], sizes = [8, 32], strides = [1, 1]} : vector<8x128xf32> to vector<8x32xf32>
    %203 = arith.truncf %202 : vector<8x32xf32> to vector<8x32xbf16>
    %c0_86 = arith.constant 0 : index
    %c0_87 = arith.constant 0 : index
    %c0_88 = arith.constant 0 : index
    %204 = vector.load %arg2[%c0_86, %c0_87, %c0_88] : memref<2x32x384xbf16, #tpu.memory_space<vmem>>, vector<1x32x384xbf16>
    %205 = vector.shape_cast %204 : vector<1x32x384xbf16> to vector<32x384xbf16>
    %cst_89 = arith.constant dense<0.000000e+00> : vector<8x384xf32>
    %206 = tpu.matmul %201, %205, %cst_89 {dimension_numbers = #tpu.dot_dimension_numbers<[1], [0], [0], [1], [0, 0, 1, 1], [], []>} : vector<8x32xbf16>, vector<32x384xbf16>, vector<8x384xf32> -> vector<8x384xf32>
    %c0_90 = arith.constant 0 : index
    %c0_91 = arith.constant 0 : index
    %c0_92 = arith.constant 0 : index
    %207 = vector.load %arg4[%c0_90, %c0_91, %c0_92] : memref<2x1x384xf32, #tpu.memory_space<vmem>>, vector<1x1x384xf32>
    %208 = vector.shape_cast %207 : vector<1x1x384xf32> to vector<1x384xf32>
    %209 = vector.broadcast %208 : vector<1x384xf32> to vector<8x384xf32>
    %210 = arith.addf %206, %209 : vector<8x384xf32>
    %c0_93 = arith.constant 0 : index
    %c0_94 = arith.constant 0 : index
    %c0_95 = arith.constant 0 : index
    %211 = vector.load %arg3[%c0_93, %c0_94, %c0_95] : memref<2x32x384xbf16, #tpu.memory_space<vmem>>, vector<1x32x384xbf16>
    %212 = vector.shape_cast %211 : vector<1x32x384xbf16> to vector<32x384xbf16>
    %cst_96 = arith.constant dense<0.000000e+00> : vector<8x384xf32>
    %213 = tpu.matmul %203, %212, %cst_96 {dimension_numbers = #tpu.dot_dimension_numbers<[1], [0], [0], [1], [0, 0, 1, 1], [], []>} : vector<8x32xbf16>, vector<32x384xbf16>, vector<8x384xf32> -> vector<8x384xf32>
    %214 = vector.extract_strided_slice %210 {offsets = [0, 0], sizes = [8, 128], strides = [1, 1]} : vector<8x384xf32> to vector<8x128xf32>
    %215 = vector.extract_strided_slice %213 {offsets = [0, 0], sizes = [8, 128], strides = [1, 1]} : vector<8x384xf32> to vector<8x128xf32>
    %216 = arith.addf %214, %215 : vector<8x128xf32>
    %217 = arith.negf %216 : vector<8x128xf32>
    %218 = math.exp %217 : vector<8x128xf32>
    %cst_97 = arith.constant 1.000000e+00 : f32
    %219 = vector.broadcast %cst_97 : f32 to vector<8x128xf32>
    %220 = arith.addf %219, %218 : vector<8x128xf32>
    %221 = arith.divf %219, %220 : vector<8x128xf32>
    %222 = vector.extract_strided_slice %210 {offsets = [0, 128], sizes = [8, 128], strides = [1, 1]} : vector<8x384xf32> to vector<8x128xf32>
    %223 = vector.extract_strided_slice %213 {offsets = [0, 128], sizes = [8, 128], strides = [1, 1]} : vector<8x384xf32> to vector<8x128xf32>
    %224 = arith.addf %222, %223 : vector<8x128xf32>
    %225 = arith.negf %224 : vector<8x128xf32>
    %226 = math.exp %225 : vector<8x128xf32>
    %cst_98 = arith.constant 1.000000e+00 : f32
    %227 = vector.broadcast %cst_98 : f32 to vector<8x128xf32>
    %228 = arith.addf %227, %226 : vector<8x128xf32>
    %229 = arith.divf %227, %228 : vector<8x128xf32>
    %230 = vector.extract_strided_slice %210 {offsets = [0, 256], sizes = [8, 128], strides = [1, 1]} : vector<8x384xf32> to vector<8x128xf32>
    %231 = vector.extract_strided_slice %213 {offsets = [0, 256], sizes = [8, 128], strides = [1, 1]} : vector<8x384xf32> to vector<8x128xf32>
    %c0_99 = arith.constant 0 : index
    %c0_100 = arith.constant 0 : index
    %c0_101 = arith.constant 0 : index
    %232 = vector.load %arg5[%c0_99, %c0_100, %c0_101] : memref<2x1x128xf32, #tpu.memory_space<vmem>>, vector<1x1x128xf32>
    %233 = vector.shape_cast %232 : vector<1x1x128xf32> to vector<1x128xf32>
    %234 = vector.broadcast %233 : vector<1x128xf32> to vector<8x128xf32>
    %235 = arith.addf %231, %234 : vector<8x128xf32>
    %236 = arith.mulf %221, %235 : vector<8x128xf32>
    %237 = arith.addf %230, %236 : vector<8x128xf32>
    %238 = math.tanh %237 : vector<8x128xf32>
    %cst_102 = arith.constant 1.000000e+00 : f32
    %239 = vector.broadcast %cst_102 : f32 to vector<8x128xf32>
    %240 = arith.subf %239, %229 : vector<8x128xf32>
    %241 = arith.mulf %240, %238 : vector<8x128xf32>
    %242 = arith.mulf %229, %144 : vector<8x128xf32>
    %243 = arith.addf %241, %242 : vector<8x128xf32>
    %244 = vector.extract_strided_slice %243 {offsets = [0, 0], sizes = [8, 32], strides = [1, 1]} : vector<8x128xf32> to vector<8x32xf32>
    %245 = arith.truncf %244 : vector<8x32xf32> to vector<8x32xbf16>
    %246 = vector.extract_strided_slice %188 {offsets = [0, 0], sizes = [8, 32], strides = [1, 1]} : vector<8x128xf32> to vector<8x32xf32>
    %247 = arith.truncf %246 : vector<8x32xf32> to vector<8x32xbf16>
    %c1_103 = arith.constant 1 : index
    %c0_104 = arith.constant 0 : index
    %c0_105 = arith.constant 0 : index
    %248 = vector.load %arg2[%c1_103, %c0_104, %c0_105] : memref<2x32x384xbf16, #tpu.memory_space<vmem>>, vector<1x32x384xbf16>
    %249 = vector.shape_cast %248 : vector<1x32x384xbf16> to vector<32x384xbf16>
    %cst_106 = arith.constant dense<0.000000e+00> : vector<8x384xf32>
    %250 = tpu.matmul %245, %249, %cst_106 {dimension_numbers = #tpu.dot_dimension_numbers<[1], [0], [0], [1], [0, 0, 1, 1], [], []>} : vector<8x32xbf16>, vector<32x384xbf16>, vector<8x384xf32> -> vector<8x384xf32>
    %c1_107 = arith.constant 1 : index
    %c0_108 = arith.constant 0 : index
    %c0_109 = arith.constant 0 : index
    %251 = vector.load %arg4[%c1_107, %c0_108, %c0_109] : memref<2x1x384xf32, #tpu.memory_space<vmem>>, vector<1x1x384xf32>
    %252 = vector.shape_cast %251 : vector<1x1x384xf32> to vector<1x384xf32>
    %253 = vector.broadcast %252 : vector<1x384xf32> to vector<8x384xf32>
    %254 = arith.addf %250, %253 : vector<8x384xf32>
    %c1_110 = arith.constant 1 : index
    %c0_111 = arith.constant 0 : index
    %c0_112 = arith.constant 0 : index
    %255 = vector.load %arg3[%c1_110, %c0_111, %c0_112] : memref<2x32x384xbf16, #tpu.memory_space<vmem>>, vector<1x32x384xbf16>
    %256 = vector.shape_cast %255 : vector<1x32x384xbf16> to vector<32x384xbf16>
    %cst_113 = arith.constant dense<0.000000e+00> : vector<8x384xf32>
    %257 = tpu.matmul %247, %256, %cst_113 {dimension_numbers = #tpu.dot_dimension_numbers<[1], [0], [0], [1], [0, 0, 1, 1], [], []>} : vector<8x32xbf16>, vector<32x384xbf16>, vector<8x384xf32> -> vector<8x384xf32>
    %258 = vector.extract_strided_slice %254 {offsets = [0, 0], sizes = [8, 128], strides = [1, 1]} : vector<8x384xf32> to vector<8x128xf32>
    %259 = vector.extract_strided_slice %257 {offsets = [0, 0], sizes = [8, 128], strides = [1, 1]} : vector<8x384xf32> to vector<8x128xf32>
    %260 = arith.addf %258, %259 : vector<8x128xf32>
    %261 = arith.negf %260 : vector<8x128xf32>
    %262 = math.exp %261 : vector<8x128xf32>
    %cst_114 = arith.constant 1.000000e+00 : f32
    %263 = vector.broadcast %cst_114 : f32 to vector<8x128xf32>
    %264 = arith.addf %263, %262 : vector<8x128xf32>
    %265 = arith.divf %263, %264 : vector<8x128xf32>
    %266 = vector.extract_strided_slice %254 {offsets = [0, 128], sizes = [8, 128], strides = [1, 1]} : vector<8x384xf32> to vector<8x128xf32>
    %267 = vector.extract_strided_slice %257 {offsets = [0, 128], sizes = [8, 128], strides = [1, 1]} : vector<8x384xf32> to vector<8x128xf32>
    %268 = arith.addf %266, %267 : vector<8x128xf32>
    %269 = arith.negf %268 : vector<8x128xf32>
    %270 = math.exp %269 : vector<8x128xf32>
    %cst_115 = arith.constant 1.000000e+00 : f32
    %271 = vector.broadcast %cst_115 : f32 to vector<8x128xf32>
    %272 = arith.addf %271, %270 : vector<8x128xf32>
    %273 = arith.divf %271, %272 : vector<8x128xf32>
    %274 = vector.extract_strided_slice %254 {offsets = [0, 256], sizes = [8, 128], strides = [1, 1]} : vector<8x384xf32> to vector<8x128xf32>
    %275 = vector.extract_strided_slice %257 {offsets = [0, 256], sizes = [8, 128], strides = [1, 1]} : vector<8x384xf32> to vector<8x128xf32>
    %c1_116 = arith.constant 1 : index
    %c0_117 = arith.constant 0 : index
    %c0_118 = arith.constant 0 : index
    %276 = vector.load %arg5[%c1_116, %c0_117, %c0_118] : memref<2x1x128xf32, #tpu.memory_space<vmem>>, vector<1x1x128xf32>
    %277 = vector.shape_cast %276 : vector<1x1x128xf32> to vector<1x128xf32>
    %278 = vector.broadcast %277 : vector<1x128xf32> to vector<8x128xf32>
    %279 = arith.addf %275, %278 : vector<8x128xf32>
    %280 = arith.mulf %265, %279 : vector<8x128xf32>
    %281 = arith.addf %274, %280 : vector<8x128xf32>
    %282 = math.tanh %281 : vector<8x128xf32>
    %cst_119 = arith.constant 1.000000e+00 : f32
    %283 = vector.broadcast %cst_119 : f32 to vector<8x128xf32>
    %284 = arith.subf %283, %273 : vector<8x128xf32>
    %285 = arith.mulf %284, %282 : vector<8x128xf32>
    %286 = arith.mulf %273, %188 : vector<8x128xf32>
    %287 = arith.addf %285, %286 : vector<8x128xf32>
    %288 = vector.extract_strided_slice %287 {offsets = [0, 0], sizes = [8, 32], strides = [1, 1]} : vector<8x128xf32> to vector<8x32xf32>
    %289 = arith.truncf %288 : vector<8x32xf32> to vector<8x32xbf16>
    %290 = vector.extract_strided_slice %243 {offsets = [0, 0], sizes = [8, 32], strides = [1, 1]} : vector<8x128xf32> to vector<8x32xf32>
    %291 = arith.truncf %290 : vector<8x32xf32> to vector<8x32xbf16>
    %c0_120 = arith.constant 0 : index
    %c0_121 = arith.constant 0 : index
    %c0_122 = arith.constant 0 : index
    %292 = vector.load %arg2[%c0_120, %c0_121, %c0_122] : memref<2x32x384xbf16, #tpu.memory_space<vmem>>, vector<1x32x384xbf16>
    %293 = vector.shape_cast %292 : vector<1x32x384xbf16> to vector<32x384xbf16>
    %cst_123 = arith.constant dense<0.000000e+00> : vector<8x384xf32>
    %294 = tpu.matmul %289, %293, %cst_123 {dimension_numbers = #tpu.dot_dimension_numbers<[1], [0], [0], [1], [0, 0, 1, 1], [], []>} : vector<8x32xbf16>, vector<32x384xbf16>, vector<8x384xf32> -> vector<8x384xf32>
    %c0_124 = arith.constant 0 : index
    %c0_125 = arith.constant 0 : index
    %c0_126 = arith.constant 0 : index
    %295 = vector.load %arg4[%c0_124, %c0_125, %c0_126] : memref<2x1x384xf32, #tpu.memory_space<vmem>>, vector<1x1x384xf32>
    %296 = vector.shape_cast %295 : vector<1x1x384xf32> to vector<1x384xf32>
    %297 = vector.broadcast %296 : vector<1x384xf32> to vector<8x384xf32>
    %298 = arith.addf %294, %297 : vector<8x384xf32>
    %c0_127 = arith.constant 0 : index
    %c0_128 = arith.constant 0 : index
    %c0_129 = arith.constant 0 : index
    %299 = vector.load %arg3[%c0_127, %c0_128, %c0_129] : memref<2x32x384xbf16, #tpu.memory_space<vmem>>, vector<1x32x384xbf16>
    %300 = vector.shape_cast %299 : vector<1x32x384xbf16> to vector<32x384xbf16>
    %cst_130 = arith.constant dense<0.000000e+00> : vector<8x384xf32>
    %301 = tpu.matmul %291, %300, %cst_130 {dimension_numbers = #tpu.dot_dimension_numbers<[1], [0], [0], [1], [0, 0, 1, 1], [], []>} : vector<8x32xbf16>, vector<32x384xbf16>, vector<8x384xf32> -> vector<8x384xf32>
    %302 = vector.extract_strided_slice %298 {offsets = [0, 0], sizes = [8, 128], strides = [1, 1]} : vector<8x384xf32> to vector<8x128xf32>
    %303 = vector.extract_strided_slice %301 {offsets = [0, 0], sizes = [8, 128], strides = [1, 1]} : vector<8x384xf32> to vector<8x128xf32>
    %304 = arith.addf %302, %303 : vector<8x128xf32>
    %305 = arith.negf %304 : vector<8x128xf32>
    %306 = math.exp %305 : vector<8x128xf32>
    %cst_131 = arith.constant 1.000000e+00 : f32
    %307 = vector.broadcast %cst_131 : f32 to vector<8x128xf32>
    %308 = arith.addf %307, %306 : vector<8x128xf32>
    %309 = arith.divf %307, %308 : vector<8x128xf32>
    %310 = vector.extract_strided_slice %298 {offsets = [0, 128], sizes = [8, 128], strides = [1, 1]} : vector<8x384xf32> to vector<8x128xf32>
    %311 = vector.extract_strided_slice %301 {offsets = [0, 128], sizes = [8, 128], strides = [1, 1]} : vector<8x384xf32> to vector<8x128xf32>
    %312 = arith.addf %310, %311 : vector<8x128xf32>
    %313 = arith.negf %312 : vector<8x128xf32>
    %314 = math.exp %313 : vector<8x128xf32>
    %cst_132 = arith.constant 1.000000e+00 : f32
    %315 = vector.broadcast %cst_132 : f32 to vector<8x128xf32>
    %316 = arith.addf %315, %314 : vector<8x128xf32>
    %317 = arith.divf %315, %316 : vector<8x128xf32>
    %318 = vector.extract_strided_slice %298 {offsets = [0, 256], sizes = [8, 128], strides = [1, 1]} : vector<8x384xf32> to vector<8x128xf32>
    %319 = vector.extract_strided_slice %301 {offsets = [0, 256], sizes = [8, 128], strides = [1, 1]} : vector<8x384xf32> to vector<8x128xf32>
    %c0_133 = arith.constant 0 : index
    %c0_134 = arith.constant 0 : index
    %c0_135 = arith.constant 0 : index
    %320 = vector.load %arg5[%c0_133, %c0_134, %c0_135] : memref<2x1x128xf32, #tpu.memory_space<vmem>>, vector<1x1x128xf32>
    %321 = vector.shape_cast %320 : vector<1x1x128xf32> to vector<1x128xf32>
    %322 = vector.broadcast %321 : vector<1x128xf32> to vector<8x128xf32>
    %323 = arith.addf %319, %322 : vector<8x128xf32>
    %324 = arith.mulf %309, %323 : vector<8x128xf32>
    %325 = arith.addf %318, %324 : vector<8x128xf32>
    %326 = math.tanh %325 : vector<8x128xf32>
    %cst_136 = arith.constant 1.000000e+00 : f32
    %327 = vector.broadcast %cst_136 : f32 to vector<8x128xf32>
    %328 = arith.subf %327, %317 : vector<8x128xf32>
    %329 = arith.mulf %328, %326 : vector<8x128xf32>
    %330 = arith.mulf %317, %243 : vector<8x128xf32>
    %331 = arith.addf %329, %330 : vector<8x128xf32>
    %332 = vector.extract_strided_slice %331 {offsets = [0, 0], sizes = [8, 32], strides = [1, 1]} : vector<8x128xf32> to vector<8x32xf32>
    %333 = arith.truncf %332 : vector<8x32xf32> to vector<8x32xbf16>
    %334 = vector.extract_strided_slice %287 {offsets = [0, 0], sizes = [8, 32], strides = [1, 1]} : vector<8x128xf32> to vector<8x32xf32>
    %335 = arith.truncf %334 : vector<8x32xf32> to vector<8x32xbf16>
    %c1_137 = arith.constant 1 : index
    %c0_138 = arith.constant 0 : index
    %c0_139 = arith.constant 0 : index
    %336 = vector.load %arg2[%c1_137, %c0_138, %c0_139] : memref<2x32x384xbf16, #tpu.memory_space<vmem>>, vector<1x32x384xbf16>
    %337 = vector.shape_cast %336 : vector<1x32x384xbf16> to vector<32x384xbf16>
    %cst_140 = arith.constant dense<0.000000e+00> : vector<8x384xf32>
    %338 = tpu.matmul %333, %337, %cst_140 {dimension_numbers = #tpu.dot_dimension_numbers<[1], [0], [0], [1], [0, 0, 1, 1], [], []>} : vector<8x32xbf16>, vector<32x384xbf16>, vector<8x384xf32> -> vector<8x384xf32>
    %c1_141 = arith.constant 1 : index
    %c0_142 = arith.constant 0 : index
    %c0_143 = arith.constant 0 : index
    %339 = vector.load %arg4[%c1_141, %c0_142, %c0_143] : memref<2x1x384xf32, #tpu.memory_space<vmem>>, vector<1x1x384xf32>
    %340 = vector.shape_cast %339 : vector<1x1x384xf32> to vector<1x384xf32>
    %341 = vector.broadcast %340 : vector<1x384xf32> to vector<8x384xf32>
    %342 = arith.addf %338, %341 : vector<8x384xf32>
    %c1_144 = arith.constant 1 : index
    %c0_145 = arith.constant 0 : index
    %c0_146 = arith.constant 0 : index
    %343 = vector.load %arg3[%c1_144, %c0_145, %c0_146] : memref<2x32x384xbf16, #tpu.memory_space<vmem>>, vector<1x32x384xbf16>
    %344 = vector.shape_cast %343 : vector<1x32x384xbf16> to vector<32x384xbf16>
    %cst_147 = arith.constant dense<0.000000e+00> : vector<8x384xf32>
    %345 = tpu.matmul %335, %344, %cst_147 {dimension_numbers = #tpu.dot_dimension_numbers<[1], [0], [0], [1], [0, 0, 1, 1], [], []>} : vector<8x32xbf16>, vector<32x384xbf16>, vector<8x384xf32> -> vector<8x384xf32>
    %346 = vector.extract_strided_slice %342 {offsets = [0, 0], sizes = [8, 128], strides = [1, 1]} : vector<8x384xf32> to vector<8x128xf32>
    %347 = vector.extract_strided_slice %345 {offsets = [0, 0], sizes = [8, 128], strides = [1, 1]} : vector<8x384xf32> to vector<8x128xf32>
    %348 = arith.addf %346, %347 : vector<8x128xf32>
    %349 = arith.negf %348 : vector<8x128xf32>
    %350 = math.exp %349 : vector<8x128xf32>
    %cst_148 = arith.constant 1.000000e+00 : f32
    %351 = vector.broadcast %cst_148 : f32 to vector<8x128xf32>
    %352 = arith.addf %351, %350 : vector<8x128xf32>
    %353 = arith.divf %351, %352 : vector<8x128xf32>
    %354 = vector.extract_strided_slice %342 {offsets = [0, 128], sizes = [8, 128], strides = [1, 1]} : vector<8x384xf32> to vector<8x128xf32>
    %355 = vector.extract_strided_slice %345 {offsets = [0, 128], sizes = [8, 128], strides = [1, 1]} : vector<8x384xf32> to vector<8x128xf32>
    %356 = arith.addf %354, %355 : vector<8x128xf32>
    %357 = arith.negf %356 : vector<8x128xf32>
    %358 = math.exp %357 : vector<8x128xf32>
    %cst_149 = arith.constant 1.000000e+00 : f32
    %359 = vector.broadcast %cst_149 : f32 to vector<8x128xf32>
    %360 = arith.addf %359, %358 : vector<8x128xf32>
    %361 = arith.divf %359, %360 : vector<8x128xf32>
    %362 = vector.extract_strided_slice %342 {offsets = [0, 256], sizes = [8, 128], strides = [1, 1]} : vector<8x384xf32> to vector<8x128xf32>
    %363 = vector.extract_strided_slice %345 {offsets = [0, 256], sizes = [8, 128], strides = [1, 1]} : vector<8x384xf32> to vector<8x128xf32>
    %c1_150 = arith.constant 1 : index
    %c0_151 = arith.constant 0 : index
    %c0_152 = arith.constant 0 : index
    %364 = vector.load %arg5[%c1_150, %c0_151, %c0_152] : memref<2x1x128xf32, #tpu.memory_space<vmem>>, vector<1x1x128xf32>
    %365 = vector.shape_cast %364 : vector<1x1x128xf32> to vector<1x128xf32>
    %366 = vector.broadcast %365 : vector<1x128xf32> to vector<8x128xf32>
    %367 = arith.addf %363, %366 : vector<8x128xf32>
    %368 = arith.mulf %353, %367 : vector<8x128xf32>
    %369 = arith.addf %362, %368 : vector<8x128xf32>
    %370 = math.tanh %369 : vector<8x128xf32>
    %cst_153 = arith.constant 1.000000e+00 : f32
    %371 = vector.broadcast %cst_153 : f32 to vector<8x128xf32>
    %372 = arith.subf %371, %361 : vector<8x128xf32>
    %373 = arith.mulf %372, %370 : vector<8x128xf32>
    %374 = arith.mulf %361, %287 : vector<8x128xf32>
    %375 = arith.addf %373, %374 : vector<8x128xf32>
    %c1_154 = arith.constant 1 : index
    %c0_155 = arith.constant 0 : index
    %c0_156 = arith.constant 0 : index
    %376 = vector.load %arg7[%c1_154, %c0_155, %c0_156] : memref<6x8x128xf32, #tpu.memory_space<vmem>>, vector<1x8x128xf32>
    %377 = vector.shape_cast %376 : vector<1x8x128xf32> to vector<8x128xf32>
    %378 = vector.shape_cast %375 : vector<8x128xf32> to vector<1x8x128xf32>
    tpu.vector_store %arg7[%c1_154, %c0_155, %c0_156], %378 {strides = array<i32>} : memref<6x8x128xf32, #tpu.memory_space<vmem>>, vector<1x8x128xf32>,
    %c2 = arith.constant 2 : index
    %c0_157 = arith.constant 0 : index
    %c0_158 = arith.constant 0 : index
    %379 = vector.load %arg0[%c2, %c0_157, %c0_158] : memref<6x8x1xi32, #tpu.memory_space<vmem>>, vector<1x8x1xi32>
    %380 = vector.shape_cast %379 : vector<1x8x1xi32> to vector<8x1xi32>
    %381 = vector.broadcast %380 : vector<8x1xi32> to vector<8x64xi32>
    %382 = arith.cmpi eq, %0, %381 : vector<8x64xi32>
    %383 = arith.extui %382 : vector<8x64xi1> to vector<8x64xi32>
    %384 = arith.sitofp %383 : vector<8x64xi32> to vector<8x64xf32>
    %385 = arith.truncf %384 : vector<8x64xf32> to vector<8x64xbf16>
    %c0_159 = arith.constant 0 : index
    %c0_160 = arith.constant 0 : index
    %386 = vector.load %arg1[%c0_159, %c0_160] : memref<64x32xbf16, #tpu.memory_space<vmem>>, vector<64x32xbf16>
    %cst_161 = arith.constant dense<0.000000e+00> : vector<8x32xf32>
    %387 = tpu.matmul %385, %386, %cst_161 {dimension_numbers = #tpu.dot_dimension_numbers<[1], [0], [0], [1], [0, 0, 1, 1], [], []>} : vector<8x64xbf16>, vector<64x32xbf16>, vector<8x32xf32> -> vector<8x32xf32>
    %388 = arith.truncf %387 : vector<8x32xf32> to vector<8x32xbf16>
    %389 = vector.extract_strided_slice %331 {offsets = [0, 0], sizes = [8, 32], strides = [1, 1]} : vector<8x128xf32> to vector<8x32xf32>
    %390 = arith.truncf %389 : vector<8x32xf32> to vector<8x32xbf16>
    %c0_162 = arith.constant 0 : index
    %c0_163 = arith.constant 0 : index
    %c0_164 = arith.constant 0 : index
    %391 = vector.load %arg2[%c0_162, %c0_163, %c0_164] : memref<2x32x384xbf16, #tpu.memory_space<vmem>>, vector<1x32x384xbf16>
    %392 = vector.shape_cast %391 : vector<1x32x384xbf16> to vector<32x384xbf16>
    %cst_165 = arith.constant dense<0.000000e+00> : vector<8x384xf32>
    %393 = tpu.matmul %388, %392, %cst_165 {dimension_numbers = #tpu.dot_dimension_numbers<[1], [0], [0], [1], [0, 0, 1, 1], [], []>} : vector<8x32xbf16>, vector<32x384xbf16>, vector<8x384xf32> -> vector<8x384xf32>
    %c0_166 = arith.constant 0 : index
    %c0_167 = arith.constant 0 : index
    %c0_168 = arith.constant 0 : index
    %394 = vector.load %arg4[%c0_166, %c0_167, %c0_168] : memref<2x1x384xf32, #tpu.memory_space<vmem>>, vector<1x1x384xf32>
    %395 = vector.shape_cast %394 : vector<1x1x384xf32> to vector<1x384xf32>
    %396 = vector.broadcast %395 : vector<1x384xf32> to vector<8x384xf32>
    %397 = arith.addf %393, %396 : vector<8x384xf32>
    %c0_169 = arith.constant 0 : index
    %c0_170 = arith.constant 0 : index
    %c0_171 = arith.constant 0 : index
    %398 = vector.load %arg3[%c0_169, %c0_170, %c0_171] : memref<2x32x384xbf16, #tpu.memory_space<vmem>>, vector<1x32x384xbf16>
    %399 = vector.shape_cast %398 : vector<1x32x384xbf16> to vector<32x384xbf16>
    %cst_172 = arith.constant dense<0.000000e+00> : vector<8x384xf32>
    %400 = tpu.matmul %390, %399, %cst_172 {dimension_numbers = #tpu.dot_dimension_numbers<[1], [0], [0], [1], [0, 0, 1, 1], [], []>} : vector<8x32xbf16>, vector<32x384xbf16>, vector<8x384xf32> -> vector<8x384xf32>
    %401 = vector.extract_strided_slice %397 {offsets = [0, 0], sizes = [8, 128], strides = [1, 1]} : vector<8x384xf32> to vector<8x128xf32>
    %402 = vector.extract_strided_slice %400 {offsets = [0, 0], sizes = [8, 128], strides = [1, 1]} : vector<8x384xf32> to vector<8x128xf32>
    %403 = arith.addf %401, %402 : vector<8x128xf32>
    %404 = arith.negf %403 : vector<8x128xf32>
    %405 = math.exp %404 : vector<8x128xf32>
    %cst_173 = arith.constant 1.000000e+00 : f32
    %406 = vector.broadcast %cst_173 : f32 to vector<8x128xf32>
    %407 = arith.addf %406, %405 : vector<8x128xf32>
    %408 = arith.divf %406, %407 : vector<8x128xf32>
    %409 = vector.extract_strided_slice %397 {offsets = [0, 128], sizes = [8, 128], strides = [1, 1]} : vector<8x384xf32> to vector<8x128xf32>
    %410 = vector.extract_strided_slice %400 {offsets = [0, 128], sizes = [8, 128], strides = [1, 1]} : vector<8x384xf32> to vector<8x128xf32>
    %411 = arith.addf %409, %410 : vector<8x128xf32>
    %412 = arith.negf %411 : vector<8x128xf32>
    %413 = math.exp %412 : vector<8x128xf32>
    %cst_174 = arith.constant 1.000000e+00 : f32
    %414 = vector.broadcast %cst_174 : f32 to vector<8x128xf32>
    %415 = arith.addf %414, %413 : vector<8x128xf32>
    %416 = arith.divf %414, %415 : vector<8x128xf32>
    %417 = vector.extract_strided_slice %397 {offsets = [0, 256], sizes = [8, 128], strides = [1, 1]} : vector<8x384xf32> to vector<8x128xf32>
    %418 = vector.extract_strided_slice %400 {offsets = [0, 256], sizes = [8, 128], strides = [1, 1]} : vector<8x384xf32> to vector<8x128xf32>
    %c0_175 = arith.constant 0 : index
    %c0_176 = arith.constant 0 : index
    %c0_177 = arith.constant 0 : index
    %419 = vector.load %arg5[%c0_175, %c0_176, %c0_177] : memref<2x1x128xf32, #tpu.memory_space<vmem>>, vector<1x1x128xf32>
    %420 = vector.shape_cast %419 : vector<1x1x128xf32> to vector<1x128xf32>
    %421 = vector.broadcast %420 : vector<1x128xf32> to vector<8x128xf32>
    %422 = arith.addf %418, %421 : vector<8x128xf32>
    %423 = arith.mulf %408, %422 : vector<8x128xf32>
    %424 = arith.addf %417, %423 : vector<8x128xf32>
    %425 = math.tanh %424 : vector<8x128xf32>
    %cst_178 = arith.constant 1.000000e+00 : f32
    %426 = vector.broadcast %cst_178 : f32 to vector<8x128xf32>
    %427 = arith.subf %426, %416 : vector<8x128xf32>
    %428 = arith.mulf %427, %425 : vector<8x128xf32>
    %429 = arith.mulf %416, %331 : vector<8x128xf32>
    %430 = arith.addf %428, %429 : vector<8x128xf32>
    %431 = vector.extract_strided_slice %430 {offsets = [0, 0], sizes = [8, 32], strides = [1, 1]} : vector<8x128xf32> to vector<8x32xf32>
    %432 = arith.truncf %431 : vector<8x32xf32> to vector<8x32xbf16>
    %433 = vector.extract_strided_slice %375 {offsets = [0, 0], sizes = [8, 32], strides = [1, 1]} : vector<8x128xf32> to vector<8x32xf32>
    %434 = arith.truncf %433 : vector<8x32xf32> to vector<8x32xbf16>
    %c1_179 = arith.constant 1 : index
    %c0_180 = arith.constant 0 : index
    %c0_181 = arith.constant 0 : index
    %435 = vector.load %arg2[%c1_179, %c0_180, %c0_181] : memref<2x32x384xbf16, #tpu.memory_space<vmem>>, vector<1x32x384xbf16>
    %436 = vector.shape_cast %435 : vector<1x32x384xbf16> to vector<32x384xbf16>
    %cst_182 = arith.constant dense<0.000000e+00> : vector<8x384xf32>
    %437 = tpu.matmul %432, %436, %cst_182 {dimension_numbers = #tpu.dot_dimension_numbers<[1], [0], [0], [1], [0, 0, 1, 1], [], []>} : vector<8x32xbf16>, vector<32x384xbf16>, vector<8x384xf32> -> vector<8x384xf32>
    %c1_183 = arith.constant 1 : index
    %c0_184 = arith.constant 0 : index
    %c0_185 = arith.constant 0 : index
    %438 = vector.load %arg4[%c1_183, %c0_184, %c0_185] : memref<2x1x384xf32, #tpu.memory_space<vmem>>, vector<1x1x384xf32>
    %439 = vector.shape_cast %438 : vector<1x1x384xf32> to vector<1x384xf32>
    %440 = vector.broadcast %439 : vector<1x384xf32> to vector<8x384xf32>
    %441 = arith.addf %437, %440 : vector<8x384xf32>
    %c1_186 = arith.constant 1 : index
    %c0_187 = arith.constant 0 : index
    %c0_188 = arith.constant 0 : index
    %442 = vector.load %arg3[%c1_186, %c0_187, %c0_188] : memref<2x32x384xbf16, #tpu.memory_space<vmem>>, vector<1x32x384xbf16>
    %443 = vector.shape_cast %442 : vector<1x32x384xbf16> to vector<32x384xbf16>
    %cst_189 = arith.constant dense<0.000000e+00> : vector<8x384xf32>
    %444 = tpu.matmul %434, %443, %cst_189 {dimension_numbers = #tpu.dot_dimension_numbers<[1], [0], [0], [1], [0, 0, 1, 1], [], []>} : vector<8x32xbf16>, vector<32x384xbf16>, vector<8x384xf32> -> vector<8x384xf32>
    %445 = vector.extract_strided_slice %441 {offsets = [0, 0], sizes = [8, 128], strides = [1, 1]} : vector<8x384xf32> to vector<8x128xf32>
    %446 = vector.extract_strided_slice %444 {offsets = [0, 0], sizes = [8, 128], strides = [1, 1]} : vector<8x384xf32> to vector<8x128xf32>
    %447 = arith.addf %445, %446 : vector<8x128xf32>
    %448 = arith.negf %447 : vector<8x128xf32>
    %449 = math.exp %448 : vector<8x128xf32>
    %cst_190 = arith.constant 1.000000e+00 : f32
    %450 = vector.broadcast %cst_190 : f32 to vector<8x128xf32>
    %451 = arith.addf %450, %449 : vector<8x128xf32>
    %452 = arith.divf %450, %451 : vector<8x128xf32>
    %453 = vector.extract_strided_slice %441 {offsets = [0, 128], sizes = [8, 128], strides = [1, 1]} : vector<8x384xf32> to vector<8x128xf32>
    %454 = vector.extract_strided_slice %444 {offsets = [0, 128], sizes = [8, 128], strides = [1, 1]} : vector<8x384xf32> to vector<8x128xf32>
    %455 = arith.addf %453, %454 : vector<8x128xf32>
    %456 = arith.negf %455 : vector<8x128xf32>
    %457 = math.exp %456 : vector<8x128xf32>
    %cst_191 = arith.constant 1.000000e+00 : f32
    %458 = vector.broadcast %cst_191 : f32 to vector<8x128xf32>
    %459 = arith.addf %458, %457 : vector<8x128xf32>
    %460 = arith.divf %458, %459 : vector<8x128xf32>
    %461 = vector.extract_strided_slice %441 {offsets = [0, 256], sizes = [8, 128], strides = [1, 1]} : vector<8x384xf32> to vector<8x128xf32>
    %462 = vector.extract_strided_slice %444 {offsets = [0, 256], sizes = [8, 128], strides = [1, 1]} : vector<8x384xf32> to vector<8x128xf32>
    %c1_192 = arith.constant 1 : index
    %c0_193 = arith.constant 0 : index
    %c0_194 = arith.constant 0 : index
    %463 = vector.load %arg5[%c1_192, %c0_193, %c0_194] : memref<2x1x128xf32, #tpu.memory_space<vmem>>, vector<1x1x128xf32>
    %464 = vector.shape_cast %463 : vector<1x1x128xf32> to vector<1x128xf32>
    %465 = vector.broadcast %464 : vector<1x128xf32> to vector<8x128xf32>
    %466 = arith.addf %462, %465 : vector<8x128xf32>
    %467 = arith.mulf %452, %466 : vector<8x128xf32>
    %468 = arith.addf %461, %467 : vector<8x128xf32>
    %469 = math.tanh %468 : vector<8x128xf32>
    %cst_195 = arith.constant 1.000000e+00 : f32
    %470 = vector.broadcast %cst_195 : f32 to vector<8x128xf32>
    %471 = arith.subf %470, %460 : vector<8x128xf32>
    %472 = arith.mulf %471, %469 : vector<8x128xf32>
    %473 = arith.mulf %460, %375 : vector<8x128xf32>
    %474 = arith.addf %472, %473 : vector<8x128xf32>
    %475 = vector.extract_strided_slice %474 {offsets = [0, 0], sizes = [8, 32], strides = [1, 1]} : vector<8x128xf32> to vector<8x32xf32>
    %476 = arith.truncf %475 : vector<8x32xf32> to vector<8x32xbf16>
    %477 = vector.extract_strided_slice %430 {offsets = [0, 0], sizes = [8, 32], strides = [1, 1]} : vector<8x128xf32> to vector<8x32xf32>
    %478 = arith.truncf %477 : vector<8x32xf32> to vector<8x32xbf16>
    %c0_196 = arith.constant 0 : index
    %c0_197 = arith.constant 0 : index
    %c0_198 = arith.constant 0 : index
    %479 = vector.load %arg2[%c0_196, %c0_197, %c0_198] : memref<2x32x384xbf16, #tpu.memory_space<vmem>>, vector<1x32x384xbf16>
    %480 = vector.shape_cast %479 : vector<1x32x384xbf16> to vector<32x384xbf16>
    %cst_199 = arith.constant dense<0.000000e+00> : vector<8x384xf32>
    %481 = tpu.matmul %476, %480, %cst_199 {dimension_numbers = #tpu.dot_dimension_numbers<[1], [0], [0], [1], [0, 0, 1, 1], [], []>} : vector<8x32xbf16>, vector<32x384xbf16>, vector<8x384xf32> -> vector<8x384xf32>
    %c0_200 = arith.constant 0 : index
    %c0_201 = arith.constant 0 : index
    %c0_202 = arith.constant 0 : index
    %482 = vector.load %arg4[%c0_200, %c0_201, %c0_202] : memref<2x1x384xf32, #tpu.memory_space<vmem>>, vector<1x1x384xf32>
    %483 = vector.shape_cast %482 : vector<1x1x384xf32> to vector<1x384xf32>
    %484 = vector.broadcast %483 : vector<1x384xf32> to vector<8x384xf32>
    %485 = arith.addf %481, %484 : vector<8x384xf32>
    %c0_203 = arith.constant 0 : index
    %c0_204 = arith.constant 0 : index
    %c0_205 = arith.constant 0 : index
    %486 = vector.load %arg3[%c0_203, %c0_204, %c0_205] : memref<2x32x384xbf16, #tpu.memory_space<vmem>>, vector<1x32x384xbf16>
    %487 = vector.shape_cast %486 : vector<1x32x384xbf16> to vector<32x384xbf16>
    %cst_206 = arith.constant dense<0.000000e+00> : vector<8x384xf32>
    %488 = tpu.matmul %478, %487, %cst_206 {dimension_numbers = #tpu.dot_dimension_numbers<[1], [0], [0], [1], [0, 0, 1, 1], [], []>} : vector<8x32xbf16>, vector<32x384xbf16>, vector<8x384xf32> -> vector<8x384xf32>
    %489 = vector.extract_strided_slice %485 {offsets = [0, 0], sizes = [8, 128], strides = [1, 1]} : vector<8x384xf32> to vector<8x128xf32>
    %490 = vector.extract_strided_slice %488 {offsets = [0, 0], sizes = [8, 128], strides = [1, 1]} : vector<8x384xf32> to vector<8x128xf32>
    %491 = arith.addf %489, %490 : vector<8x128xf32>
    %492 = arith.negf %491 : vector<8x128xf32>
    %493 = math.exp %492 : vector<8x128xf32>
    %cst_207 = arith.constant 1.000000e+00 : f32
    %494 = vector.broadcast %cst_207 : f32 to vector<8x128xf32>
    %495 = arith.addf %494, %493 : vector<8x128xf32>
    %496 = arith.divf %494, %495 : vector<8x128xf32>
    %497 = vector.extract_strided_slice %485 {offsets = [0, 128], sizes = [8, 128], strides = [1, 1]} : vector<8x384xf32> to vector<8x128xf32>
    %498 = vector.extract_strided_slice %488 {offsets = [0, 128], sizes = [8, 128], strides = [1, 1]} : vector<8x384xf32> to vector<8x128xf32>
    %499 = arith.addf %497, %498 : vector<8x128xf32>
    %500 = arith.negf %499 : vector<8x128xf32>
    %501 = math.exp %500 : vector<8x128xf32>
    %cst_208 = arith.constant 1.000000e+00 : f32
    %502 = vector.broadcast %cst_208 : f32 to vector<8x128xf32>
    %503 = arith.addf %502, %501 : vector<8x128xf32>
    %504 = arith.divf %502, %503 : vector<8x128xf32>
    %505 = vector.extract_strided_slice %485 {offsets = [0, 256], sizes = [8, 128], strides = [1, 1]} : vector<8x384xf32> to vector<8x128xf32>
    %506 = vector.extract_strided_slice %488 {offsets = [0, 256], sizes = [8, 128], strides = [1, 1]} : vector<8x384xf32> to vector<8x128xf32>
    %c0_209 = arith.constant 0 : index
    %c0_210 = arith.constant 0 : index
    %c0_211 = arith.constant 0 : index
    %507 = vector.load %arg5[%c0_209, %c0_210, %c0_211] : memref<2x1x128xf32, #tpu.memory_space<vmem>>, vector<1x1x128xf32>
    %508 = vector.shape_cast %507 : vector<1x1x128xf32> to vector<1x128xf32>
    %509 = vector.broadcast %508 : vector<1x128xf32> to vector<8x128xf32>
    %510 = arith.addf %506, %509 : vector<8x128xf32>
    %511 = arith.mulf %496, %510 : vector<8x128xf32>
    %512 = arith.addf %505, %511 : vector<8x128xf32>
    %513 = math.tanh %512 : vector<8x128xf32>
    %cst_212 = arith.constant 1.000000e+00 : f32
    %514 = vector.broadcast %cst_212 : f32 to vector<8x128xf32>
    %515 = arith.subf %514, %504 : vector<8x128xf32>
    %516 = arith.mulf %515, %513 : vector<8x128xf32>
    %517 = arith.mulf %504, %430 : vector<8x128xf32>
    %518 = arith.addf %516, %517 : vector<8x128xf32>
    %519 = vector.extract_strided_slice %518 {offsets = [0, 0], sizes = [8, 32], strides = [1, 1]} : vector<8x128xf32> to vector<8x32xf32>
    %520 = arith.truncf %519 : vector<8x32xf32> to vector<8x32xbf16>
    %521 = vector.extract_strided_slice %474 {offsets = [0, 0], sizes = [8, 32], strides = [1, 1]} : vector<8x128xf32> to vector<8x32xf32>
    %522 = arith.truncf %521 : vector<8x32xf32> to vector<8x32xbf16>
    %c1_213 = arith.constant 1 : index
    %c0_214 = arith.constant 0 : index
    %c0_215 = arith.constant 0 : index
    %523 = vector.load %arg2[%c1_213, %c0_214, %c0_215] : memref<2x32x384xbf16, #tpu.memory_space<vmem>>, vector<1x32x384xbf16>
    %524 = vector.shape_cast %523 : vector<1x32x384xbf16> to vector<32x384xbf16>
    %cst_216 = arith.constant dense<0.000000e+00> : vector<8x384xf32>
    %525 = tpu.matmul %520, %524, %cst_216 {dimension_numbers = #tpu.dot_dimension_numbers<[1], [0], [0], [1], [0, 0, 1, 1], [], []>} : vector<8x32xbf16>, vector<32x384xbf16>, vector<8x384xf32> -> vector<8x384xf32>
    %c1_217 = arith.constant 1 : index
    %c0_218 = arith.constant 0 : index
    %c0_219 = arith.constant 0 : index
    %526 = vector.load %arg4[%c1_217, %c0_218, %c0_219] : memref<2x1x384xf32, #tpu.memory_space<vmem>>, vector<1x1x384xf32>
    %527 = vector.shape_cast %526 : vector<1x1x384xf32> to vector<1x384xf32>
    %528 = vector.broadcast %527 : vector<1x384xf32> to vector<8x384xf32>
    %529 = arith.addf %525, %528 : vector<8x384xf32>
    %c1_220 = arith.constant 1 : index
    %c0_221 = arith.constant 0 : index
    %c0_222 = arith.constant 0 : index
    %530 = vector.load %arg3[%c1_220, %c0_221, %c0_222] : memref<2x32x384xbf16, #tpu.memory_space<vmem>>, vector<1x32x384xbf16>
    %531 = vector.shape_cast %530 : vector<1x32x384xbf16> to vector<32x384xbf16>
    %cst_223 = arith.constant dense<0.000000e+00> : vector<8x384xf32>
    %532 = tpu.matmul %522, %531, %cst_223 {dimension_numbers = #tpu.dot_dimension_numbers<[1], [0], [0], [1], [0, 0, 1, 1], [], []>} : vector<8x32xbf16>, vector<32x384xbf16>, vector<8x384xf32> -> vector<8x384xf32>
    %533 = vector.extract_strided_slice %529 {offsets = [0, 0], sizes = [8, 128], strides = [1, 1]} : vector<8x384xf32> to vector<8x128xf32>
    %534 = vector.extract_strided_slice %532 {offsets = [0, 0], sizes = [8, 128], strides = [1, 1]} : vector<8x384xf32> to vector<8x128xf32>
    %535 = arith.addf %533, %534 : vector<8x128xf32>
    %536 = arith.negf %535 : vector<8x128xf32>
    %537 = math.exp %536 : vector<8x128xf32>
    %cst_224 = arith.constant 1.000000e+00 : f32
    %538 = vector.broadcast %cst_224 : f32 to vector<8x128xf32>
    %539 = arith.addf %538, %537 : vector<8x128xf32>
    %540 = arith.divf %538, %539 : vector<8x128xf32>
    %541 = vector.extract_strided_slice %529 {offsets = [0, 128], sizes = [8, 128], strides = [1, 1]} : vector<8x384xf32> to vector<8x128xf32>
    %542 = vector.extract_strided_slice %532 {offsets = [0, 128], sizes = [8, 128], strides = [1, 1]} : vector<8x384xf32> to vector<8x128xf32>
    %543 = arith.addf %541, %542 : vector<8x128xf32>
    %544 = arith.negf %543 : vector<8x128xf32>
    %545 = math.exp %544 : vector<8x128xf32>
    %cst_225 = arith.constant 1.000000e+00 : f32
    %546 = vector.broadcast %cst_225 : f32 to vector<8x128xf32>
    %547 = arith.addf %546, %545 : vector<8x128xf32>
    %548 = arith.divf %546, %547 : vector<8x128xf32>
    %549 = vector.extract_strided_slice %529 {offsets = [0, 256], sizes = [8, 128], strides = [1, 1]} : vector<8x384xf32> to vector<8x128xf32>
    %550 = vector.extract_strided_slice %532 {offsets = [0, 256], sizes = [8, 128], strides = [1, 1]} : vector<8x384xf32> to vector<8x128xf32>
    %c1_226 = arith.constant 1 : index
    %c0_227 = arith.constant 0 : index
    %c0_228 = arith.constant 0 : index
    %551 = vector.load %arg5[%c1_226, %c0_227, %c0_228] : memref<2x1x128xf32, #tpu.memory_space<vmem>>, vector<1x1x128xf32>
    %552 = vector.shape_cast %551 : vector<1x1x128xf32> to vector<1x128xf32>
    %553 = vector.broadcast %552 : vector<1x128xf32> to vector<8x128xf32>
    %554 = arith.addf %550, %553 : vector<8x128xf32>
    %555 = arith.mulf %540, %554 : vector<8x128xf32>
    %556 = arith.addf %549, %555 : vector<8x128xf32>
    %557 = math.tanh %556 : vector<8x128xf32>
    %cst_229 = arith.constant 1.000000e+00 : f32
    %558 = vector.broadcast %cst_229 : f32 to vector<8x128xf32>
    %559 = arith.subf %558, %548 : vector<8x128xf32>
    %560 = arith.mulf %559, %557 : vector<8x128xf32>
    %561 = arith.mulf %548, %474 : vector<8x128xf32>
    %562 = arith.addf %560, %561 : vector<8x128xf32>
    %c2_230 = arith.constant 2 : index
    %c0_231 = arith.constant 0 : index
    %c0_232 = arith.constant 0 : index
    %563 = vector.load %arg7[%c2_230, %c0_231, %c0_232] : memref<6x8x128xf32, #tpu.memory_space<vmem>>, vector<1x8x128xf32>
    %564 = vector.shape_cast %563 : vector<1x8x128xf32> to vector<8x128xf32>
    %565 = vector.shape_cast %562 : vector<8x128xf32> to vector<1x8x128xf32>
    tpu.vector_store %arg7[%c2_230, %c0_231, %c0_232], %565 {strides = array<i32>} : memref<6x8x128xf32, #tpu.memory_space<vmem>>, vector<1x8x128xf32>,
    %c3 = arith.constant 3 : index
    %c0_233 = arith.constant 0 : index
    %c0_234 = arith.constant 0 : index
    %566 = vector.load %arg0[%c3, %c0_233, %c0_234] : memref<6x8x1xi32, #tpu.memory_space<vmem>>, vector<1x8x1xi32>
    %567 = vector.shape_cast %566 : vector<1x8x1xi32> to vector<8x1xi32>
    %568 = vector.broadcast %567 : vector<8x1xi32> to vector<8x64xi32>
    %569 = arith.cmpi eq, %0, %568 : vector<8x64xi32>
    %570 = arith.extui %569 : vector<8x64xi1> to vector<8x64xi32>
    %571 = arith.sitofp %570 : vector<8x64xi32> to vector<8x64xf32>
    %572 = arith.truncf %571 : vector<8x64xf32> to vector<8x64xbf16>
    %c0_235 = arith.constant 0 : index
    %c0_236 = arith.constant 0 : index
    %573 = vector.load %arg1[%c0_235, %c0_236] : memref<64x32xbf16, #tpu.memory_space<vmem>>, vector<64x32xbf16>
    %cst_237 = arith.constant dense<0.000000e+00> : vector<8x32xf32>
    %574 = tpu.matmul %572, %573, %cst_237 {dimension_numbers = #tpu.dot_dimension_numbers<[1], [0], [0], [1], [0, 0, 1, 1], [], []>} : vector<8x64xbf16>, vector<64x32xbf16>, vector<8x32xf32> -> vector<8x32xf32>
    %575 = arith.truncf %574 : vector<8x32xf32> to vector<8x32xbf16>
    %576 = vector.extract_strided_slice %518 {offsets = [0, 0], sizes = [8, 32], strides = [1, 1]} : vector<8x128xf32> to vector<8x32xf32>
    %577 = arith.truncf %576 : vector<8x32xf32> to vector<8x32xbf16>
    %c0_238 = arith.constant 0 : index
    %c0_239 = arith.constant 0 : index
    %c0_240 = arith.constant 0 : index
    %578 = vector.load %arg2[%c0_238, %c0_239, %c0_240] : memref<2x32x384xbf16, #tpu.memory_space<vmem>>, vector<1x32x384xbf16>
    %579 = vector.shape_cast %578 : vector<1x32x384xbf16> to vector<32x384xbf16>
    %cst_241 = arith.constant dense<0.000000e+00> : vector<8x384xf32>
    %580 = tpu.matmul %575, %579, %cst_241 {dimension_numbers = #tpu.dot_dimension_numbers<[1], [0], [0], [1], [0, 0, 1, 1], [], []>} : vector<8x32xbf16>, vector<32x384xbf16>, vector<8x384xf32> -> vector<8x384xf32>
    %c0_242 = arith.constant 0 : index
    %c0_243 = arith.constant 0 : index
    %c0_244 = arith.constant 0 : index
    %581 = vector.load %arg4[%c0_242, %c0_243, %c0_244] : memref<2x1x384xf32, #tpu.memory_space<vmem>>, vector<1x1x384xf32>
    %582 = vector.shape_cast %581 : vector<1x1x384xf32> to vector<1x384xf32>
    %583 = vector.broadcast %582 : vector<1x384xf32> to vector<8x384xf32>
    %584 = arith.addf %580, %583 : vector<8x384xf32>
    %c0_245 = arith.constant 0 : index
    %c0_246 = arith.constant 0 : index
    %c0_247 = arith.constant 0 : index
    %585 = vector.load %arg3[%c0_245, %c0_246, %c0_247] : memref<2x32x384xbf16, #tpu.memory_space<vmem>>, vector<1x32x384xbf16>
    %586 = vector.shape_cast %585 : vector<1x32x384xbf16> to vector<32x384xbf16>
    %cst_248 = arith.constant dense<0.000000e+00> : vector<8x384xf32>
    %587 = tpu.matmul %577, %586, %cst_248 {dimension_numbers = #tpu.dot_dimension_numbers<[1], [0], [0], [1], [0, 0, 1, 1], [], []>} : vector<8x32xbf16>, vector<32x384xbf16>, vector<8x384xf32> -> vector<8x384xf32>
    %588 = vector.extract_strided_slice %584 {offsets = [0, 0], sizes = [8, 128], strides = [1, 1]} : vector<8x384xf32> to vector<8x128xf32>
    %589 = vector.extract_strided_slice %587 {offsets = [0, 0], sizes = [8, 128], strides = [1, 1]} : vector<8x384xf32> to vector<8x128xf32>
    %590 = arith.addf %588, %589 : vector<8x128xf32>
    %591 = arith.negf %590 : vector<8x128xf32>
    %592 = math.exp %591 : vector<8x128xf32>
    %cst_249 = arith.constant 1.000000e+00 : f32
    %593 = vector.broadcast %cst_249 : f32 to vector<8x128xf32>
    %594 = arith.addf %593, %592 : vector<8x128xf32>
    %595 = arith.divf %593, %594 : vector<8x128xf32>
    %596 = vector.extract_strided_slice %584 {offsets = [0, 128], sizes = [8, 128], strides = [1, 1]} : vector<8x384xf32> to vector<8x128xf32>
    %597 = vector.extract_strided_slice %587 {offsets = [0, 128], sizes = [8, 128], strides = [1, 1]} : vector<8x384xf32> to vector<8x128xf32>
    %598 = arith.addf %596, %597 : vector<8x128xf32>
    %599 = arith.negf %598 : vector<8x128xf32>
    %600 = math.exp %599 : vector<8x128xf32>
    %cst_250 = arith.constant 1.000000e+00 : f32
    %601 = vector.broadcast %cst_250 : f32 to vector<8x128xf32>
    %602 = arith.addf %601, %600 : vector<8x128xf32>
    %603 = arith.divf %601, %602 : vector<8x128xf32>
    %604 = vector.extract_strided_slice %584 {offsets = [0, 256], sizes = [8, 128], strides = [1, 1]} : vector<8x384xf32> to vector<8x128xf32>
    %605 = vector.extract_strided_slice %587 {offsets = [0, 256], sizes = [8, 128], strides = [1, 1]} : vector<8x384xf32> to vector<8x128xf32>
    %c0_251 = arith.constant 0 : index
    %c0_252 = arith.constant 0 : index
    %c0_253 = arith.constant 0 : index
    %606 = vector.load %arg5[%c0_251, %c0_252, %c0_253] : memref<2x1x128xf32, #tpu.memory_space<vmem>>, vector<1x1x128xf32>
    %607 = vector.shape_cast %606 : vector<1x1x128xf32> to vector<1x128xf32>
    %608 = vector.broadcast %607 : vector<1x128xf32> to vector<8x128xf32>
    %609 = arith.addf %605, %608 : vector<8x128xf32>
    %610 = arith.mulf %595, %609 : vector<8x128xf32>
    %611 = arith.addf %604, %610 : vector<8x128xf32>
    %612 = math.tanh %611 : vector<8x128xf32>
    %cst_254 = arith.constant 1.000000e+00 : f32
    %613 = vector.broadcast %cst_254 : f32 to vector<8x128xf32>
    %614 = arith.subf %613, %603 : vector<8x128xf32>
    %615 = arith.mulf %614, %612 : vector<8x128xf32>
    %616 = arith.mulf %603, %518 : vector<8x128xf32>
    %617 = arith.addf %615, %616 : vector<8x128xf32>
    %618 = vector.extract_strided_slice %617 {offsets = [0, 0], sizes = [8, 32], strides = [1, 1]} : vector<8x128xf32> to vector<8x32xf32>
    %619 = arith.truncf %618 : vector<8x32xf32> to vector<8x32xbf16>
    %620 = vector.extract_strided_slice %562 {offsets = [0, 0], sizes = [8, 32], strides = [1, 1]} : vector<8x128xf32> to vector<8x32xf32>
    %621 = arith.truncf %620 : vector<8x32xf32> to vector<8x32xbf16>
    %c1_255 = arith.constant 1 : index
    %c0_256 = arith.constant 0 : index
    %c0_257 = arith.constant 0 : index
    %622 = vector.load %arg2[%c1_255, %c0_256, %c0_257] : memref<2x32x384xbf16, #tpu.memory_space<vmem>>, vector<1x32x384xbf16>
    %623 = vector.shape_cast %622 : vector<1x32x384xbf16> to vector<32x384xbf16>
    %cst_258 = arith.constant dense<0.000000e+00> : vector<8x384xf32>
    %624 = tpu.matmul %619, %623, %cst_258 {dimension_numbers = #tpu.dot_dimension_numbers<[1], [0], [0], [1], [0, 0, 1, 1], [], []>} : vector<8x32xbf16>, vector<32x384xbf16>, vector<8x384xf32> -> vector<8x384xf32>
    %c1_259 = arith.constant 1 : index
    %c0_260 = arith.constant 0 : index
    %c0_261 = arith.constant 0 : index
    %625 = vector.load %arg4[%c1_259, %c0_260, %c0_261] : memref<2x1x384xf32, #tpu.memory_space<vmem>>, vector<1x1x384xf32>
    %626 = vector.shape_cast %625 : vector<1x1x384xf32> to vector<1x384xf32>
    %627 = vector.broadcast %626 : vector<1x384xf32> to vector<8x384xf32>
    %628 = arith.addf %624, %627 : vector<8x384xf32>
    %c1_262 = arith.constant 1 : index
    %c0_263 = arith.constant 0 : index
    %c0_264 = arith.constant 0 : index
    %629 = vector.load %arg3[%c1_262, %c0_263, %c0_264] : memref<2x32x384xbf16, #tpu.memory_space<vmem>>, vector<1x32x384xbf16>
    %630 = vector.shape_cast %629 : vector<1x32x384xbf16> to vector<32x384xbf16>
    %cst_265 = arith.constant dense<0.000000e+00> : vector<8x384xf32>
    %631 = tpu.matmul %621, %630, %cst_265 {dimension_numbers = #tpu.dot_dimension_numbers<[1], [0], [0], [1], [0, 0, 1, 1], [], []>} : vector<8x32xbf16>, vector<32x384xbf16>, vector<8x384xf32> -> vector<8x384xf32>
    %632 = vector.extract_strided_slice %628 {offsets = [0, 0], sizes = [8, 128], strides = [1, 1]} : vector<8x384xf32> to vector<8x128xf32>
    %633 = vector.extract_strided_slice %631 {offsets = [0, 0], sizes = [8, 128], strides = [1, 1]} : vector<8x384xf32> to vector<8x128xf32>
    %634 = arith.addf %632, %633 : vector<8x128xf32>
    %635 = arith.negf %634 : vector<8x128xf32>
    %636 = math.exp %635 : vector<8x128xf32>
    %cst_266 = arith.constant 1.000000e+00 : f32
    %637 = vector.broadcast %cst_266 : f32 to vector<8x128xf32>
    %638 = arith.addf %637, %636 : vector<8x128xf32>
    %639 = arith.divf %637, %638 : vector<8x128xf32>
    %640 = vector.extract_strided_slice %628 {offsets = [0, 128], sizes = [8, 128], strides = [1, 1]} : vector<8x384xf32> to vector<8x128xf32>
    %641 = vector.extract_strided_slice %631 {offsets = [0, 128], sizes = [8, 128], strides = [1, 1]} : vector<8x384xf32> to vector<8x128xf32>
    %642 = arith.addf %640, %641 : vector<8x128xf32>
    %643 = arith.negf %642 : vector<8x128xf32>
    %644 = math.exp %643 : vector<8x128xf32>
    %cst_267 = arith.constant 1.000000e+00 : f32
    %645 = vector.broadcast %cst_267 : f32 to vector<8x128xf32>
    %646 = arith.addf %645, %644 : vector<8x128xf32>
    %647 = arith.divf %645, %646 : vector<8x128xf32>
    %648 = vector.extract_strided_slice %628 {offsets = [0, 256], sizes = [8, 128], strides = [1, 1]} : vector<8x384xf32> to vector<8x128xf32>
    %649 = vector.extract_strided_slice %631 {offsets = [0, 256], sizes = [8, 128], strides = [1, 1]} : vector<8x384xf32> to vector<8x128xf32>
    %c1_268 = arith.constant 1 : index
    %c0_269 = arith.constant 0 : index
    %c0_270 = arith.constant 0 : index
    %650 = vector.load %arg5[%c1_268, %c0_269, %c0_270] : memref<2x1x128xf32, #tpu.memory_space<vmem>>, vector<1x1x128xf32>
    %651 = vector.shape_cast %650 : vector<1x1x128xf32> to vector<1x128xf32>
    %652 = vector.broadcast %651 : vector<1x128xf32> to vector<8x128xf32>
    %653 = arith.addf %649, %652 : vector<8x128xf32>
    %654 = arith.mulf %639, %653 : vector<8x128xf32>
    %655 = arith.addf %648, %654 : vector<8x128xf32>
    %656 = math.tanh %655 : vector<8x128xf32>
    %cst_271 = arith.constant 1.000000e+00 : f32
    %657 = vector.broadcast %cst_271 : f32 to vector<8x128xf32>
    %658 = arith.subf %657, %647 : vector<8x128xf32>
    %659 = arith.mulf %658, %656 : vector<8x128xf32>
    %660 = arith.mulf %647, %562 : vector<8x128xf32>
    %661 = arith.addf %659, %660 : vector<8x128xf32>
    %662 = vector.extract_strided_slice %661 {offsets = [0, 0], sizes = [8, 32], strides = [1, 1]} : vector<8x128xf32> to vector<8x32xf32>
    %663 = arith.truncf %662 : vector<8x32xf32> to vector<8x32xbf16>
    %664 = vector.extract_strided_slice %617 {offsets = [0, 0], sizes = [8, 32], strides = [1, 1]} : vector<8x128xf32> to vector<8x32xf32>
    %665 = arith.truncf %664 : vector<8x32xf32> to vector<8x32xbf16>
    %c0_272 = arith.constant 0 : index
    %c0_273 = arith.constant 0 : index
    %c0_274 = arith.constant 0 : index
    %666 = vector.load %arg2[%c0_272, %c0_273, %c0_274] : memref<2x32x384xbf16, #tpu.memory_space<vmem>>, vector<1x32x384xbf16>
    %667 = vector.shape_cast %666 : vector<1x32x384xbf16> to vector<32x384xbf16>
    %cst_275 = arith.constant dense<0.000000e+00> : vector<8x384xf32>
    %668 = tpu.matmul %663, %667, %cst_275 {dimension_numbers = #tpu.dot_dimension_numbers<[1], [0], [0], [1], [0, 0, 1, 1], [], []>} : vector<8x32xbf16>, vector<32x384xbf16>, vector<8x384xf32> -> vector<8x384xf32>
    %c0_276 = arith.constant 0 : index
    %c0_277 = arith.constant 0 : index
    %c0_278 = arith.constant 0 : index
    %669 = vector.load %arg4[%c0_276, %c0_277, %c0_278] : memref<2x1x384xf32, #tpu.memory_space<vmem>>, vector<1x1x384xf32>
    %670 = vector.shape_cast %669 : vector<1x1x384xf32> to vector<1x384xf32>
    %671 = vector.broadcast %670 : vector<1x384xf32> to vector<8x384xf32>
    %672 = arith.addf %668, %671 : vector<8x384xf32>
    %c0_279 = arith.constant 0 : index
    %c0_280 = arith.constant 0 : index
    %c0_281 = arith.constant 0 : index
    %673 = vector.load %arg3[%c0_279, %c0_280, %c0_281] : memref<2x32x384xbf16, #tpu.memory_space<vmem>>, vector<1x32x384xbf16>
    %674 = vector.shape_cast %673 : vector<1x32x384xbf16> to vector<32x384xbf16>
    %cst_282 = arith.constant dense<0.000000e+00> : vector<8x384xf32>
    %675 = tpu.matmul %665, %674, %cst_282 {dimension_numbers = #tpu.dot_dimension_numbers<[1], [0], [0], [1], [0, 0, 1, 1], [], []>} : vector<8x32xbf16>, vector<32x384xbf16>, vector<8x384xf32> -> vector<8x384xf32>
    %676 = vector.extract_strided_slice %672 {offsets = [0, 0], sizes = [8, 128], strides = [1, 1]} : vector<8x384xf32> to vector<8x128xf32>
    %677 = vector.extract_strided_slice %675 {offsets = [0, 0], sizes = [8, 128], strides = [1, 1]} : vector<8x384xf32> to vector<8x128xf32>
    %678 = arith.addf %676, %677 : vector<8x128xf32>
    %679 = arith.negf %678 : vector<8x128xf32>
    %680 = math.exp %679 : vector<8x128xf32>
    %cst_283 = arith.constant 1.000000e+00 : f32
    %681 = vector.broadcast %cst_283 : f32 to vector<8x128xf32>
    %682 = arith.addf %681, %680 : vector<8x128xf32>
    %683 = arith.divf %681, %682 : vector<8x128xf32>
    %684 = vector.extract_strided_slice %672 {offsets = [0, 128], sizes = [8, 128], strides = [1, 1]} : vector<8x384xf32> to vector<8x128xf32>
    %685 = vector.extract_strided_slice %675 {offsets = [0, 128], sizes = [8, 128], strides = [1, 1]} : vector<8x384xf32> to vector<8x128xf32>
    %686 = arith.addf %684, %685 : vector<8x128xf32>
    %687 = arith.negf %686 : vector<8x128xf32>
    %688 = math.exp %687 : vector<8x128xf32>
    %cst_284 = arith.constant 1.000000e+00 : f32
    %689 = vector.broadcast %cst_284 : f32 to vector<8x128xf32>
    %690 = arith.addf %689, %688 : vector<8x128xf32>
    %691 = arith.divf %689, %690 : vector<8x128xf32>
    %692 = vector.extract_strided_slice %672 {offsets = [0, 256], sizes = [8, 128], strides = [1, 1]} : vector<8x384xf32> to vector<8x128xf32>
    %693 = vector.extract_strided_slice %675 {offsets = [0, 256], sizes = [8, 128], strides = [1, 1]} : vector<8x384xf32> to vector<8x128xf32>
    %c0_285 = arith.constant 0 : index
    %c0_286 = arith.constant 0 : index
    %c0_287 = arith.constant 0 : index
    %694 = vector.load %arg5[%c0_285, %c0_286, %c0_287] : memref<2x1x128xf32, #tpu.memory_space<vmem>>, vector<1x1x128xf32>
    %695 = vector.shape_cast %694 : vector<1x1x128xf32> to vector<1x128xf32>
    %696 = vector.broadcast %695 : vector<1x128xf32> to vector<8x128xf32>
    %697 = arith.addf %693, %696 : vector<8x128xf32>
    %698 = arith.mulf %683, %697 : vector<8x128xf32>
    %699 = arith.addf %692, %698 : vector<8x128xf32>
    %700 = math.tanh %699 : vector<8x128xf32>
    %cst_288 = arith.constant 1.000000e+00 : f32
    %701 = vector.broadcast %cst_288 : f32 to vector<8x128xf32>
    %702 = arith.subf %701, %691 : vector<8x128xf32>
    %703 = arith.mulf %702, %700 : vector<8x128xf32>
    %704 = arith.mulf %691, %617 : vector<8x128xf32>
    %705 = arith.addf %703, %704 : vector<8x128xf32>
    %706 = vector.extract_strided_slice %705 {offsets = [0, 0], sizes = [8, 32], strides = [1, 1]} : vector<8x128xf32> to vector<8x32xf32>
    %707 = arith.truncf %706 : vector<8x32xf32> to vector<8x32xbf16>
    %708 = vector.extract_strided_slice %661 {offsets = [0, 0], sizes = [8, 32], strides = [1, 1]} : vector<8x128xf32> to vector<8x32xf32>
    %709 = arith.truncf %708 : vector<8x32xf32> to vector<8x32xbf16>
    %c1_289 = arith.constant 1 : index
    %c0_290 = arith.constant 0 : index
    %c0_291 = arith.constant 0 : index
    %710 = vector.load %arg2[%c1_289, %c0_290, %c0_291] : memref<2x32x384xbf16, #tpu.memory_space<vmem>>, vector<1x32x384xbf16>
    %711 = vector.shape_cast %710 : vector<1x32x384xbf16> to vector<32x384xbf16>
    %cst_292 = arith.constant dense<0.000000e+00> : vector<8x384xf32>
    %712 = tpu.matmul %707, %711, %cst_292 {dimension_numbers = #tpu.dot_dimension_numbers<[1], [0], [0], [1], [0, 0, 1, 1], [], []>} : vector<8x32xbf16>, vector<32x384xbf16>, vector<8x384xf32> -> vector<8x384xf32>
    %c1_293 = arith.constant 1 : index
    %c0_294 = arith.constant 0 : index
    %c0_295 = arith.constant 0 : index
    %713 = vector.load %arg4[%c1_293, %c0_294, %c0_295] : memref<2x1x384xf32, #tpu.memory_space<vmem>>, vector<1x1x384xf32>
    %714 = vector.shape_cast %713 : vector<1x1x384xf32> to vector<1x384xf32>
    %715 = vector.broadcast %714 : vector<1x384xf32> to vector<8x384xf32>
    %716 = arith.addf %712, %715 : vector<8x384xf32>
    %c1_296 = arith.constant 1 : index
    %c0_297 = arith.constant 0 : index
    %c0_298 = arith.constant 0 : index
    %717 = vector.load %arg3[%c1_296, %c0_297, %c0_298] : memref<2x32x384xbf16, #tpu.memory_space<vmem>>, vector<1x32x384xbf16>
    %718 = vector.shape_cast %717 : vector<1x32x384xbf16> to vector<32x384xbf16>
    %cst_299 = arith.constant dense<0.000000e+00> : vector<8x384xf32>
    %719 = tpu.matmul %709, %718, %cst_299 {dimension_numbers = #tpu.dot_dimension_numbers<[1], [0], [0], [1], [0, 0, 1, 1], [], []>} : vector<8x32xbf16>, vector<32x384xbf16>, vector<8x384xf32> -> vector<8x384xf32>
    %720 = vector.extract_strided_slice %716 {offsets = [0, 0], sizes = [8, 128], strides = [1, 1]} : vector<8x384xf32> to vector<8x128xf32>
    %721 = vector.extract_strided_slice %719 {offsets = [0, 0], sizes = [8, 128], strides = [1, 1]} : vector<8x384xf32> to vector<8x128xf32>
    %722 = arith.addf %720, %721 : vector<8x128xf32>
    %723 = arith.negf %722 : vector<8x128xf32>
    %724 = math.exp %723 : vector<8x128xf32>
    %cst_300 = arith.constant 1.000000e+00 : f32
    %725 = vector.broadcast %cst_300 : f32 to vector<8x128xf32>
    %726 = arith.addf %725, %724 : vector<8x128xf32>
    %727 = arith.divf %725, %726 : vector<8x128xf32>
    %728 = vector.extract_strided_slice %716 {offsets = [0, 128], sizes = [8, 128], strides = [1, 1]} : vector<8x384xf32> to vector<8x128xf32>
    %729 = vector.extract_strided_slice %719 {offsets = [0, 128], sizes = [8, 128], strides = [1, 1]} : vector<8x384xf32> to vector<8x128xf32>
    %730 = arith.addf %728, %729 : vector<8x128xf32>
    %731 = arith.negf %730 : vector<8x128xf32>
    %732 = math.exp %731 : vector<8x128xf32>
    %cst_301 = arith.constant 1.000000e+00 : f32
    %733 = vector.broadcast %cst_301 : f32 to vector<8x128xf32>
    %734 = arith.addf %733, %732 : vector<8x128xf32>
    %735 = arith.divf %733, %734 : vector<8x128xf32>
    %736 = vector.extract_strided_slice %716 {offsets = [0, 256], sizes = [8, 128], strides = [1, 1]} : vector<8x384xf32> to vector<8x128xf32>
    %737 = vector.extract_strided_slice %719 {offsets = [0, 256], sizes = [8, 128], strides = [1, 1]} : vector<8x384xf32> to vector<8x128xf32>
    %c1_302 = arith.constant 1 : index
    %c0_303 = arith.constant 0 : index
    %c0_304 = arith.constant 0 : index
    %738 = vector.load %arg5[%c1_302, %c0_303, %c0_304] : memref<2x1x128xf32, #tpu.memory_space<vmem>>, vector<1x1x128xf32>
    %739 = vector.shape_cast %738 : vector<1x1x128xf32> to vector<1x128xf32>
    %740 = vector.broadcast %739 : vector<1x128xf32> to vector<8x128xf32>
    %741 = arith.addf %737, %740 : vector<8x128xf32>
    %742 = arith.mulf %727, %741 : vector<8x128xf32>
    %743 = arith.addf %736, %742 : vector<8x128xf32>
    %744 = math.tanh %743 : vector<8x128xf32>
    %cst_305 = arith.constant 1.000000e+00 : f32
    %745 = vector.broadcast %cst_305 : f32 to vector<8x128xf32>
    %746 = arith.subf %745, %735 : vector<8x128xf32>
    %747 = arith.mulf %746, %744 : vector<8x128xf32>
    %748 = arith.mulf %735, %661 : vector<8x128xf32>
    %749 = arith.addf %747, %748 : vector<8x128xf32>
    %c3_306 = arith.constant 3 : index
    %c0_307 = arith.constant 0 : index
    %c0_308 = arith.constant 0 : index
    %750 = vector.load %arg7[%c3_306, %c0_307, %c0_308] : memref<6x8x128xf32, #tpu.memory_space<vmem>>, vector<1x8x128xf32>
    %751 = vector.shape_cast %750 : vector<1x8x128xf32> to vector<8x128xf32>
    %752 = vector.shape_cast %749 : vector<8x128xf32> to vector<1x8x128xf32>
    tpu.vector_store %arg7[%c3_306, %c0_307, %c0_308], %752 {strides = array<i32>} : memref<6x8x128xf32, #tpu.memory_space<vmem>>, vector<1x8x128xf32>,
    %c4 = arith.constant 4 : index
    %c0_309 = arith.constant 0 : index
    %c0_310 = arith.constant 0 : index
    %753 = vector.load %arg0[%c4, %c0_309, %c0_310] : memref<6x8x1xi32, #tpu.memory_space<vmem>>, vector<1x8x1xi32>
    %754 = vector.shape_cast %753 : vector<1x8x1xi32> to vector<8x1xi32>
    %755 = vector.broadcast %754 : vector<8x1xi32> to vector<8x64xi32>
    %756 = arith.cmpi eq, %0, %755 : vector<8x64xi32>
    %757 = arith.extui %756 : vector<8x64xi1> to vector<8x64xi32>
    %758 = arith.sitofp %757 : vector<8x64xi32> to vector<8x64xf32>
    %759 = arith.truncf %758 : vector<8x64xf32> to vector<8x64xbf16>
    %c0_311 = arith.constant 0 : index
    %c0_312 = arith.constant 0 : index
    %760 = vector.load %arg1[%c0_311, %c0_312] : memref<64x32xbf16, #tpu.memory_space<vmem>>, vector<64x32xbf16>
    %cst_313 = arith.constant dense<0.000000e+00> : vector<8x32xf32>
    %761 = tpu.matmul %759, %760, %cst_313 {dimension_numbers = #tpu.dot_dimension_numbers<[1], [0], [0], [1], [0, 0, 1, 1], [], []>} : vector<8x64xbf16>, vector<64x32xbf16>, vector<8x32xf32> -> vector<8x32xf32>
    %762 = arith.truncf %761 : vector<8x32xf32> to vector<8x32xbf16>
    %763 = vector.extract_strided_slice %705 {offsets = [0, 0], sizes = [8, 32], strides = [1, 1]} : vector<8x128xf32> to vector<8x32xf32>
    %764 = arith.truncf %763 : vector<8x32xf32> to vector<8x32xbf16>
    %c0_314 = arith.constant 0 : index
    %c0_315 = arith.constant 0 : index
    %c0_316 = arith.constant 0 : index
    %765 = vector.load %arg2[%c0_314, %c0_315, %c0_316] : memref<2x32x384xbf16, #tpu.memory_space<vmem>>, vector<1x32x384xbf16>
    %766 = vector.shape_cast %765 : vector<1x32x384xbf16> to vector<32x384xbf16>
    %cst_317 = arith.constant dense<0.000000e+00> : vector<8x384xf32>
    %767 = tpu.matmul %762, %766, %cst_317 {dimension_numbers = #tpu.dot_dimension_numbers<[1], [0], [0], [1], [0, 0, 1, 1], [], []>} : vector<8x32xbf16>, vector<32x384xbf16>, vector<8x384xf32> -> vector<8x384xf32>
    %c0_318 = arith.constant 0 : index
    %c0_319 = arith.constant 0 : index
    %c0_320 = arith.constant 0 : index
    %768 = vector.load %arg4[%c0_318, %c0_319, %c0_320] : memref<2x1x384xf32, #tpu.memory_space<vmem>>, vector<1x1x384xf32>
    %769 = vector.shape_cast %768 : vector<1x1x384xf32> to vector<1x384xf32>
    %770 = vector.broadcast %769 : vector<1x384xf32> to vector<8x384xf32>
    %771 = arith.addf %767, %770 : vector<8x384xf32>
    %c0_321 = arith.constant 0 : index
    %c0_322 = arith.constant 0 : index
    %c0_323 = arith.constant 0 : index
    %772 = vector.load %arg3[%c0_321, %c0_322, %c0_323] : memref<2x32x384xbf16, #tpu.memory_space<vmem>>, vector<1x32x384xbf16>
    %773 = vector.shape_cast %772 : vector<1x32x384xbf16> to vector<32x384xbf16>
    %cst_324 = arith.constant dense<0.000000e+00> : vector<8x384xf32>
    %774 = tpu.matmul %764, %773, %cst_324 {dimension_numbers = #tpu.dot_dimension_numbers<[1], [0], [0], [1], [0, 0, 1, 1], [], []>} : vector<8x32xbf16>, vector<32x384xbf16>, vector<8x384xf32> -> vector<8x384xf32>
    %775 = vector.extract_strided_slice %771 {offsets = [0, 0], sizes = [8, 128], strides = [1, 1]} : vector<8x384xf32> to vector<8x128xf32>
    %776 = vector.extract_strided_slice %774 {offsets = [0, 0], sizes = [8, 128], strides = [1, 1]} : vector<8x384xf32> to vector<8x128xf32>
    %777 = arith.addf %775, %776 : vector<8x128xf32>
    %778 = arith.negf %777 : vector<8x128xf32>
    %779 = math.exp %778 : vector<8x128xf32>
    %cst_325 = arith.constant 1.000000e+00 : f32
    %780 = vector.broadcast %cst_325 : f32 to vector<8x128xf32>
    %781 = arith.addf %780, %779 : vector<8x128xf32>
    %782 = arith.divf %780, %781 : vector<8x128xf32>
    %783 = vector.extract_strided_slice %771 {offsets = [0, 128], sizes = [8, 128], strides = [1, 1]} : vector<8x384xf32> to vector<8x128xf32>
    %784 = vector.extract_strided_slice %774 {offsets = [0, 128], sizes = [8, 128], strides = [1, 1]} : vector<8x384xf32> to vector<8x128xf32>
    %785 = arith.addf %783, %784 : vector<8x128xf32>
    %786 = arith.negf %785 : vector<8x128xf32>
    %787 = math.exp %786 : vector<8x128xf32>
    %cst_326 = arith.constant 1.000000e+00 : f32
    %788 = vector.broadcast %cst_326 : f32 to vector<8x128xf32>
    %789 = arith.addf %788, %787 : vector<8x128xf32>
    %790 = arith.divf %788, %789 : vector<8x128xf32>
    %791 = vector.extract_strided_slice %771 {offsets = [0, 256], sizes = [8, 128], strides = [1, 1]} : vector<8x384xf32> to vector<8x128xf32>
    %792 = vector.extract_strided_slice %774 {offsets = [0, 256], sizes = [8, 128], strides = [1, 1]} : vector<8x384xf32> to vector<8x128xf32>
    %c0_327 = arith.constant 0 : index
    %c0_328 = arith.constant 0 : index
    %c0_329 = arith.constant 0 : index
    %793 = vector.load %arg5[%c0_327, %c0_328, %c0_329] : memref<2x1x128xf32, #tpu.memory_space<vmem>>, vector<1x1x128xf32>
    %794 = vector.shape_cast %793 : vector<1x1x128xf32> to vector<1x128xf32>
    %795 = vector.broadcast %794 : vector<1x128xf32> to vector<8x128xf32>
    %796 = arith.addf %792, %795 : vector<8x128xf32>
    %797 = arith.mulf %782, %796 : vector<8x128xf32>
    %798 = arith.addf %791, %797 : vector<8x128xf32>
    %799 = math.tanh %798 : vector<8x128xf32>
    %cst_330 = arith.constant 1.000000e+00 : f32
    %800 = vector.broadcast %cst_330 : f32 to vector<8x128xf32>
    %801 = arith.subf %800, %790 : vector<8x128xf32>
    %802 = arith.mulf %801, %799 : vector<8x128xf32>
    %803 = arith.mulf %790, %705 : vector<8x128xf32>
    %804 = arith.addf %802, %803 : vector<8x128xf32>
    %805 = vector.extract_strided_slice %804 {offsets = [0, 0], sizes = [8, 32], strides = [1, 1]} : vector<8x128xf32> to vector<8x32xf32>
    %806 = arith.truncf %805 : vector<8x32xf32> to vector<8x32xbf16>
    %807 = vector.extract_strided_slice %749 {offsets = [0, 0], sizes = [8, 32], strides = [1, 1]} : vector<8x128xf32> to vector<8x32xf32>
    %808 = arith.truncf %807 : vector<8x32xf32> to vector<8x32xbf16>
    %c1_331 = arith.constant 1 : index
    %c0_332 = arith.constant 0 : index
    %c0_333 = arith.constant 0 : index
    %809 = vector.load %arg2[%c1_331, %c0_332, %c0_333] : memref<2x32x384xbf16, #tpu.memory_space<vmem>>, vector<1x32x384xbf16>
    %810 = vector.shape_cast %809 : vector<1x32x384xbf16> to vector<32x384xbf16>
    %cst_334 = arith.constant dense<0.000000e+00> : vector<8x384xf32>
    %811 = tpu.matmul %806, %810, %cst_334 {dimension_numbers = #tpu.dot_dimension_numbers<[1], [0], [0], [1], [0, 0, 1, 1], [], []>} : vector<8x32xbf16>, vector<32x384xbf16>, vector<8x384xf32> -> vector<8x384xf32>
    %c1_335 = arith.constant 1 : index
    %c0_336 = arith.constant 0 : index
    %c0_337 = arith.constant 0 : index
    %812 = vector.load %arg4[%c1_335, %c0_336, %c0_337] : memref<2x1x384xf32, #tpu.memory_space<vmem>>, vector<1x1x384xf32>
    %813 = vector.shape_cast %812 : vector<1x1x384xf32> to vector<1x384xf32>
    %814 = vector.broadcast %813 : vector<1x384xf32> to vector<8x384xf32>
    %815 = arith.addf %811, %814 : vector<8x384xf32>
    %c1_338 = arith.constant 1 : index
    %c0_339 = arith.constant 0 : index
    %c0_340 = arith.constant 0 : index
    %816 = vector.load %arg3[%c1_338, %c0_339, %c0_340] : memref<2x32x384xbf16, #tpu.memory_space<vmem>>, vector<1x32x384xbf16>
    %817 = vector.shape_cast %816 : vector<1x32x384xbf16> to vector<32x384xbf16>
    %cst_341 = arith.constant dense<0.000000e+00> : vector<8x384xf32>
    %818 = tpu.matmul %808, %817, %cst_341 {dimension_numbers = #tpu.dot_dimension_numbers<[1], [0], [0], [1], [0, 0, 1, 1], [], []>} : vector<8x32xbf16>, vector<32x384xbf16>, vector<8x384xf32> -> vector<8x384xf32>
    %819 = vector.extract_strided_slice %815 {offsets = [0, 0], sizes = [8, 128], strides = [1, 1]} : vector<8x384xf32> to vector<8x128xf32>
    %820 = vector.extract_strided_slice %818 {offsets = [0, 0], sizes = [8, 128], strides = [1, 1]} : vector<8x384xf32> to vector<8x128xf32>
    %821 = arith.addf %819, %820 : vector<8x128xf32>
    %822 = arith.negf %821 : vector<8x128xf32>
    %823 = math.exp %822 : vector<8x128xf32>
    %cst_342 = arith.constant 1.000000e+00 : f32
    %824 = vector.broadcast %cst_342 : f32 to vector<8x128xf32>
    %825 = arith.addf %824, %823 : vector<8x128xf32>
    %826 = arith.divf %824, %825 : vector<8x128xf32>
    %827 = vector.extract_strided_slice %815 {offsets = [0, 128], sizes = [8, 128], strides = [1, 1]} : vector<8x384xf32> to vector<8x128xf32>
    %828 = vector.extract_strided_slice %818 {offsets = [0, 128], sizes = [8, 128], strides = [1, 1]} : vector<8x384xf32> to vector<8x128xf32>
    %829 = arith.addf %827, %828 : vector<8x128xf32>
    %830 = arith.negf %829 : vector<8x128xf32>
    %831 = math.exp %830 : vector<8x128xf32>
    %cst_343 = arith.constant 1.000000e+00 : f32
    %832 = vector.broadcast %cst_343 : f32 to vector<8x128xf32>
    %833 = arith.addf %832, %831 : vector<8x128xf32>
    %834 = arith.divf %832, %833 : vector<8x128xf32>
    %835 = vector.extract_strided_slice %815 {offsets = [0, 256], sizes = [8, 128], strides = [1, 1]} : vector<8x384xf32> to vector<8x128xf32>
    %836 = vector.extract_strided_slice %818 {offsets = [0, 256], sizes = [8, 128], strides = [1, 1]} : vector<8x384xf32> to vector<8x128xf32>
    %c1_344 = arith.constant 1 : index
    %c0_345 = arith.constant 0 : index
    %c0_346 = arith.constant 0 : index
    %837 = vector.load %arg5[%c1_344, %c0_345, %c0_346] : memref<2x1x128xf32, #tpu.memory_space<vmem>>, vector<1x1x128xf32>
    %838 = vector.shape_cast %837 : vector<1x1x128xf32> to vector<1x128xf32>
    %839 = vector.broadcast %838 : vector<1x128xf32> to vector<8x128xf32>
    %840 = arith.addf %836, %839 : vector<8x128xf32>
    %841 = arith.mulf %826, %840 : vector<8x128xf32>
    %842 = arith.addf %835, %841 : vector<8x128xf32>
    %843 = math.tanh %842 : vector<8x128xf32>
    %cst_347 = arith.constant 1.000000e+00 : f32
    %844 = vector.broadcast %cst_347 : f32 to vector<8x128xf32>
    %845 = arith.subf %844, %834 : vector<8x128xf32>
    %846 = arith.mulf %845, %843 : vector<8x128xf32>
    %847 = arith.mulf %834, %749 : vector<8x128xf32>
    %848 = arith.addf %846, %847 : vector<8x128xf32>
    %849 = vector.extract_strided_slice %848 {offsets = [0, 0], sizes = [8, 32], strides = [1, 1]} : vector<8x128xf32> to vector<8x32xf32>
    %850 = arith.truncf %849 : vector<8x32xf32> to vector<8x32xbf16>
    %851 = vector.extract_strided_slice %804 {offsets = [0, 0], sizes = [8, 32], strides = [1, 1]} : vector<8x128xf32> to vector<8x32xf32>
    %852 = arith.truncf %851 : vector<8x32xf32> to vector<8x32xbf16>
    %c0_348 = arith.constant 0 : index
    %c0_349 = arith.constant 0 : index
    %c0_350 = arith.constant 0 : index
    %853 = vector.load %arg2[%c0_348, %c0_349, %c0_350] : memref<2x32x384xbf16, #tpu.memory_space<vmem>>, vector<1x32x384xbf16>
    %854 = vector.shape_cast %853 : vector<1x32x384xbf16> to vector<32x384xbf16>
    %cst_351 = arith.constant dense<0.000000e+00> : vector<8x384xf32>
    %855 = tpu.matmul %850, %854, %cst_351 {dimension_numbers = #tpu.dot_dimension_numbers<[1], [0], [0], [1], [0, 0, 1, 1], [], []>} : vector<8x32xbf16>, vector<32x384xbf16>, vector<8x384xf32> -> vector<8x384xf32>
    %c0_352 = arith.constant 0 : index
    %c0_353 = arith.constant 0 : index
    %c0_354 = arith.constant 0 : index
    %856 = vector.load %arg4[%c0_352, %c0_353, %c0_354] : memref<2x1x384xf32, #tpu.memory_space<vmem>>, vector<1x1x384xf32>
    %857 = vector.shape_cast %856 : vector<1x1x384xf32> to vector<1x384xf32>
    %858 = vector.broadcast %857 : vector<1x384xf32> to vector<8x384xf32>
    %859 = arith.addf %855, %858 : vector<8x384xf32>
    %c0_355 = arith.constant 0 : index
    %c0_356 = arith.constant 0 : index
    %c0_357 = arith.constant 0 : index
    %860 = vector.load %arg3[%c0_355, %c0_356, %c0_357] : memref<2x32x384xbf16, #tpu.memory_space<vmem>>, vector<1x32x384xbf16>
    %861 = vector.shape_cast %860 : vector<1x32x384xbf16> to vector<32x384xbf16>
    %cst_358 = arith.constant dense<0.000000e+00> : vector<8x384xf32>
    %862 = tpu.matmul %852, %861, %cst_358 {dimension_numbers = #tpu.dot_dimension_numbers<[1], [0], [0], [1], [0, 0, 1, 1], [], []>} : vector<8x32xbf16>, vector<32x384xbf16>, vector<8x384xf32> -> vector<8x384xf32>
    %863 = vector.extract_strided_slice %859 {offsets = [0, 0], sizes = [8, 128], strides = [1, 1]} : vector<8x384xf32> to vector<8x128xf32>
    %864 = vector.extract_strided_slice %862 {offsets = [0, 0], sizes = [8, 128], strides = [1, 1]} : vector<8x384xf32> to vector<8x128xf32>
    %865 = arith.addf %863, %864 : vector<8x128xf32>
    %866 = arith.negf %865 : vector<8x128xf32>
    %867 = math.exp %866 : vector<8x128xf32>
    %cst_359 = arith.constant 1.000000e+00 : f32
    %868 = vector.broadcast %cst_359 : f32 to vector<8x128xf32>
    %869 = arith.addf %868, %867 : vector<8x128xf32>
    %870 = arith.divf %868, %869 : vector<8x128xf32>
    %871 = vector.extract_strided_slice %859 {offsets = [0, 128], sizes = [8, 128], strides = [1, 1]} : vector<8x384xf32> to vector<8x128xf32>
    %872 = vector.extract_strided_slice %862 {offsets = [0, 128], sizes = [8, 128], strides = [1, 1]} : vector<8x384xf32> to vector<8x128xf32>
    %873 = arith.addf %871, %872 : vector<8x128xf32>
    %874 = arith.negf %873 : vector<8x128xf32>
    %875 = math.exp %874 : vector<8x128xf32>
    %cst_360 = arith.constant 1.000000e+00 : f32
    %876 = vector.broadcast %cst_360 : f32 to vector<8x128xf32>
    %877 = arith.addf %876, %875 : vector<8x128xf32>
    %878 = arith.divf %876, %877 : vector<8x128xf32>
    %879 = vector.extract_strided_slice %859 {offsets = [0, 256], sizes = [8, 128], strides = [1, 1]} : vector<8x384xf32> to vector<8x128xf32>
    %880 = vector.extract_strided_slice %862 {offsets = [0, 256], sizes = [8, 128], strides = [1, 1]} : vector<8x384xf32> to vector<8x128xf32>
    %c0_361 = arith.constant 0 : index
    %c0_362 = arith.constant 0 : index
    %c0_363 = arith.constant 0 : index
    %881 = vector.load %arg5[%c0_361, %c0_362, %c0_363] : memref<2x1x128xf32, #tpu.memory_space<vmem>>, vector<1x1x128xf32>
    %882 = vector.shape_cast %881 : vector<1x1x128xf32> to vector<1x128xf32>
    %883 = vector.broadcast %882 : vector<1x128xf32> to vector<8x128xf32>
    %884 = arith.addf %880, %883 : vector<8x128xf32>
    %885 = arith.mulf %870, %884 : vector<8x128xf32>
    %886 = arith.addf %879, %885 : vector<8x128xf32>
    %887 = math.tanh %886 : vector<8x128xf32>
    %cst_364 = arith.constant 1.000000e+00 : f32
    %888 = vector.broadcast %cst_364 : f32 to vector<8x128xf32>
    %889 = arith.subf %888, %878 : vector<8x128xf32>
    %890 = arith.mulf %889, %887 : vector<8x128xf32>
    %891 = arith.mulf %878, %804 : vector<8x128xf32>
    %892 = arith.addf %890, %891 : vector<8x128xf32>
    %893 = vector.extract_strided_slice %892 {offsets = [0, 0], sizes = [8, 32], strides = [1, 1]} : vector<8x128xf32> to vector<8x32xf32>
    %894 = arith.truncf %893 : vector<8x32xf32> to vector<8x32xbf16>
    %895 = vector.extract_strided_slice %848 {offsets = [0, 0], sizes = [8, 32], strides = [1, 1]} : vector<8x128xf32> to vector<8x32xf32>
    %896 = arith.truncf %895 : vector<8x32xf32> to vector<8x32xbf16>
    %c1_365 = arith.constant 1 : index
    %c0_366 = arith.constant 0 : index
    %c0_367 = arith.constant 0 : index
    %897 = vector.load %arg2[%c1_365, %c0_366, %c0_367] : memref<2x32x384xbf16, #tpu.memory_space<vmem>>, vector<1x32x384xbf16>
    %898 = vector.shape_cast %897 : vector<1x32x384xbf16> to vector<32x384xbf16>
    %cst_368 = arith.constant dense<0.000000e+00> : vector<8x384xf32>
    %899 = tpu.matmul %894, %898, %cst_368 {dimension_numbers = #tpu.dot_dimension_numbers<[1], [0], [0], [1], [0, 0, 1, 1], [], []>} : vector<8x32xbf16>, vector<32x384xbf16>, vector<8x384xf32> -> vector<8x384xf32>
    %c1_369 = arith.constant 1 : index
    %c0_370 = arith.constant 0 : index
    %c0_371 = arith.constant 0 : index
    %900 = vector.load %arg4[%c1_369, %c0_370, %c0_371] : memref<2x1x384xf32, #tpu.memory_space<vmem>>, vector<1x1x384xf32>
    %901 = vector.shape_cast %900 : vector<1x1x384xf32> to vector<1x384xf32>
    %902 = vector.broadcast %901 : vector<1x384xf32> to vector<8x384xf32>
    %903 = arith.addf %899, %902 : vector<8x384xf32>
    %c1_372 = arith.constant 1 : index
    %c0_373 = arith.constant 0 : index
    %c0_374 = arith.constant 0 : index
    %904 = vector.load %arg3[%c1_372, %c0_373, %c0_374] : memref<2x32x384xbf16, #tpu.memory_space<vmem>>, vector<1x32x384xbf16>
    %905 = vector.shape_cast %904 : vector<1x32x384xbf16> to vector<32x384xbf16>
    %cst_375 = arith.constant dense<0.000000e+00> : vector<8x384xf32>
    %906 = tpu.matmul %896, %905, %cst_375 {dimension_numbers = #tpu.dot_dimension_numbers<[1], [0], [0], [1], [0, 0, 1, 1], [], []>} : vector<8x32xbf16>, vector<32x384xbf16>, vector<8x384xf32> -> vector<8x384xf32>
    %907 = vector.extract_strided_slice %903 {offsets = [0, 0], sizes = [8, 128], strides = [1, 1]} : vector<8x384xf32> to vector<8x128xf32>
    %908 = vector.extract_strided_slice %906 {offsets = [0, 0], sizes = [8, 128], strides = [1, 1]} : vector<8x384xf32> to vector<8x128xf32>
    %909 = arith.addf %907, %908 : vector<8x128xf32>
    %910 = arith.negf %909 : vector<8x128xf32>
    %911 = math.exp %910 : vector<8x128xf32>
    %cst_376 = arith.constant 1.000000e+00 : f32
    %912 = vector.broadcast %cst_376 : f32 to vector<8x128xf32>
    %913 = arith.addf %912, %911 : vector<8x128xf32>
    %914 = arith.divf %912, %913 : vector<8x128xf32>
    %915 = vector.extract_strided_slice %903 {offsets = [0, 128], sizes = [8, 128], strides = [1, 1]} : vector<8x384xf32> to vector<8x128xf32>
    %916 = vector.extract_strided_slice %906 {offsets = [0, 128], sizes = [8, 128], strides = [1, 1]} : vector<8x384xf32> to vector<8x128xf32>
    %917 = arith.addf %915, %916 : vector<8x128xf32>
    %918 = arith.negf %917 : vector<8x128xf32>
    %919 = math.exp %918 : vector<8x128xf32>
    %cst_377 = arith.constant 1.000000e+00 : f32
    %920 = vector.broadcast %cst_377 : f32 to vector<8x128xf32>
    %921 = arith.addf %920, %919 : vector<8x128xf32>
    %922 = arith.divf %920, %921 : vector<8x128xf32>
    %923 = vector.extract_strided_slice %903 {offsets = [0, 256], sizes = [8, 128], strides = [1, 1]} : vector<8x384xf32> to vector<8x128xf32>
    %924 = vector.extract_strided_slice %906 {offsets = [0, 256], sizes = [8, 128], strides = [1, 1]} : vector<8x384xf32> to vector<8x128xf32>
    %c1_378 = arith.constant 1 : index
    %c0_379 = arith.constant 0 : index
    %c0_380 = arith.constant 0 : index
    %925 = vector.load %arg5[%c1_378, %c0_379, %c0_380] : memref<2x1x128xf32, #tpu.memory_space<vmem>>, vector<1x1x128xf32>
    %926 = vector.shape_cast %925 : vector<1x1x128xf32> to vector<1x128xf32>
    %927 = vector.broadcast %926 : vector<1x128xf32> to vector<8x128xf32>
    %928 = arith.addf %924, %927 : vector<8x128xf32>
    %929 = arith.mulf %914, %928 : vector<8x128xf32>
    %930 = arith.addf %923, %929 : vector<8x128xf32>
    %931 = math.tanh %930 : vector<8x128xf32>
    %cst_381 = arith.constant 1.000000e+00 : f32
    %932 = vector.broadcast %cst_381 : f32 to vector<8x128xf32>
    %933 = arith.subf %932, %922 : vector<8x128xf32>
    %934 = arith.mulf %933, %931 : vector<8x128xf32>
    %935 = arith.mulf %922, %848 : vector<8x128xf32>
    %936 = arith.addf %934, %935 : vector<8x128xf32>
    %c4_382 = arith.constant 4 : index
    %c0_383 = arith.constant 0 : index
    %c0_384 = arith.constant 0 : index
    %937 = vector.load %arg7[%c4_382, %c0_383, %c0_384] : memref<6x8x128xf32, #tpu.memory_space<vmem>>, vector<1x8x128xf32>
    %938 = vector.shape_cast %937 : vector<1x8x128xf32> to vector<8x128xf32>
    %939 = vector.shape_cast %936 : vector<8x128xf32> to vector<1x8x128xf32>
    tpu.vector_store %arg7[%c4_382, %c0_383, %c0_384], %939 {strides = array<i32>} : memref<6x8x128xf32, #tpu.memory_space<vmem>>, vector<1x8x128xf32>,
    %c5 = arith.constant 5 : index
    %c0_385 = arith.constant 0 : index
    %c0_386 = arith.constant 0 : index
    %940 = vector.load %arg0[%c5, %c0_385, %c0_386] : memref<6x8x1xi32, #tpu.memory_space<vmem>>, vector<1x8x1xi32>
    %941 = vector.shape_cast %940 : vector<1x8x1xi32> to vector<8x1xi32>
    %942 = vector.broadcast %941 : vector<8x1xi32> to vector<8x64xi32>
    %943 = arith.cmpi eq, %0, %942 : vector<8x64xi32>
    %944 = arith.extui %943 : vector<8x64xi1> to vector<8x64xi32>
    %945 = arith.sitofp %944 : vector<8x64xi32> to vector<8x64xf32>
    %946 = arith.truncf %945 : vector<8x64xf32> to vector<8x64xbf16>
    %c0_387 = arith.constant 0 : index
    %c0_388 = arith.constant 0 : index
    %947 = vector.load %arg1[%c0_387, %c0_388] : memref<64x32xbf16, #tpu.memory_space<vmem>>, vector<64x32xbf16>
    %cst_389 = arith.constant dense<0.000000e+00> : vector<8x32xf32>
    %948 = tpu.matmul %946, %947, %cst_389 {dimension_numbers = #tpu.dot_dimension_numbers<[1], [0], [0], [1], [0, 0, 1, 1], [], []>} : vector<8x64xbf16>, vector<64x32xbf16>, vector<8x32xf32> -> vector<8x32xf32>
    %949 = arith.truncf %948 : vector<8x32xf32> to vector<8x32xbf16>
    %950 = vector.extract_strided_slice %892 {offsets = [0, 0], sizes = [8, 32], strides = [1, 1]} : vector<8x128xf32> to vector<8x32xf32>
    %951 = arith.truncf %950 : vector<8x32xf32> to vector<8x32xbf16>
    %c0_390 = arith.constant 0 : index
    %c0_391 = arith.constant 0 : index
    %c0_392 = arith.constant 0 : index
    %952 = vector.load %arg2[%c0_390, %c0_391, %c0_392] : memref<2x32x384xbf16, #tpu.memory_space<vmem>>, vector<1x32x384xbf16>
    %953 = vector.shape_cast %952 : vector<1x32x384xbf16> to vector<32x384xbf16>
    %cst_393 = arith.constant dense<0.000000e+00> : vector<8x384xf32>
    %954 = tpu.matmul %949, %953, %cst_393 {dimension_numbers = #tpu.dot_dimension_numbers<[1], [0], [0], [1], [0, 0, 1, 1], [], []>} : vector<8x32xbf16>, vector<32x384xbf16>, vector<8x384xf32> -> vector<8x384xf32>
    %c0_394 = arith.constant 0 : index
    %c0_395 = arith.constant 0 : index
    %c0_396 = arith.constant 0 : index
    %955 = vector.load %arg4[%c0_394, %c0_395, %c0_396] : memref<2x1x384xf32, #tpu.memory_space<vmem>>, vector<1x1x384xf32>
    %956 = vector.shape_cast %955 : vector<1x1x384xf32> to vector<1x384xf32>
    %957 = vector.broadcast %956 : vector<1x384xf32> to vector<8x384xf32>
    %958 = arith.addf %954, %957 : vector<8x384xf32>
    %c0_397 = arith.constant 0 : index
    %c0_398 = arith.constant 0 : index
    %c0_399 = arith.constant 0 : index
    %959 = vector.load %arg3[%c0_397, %c0_398, %c0_399] : memref<2x32x384xbf16, #tpu.memory_space<vmem>>, vector<1x32x384xbf16>
    %960 = vector.shape_cast %959 : vector<1x32x384xbf16> to vector<32x384xbf16>
    %cst_400 = arith.constant dense<0.000000e+00> : vector<8x384xf32>
    %961 = tpu.matmul %951, %960, %cst_400 {dimension_numbers = #tpu.dot_dimension_numbers<[1], [0], [0], [1], [0, 0, 1, 1], [], []>} : vector<8x32xbf16>, vector<32x384xbf16>, vector<8x384xf32> -> vector<8x384xf32>
    %962 = vector.extract_strided_slice %958 {offsets = [0, 0], sizes = [8, 128], strides = [1, 1]} : vector<8x384xf32> to vector<8x128xf32>
    %963 = vector.extract_strided_slice %961 {offsets = [0, 0], sizes = [8, 128], strides = [1, 1]} : vector<8x384xf32> to vector<8x128xf32>
    %964 = arith.addf %962, %963 : vector<8x128xf32>
    %965 = arith.negf %964 : vector<8x128xf32>
    %966 = math.exp %965 : vector<8x128xf32>
    %cst_401 = arith.constant 1.000000e+00 : f32
    %967 = vector.broadcast %cst_401 : f32 to vector<8x128xf32>
    %968 = arith.addf %967, %966 : vector<8x128xf32>
    %969 = arith.divf %967, %968 : vector<8x128xf32>
    %970 = vector.extract_strided_slice %958 {offsets = [0, 128], sizes = [8, 128], strides = [1, 1]} : vector<8x384xf32> to vector<8x128xf32>
    %971 = vector.extract_strided_slice %961 {offsets = [0, 128], sizes = [8, 128], strides = [1, 1]} : vector<8x384xf32> to vector<8x128xf32>
    %972 = arith.addf %970, %971 : vector<8x128xf32>
    %973 = arith.negf %972 : vector<8x128xf32>
    %974 = math.exp %973 : vector<8x128xf32>
    %cst_402 = arith.constant 1.000000e+00 : f32
    %975 = vector.broadcast %cst_402 : f32 to vector<8x128xf32>
    %976 = arith.addf %975, %974 : vector<8x128xf32>
    %977 = arith.divf %975, %976 : vector<8x128xf32>
    %978 = vector.extract_strided_slice %958 {offsets = [0, 256], sizes = [8, 128], strides = [1, 1]} : vector<8x384xf32> to vector<8x128xf32>
    %979 = vector.extract_strided_slice %961 {offsets = [0, 256], sizes = [8, 128], strides = [1, 1]} : vector<8x384xf32> to vector<8x128xf32>
    %c0_403 = arith.constant 0 : index
    %c0_404 = arith.constant 0 : index
    %c0_405 = arith.constant 0 : index
    %980 = vector.load %arg5[%c0_403, %c0_404, %c0_405] : memref<2x1x128xf32, #tpu.memory_space<vmem>>, vector<1x1x128xf32>
    %981 = vector.shape_cast %980 : vector<1x1x128xf32> to vector<1x128xf32>
    %982 = vector.broadcast %981 : vector<1x128xf32> to vector<8x128xf32>
    %983 = arith.addf %979, %982 : vector<8x128xf32>
    %984 = arith.mulf %969, %983 : vector<8x128xf32>
    %985 = arith.addf %978, %984 : vector<8x128xf32>
    %986 = math.tanh %985 : vector<8x128xf32>
    %cst_406 = arith.constant 1.000000e+00 : f32
    %987 = vector.broadcast %cst_406 : f32 to vector<8x128xf32>
    %988 = arith.subf %987, %977 : vector<8x128xf32>
    %989 = arith.mulf %988, %986 : vector<8x128xf32>
    %990 = arith.mulf %977, %892 : vector<8x128xf32>
    %991 = arith.addf %989, %990 : vector<8x128xf32>
    %992 = vector.extract_strided_slice %991 {offsets = [0, 0], sizes = [8, 32], strides = [1, 1]} : vector<8x128xf32> to vector<8x32xf32>
    %993 = arith.truncf %992 : vector<8x32xf32> to vector<8x32xbf16>
    %994 = vector.extract_strided_slice %936 {offsets = [0, 0], sizes = [8, 32], strides = [1, 1]} : vector<8x128xf32> to vector<8x32xf32>
    %995 = arith.truncf %994 : vector<8x32xf32> to vector<8x32xbf16>
    %c1_407 = arith.constant 1 : index
    %c0_408 = arith.constant 0 : index
    %c0_409 = arith.constant 0 : index
    %996 = vector.load %arg2[%c1_407, %c0_408, %c0_409] : memref<2x32x384xbf16, #tpu.memory_space<vmem>>, vector<1x32x384xbf16>
    %997 = vector.shape_cast %996 : vector<1x32x384xbf16> to vector<32x384xbf16>
    %cst_410 = arith.constant dense<0.000000e+00> : vector<8x384xf32>
    %998 = tpu.matmul %993, %997, %cst_410 {dimension_numbers = #tpu.dot_dimension_numbers<[1], [0], [0], [1], [0, 0, 1, 1], [], []>} : vector<8x32xbf16>, vector<32x384xbf16>, vector<8x384xf32> -> vector<8x384xf32>
    %c1_411 = arith.constant 1 : index
    %c0_412 = arith.constant 0 : index
    %c0_413 = arith.constant 0 : index
    %999 = vector.load %arg4[%c1_411, %c0_412, %c0_413] : memref<2x1x384xf32, #tpu.memory_space<vmem>>, vector<1x1x384xf32>
    %1000 = vector.shape_cast %999 : vector<1x1x384xf32> to vector<1x384xf32>
    %1001 = vector.broadcast %1000 : vector<1x384xf32> to vector<8x384xf32>
    %1002 = arith.addf %998, %1001 : vector<8x384xf32>
    %c1_414 = arith.constant 1 : index
    %c0_415 = arith.constant 0 : index
    %c0_416 = arith.constant 0 : index
    %1003 = vector.load %arg3[%c1_414, %c0_415, %c0_416] : memref<2x32x384xbf16, #tpu.memory_space<vmem>>, vector<1x32x384xbf16>
    %1004 = vector.shape_cast %1003 : vector<1x32x384xbf16> to vector<32x384xbf16>
    %cst_417 = arith.constant dense<0.000000e+00> : vector<8x384xf32>
    %1005 = tpu.matmul %995, %1004, %cst_417 {dimension_numbers = #tpu.dot_dimension_numbers<[1], [0], [0], [1], [0, 0, 1, 1], [], []>} : vector<8x32xbf16>, vector<32x384xbf16>, vector<8x384xf32> -> vector<8x384xf32>
    %1006 = vector.extract_strided_slice %1002 {offsets = [0, 0], sizes = [8, 128], strides = [1, 1]} : vector<8x384xf32> to vector<8x128xf32>
    %1007 = vector.extract_strided_slice %1005 {offsets = [0, 0], sizes = [8, 128], strides = [1, 1]} : vector<8x384xf32> to vector<8x128xf32>
    %1008 = arith.addf %1006, %1007 : vector<8x128xf32>
    %1009 = arith.negf %1008 : vector<8x128xf32>
    %1010 = math.exp %1009 : vector<8x128xf32>
    %cst_418 = arith.constant 1.000000e+00 : f32
    %1011 = vector.broadcast %cst_418 : f32 to vector<8x128xf32>
    %1012 = arith.addf %1011, %1010 : vector<8x128xf32>
    %1013 = arith.divf %1011, %1012 : vector<8x128xf32>
    %1014 = vector.extract_strided_slice %1002 {offsets = [0, 128], sizes = [8, 128], strides = [1, 1]} : vector<8x384xf32> to vector<8x128xf32>
    %1015 = vector.extract_strided_slice %1005 {offsets = [0, 128], sizes = [8, 128], strides = [1, 1]} : vector<8x384xf32> to vector<8x128xf32>
    %1016 = arith.addf %1014, %1015 : vector<8x128xf32>
    %1017 = arith.negf %1016 : vector<8x128xf32>
    %1018 = math.exp %1017 : vector<8x128xf32>
    %cst_419 = arith.constant 1.000000e+00 : f32
    %1019 = vector.broadcast %cst_419 : f32 to vector<8x128xf32>
    %1020 = arith.addf %1019, %1018 : vector<8x128xf32>
    %1021 = arith.divf %1019, %1020 : vector<8x128xf32>
    %1022 = vector.extract_strided_slice %1002 {offsets = [0, 256], sizes = [8, 128], strides = [1, 1]} : vector<8x384xf32> to vector<8x128xf32>
    %1023 = vector.extract_strided_slice %1005 {offsets = [0, 256], sizes = [8, 128], strides = [1, 1]} : vector<8x384xf32> to vector<8x128xf32>
    %c1_420 = arith.constant 1 : index
    %c0_421 = arith.constant 0 : index
    %c0_422 = arith.constant 0 : index
    %1024 = vector.load %arg5[%c1_420, %c0_421, %c0_422] : memref<2x1x128xf32, #tpu.memory_space<vmem>>, vector<1x1x128xf32>
    %1025 = vector.shape_cast %1024 : vector<1x1x128xf32> to vector<1x128xf32>
    %1026 = vector.broadcast %1025 : vector<1x128xf32> to vector<8x128xf32>
    %1027 = arith.addf %1023, %1026 : vector<8x128xf32>
    %1028 = arith.mulf %1013, %1027 : vector<8x128xf32>
    %1029 = arith.addf %1022, %1028 : vector<8x128xf32>
    %1030 = math.tanh %1029 : vector<8x128xf32>
    %cst_423 = arith.constant 1.000000e+00 : f32
    %1031 = vector.broadcast %cst_423 : f32 to vector<8x128xf32>
    %1032 = arith.subf %1031, %1021 : vector<8x128xf32>
    %1033 = arith.mulf %1032, %1030 : vector<8x128xf32>
    %1034 = arith.mulf %1021, %936 : vector<8x128xf32>
    %1035 = arith.addf %1033, %1034 : vector<8x128xf32>
    %1036 = vector.extract_strided_slice %1035 {offsets = [0, 0], sizes = [8, 32], strides = [1, 1]} : vector<8x128xf32> to vector<8x32xf32>
    %1037 = arith.truncf %1036 : vector<8x32xf32> to vector<8x32xbf16>
    %1038 = vector.extract_strided_slice %991 {offsets = [0, 0], sizes = [8, 32], strides = [1, 1]} : vector<8x128xf32> to vector<8x32xf32>
    %1039 = arith.truncf %1038 : vector<8x32xf32> to vector<8x32xbf16>
    %c0_424 = arith.constant 0 : index
    %c0_425 = arith.constant 0 : index
    %c0_426 = arith.constant 0 : index
    %1040 = vector.load %arg2[%c0_424, %c0_425, %c0_426] : memref<2x32x384xbf16, #tpu.memory_space<vmem>>, vector<1x32x384xbf16>
    %1041 = vector.shape_cast %1040 : vector<1x32x384xbf16> to vector<32x384xbf16>
    %cst_427 = arith.constant dense<0.000000e+00> : vector<8x384xf32>
    %1042 = tpu.matmul %1037, %1041, %cst_427 {dimension_numbers = #tpu.dot_dimension_numbers<[1], [0], [0], [1], [0, 0, 1, 1], [], []>} : vector<8x32xbf16>, vector<32x384xbf16>, vector<8x384xf32> -> vector<8x384xf32>
    %c0_428 = arith.constant 0 : index
    %c0_429 = arith.constant 0 : index
    %c0_430 = arith.constant 0 : index
    %1043 = vector.load %arg4[%c0_428, %c0_429, %c0_430] : memref<2x1x384xf32, #tpu.memory_space<vmem>>, vector<1x1x384xf32>
    %1044 = vector.shape_cast %1043 : vector<1x1x384xf32> to vector<1x384xf32>
    %1045 = vector.broadcast %1044 : vector<1x384xf32> to vector<8x384xf32>
    %1046 = arith.addf %1042, %1045 : vector<8x384xf32>
    %c0_431 = arith.constant 0 : index
    %c0_432 = arith.constant 0 : index
    %c0_433 = arith.constant 0 : index
    %1047 = vector.load %arg3[%c0_431, %c0_432, %c0_433] : memref<2x32x384xbf16, #tpu.memory_space<vmem>>, vector<1x32x384xbf16>
    %1048 = vector.shape_cast %1047 : vector<1x32x384xbf16> to vector<32x384xbf16>
    %cst_434 = arith.constant dense<0.000000e+00> : vector<8x384xf32>
    %1049 = tpu.matmul %1039, %1048, %cst_434 {dimension_numbers = #tpu.dot_dimension_numbers<[1], [0], [0], [1], [0, 0, 1, 1], [], []>} : vector<8x32xbf16>, vector<32x384xbf16>, vector<8x384xf32> -> vector<8x384xf32>
    %1050 = vector.extract_strided_slice %1046 {offsets = [0, 0], sizes = [8, 128], strides = [1, 1]} : vector<8x384xf32> to vector<8x128xf32>
    %1051 = vector.extract_strided_slice %1049 {offsets = [0, 0], sizes = [8, 128], strides = [1, 1]} : vector<8x384xf32> to vector<8x128xf32>
    %1052 = arith.addf %1050, %1051 : vector<8x128xf32>
    %1053 = arith.negf %1052 : vector<8x128xf32>
    %1054 = math.exp %1053 : vector<8x128xf32>
    %cst_435 = arith.constant 1.000000e+00 : f32
    %1055 = vector.broadcast %cst_435 : f32 to vector<8x128xf32>
    %1056 = arith.addf %1055, %1054 : vector<8x128xf32>
    %1057 = arith.divf %1055, %1056 : vector<8x128xf32>
    %1058 = vector.extract_strided_slice %1046 {offsets = [0, 128], sizes = [8, 128], strides = [1, 1]} : vector<8x384xf32> to vector<8x128xf32>
    %1059 = vector.extract_strided_slice %1049 {offsets = [0, 128], sizes = [8, 128], strides = [1, 1]} : vector<8x384xf32> to vector<8x128xf32>
    %1060 = arith.addf %1058, %1059 : vector<8x128xf32>
    %1061 = arith.negf %1060 : vector<8x128xf32>
    %1062 = math.exp %1061 : vector<8x128xf32>
    %cst_436 = arith.constant 1.000000e+00 : f32
    %1063 = vector.broadcast %cst_436 : f32 to vector<8x128xf32>
    %1064 = arith.addf %1063, %1062 : vector<8x128xf32>
    %1065 = arith.divf %1063, %1064 : vector<8x128xf32>
    %1066 = vector.extract_strided_slice %1046 {offsets = [0, 256], sizes = [8, 128], strides = [1, 1]} : vector<8x384xf32> to vector<8x128xf32>
    %1067 = vector.extract_strided_slice %1049 {offsets = [0, 256], sizes = [8, 128], strides = [1, 1]} : vector<8x384xf32> to vector<8x128xf32>
    %c0_437 = arith.constant 0 : index
    %c0_438 = arith.constant 0 : index
    %c0_439 = arith.constant 0 : index
    %1068 = vector.load %arg5[%c0_437, %c0_438, %c0_439] : memref<2x1x128xf32, #tpu.memory_space<vmem>>, vector<1x1x128xf32>
    %1069 = vector.shape_cast %1068 : vector<1x1x128xf32> to vector<1x128xf32>
    %1070 = vector.broadcast %1069 : vector<1x128xf32> to vector<8x128xf32>
    %1071 = arith.addf %1067, %1070 : vector<8x128xf32>
    %1072 = arith.mulf %1057, %1071 : vector<8x128xf32>
    %1073 = arith.addf %1066, %1072 : vector<8x128xf32>
    %1074 = math.tanh %1073 : vector<8x128xf32>
    %cst_440 = arith.constant 1.000000e+00 : f32
    %1075 = vector.broadcast %cst_440 : f32 to vector<8x128xf32>
    %1076 = arith.subf %1075, %1065 : vector<8x128xf32>
    %1077 = arith.mulf %1076, %1074 : vector<8x128xf32>
    %1078 = arith.mulf %1065, %991 : vector<8x128xf32>
    %1079 = arith.addf %1077, %1078 : vector<8x128xf32>
    %1080 = vector.extract_strided_slice %1079 {offsets = [0, 0], sizes = [8, 32], strides = [1, 1]} : vector<8x128xf32> to vector<8x32xf32>
    %1081 = arith.truncf %1080 : vector<8x32xf32> to vector<8x32xbf16>
    %1082 = vector.extract_strided_slice %1035 {offsets = [0, 0], sizes = [8, 32], strides = [1, 1]} : vector<8x128xf32> to vector<8x32xf32>
    %1083 = arith.truncf %1082 : vector<8x32xf32> to vector<8x32xbf16>
    %c1_441 = arith.constant 1 : index
    %c0_442 = arith.constant 0 : index
    %c0_443 = arith.constant 0 : index
    %1084 = vector.load %arg2[%c1_441, %c0_442, %c0_443] : memref<2x32x384xbf16, #tpu.memory_space<vmem>>, vector<1x32x384xbf16>
    %1085 = vector.shape_cast %1084 : vector<1x32x384xbf16> to vector<32x384xbf16>
    %cst_444 = arith.constant dense<0.000000e+00> : vector<8x384xf32>
    %1086 = tpu.matmul %1081, %1085, %cst_444 {dimension_numbers = #tpu.dot_dimension_numbers<[1], [0], [0], [1], [0, 0, 1, 1], [], []>} : vector<8x32xbf16>, vector<32x384xbf16>, vector<8x384xf32> -> vector<8x384xf32>
    %c1_445 = arith.constant 1 : index
    %c0_446 = arith.constant 0 : index
    %c0_447 = arith.constant 0 : index
    %1087 = vector.load %arg4[%c1_445, %c0_446, %c0_447] : memref<2x1x384xf32, #tpu.memory_space<vmem>>, vector<1x1x384xf32>
    %1088 = vector.shape_cast %1087 : vector<1x1x384xf32> to vector<1x384xf32>
    %1089 = vector.broadcast %1088 : vector<1x384xf32> to vector<8x384xf32>
    %1090 = arith.addf %1086, %1089 : vector<8x384xf32>
    %c1_448 = arith.constant 1 : index
    %c0_449 = arith.constant 0 : index
    %c0_450 = arith.constant 0 : index
    %1091 = vector.load %arg3[%c1_448, %c0_449, %c0_450] : memref<2x32x384xbf16, #tpu.memory_space<vmem>>, vector<1x32x384xbf16>
    %1092 = vector.shape_cast %1091 : vector<1x32x384xbf16> to vector<32x384xbf16>
    %cst_451 = arith.constant dense<0.000000e+00> : vector<8x384xf32>
    %1093 = tpu.matmul %1083, %1092, %cst_451 {dimension_numbers = #tpu.dot_dimension_numbers<[1], [0], [0], [1], [0, 0, 1, 1], [], []>} : vector<8x32xbf16>, vector<32x384xbf16>, vector<8x384xf32> -> vector<8x384xf32>
    %1094 = vector.extract_strided_slice %1090 {offsets = [0, 0], sizes = [8, 128], strides = [1, 1]} : vector<8x384xf32> to vector<8x128xf32>
    %1095 = vector.extract_strided_slice %1093 {offsets = [0, 0], sizes = [8, 128], strides = [1, 1]} : vector<8x384xf32> to vector<8x128xf32>
    %1096 = arith.addf %1094, %1095 : vector<8x128xf32>
    %1097 = arith.negf %1096 : vector<8x128xf32>
    %1098 = math.exp %1097 : vector<8x128xf32>
    %cst_452 = arith.constant 1.000000e+00 : f32
    %1099 = vector.broadcast %cst_452 : f32 to vector<8x128xf32>
    %1100 = arith.addf %1099, %1098 : vector<8x128xf32>
    %1101 = arith.divf %1099, %1100 : vector<8x128xf32>
    %1102 = vector.extract_strided_slice %1090 {offsets = [0, 128], sizes = [8, 128], strides = [1, 1]} : vector<8x384xf32> to vector<8x128xf32>
    %1103 = vector.extract_strided_slice %1093 {offsets = [0, 128], sizes = [8, 128], strides = [1, 1]} : vector<8x384xf32> to vector<8x128xf32>
    %1104 = arith.addf %1102, %1103 : vector<8x128xf32>
    %1105 = arith.negf %1104 : vector<8x128xf32>
    %1106 = math.exp %1105 : vector<8x128xf32>
    %cst_453 = arith.constant 1.000000e+00 : f32
    %1107 = vector.broadcast %cst_453 : f32 to vector<8x128xf32>
    %1108 = arith.addf %1107, %1106 : vector<8x128xf32>
    %1109 = arith.divf %1107, %1108 : vector<8x128xf32>
    %1110 = vector.extract_strided_slice %1090 {offsets = [0, 256], sizes = [8, 128], strides = [1, 1]} : vector<8x384xf32> to vector<8x128xf32>
    %1111 = vector.extract_strided_slice %1093 {offsets = [0, 256], sizes = [8, 128], strides = [1, 1]} : vector<8x384xf32> to vector<8x128xf32>
    %c1_454 = arith.constant 1 : index
    %c0_455 = arith.constant 0 : index
    %c0_456 = arith.constant 0 : index
    %1112 = vector.load %arg5[%c1_454, %c0_455, %c0_456] : memref<2x1x128xf32, #tpu.memory_space<vmem>>, vector<1x1x128xf32>
    %1113 = vector.shape_cast %1112 : vector<1x1x128xf32> to vector<1x128xf32>
    %1114 = vector.broadcast %1113 : vector<1x128xf32> to vector<8x128xf32>
    %1115 = arith.addf %1111, %1114 : vector<8x128xf32>
    %1116 = arith.mulf %1101, %1115 : vector<8x128xf32>
    %1117 = arith.addf %1110, %1116 : vector<8x128xf32>
    %1118 = math.tanh %1117 : vector<8x128xf32>
    %cst_457 = arith.constant 1.000000e+00 : f32
    %1119 = vector.broadcast %cst_457 : f32 to vector<8x128xf32>
    %1120 = arith.subf %1119, %1109 : vector<8x128xf32>
    %1121 = arith.mulf %1120, %1118 : vector<8x128xf32>
    %1122 = arith.mulf %1109, %1035 : vector<8x128xf32>
    %1123 = arith.addf %1121, %1122 : vector<8x128xf32>
    %c5_458 = arith.constant 5 : index
    %c0_459 = arith.constant 0 : index
    %c0_460 = arith.constant 0 : index
    %1124 = vector.load %arg7[%c5_458, %c0_459, %c0_460] : memref<6x8x128xf32, #tpu.memory_space<vmem>>, vector<1x8x128xf32>
    %1125 = vector.shape_cast %1124 : vector<1x8x128xf32> to vector<8x128xf32>
    %1126 = vector.shape_cast %1123 : vector<8x128xf32> to vector<1x8x128xf32>
    tpu.vector_store %arg7[%c5_458, %c0_459, %c0_460], %1126 {strides = array<i32>} : memref<6x8x128xf32, #tpu.memory_space<vmem>>, vector<1x8x128xf32>,
    %c0_461 = arith.constant 0 : index
    %c0_462 = arith.constant 0 : index
    %c0_463 = arith.constant 0 : index
    %1127 = vector.load %arg8[%c0_461, %c0_462, %c0_463] : memref<2x8x128xf32, #tpu.memory_space<vmem>>, vector<1x8x128xf32>
    %1128 = vector.shape_cast %1127 : vector<1x8x128xf32> to vector<8x128xf32>
    %1129 = vector.shape_cast %1079 : vector<8x128xf32> to vector<1x8x128xf32>
    tpu.vector_store %arg8[%c0_461, %c0_462, %c0_463], %1129 {strides = array<i32>} : memref<2x8x128xf32, #tpu.memory_space<vmem>>, vector<1x8x128xf32>,
    %c1_464 = arith.constant 1 : index
    %c0_465 = arith.constant 0 : index
    %c0_466 = arith.constant 0 : index
    %1130 = vector.load %arg8[%c1_464, %c0_465, %c0_466] : memref<2x8x128xf32, #tpu.memory_space<vmem>>, vector<1x8x128xf32>
    %1131 = vector.shape_cast %1130 : vector<1x8x128xf32> to vector<8x128xf32>
    %1132 = vector.shape_cast %1123 : vector<8x128xf32> to vector<1x8x128xf32>
    tpu.vector_store %arg8[%c1_464, %c0_465, %c0_466], %1132 {strides = array<i32>} : memref<2x8x128xf32, #tpu.memory_space<vmem>>, vector<1x8x128xf32>,
    return
  }
}

</mosaic_0001>

<llo_original>
// kernel: _encoder_seq_impl.1
$region0: #{_encoder_seq_impl.1}
  #allocation0 [shape = 'u32[]', space=smem, size = 0x4, offset = 0x4, fixed_abs, tag = 'smem constant byte address 0x4 - core index']
  #allocation1 [shape = 'u32[144,128]{1,0:T(1,128)}', space=vmem, size = 0x12000, scoped, tag = 'internal scratch']
  %s0 = inlined_call_operand.vmem [shape: s32[6,8,1], index: 0, kind: input, shape index: {}]
  %s1 = inlined_call_operand.vmem [shape: bf16[64,32], index: 1, kind: input, shape index: {}]
  %s2 = inlined_call_operand.vmem [shape: bf16[2,32,384], index: 2, kind: input, shape index: {}]
  %s3 = inlined_call_operand.hbm [shape: bf16[2,32,384], index: 3, kind: input, shape index: {}]
  %s4 = inlined_call_operand.vmem [shape: f32[2,1,384], index: 4, kind: input, shape index: {}]
  %s5 = inlined_call_operand.vmem [shape: f32[2,1,128], index: 5, kind: input, shape index: {}]
  %s6 = inlined_call_operand.hbm [shape: f32[2,8,128], index: 6, kind: input, shape index: {}, may-alias: {6,8}]
  %s7 = inlined_call_operand.hbm [shape: f32[6,8,128], index: 7, kind: output, shape index: {0}]
  %s8 = inlined_call_operand.hbm [shape: f32[2,8,128], index: 8, kind: output, shape index: {1}, may-alias: {6,8}]
  %9 = xla_tuple %s7, %s8
  %s10 = sld [smem:[#allocation0]]
  $region54: #{_encoder_seq_impl.1} parent=0
    _
  %s12 = ssub.s32 1, %s10
  %s13 = scalar_select 0, %s12, %s10
  $region1: #{_encoder_seq_impl.1} parent=0
    #allocation2 [shape = 'u8[49152]{0}', space=vmem, size = 0xc000, scoped, tag = 'input window, operand 3, single buffered']
    #allocation3 [shape = 's32[1]{0}', space=sflag, size = 0x4, scoped, tag = 'scoped memory for _encoder_seq_impl.1']
    #allocation4 [shape = 's32[1]{0}', space=sflag, size = 0x4, scoped, tag = 'scoped memory for _encoder_seq_impl.1']
    #allocation5 [shape = 'u8[8192]{0}', space=vmem, size = 0x2000, scoped, tag = 'input window, operand 6, single buffered']
    #allocation6 [shape = 's32[1]{0}', space=sflag, size = 0x4, scoped, tag = 'scoped memory for _encoder_seq_impl.1']
    #allocation7 [shape = 'u8[24576]{0}', space=vmem, size = 0x6000, scoped, tag = 'output window, operand 0, single buffered']
    #allocation8 [shape = 'u8[8192]{0}', space=vmem, size = 0x2000, scoped, tag = 'output window, operand 1, single buffered']
    #allocation9 [shape = 's32[1]{0}', space=sflag, size = 0x4, scoped, tag = 'scoped memory for _encoder_seq_impl.1']
    %14 = vsyncpa [#allocation3], 0
    %15 = vsyncpa [#allocation6], 0
    %16 = vsyncpa [#allocation4], 0
    %17 = vsyncpa [#allocation9], 0
    // Predicated region
    $region2: #{_encoder_seq_impl.1} parent=1 // pred_check
      _
    $region3: #{_encoder_seq_impl.1} parent=1 // pred_check_branch
      %19 = sbr.rel (0) target = $region5
    $region4: #{_encoder_seq_impl.1} parent=1 // pred_region
      _
    $region5: #{_encoder_seq_impl.1} parent=1 // pred_fallthru
      _
    // Predicated region
    $region6: #{_encoder_seq_impl.1} parent=1 // pred_check
      _
    $region7: #{_encoder_seq_impl.1} parent=1 // pred_check_branch
      %21 = sbr.rel (0) target = $region9
    $region8: #{_encoder_seq_impl.1} parent=1 // pred_region
      _
    $region9: #{_encoder_seq_impl.1} parent=1 // pred_fallthru
      _
    // Predicated region
    $region10: #{_encoder_seq_impl.1} parent=1 // pred_check
      _
    $region11: #{_encoder_seq_impl.1} parent=1 // pred_check_branch
      %23 = sbr.rel (0) target = $region13
    $region12: #{_encoder_seq_impl.1} parent=1 // pred_region
      _
    $region13: #{_encoder_seq_impl.1} parent=1 // pred_fallthru
      _
    // Predicated region
    $region14: #{_encoder_seq_impl.1} parent=1 // pred_check
      _
    $region15: #{_encoder_seq_impl.1} parent=1 // pred_check_branch
      %25 = sbr.rel (0) target = $region17
    $region16: #{_encoder_seq_impl.1} parent=1 // pred_region
      %s27 = ssub.s32 1536, 1536
      %28 = vsyncadd [#allocation3], %s27
      %s29 = sshll.u32 [#allocation2], 4
      %s30 = int_to_ptr.vmem [resolvable:$true] %s29
      %35 = dma.hbm_to_vmem [thread:$0]  %s3, 1536, %s30, [#allocation3], 192, 192, 12
    $region17: #{_encoder_seq_impl.1} parent=1 // pred_fallthru
      _
    // Predicated region
    $region18: #{_encoder_seq_impl.1} parent=1 // pred_check
      _
    $region19: #{_encoder_seq_impl.1} parent=1 // pred_check_branch
      %37 = sbr.rel (0) target = $region21
    $region20: #{_encoder_seq_impl.1} parent=1 // pred_region
      _
    $region21: #{_encoder_seq_impl.1} parent=1 // pred_fallthru
      _
    // Predicated region
    $region22: #{_encoder_seq_impl.1} parent=1 // pred_check
      _
    $region23: #{_encoder_seq_impl.1} parent=1 // pred_check_branch
      %39 = sbr.rel (0) target = $region25
    $region24: #{_encoder_seq_impl.1} parent=1 // pred_region
      _
    $region25: #{_encoder_seq_impl.1} parent=1 // pred_fallthru
      _
    // Predicated region
    $region26: #{_encoder_seq_impl.1} parent=1 // pred_check
      _
    $region27: #{_encoder_seq_impl.1} parent=1 // pred_check_branch
      %41 = sbr.rel (0) target = $region29
    $region28: #{_encoder_seq_impl.1} parent=1 // pred_region
      %s43 = ssub.s32 256, 256
      %44 = vsyncadd [#allocation6], %s43
      %s45 = sshll.u32 [#allocation5], 4
      %s46 = int_to_ptr.vmem [resolvable:$true] %s45
      %51 = dma.hbm_to_vmem [thread:$0]  %s6, 256, %s46, [#allocation6], 128, 128, 8
    $region29: #{_encoder_seq_impl.1} parent=1 // pred_fallthru
      _
    // Predicated region
    $region30: #{_encoder_seq_impl.1} parent=1 // pred_check
      _
    $region31: #{_encoder_seq_impl.1} parent=1 // pred_check_branch
      %53 = sbr.rel (0) target = $region33
    $region32: #{_encoder_seq_impl.1} parent=1 // pred_region
      %54 = dma.done [#allocation3], 1536
    $region33: #{_encoder_seq_impl.1} parent=1 // pred_fallthru
      _
    // Predicated region
    $region34: #{_encoder_seq_impl.1} parent=1 // pred_check
      _
    $region35: #{_encoder_seq_impl.1} parent=1 // pred_check_branch
      %56 = sbr.rel (0) target = $region37
    $region36: #{_encoder_seq_impl.1} parent=1 // pred_region
      %57 = dma.done [#allocation6], 256
    $region37: #{_encoder_seq_impl.1} parent=1 // pred_fallthru
      _
    %v59 = vlaneseq
    %v60 = vand.u32 %v59, 127
    %v61 = vld [vmem:[#allocation5] sm:$0xff]
    %s62 = scalar_lea.vmem [#allocation5], 8
    %v63 = vld [vmem:[%s62] sm:$0xff]
    %v64 = vld [vmem:[%s0] sm:$0xff]
    %65 = vset.pattern.permute.xlu0 0
    %66 = vperm.xlu0 %65, %v64
    %v67 = vpop.permute.xlu0 %66
    %vm68 = vcmp.eq.s32.totalorder %v60, %v67
    %v69 = vsel %vm68, 1, 0
    %v70 = vcvt.s32.f32 %v69
    %v71 = vpack.c.bf16 %v70, %v70
    %v72 = vld [vmem:[%s1] sm:$0xf]
    %v73 = vld [vmem:[%s1 + $0x4] sm:$0xf]
    %v74 = vld [vmem:[%s1 + $0x8] sm:$0xf]
    %v75 = vld [vmem:[%s1 + $0xc] sm:$0xf]
    %v76 = vld [vmem:[%s1 + $0x10] sm:$0xf]
    %v77 = vld [vmem:[%s1 + $0x14] sm:$0xf]
    %v78 = vld [vmem:[%s1 + $0x18] sm:$0xf]
    %v79 = vld [vmem:[%s1 + $0x1c] sm:$0xf]
    %v88 = vunpack.c.l.b16 %v72
    %v89 = vunpack.c.l.b16 %v73
    %v90 = vunpack.c.l.b16 %v74
    %v91 = vunpack.c.l.b16 %v75
    %v92 = vunpack.c.l.b16 %v76
    %v93 = vunpack.c.l.b16 %v77
    %v94 = vunpack.c.l.b16 %v78
    %v95 = vunpack.c.l.b16 %v79
    %v96 = vpack.c.b16 %v89, %v88
    %v97 = vpack.c.b16 %v91, %v90
    %v98 = vpack.c.b16 %v93, %v92
    %v99 = vpack.c.b16 %v95, %v94
    %vm104 = vcmask 523264
    %v106 = vsel %vm104, %v71, 0
    %108 = vmatprep.subr.bf16.mxu0 0
    %109 = vmatpush1.bf16.msra.mxu0 %v96
    %110 = vmatprep.subr.bf16.mxu0 0
    %111 = vmatpush1.bf16.msra.mxu0 %v97
    %112 = vmatprep.subr.bf16.mxu0 0
    %113 = vmatpush1.bf16.msra.mxu0 %v98
    %114 = vmatprep.subr.bf16.mxu0 0
    %115 = vmatpush1.bf16.msra.mxu0 %v99
    %116 = vmatprep.subr.bf16.mxu0 0
    %117 = vmatpush1.bf16.msra.mxu0 0
    %118 = vmatprep.subr.bf16.mxu0 0
    %119 = vmatpush1.bf16.msra.mxu0 0
    %120 = vmatprep.subr.bf16.mxu0 0
    %121 = vmatpush1.bf16.msra.mxu0 0
    %122 = vmatprep.subr.bf16.mxu0 0
    %123 = vmatpush1.bf16.msra.mxu0 0
    %124 = vmatprep.subr.bf16.mxu0 0
    %125 = vmatpush1.bf16.msra.mxu0 0
    %126 = vmatprep.subr.bf16.mxu0 0
    %127 = vmatpush1.bf16.msra.mxu0 0
    %128 = vmatprep.subr.bf16.mxu0 0
    %129 = vmatpush1.bf16.msra.mxu0 0
    %130 = vmatprep.subr.bf16.mxu0 0
    %131 = vmatpush1.bf16.msra.mxu0 0
    %132 = vmatprep.subr.bf16.mxu0 0
    %133 = vmatpush1.bf16.msra.mxu0 0
    %134 = vmatprep.subr.bf16.mxu0 0
    %135 = vmatpush1.bf16.msra.mxu0 0
    %136 = vmatprep.subr.bf16.mxu0 0
    %137 = vmatpush1.bf16.msra.mxu0 0
    %138 = vmatprep.subr.bf16.mxu0 0
    %139 = vmatpush1.bf16.msra.mxu0 0
    %140 = vmatprep.mubr.bf16.mxu0 0
    %141 = vmatmul.mubr.bf16.gmra.mrb[0].mxu0 %v106
    %v142 = vpop.f32.mrb[0].mxu0
    %v143 = vadd.f32 0.0, %v142
    %v144 = vpop.f32.mrb[0].mxu0
    %v145 = vpop.f32.mrb[0].mxu0
    %v146 = vpop.f32.mrb[0].mxu0
    %147 = vdwg.mxu0
    %v148 = vpack.c.bf16 %v143, %v143
    %v149 = vpack.c.bf16 %v61, %v61
    %v150 = vld [vmem:[%s2] sm:$0xff]
    %v151 = vld [vmem:[%s2 + $0x8] sm:$0xf]
    %v152 = vld [vmem:[%s2 + $0xc] sm:$0xff]
    %v153 = vld [vmem:[%s2 + $0x14] sm:$0xf]
    %v154 = vld [vmem:[%s2 + $0x18] sm:$0xff]
    %v155 = vld [vmem:[%s2 + $0x20] sm:$0xf]
    %v156 = vld [vmem:[%s2 + $0x24] sm:$0xff]
    %v157 = vld [vmem:[%s2 + $0x2c] sm:$0xf]
    %v158 = vld [vmem:[%s4] sm:$0x7]
    %v160 = vlaneseq
    %v161 = vshrl.u32 %v160, 7
    %v162 = vsub.s32 0, %v161
    %v163 = vrot.slane %v158, %v162
    %v164 = vlaneseq
    %v165 = vshrl.u32 %v164, 7
    %v166 = vsub.s32 1, %v165
    %v167 = vrot.slane %v158, %v166
    %v168 = vlaneseq
    %v169 = vshrl.u32 %v168, 7
    %v170 = vsub.s32 2, %v169
    %v171 = vrot.slane %v158, %v170
    %v183 = vunpack.c.l.b16 %v150
    %v184 = vunpack.c.h.b16 %v150
    %v185 = vunpack.c.l.b16 %v151
    %v186 = vunpack.c.l.b16 %v152
    %v187 = vunpack.c.h.b16 %v152
    %v188 = vunpack.c.l.b16 %v153
    %v189 = vunpack.c.l.b16 %v154
    %v190 = vunpack.c.h.b16 %v154
    %v191 = vunpack.c.l.b16 %v155
    %v192 = vunpack.c.l.b16 %v156
    %v193 = vunpack.c.h.b16 %v156
    %v194 = vunpack.c.l.b16 %v157
    %v195 = vpack.c.b16 %v186, %v183
    %v196 = vpack.c.b16 %v187, %v184
    %v197 = vpack.c.b16 %v188, %v185
    %v198 = vpack.c.b16 %v192, %v189
    %v199 = vpack.c.b16 %v193, %v190
    %v200 = vpack.c.b16 %v194, %v191
    %vm207 = vcmask 261120
    %v209 = vsel %vm207, %v148, 0
    %211 = vmatprep.subr.bf16.mxu0 %v196
    %212 = vmatpush1.bf16.msra.mxu0 %v195
    %213 = vmatprep.subr.bf16.mxu0 %v199
    %214 = vmatpush1.bf16.msra.mxu0 %v198
    %215 = vmatprep.subr.bf16.mxu0 0
    %216 = vmatpush1.bf16.msra.mxu0 0
    %217 = vmatprep.subr.bf16.mxu0 0
    %218 = vmatpush1.bf16.msra.mxu0 0
    %219 = vmatprep.subr.bf16.mxu0 0
    %220 = vmatpush1.bf16.msra.mxu0 0
    %221 = vmatprep.subr.bf16.mxu0 0
    %222 = vmatpush1.bf16.msra.mxu0 0
    %223 = vmatprep.subr.bf16.mxu0 0
    %224 = vmatpush1.bf16.msra.mxu0 0
    %225 = vmatprep.subr.bf16.mxu0 0
    %226 = vmatpush1.bf16.msra.mxu0 0
    %227 = vmatprep.subr.bf16.mxu0 0
    %228 = vmatpush1.bf16.msra.mxu0 0
    %229 = vmatprep.subr.bf16.mxu0 0
    %230 = vmatpush1.bf16.msra.mxu0 0
    %231 = vmatprep.subr.bf16.mxu0 0
    %232 = vmatpush1.bf16.msra.mxu0 0
    %233 = vmatprep.subr.bf16.mxu0 0
    %234 = vmatpush1.bf16.msra.mxu0 0
    %235 = vmatprep.subr.bf16.mxu0 0
    %236 = vmatpush1.bf16.msra.mxu0 0
    %237 = vmatprep.subr.bf16.mxu0 0
    %238 = vmatpush1.bf16.msra.mxu0 0
    %239 = vmatprep.subr.bf16.mxu0 0
    %240 = vmatpush1.bf16.msra.mxu0 0
    %241 = vmatprep.subr.bf16.mxu0 0
    %242 = vmatpush1.bf16.msra.mxu0 0
    %243 = vmatprep.mubr.bf16.mxu0 0
    %244 = vmatmul.mubr.bf16.gmra.mrb[0].mxu0 %v209
    %v245 = vpop.f32.mrb[0].mxu0
    %v246 = vadd.f32 %v163, %v245
    %v247 = vpop.f32.mrb[0].mxu0
    %v248 = vadd.f32 %v167, %v247
    %v249 = vpop.f32.mrb[0].mxu0
    %v250 = vpop.f32.mrb[0].mxu0
    %251 = vdwg.mxu0
    %252 = vmatprep.subr.bf16.mxu0 0
    %253 = vmatpush1.bf16.msra.mxu0 %v197
    %254 = vmatprep.subr.bf16.mxu0 0
    %255 = vmatpush1.bf16.msra.mxu0 %v200
    %256 = vmatprep.subr.bf16.mxu0 0
    %257 = vmatpush1.bf16.msra.mxu0 0
    %258 = vmatprep.subr.bf16.mxu0 0
    %259 = vmatpush1.bf16.msra.mxu0 0
    %260 = vmatprep.subr.bf16.mxu0 0
    %261 = vmatpush1.bf16.msra.mxu0 0
    %262 = vmatprep.subr.bf16.mxu0 0
    %263 = vmatpush1.bf16.msra.mxu0 0
    %264 = vmatprep.subr.bf16.mxu0 0
    %265 = vmatpush1.bf16.msra.mxu0 0
    %266 = vmatprep.subr.bf16.mxu0 0
    %267 = vmatpush1.bf16.msra.mxu0 0
    %268 = vmatprep.subr.bf16.mxu0 0
    %269 = vmatpush1.bf16.msra.mxu0 0
    %270 = vmatprep.subr.bf16.mxu0 0
    %271 = vmatpush1.bf16.msra.mxu0 0
    %272 = vmatprep.subr.bf16.mxu0 0
    %273 = vmatpush1.bf16.msra.mxu0 0
    %274 = vmatprep.subr.bf16.mxu0 0
    %275 = vmatpush1.bf16.msra.mxu0 0
    %276 = vmatprep.subr.bf16.mxu0 0
    %277 = vmatpush1.bf16.msra.mxu0 0
    %278 = vmatprep.subr.bf16.mxu0 0
    %279 = vmatpush1.bf16.msra.mxu0 0
    %280 = vmatprep.subr.bf16.mxu0 0
    %281 = vmatpush1.bf16.msra.mxu0 0
    %282 = vmatprep.subr.bf16.mxu0 0
    %283 = vmatpush1.bf16.msra.mxu0 0
    %284 = vmatprep.mubr.bf16.mxu0 0
    %285 = vmatmul.mubr.bf16.gmra.mrb[0].mxu0 %v209
    %v286 = vpop.f32.mrb[0].mxu0
    %v287 = vadd.f32 %v171, %v286
    %v288 = vpop.f32.mrb[0].mxu0
    %v289 = vpop.f32.mrb[0].mxu0
    %v290 = vpop.f32.mrb[0].mxu0
    %291 = vdwg.mxu0
    %v292 = vld [vmem:[#allocation2] sm:$0xff]
    %v293 = vld [vmem:[#allocation2 + $0x8] sm:$0xf]
    %v294 = vld [vmem:[#allocation2 + $0xc] sm:$0xff]
    %v295 = vld [vmem:[#allocation2 + $0x14] sm:$0xf]
    %v296 = vld [vmem:[#allocation2 + $0x18] sm:$0xff]
    %v297 = vld [vmem:[#allocation2 + $0x20] sm:$0xf]
    %v298 = vld [vmem:[#allocation2 + $0x24] sm:$0xff]
    %v299 = vld [vmem:[#allocation2 + $0x2c] sm:$0xf]
    %v308 = vunpack.c.l.b16 %v292
    %v309 = vunpack.c.h.b16 %v292
    %v310 = vunpack.c.l.b16 %v293
    %v311 = vunpack.c.l.b16 %v294
    %v312 = vunpack.c.h.b16 %v294
    %v313 = vunpack.c.l.b16 %v295
    %v314 = vunpack.c.l.b16 %v296
    %v315 = vunpack.c.h.b16 %v296
    %v316 = vunpack.c.l.b16 %v297
    %v317 = vunpack.c.l.b16 %v298
    %v318 = vunpack.c.h.b16 %v298
    %v319 = vunpack.c.l.b16 %v299
    %v320 = vpack.c.b16 %v311, %v308
    %v321 = vpack.c.b16 %v312, %v309
    %v322 = vpack.c.b16 %v313, %v310
    %v323 = vpack.c.b16 %v317, %v314
    %v324 = vpack.c.b16 %v318, %v315
    %v325 = vpack.c.b16 %v319, %v316
    %v333 = vsel %vm207, %v149, 0
    %335 = vmatprep.subr.bf16.mxu0 %v321
    %336 = vmatpush1.bf16.msra.mxu0 %v320
    %337 = vmatprep.subr.bf16.mxu0 %v324
    %338 = vmatpush1.bf16.msra.mxu0 %v323
    %339 = vmatprep.subr.bf16.mxu0 0
    %340 = vmatpush1.bf16.msra.mxu0 0
    %341 = vmatprep.subr.bf16.mxu0 0
    %342 = vmatpush1.bf16.msra.mxu0 0
    %343 = vmatprep.subr.bf16.mxu0 0
    %344 = vmatpush1.bf16.msra.mxu0 0
    %345 = vmatprep.subr.bf16.mxu0 0
    %346 = vmatpush1.bf16.msra.mxu0 0
    %347 = vmatprep.subr.bf16.mxu0 0
    %348 = vmatpush1.bf16.msra.mxu0 0
    %349 = vmatprep.subr.bf16.mxu0 0
    %350 = vmatpush1.bf16.msra.mxu0 0
    %351 = vmatprep.subr.bf16.mxu0 0
    %352 = vmatpush1.bf16.msra.mxu0 0
    %353 = vmatprep.subr.bf16.mxu0 0
    %354 = vmatpush1.bf16.msra.mxu0 0
    %355 = vmatprep.subr.bf16.mxu0 0
    %356 = vmatpush1.bf16.msra.mxu0 0
    %357 = vmatprep.subr.bf16.mxu0 0
    %358 = vmatpush1.bf16.msra.mxu0 0
    %359 = vmatprep.subr.bf16.mxu0 0
    %360 = vmatpush1.bf16.msra.mxu0 0
    %361 = vmatprep.subr.bf16.mxu0 0
    %362 = vmatpush1.bf16.msra.mxu0 0
    %363 = vmatprep.subr.bf16.mxu0 0
    %364 = vmatpush1.bf16.msra.mxu0 0
    %365 = vmatprep.subr.bf16.mxu0 0
    %366 = vmatpush1.bf16.msra.mxu0 0
    %367 = vmatprep.mubr.bf16.mxu0 0
    %368 = vmatmul.mubr.bf16.gmra.mrb[0].mxu0 %v333
    %v369 = vpop.f32.mrb[0].mxu0
    %v370 = vadd.f32 0.0, %v369
    %v371 = vpop.f32.mrb[0].mxu0
    %v372 = vadd.f32 0.0, %v371
    %v373 = vpop.f32.mrb[0].mxu0
    %v374 = vpop.f32.mrb[0].mxu0
    %375 = vdwg.mxu0
    %376 = vmatprep.subr.bf16.mxu0 0
    %377 = vmatpush1.bf16.msra.mxu0 %v322
    %378 = vmatprep.subr.bf16.mxu0 0
    %379 = vmatpush1.bf16.msra.mxu0 %v325
    %380 = vmatprep.subr.bf16.mxu0 0
    %381 = vmatpush1.bf16.msra.mxu0 0
    %382 = vmatprep.subr.bf16.mxu0 0
    %383 = vmatpush1.bf16.msra.mxu0 0
    %384 = vmatprep.subr.bf16.mxu0 0
    %385 = vmatpush1.bf16.msra.mxu0 0
    %386 = vmatprep.subr.bf16.mxu0 0
    %387 = vmatpush1.bf16.msra.mxu0 0
    %388 = vmatprep.subr.bf16.mxu0 0
    %389 = vmatpush1.bf16.msra.mxu0 0
    %390 = vmatprep.subr.bf16.mxu0 0
    %391 = vmatpush1.bf16.msra.mxu0 0
    %392 = vmatprep.subr.bf16.mxu0 0
    %393 = vmatpush1.bf16.msra.mxu0 0
    %394 = vmatprep.subr.bf16.mxu0 0
    %395 = vmatpush1.bf16.msra.mxu0 0
    %396 = vmatprep.subr.bf16.mxu0 0
    %397 = vmatpush1.bf16.msra.mxu0 0
    %398 = vmatprep.subr.bf16.mxu0 0
    %399 = vmatpush1.bf16.msra.mxu0 0
    %400 = vmatprep.subr.bf16.mxu0 0
    %401 = vmatpush1.bf16.msra.mxu0 0
    %402 = vmatprep.subr.bf16.mxu0 0
    %403 = vmatpush1.bf16.msra.mxu0 0
    %404 = vmatprep.subr.bf16.mxu0 0
    %405 = vmatpush1.bf16.msra.mxu0 0
    %406 = vmatprep.subr.bf16.mxu0 0
    %407 = vmatpush1.bf16.msra.mxu0 0
    %408 = vmatprep.mubr.bf16.mxu0 0
    %409 = vmatmul.mubr.bf16.gmra.mrb[0].mxu0 %v333
    %v410 = vpop.f32.mrb[0].mxu0
    %v411 = vadd.f32 0.0, %v410
    %v412 = vpop.f32.mrb[0].mxu0
    %v413 = vpop.f32.mrb[0].mxu0
    %v414 = vpop.f32.mrb[0].mxu0
    %415 = vdwg.mxu0
    %v416 = vadd.f32 %v246, %v370
    %v417 = vxor.u32 %v416, 2147483648
    %v418 = vmul.f32 %v417, 1.442695
    %v419 = vpow.pop %v418
    %v420 = vadd.f32 %v419, 1.0
    %v421 = vrcp.pop %v420
    %v422 = vmul.f32 1.0, %v421
    %v423 = vadd.f32 %v248, %v372
    %v424 = vxor.u32 %v423, 2147483648
    %v425 = vmul.f32 %v424, 1.442695
    %v426 = vpow.pop %v425
    %v427 = vadd.f32 %v426, 1.0
    %v428 = vrcp.pop %v427
    %v429 = vmul.f32 1.0, %v428
    %v430 = vld [vmem:[%s5] sm:$0x1]
    %v432 = vlaneseq
    %v433 = vshrl.u32 %v432, 7
    %v434 = vsub.s32 0, %v433
    %v435 = vrot.slane %v430, %v434
    %v437 = vadd.f32 %v411, %v435
    %v438 = vmul.f32 %v422, %v437
    %v439 = vadd.f32 %v287, %v438
    %v440 = vtanh.pop %v439
    %v441 = vsub.f32 1.0, %v429
    %v442 = vmul.f32 %v441, %v440
    %v443 = vmul.f32 %v429, %v61
    %v444 = vadd.f32 %v442, %v443
    %v445 = vpack.c.bf16 %v444, %v444
    %v446 = vpack.c.bf16 %v63, %v63
    %s447 = scalar_lea.vmem %s2, 48
    %v448 = vld [vmem:[%s447] sm:$0xff]
    %v449 = vld [vmem:[%s447 + $0x8] sm:$0xf]
    %v450 = vld [vmem:[%s447 + $0xc] sm:$0xff]
    %v451 = vld [vmem:[%s447 + $0x14] sm:$0xf]
    %v452 = vld [vmem:[%s447 + $0x18] sm:$0xff]
    %v453 = vld [vmem:[%s447 + $0x20] sm:$0xf]
    %v454 = vld [vmem:[%s447 + $0x24] sm:$0xff]
    %v455 = vld [vmem:[%s447 + $0x2c] sm:$0xf]
    %s456 = scalar_lea.vmem %s4, 3
    %v457 = vld [vmem:[%s456] sm:$0x7]
    %v459 = vlaneseq
    %v460 = vshrl.u32 %v459, 7
    %v461 = vsub.s32 0, %v460
    %v462 = vrot.slane %v457, %v461
    %v463 = vlaneseq
    %v464 = vshrl.u32 %v463, 7
    %v465 = vsub.s32 1, %v464
    %v466 = vrot.slane %v457, %v465
    %v467 = vlaneseq
    %v468 = vshrl.u32 %v467, 7
    %v469 = vsub.s32 2, %v468
    %v470 = vrot.slane %v457, %v469
    %v482 = vunpack.c.l.b16 %v448
    %v483 = vunpack.c.h.b16 %v448
    %v484 = vunpack.c.l.b16 %v449
    %v485 = vunpack.c.l.b16 %v450
    %v486 = vunpack.c.h.b16 %v450
    %v487 = vunpack.c.l.b16 %v451
    %v488 = vunpack.c.l.b16 %v452
    %v489 = vunpack.c.h.b16 %v452
    %v490 = vunpack.c.l.b16 %v453
    %v491 = vunpack.c.l.b16 %v454
    %v492 = vunpack.c.h.b16 %v454
    %v493 = vunpack.c.l.b16 %v455
    %v494 = vpack.c.b16 %v485, %v482
    %v495 = vpack.c.b16 %v486, %v483
    %v496 = vpack.c.b16 %v487, %v484
    %v497 = vpack.c.b16 %v491, %v488
    %v498 = vpack.c.b16 %v492, %v489
    %v499 = vpack.c.b16 %v493, %v490
    %v507 = vsel %vm207, %v445, 0
    %509 = vmatprep.subr.bf16.mxu0 %v495
    %510 = vmatpush1.bf16.msra.mxu0 %v494
    %511 = vmatprep.subr.bf16.mxu0 %v498
    %512 = vmatpush1.bf16.msra.mxu0 %v497
    %513 = vmatprep.subr.bf16.mxu0 0
    %514 = vmatpush1.bf16.msra.mxu0 0
    %515 = vmatprep.subr.bf16.mxu0 0
    %516 = vmatpush1.bf16.msra.mxu0 0
    %517 = vmatprep.subr.bf16.mxu0 0
    %518 = vmatpush1.bf16.msra.mxu0 0
    %519 = vmatprep.subr.bf16.mxu0 0
    %520 = vmatpush1.bf16.msra.mxu0 0
    %521 = vmatprep.subr.bf16.mxu0 0
    %522 = vmatpush1.bf16.msra.mxu0 0
    %523 = vmatprep.subr.bf16.mxu0 0
    %524 = vmatpush1.bf16.msra.mxu0 0
    %525 = vmatprep.subr.bf16.mxu0 0
    %526 = vmatpush1.bf16.msra.mxu0 0
    %527 = vmatprep.subr.bf16.mxu0 0
    %528 = vmatpush1.bf16.msra.mxu0 0
    %529 = vmatprep.subr.bf16.mxu0 0
    %530 = vmatpush1.bf16.msra.mxu0 0
    %531 = vmatprep.subr.bf16.mxu0 0
    %532 = vmatpush1.bf16.msra.mxu0 0
    %533 = vmatprep.subr.bf16.mxu0 0
    %534 = vmatpush1.bf16.msra.mxu0 0
    %535 = vmatprep.subr.bf16.mxu0 0
    %536 = vmatpush1.bf16.msra.mxu0 0
    %537 = vmatprep.subr.bf16.mxu0 0
    %538 = vmatpush1.bf16.msra.mxu0 0
    %539 = vmatprep.subr.bf16.mxu0 0
    %540 = vmatpush1.bf16.msra.mxu0 0
    %541 = vmatprep.mubr.bf16.mxu0 0
    %542 = vmatmul.mubr.bf16.gmra.mrb[0].mxu0 %v507
    %v543 = vpop.f32.mrb[0].mxu0
    %v544 = vadd.f32 %v462, %v543
    %v545 = vpop.f32.mrb[0].mxu0
    %v546 = vadd.f32 %v466, %v545
    %v547 = vpop.f32.mrb[0].mxu0
    %v548 = vpop.f32.mrb[0].mxu0
    %549 = vdwg.mxu0
    %550 = vmatprep.subr.bf16.mxu0 0
    %551 = vmatpush1.bf16.msra.mxu0 %v496
    %552 = vmatprep.subr.bf16.mxu0 0
    %553 = vmatpush1.bf16.msra.mxu0 %v499
    %554 = vmatprep.subr.bf16.mxu0 0
    %555 = vmatpush1.bf16.msra.mxu0 0
    %556 = vmatprep.subr.bf16.mxu0 0
    %557 = vmatpush1.bf16.msra.mxu0 0
    %558 = vmatprep.subr.bf16.mxu0 0
    %559 = vmatpush1.bf16.msra.mxu0 0
    %560 = vmatprep.subr.bf16.mxu0 0
    %561 = vmatpush1.bf16.msra.mxu0 0
    %562 = vmatprep.subr.bf16.mxu0 0
    %563 = vmatpush1.bf16.msra.mxu0 0
    %564 = vmatprep.subr.bf16.mxu0 0
    %565 = vmatpush1.bf16.msra.mxu0 0
    %566 = vmatprep.subr.bf16.mxu0 0
    %567 = vmatpush1.bf16.msra.mxu0 0
    %568 = vmatprep.subr.bf16.mxu0 0
    %569 = vmatpush1.bf16.msra.mxu0 0
    %570 = vmatprep.subr.bf16.mxu0 0
    %571 = vmatpush1.bf16.msra.mxu0 0
    %572 = vmatprep.subr.bf16.mxu0 0
    %573 = vmatpush1.bf16.msra.mxu0 0
    %574 = vmatprep.subr.bf16.mxu0 0
    %575 = vmatpush1.bf16.msra.mxu0 0
    %576 = vmatprep.subr.bf16.mxu0 0
    %577 = vmatpush1.bf16.msra.mxu0 0
    %578 = vmatprep.subr.bf16.mxu0 0
    %579 = vmatpush1.bf16.msra.mxu0 0
    %580 = vmatprep.subr.bf16.mxu0 0
    %581 = vmatpush1.bf16.msra.mxu0 0
    %582 = vmatprep.mubr.bf16.mxu0 0
    %583 = vmatmul.mubr.bf16.gmra.mrb[0].mxu0 %v507
    %v584 = vpop.f32.mrb[0].mxu0
    %v585 = vadd.f32 %v470, %v584
    %v586 = vpop.f32.mrb[0].mxu0
    %v587 = vpop.f32.mrb[0].mxu0
    %v588 = vpop.f32.mrb[0].mxu0
    %589 = vdwg.mxu0
    %s590 = scalar_lea.vmem [#allocation2], 48
    %v591 = vld [vmem:[%s590] sm:$0xff]
    %v592 = vld [vmem:[%s590 + $0x8] sm:$0xf]
    %v593 = vld [vmem:[%s590 + $0xc] sm:$0xff]
    %v594 = vld [vmem:[%s590 + $0x14] sm:$0xf]
    %v595 = vld [vmem:[%s590 + $0x18] sm:$0xff]
    %v596 = vld [vmem:[%s590 + $0x20] sm:$0xf]
    %v597 = vld [vmem:[%s590 + $0x24] sm:$0xff]
    %v598 = vld [vmem:[%s590 + $0x2c] sm:$0xf]
    %v607 = vunpack.c.l.b16 %v591
    %v608 = vunpack.c.h.b16 %v591
    %v609 = vunpack.c.l.b16 %v592
    %v610 = vunpack.c.l.b16 %v593
    %v611 = vunpack.c.h.b16 %v593
    %v612 = vunpack.c.l.b16 %v594
    %v613 = vunpack.c.l.b16 %v595
    %v614 = vunpack.c.h.b16 %v595
    %v615 = vunpack.c.l.b16 %v596
    %v616 = vunpack.c.l.b16 %v597
    %v617 = vunpack.c.h.b16 %v597
    %v618 = vunpack.c.l.b16 %v598
    %v619 = vpack.c.b16 %v610, %v607
    %v620 = vpack.c.b16 %v611, %v608
    %v621 = vpack.c.b16 %v612, %v609
    %v622 = vpack.c.b16 %v616, %v613
    %v623 = vpack.c.b16 %v617, %v614
    %v624 = vpack.c.b16 %v618, %v615
    %v632 = vsel %vm207, %v446, 0
    %634 = vmatprep.subr.bf16.mxu0 %v620
    %635 = vmatpush1.bf16.msra.mxu0 %v619
    %636 = vmatprep.subr.bf16.mxu0 %v623
    %637 = vmatpush1.bf16.msra.mxu0 %v622
    %638 = vmatprep.subr.bf16.mxu0 0
    %639 = vmatpush1.bf16.msra.mxu0 0
    %640 = vmatprep.subr.bf16.mxu0 0
    %641 = vmatpush1.bf16.msra.mxu0 0
    %642 = vmatprep.subr.bf16.mxu0 0
    %643 = vmatpush1.bf16.msra.mxu0 0
    %644 = vmatprep.subr.bf16.mxu0 0
    %645 = vmatpush1.bf16.msra.mxu0 0
    %646 = vmatprep.subr.bf16.mxu0 0
    %647 = vmatpush1.bf16.msra.mxu0 0
    %648 = vmatprep.subr.bf16.mxu0 0
    %649 = vmatpush1.bf16.msra.mxu0 0
    %650 = vmatprep.subr.bf16.mxu0 0
    %651 = vmatpush1.bf16.msra.mxu0 0
    %652 = vmatprep.subr.bf16.mxu0 0
    %653 = vmatpush1.bf16.msra.mxu0 0
    %654 = vmatprep.subr.bf16.mxu0 0
    %655 = vmatpush1.bf16.msra.mxu0 0
    %656 = vmatprep.subr.bf16.mxu0 0
    %657 = vmatpush1.bf16.msra.mxu0 0
    %658 = vmatprep.subr.bf16.mxu0 0
    %659 = vmatpush1.bf16.msra.mxu0 0
    %660 = vmatprep.subr.bf16.mxu0 0
    %661 = vmatpush1.bf16.msra.mxu0 0
    %662 = vmatprep.subr.bf16.mxu0 0
    %663 = vmatpush1.bf16.msra.mxu0 0
    %664 = vmatprep.subr.bf16.mxu0 0
    %665 = vmatpush1.bf16.msra.mxu0 0
    %666 = vmatprep.mubr.bf16.mxu0 0
    %667 = vmatmul.mubr.bf16.gmra.mrb[0].mxu0 %v632
    %v668 = vpop.f32.mrb[0].mxu0
    %v669 = vadd.f32 0.0, %v668
    %v670 = vpop.f32.mrb[0].mxu0
    %v671 = vadd.f32 0.0, %v670
    %v672 = vpop.f32.mrb[0].mxu0
    %v673 = vpop.f32.mrb[0].mxu0
    %674 = vdwg.mxu0
    %675 = vmatprep.subr.bf16.mxu0 0
    %676 = vmatpush1.bf16.msra.mxu0 %v621
    %677 = vmatprep.subr.bf16.mxu0 0
    %678 = vmatpush1.bf16.msra.mxu0 %v624
    %679 = vmatprep.subr.bf16.mxu0 0
    %680 = vmatpush1.bf16.msra.mxu0 0
    %681 = vmatprep.subr.bf16.mxu0 0
    %682 = vmatpush1.bf16.msra.mxu0 0
    %683 = vmatprep.subr.bf16.mxu0 0
    %684 = vmatpush1.bf16.msra.mxu0 0
    %685 = vmatprep.subr.bf16.mxu0 0
    %686 = vmatpush1.bf16.msra.mxu0 0
    %687 = vmatprep.subr.bf16.mxu0 0
    %688 = vmatpush1.bf16.msra.mxu0 0
    %689 = vmatprep.subr.bf16.mxu0 0
    %690 = vmatpush1.bf16.msra.mxu0 0
    %691 = vmatprep.subr.bf16.mxu0 0
    %692 = vmatpush1.bf16.msra.mxu0 0
    %693 = vmatprep.subr.bf16.mxu0 0
    %694 = vmatpush1.bf16.msra.mxu0 0
    %695 = vmatprep.subr.bf16.mxu0 0
    %696 = vmatpush1.bf16.msra.mxu0 0
    %697 = vmatprep.subr.bf16.mxu0 0
    %698 = vmatpush1.bf16.msra.mxu0 0
    %699 = vmatprep.subr.bf16.mxu0 0
    %700 = vmatpush1.bf16.msra.mxu0 0
    %701 = vmatprep.subr.bf16.mxu0 0
    %702 = vmatpush1.bf16.msra.mxu0 0
    %703 = vmatprep.subr.bf16.mxu0 0
    %704 = vmatpush1.bf16.msra.mxu0 0
    %705 = vmatprep.subr.bf16.mxu0 0
    %706 = vmatpush1.bf16.msra.mxu0 0
    %707 = vmatprep.mubr.bf16.mxu0 0
    %708 = vmatmul.mubr.bf16.gmra.mrb[0].mxu0 %v632
    %v709 = vpop.f32.mrb[0].mxu0
    %v710 = vadd.f32 0.0, %v709
    %v711 = vpop.f32.mrb[0].mxu0
    %v712 = vpop.f32.mrb[0].mxu0
    %v713 = vpop.f32.mrb[0].mxu0
    %714 = vdwg.mxu0
    %v715 = vadd.f32 %v544, %v669
    %v716 = vxor.u32 %v715, 2147483648
    %v717 = vmul.f32 %v716, 1.442695
    %v718 = vpow.pop %v717
    %v719 = vadd.f32 %v718, 1.0
    %v720 = vrcp.pop %v719
    %v721 = vmul.f32 1.0, %v720
    %v722 = vadd.f32 %v546, %v671
    %v723 = vxor.u32 %v722, 2147483648
    %v724 = vmul.f32 %v723, 1.442695
    %v725 = vpow.pop %v724
    %v726 = vadd.f32 %v725, 1.0
    %v727 = vrcp.pop %v726
    %v728 = vmul.f32 1.0, %v727
    %s729 = scalar_lea.vmem %s5, 1
    %v730 = vld [vmem:[%s729] sm:$0x1]
    %v732 = vlaneseq
    %v733 = vshrl.u32 %v732, 7
    %v734 = vsub.s32 0, %v733
    %v735 = vrot.slane %v730, %v734
    %v737 = vadd.f32 %v710, %v735
    %v738 = vmul.f32 %v721, %v737
    %v739 = vadd.f32 %v585, %v738
    %v740 = vtanh.pop %v739
    %v741 = vsub.f32 1.0, %v728
    %v742 = vmul.f32 %v741, %v740
    %v743 = vmul.f32 %v728, %v63
    %v744 = vadd.f32 %v742, %v743
    %v745 = vpack.c.bf16 %v744, %v744
    %v747 = vsel %vm207, %v745, 0
    %749 = vmatprep.subr.bf16.mxu0 %v196
    %750 = vmatpush1.bf16.msra.mxu0 %v195
    %751 = vmatprep.subr.bf16.mxu0 %v199
    %752 = vmatpush1.bf16.msra.mxu0 %v198
    %753 = vmatprep.subr.bf16.mxu0 0
    %754 = vmatpush1.bf16.msra.mxu0 0
    %755 = vmatprep.subr.bf16.mxu0 0
    %756 = vmatpush1.bf16.msra.mxu0 0
    %757 = vmatprep.subr.bf16.mxu0 0
    %758 = vmatpush1.bf16.msra.mxu0 0
    %759 = vmatprep.subr.bf16.mxu0 0
    %760 = vmatpush1.bf16.msra.mxu0 0
    %761 = vmatprep.subr.bf16.mxu0 0
    %762 = vmatpush1.bf16.msra.mxu0 0
    %763 = vmatprep.subr.bf16.mxu0 0
    %764 = vmatpush1.bf16.msra.mxu0 0
    %765 = vmatprep.subr.bf16.mxu0 0
    %766 = vmatpush1.bf16.msra.mxu0 0
    %767 = vmatprep.subr.bf16.mxu0 0
    %768 = vmatpush1.bf16.msra.mxu0 0
    %769 = vmatprep.subr.bf16.mxu0 0
    %770 = vmatpush1.bf16.msra.mxu0 0
    %771 = vmatprep.subr.bf16.mxu0 0
    %772 = vmatpush1.bf16.msra.mxu0 0
    %773 = vmatprep.subr.bf16.mxu0 0
    %774 = vmatpush1.bf16.msra.mxu0 0
    %775 = vmatprep.subr.bf16.mxu0 0
    %776 = vmatpush1.bf16.msra.mxu0 0
    %777 = vmatprep.subr.bf16.mxu0 0
    %778 = vmatpush1.bf16.msra.mxu0 0
    %779 = vmatprep.subr.bf16.mxu0 0
    %780 = vmatpush1.bf16.msra.mxu0 0
    %781 = vmatprep.mubr.bf16.mxu0 0
    %782 = vmatmul.mubr.bf16.gmra.mrb[0].mxu0 %v747
    %v783 = vpop.f32.mrb[0].mxu0
    %v784 = vadd.f32 %v163, %v783
    %v785 = vpop.f32.mrb[0].mxu0
    %v786 = vadd.f32 %v167, %v785
    %v787 = vpop.f32.mrb[0].mxu0
    %v788 = vpop.f32.mrb[0].mxu0
    %789 = vdwg.mxu0
    %790 = vmatprep.subr.bf16.mxu0 0
    %791 = vmatpush1.bf16.msra.mxu0 %v197
    %792 = vmatprep.subr.bf16.mxu0 0
    %793 = vmatpush1.bf16.msra.mxu0 %v200
    %794 = vmatprep.subr.bf16.mxu0 0
    %795 = vmatpush1.bf16.msra.mxu0 0
    %796 = vmatprep.subr.bf16.mxu0 0
    %797 = vmatpush1.bf16.msra.mxu0 0
    %798 = vmatprep.subr.bf16.mxu0 0
    %799 = vmatpush1.bf16.msra.mxu0 0
    %800 = vmatprep.subr.bf16.mxu0 0
    %801 = vmatpush1.bf16.msra.mxu0 0
    %802 = vmatprep.subr.bf16.mxu0 0
    %803 = vmatpush1.bf16.msra.mxu0 0
    %804 = vmatprep.subr.bf16.mxu0 0
    %805 = vmatpush1.bf16.msra.mxu0 0
    %806 = vmatprep.subr.bf16.mxu0 0
    %807 = vmatpush1.bf16.msra.mxu0 0
    %808 = vmatprep.subr.bf16.mxu0 0
    %809 = vmatpush1.bf16.msra.mxu0 0
    %810 = vmatprep.subr.bf16.mxu0 0
    %811 = vmatpush1.bf16.msra.mxu0 0
    %812 = vmatprep.subr.bf16.mxu0 0
    %813 = vmatpush1.bf16.msra.mxu0 0
    %814 = vmatprep.subr.bf16.mxu0 0
    %815 = vmatpush1.bf16.msra.mxu0 0
    %816 = vmatprep.subr.bf16.mxu0 0
    %817 = vmatpush1.bf16.msra.mxu0 0
    %818 = vmatprep.subr.bf16.mxu0 0
    %819 = vmatpush1.bf16.msra.mxu0 0
    %820 = vmatprep.subr.bf16.mxu0 0
    %821 = vmatpush1.bf16.msra.mxu0 0
    %822 = vmatprep.mubr.bf16.mxu0 0
    %823 = vmatmul.mubr.bf16.gmra.mrb[0].mxu0 %v747
    %v824 = vpop.f32.mrb[0].mxu0
    %v825 = vadd.f32 %v171, %v824
    %v826 = vpop.f32.mrb[0].mxu0
    %v827 = vpop.f32.mrb[0].mxu0
    %v828 = vpop.f32.mrb[0].mxu0
    %829 = vdwg.mxu0
    %830 = vmatprep.subr.bf16.mxu0 %v321
    %831 = vmatpush1.bf16.msra.mxu0 %v320
    %832 = vmatprep.subr.bf16.mxu0 %v324
    %833 = vmatpush1.bf16.msra.mxu0 %v323
    %834 = vmatprep.subr.bf16.mxu0 0
    %835 = vmatpush1.bf16.msra.mxu0 0
    %836 = vmatprep.subr.bf16.mxu0 0
    %837 = vmatpush1.bf16.msra.mxu0 0
    %838 = vmatprep.subr.bf16.mxu0 0
    %839 = vmatpush1.bf16.msra.mxu0 0
    %840 = vmatprep.subr.bf16.mxu0 0
    %841 = vmatpush1.bf16.msra.mxu0 0
    %842 = vmatprep.subr.bf16.mxu0 0
    %843 = vmatpush1.bf16.msra.mxu0 0
    %844 = vmatprep.subr.bf16.mxu0 0
    %845 = vmatpush1.bf16.msra.mxu0 0
    %846 = vmatprep.subr.bf16.mxu0 0
    %847 = vmatpush1.bf16.msra.mxu0 0
    %848 = vmatprep.subr.bf16.mxu0 0
    %849 = vmatpush1.bf16.msra.mxu0 0
    %850 = vmatprep.subr.bf16.mxu0 0
    %851 = vmatpush1.bf16.msra.mxu0 0
    %852 = vmatprep.subr.bf16.mxu0 0
    %853 = vmatpush1.bf16.msra.mxu0 0
    %854 = vmatprep.subr.bf16.mxu0 0
    %855 = vmatpush1.bf16.msra.mxu0 0
    %856 = vmatprep.subr.bf16.mxu0 0
    %857 = vmatpush1.bf16.msra.mxu0 0
    %858 = vmatprep.subr.bf16.mxu0 0
    %859 = vmatpush1.bf16.msra.mxu0 0
    %860 = vmatprep.subr.bf16.mxu0 0
    %861 = vmatpush1.bf16.msra.mxu0 0
    %862 = vmatprep.mubr.bf16.mxu0 0
    %863 = vmatmul.mubr.bf16.gmra.mrb[0].mxu0 %v507
    %v864 = vpop.f32.mrb[0].mxu0
    %v865 = vadd.f32 0.0, %v864
    %v866 = vpop.f32.mrb[0].mxu0
    %v867 = vadd.f32 0.0, %v866
    %v868 = vpop.f32.mrb[0].mxu0
    %v869 = vpop.f32.mrb[0].mxu0
    %870 = vdwg.mxu0
    %871 = vmatprep.subr.bf16.mxu0 0
    %872 = vmatpush1.bf16.msra.mxu0 %v322
    %873 = vmatprep.subr.bf16.mxu0 0
    %874 = vmatpush1.bf16.msra.mxu0 %v325
    %875 = vmatprep.subr.bf16.mxu0 0
    %876 = vmatpush1.bf16.msra.mxu0 0
    %877 = vmatprep.subr.bf16.mxu0 0
    %878 = vmatpush1.bf16.msra.mxu0 0
    %879 = vmatprep.subr.bf16.mxu0 0
    %880 = vmatpush1.bf16.msra.mxu0 0
    %881 = vmatprep.subr.bf16.mxu0 0
    %882 = vmatpush1.bf16.msra.mxu0 0
    %883 = vmatprep.subr.bf16.mxu0 0
    %884 = vmatpush1.bf16.msra.mxu0 0
    %885 = vmatprep.subr.bf16.mxu0 0
    %886 = vmatpush1.bf16.msra.mxu0 0
    %887 = vmatprep.subr.bf16.mxu0 0
    %888 = vmatpush1.bf16.msra.mxu0 0
    %889 = vmatprep.subr.bf16.mxu0 0
    %890 = vmatpush1.bf16.msra.mxu0 0
    %891 = vmatprep.subr.bf16.mxu0 0
    %892 = vmatpush1.bf16.msra.mxu0 0
    %893 = vmatprep.subr.bf16.mxu0 0
    %894 = vmatpush1.bf16.msra.mxu0 0
    %895 = vmatprep.subr.bf16.mxu0 0
    %896 = vmatpush1.bf16.msra.mxu0 0
    %897 = vmatprep.subr.bf16.mxu0 0
    %898 = vmatpush1.bf16.msra.mxu0 0
    %899 = vmatprep.subr.bf16.mxu0 0
    %900 = vmatpush1.bf16.msra.mxu0 0
    %901 = vmatprep.subr.bf16.mxu0 0
    %902 = vmatpush1.bf16.msra.mxu0 0
    %903 = vmatprep.mubr.bf16.mxu0 0
    %904 = vmatmul.mubr.bf16.gmra.mrb[0].mxu0 %v507
    %v905 = vpop.f32.mrb[0].mxu0
    %v906 = vadd.f32 0.0, %v905
    %v907 = vpop.f32.mrb[0].mxu0
    %v908 = vpop.f32.mrb[0].mxu0
    %v909 = vpop.f32.mrb[0].mxu0
    %910 = vdwg.mxu0
    %v911 = vadd.f32 %v784, %v865
    %v912 = vxor.u32 %v911, 2147483648
    %v913 = vmul.f32 %v912, 1.442695
    %v914 = vpow.pop %v913
    %v915 = vadd.f32 %v914, 1.0
    %v916 = vrcp.pop %v915
    %v917 = vmul.f32 1.0, %v916
    %v918 = vadd.f32 %v786, %v867
    %v919 = vxor.u32 %v918, 2147483648
    %v920 = vmul.f32 %v919, 1.442695
    %v921 = vpow.pop %v920
    %v922 = vadd.f32 %v921, 1.0
    %v923 = vrcp.pop %v922
    %v924 = vmul.f32 1.0, %v923
    %v925 = vadd.f32 %v906, %v435
    %v926 = vmul.f32 %v917, %v925
    %v927 = vadd.f32 %v825, %v926
    %v928 = vtanh.pop %v927
    %v929 = vsub.f32 1.0, %v924
    %v930 = vmul.f32 %v929, %v928
    %v931 = vmul.f32 %v924, %v444
    %v932 = vadd.f32 %v930, %v931
    %v933 = vpack.c.bf16 %v932, %v932
    %v935 = vsel %vm207, %v933, 0
    %937 = vmatprep.subr.bf16.mxu0 %v495
    %938 = vmatpush1.bf16.msra.mxu0 %v494
    %939 = vmatprep.subr.bf16.mxu0 %v498
    %940 = vmatpush1.bf16.msra.mxu0 %v497
    %941 = vmatprep.subr.bf16.mxu0 0
    %942 = vmatpush1.bf16.msra.mxu0 0
    %943 = vmatprep.subr.bf16.mxu0 0
    %944 = vmatpush1.bf16.msra.mxu0 0
    %945 = vmatprep.subr.bf16.mxu0 0
    %946 = vmatpush1.bf16.msra.mxu0 0
    %947 = vmatprep.subr.bf16.mxu0 0
    %948 = vmatpush1.bf16.msra.mxu0 0
    %949 = vmatprep.subr.bf16.mxu0 0
    %950 = vmatpush1.bf16.msra.mxu0 0
    %951 = vmatprep.subr.bf16.mxu0 0
    %952 = vmatpush1.bf16.msra.mxu0 0
    %953 = vmatprep.subr.bf16.mxu0 0
    %954 = vmatpush1.bf16.msra.mxu0 0
    %955 = vmatprep.subr.bf16.mxu0 0
    %956 = vmatpush1.bf16.msra.mxu0 0
    %957 = vmatprep.subr.bf16.mxu0 0
    %958 = vmatpush1.bf16.msra.mxu0 0
    %959 = vmatprep.subr.bf16.mxu0 0
    %960 = vmatpush1.bf16.msra.mxu0 0
    %961 = vmatprep.subr.bf16.mxu0 0
    %962 = vmatpush1.bf16.msra.mxu0 0
    %963 = vmatprep.subr.bf16.mxu0 0
    %964 = vmatpush1.bf16.msra.mxu0 0
    %965 = vmatprep.subr.bf16.mxu0 0
    %966 = vmatpush1.bf16.msra.mxu0 0
    %967 = vmatprep.subr.bf16.mxu0 0
    %968 = vmatpush1.bf16.msra.mxu0 0
    %969 = vmatprep.mubr.bf16.mxu0 0
    %970 = vmatmul.mubr.bf16.gmra.mrb[0].mxu0 %v935
    %v971 = vpop.f32.mrb[0].mxu0
    %v972 = vadd.f32 %v462, %v971
    %v973 = vpop.f32.mrb[0].mxu0
    %v974 = vadd.f32 %v466, %v973
    %v975 = vpop.f32.mrb[0].mxu0
    %v976 = vpop.f32.mrb[0].mxu0
    %977 = vdwg.mxu0
    %978 = vmatprep.subr.bf16.mxu0 0
    %979 = vmatpush1.bf16.msra.mxu0 %v496
    %980 = vmatprep.subr.bf16.mxu0 0
    %981 = vmatpush1.bf16.msra.mxu0 %v499
    %982 = vmatprep.subr.bf16.mxu0 0
    %983 = vmatpush1.bf16.msra.mxu0 0
    %984 = vmatprep.subr.bf16.mxu0 0
    %985 = vmatpush1.bf16.msra.mxu0 0
    %986 = vmatprep.subr.bf16.mxu0 0
    %987 = vmatpush1.bf16.msra.mxu0 0
    %988 = vmatprep.subr.bf16.mxu0 0
    %989 = vmatpush1.bf16.msra.mxu0 0
    %990 = vmatprep.subr.bf16.mxu0 0
    %991 = vmatpush1.bf16.msra.mxu0 0
    %992 = vmatprep.subr.bf16.mxu0 0
    %993 = vmatpush1.bf16.msra.mxu0 0
    %994 = vmatprep.subr.bf16.mxu0 0
    %995 = vmatpush1.bf16.msra.mxu0 0
    %996 = vmatprep.subr.bf16.mxu0 0
    %997 = vmatpush1.bf16.msra.mxu0 0
    %998 = vmatprep.subr.bf16.mxu0 0
    %999 = vmatpush1.bf16.msra.mxu0 0
    %1000 = vmatprep.subr.bf16.mxu0 0
    %1001 = vmatpush1.bf16.msra.mxu0 0
    %1002 = vmatprep.subr.bf16.mxu0 0
    %1003 = vmatpush1.bf16.msra.mxu0 0
    %1004 = vmatprep.subr.bf16.mxu0 0
    %1005 = vmatpush1.bf16.msra.mxu0 0
    %1006 = vmatprep.subr.bf16.mxu0 0
    %1007 = vmatpush1.bf16.msra.mxu0 0
    %1008 = vmatprep.subr.bf16.mxu0 0
    %1009 = vmatpush1.bf16.msra.mxu0 0
    %1010 = vmatprep.mubr.bf16.mxu0 0
    %1011 = vmatmul.mubr.bf16.gmra.mrb[0].mxu0 %v935
    %v1012 = vpop.f32.mrb[0].mxu0
    %v1013 = vadd.f32 %v470, %v1012
    %v1014 = vpop.f32.mrb[0].mxu0
    %v1015 = vpop.f32.mrb[0].mxu0
    %v1016 = vpop.f32.mrb[0].mxu0
    %1017 = vdwg.mxu0
    %1018 = vmatprep.subr.bf16.mxu0 %v620
    %1019 = vmatpush1.bf16.msra.mxu0 %v619
    %1020 = vmatprep.subr.bf16.mxu0 %v623
    %1021 = vmatpush1.bf16.msra.mxu0 %v622
    %1022 = vmatprep.subr.bf16.mxu0 0
    %1023 = vmatpush1.bf16.msra.mxu0 0
    %1024 = vmatprep.subr.bf16.mxu0 0
    %1025 = vmatpush1.bf16.msra.mxu0 0
    %1026 = vmatprep.subr.bf16.mxu0 0
    %1027 = vmatpush1.bf16.msra.mxu0 0
    %1028 = vmatprep.subr.bf16.mxu0 0
    %1029 = vmatpush1.bf16.msra.mxu0 0
    %1030 = vmatprep.subr.bf16.mxu0 0
    %1031 = vmatpush1.bf16.msra.mxu0 0
    %1032 = vmatprep.subr.bf16.mxu0 0
    %1033 = vmatpush1.bf16.msra.mxu0 0
    %1034 = vmatprep.subr.bf16.mxu0 0
    %1035 = vmatpush1.bf16.msra.mxu0 0
    %1036 = vmatprep.subr.bf16.mxu0 0
    %1037 = vmatpush1.bf16.msra.mxu0 0
    %1038 = vmatprep.subr.bf16.mxu0 0
    %1039 = vmatpush1.bf16.msra.mxu0 0
    %1040 = vmatprep.subr.bf16.mxu0 0
    %1041 = vmatpush1.bf16.msra.mxu0 0
    %1042 = vmatprep.subr.bf16.mxu0 0
    %1043 = vmatpush1.bf16.msra.mxu0 0
    %1044 = vmatprep.subr.bf16.mxu0 0
    %1045 = vmatpush1.bf16.msra.mxu0 0
    %1046 = vmatprep.subr.bf16.mxu0 0
    %1047 = vmatpush1.bf16.msra.mxu0 0
    %1048 = vmatprep.subr.bf16.mxu0 0
    %1049 = vmatpush1.bf16.msra.mxu0 0
    %1050 = vmatprep.mubr.bf16.mxu0 0
    %1051 = vmatmul.mubr.bf16.gmra.mrb[0].mxu0 %v747
    %v1052 = vpop.f32.mrb[0].mxu0
    %v1053 = vadd.f32 0.0, %v1052
    %v1054 = vpop.f32.mrb[0].mxu0
    %v1055 = vadd.f32 0.0, %v1054
    %v1056 = vpop.f32.mrb[0].mxu0
    %v1057 = vpop.f32.mrb[0].mxu0
    %1058 = vdwg.mxu0
    %1059 = vmatprep.subr.bf16.mxu0 0
    %1060 = vmatpush1.bf16.msra.mxu0 %v621
    %1061 = vmatprep.subr.bf16.mxu0 0
    %1062 = vmatpush1.bf16.msra.mxu0 %v624
    %1063 = vmatprep.subr.bf16.mxu0 0
    %1064 = vmatpush1.bf16.msra.mxu0 0
    %1065 = vmatprep.subr.bf16.mxu0 0
    %1066 = vmatpush1.bf16.msra.mxu0 0
    %1067 = vmatprep.subr.bf16.mxu0 0
    %1068 = vmatpush1.bf16.msra.mxu0 0
    %1069 = vmatprep.subr.bf16.mxu0 0
    %1070 = vmatpush1.bf16.msra.mxu0 0
    %1071 = vmatprep.subr.bf16.mxu0 0
    %1072 = vmatpush1.bf16.msra.mxu0 0
    %1073 = vmatprep.subr.bf16.mxu0 0
    %1074 = vmatpush1.bf16.msra.mxu0 0
    %1075 = vmatprep.subr.bf16.mxu0 0
    %1076 = vmatpush1.bf16.msra.mxu0 0
    %1077 = vmatprep.subr.bf16.mxu0 0
    %1078 = vmatpush1.bf16.msra.mxu0 0
    %1079 = vmatprep.subr.bf16.mxu0 0
    %1080 = vmatpush1.bf16.msra.mxu0 0
    %1081 = vmatprep.subr.bf16.mxu0 0
    %1082 = vmatpush1.bf16.msra.mxu0 0
    %1083 = vmatprep.subr.bf16.mxu0 0
    %1084 = vmatpush1.bf16.msra.mxu0 0
    %1085 = vmatprep.subr.bf16.mxu0 0
    %1086 = vmatpush1.bf16.msra.mxu0 0
    %1087 = vmatprep.subr.bf16.mxu0 0
    %1088 = vmatpush1.bf16.msra.mxu0 0
    %1089 = vmatprep.subr.bf16.mxu0 0
    %1090 = vmatpush1.bf16.msra.mxu0 0
    %1091 = vmatprep.mubr.bf16.mxu0 0
    %1092 = vmatmul.mubr.bf16.gmra.mrb[0].mxu0 %v747
    %v1093 = vpop.f32.mrb[0].mxu0
    %v1094 = vadd.f32 0.0, %v1093
    %v1095 = vpop.f32.mrb[0].mxu0
    %v1096 = vpop.f32.mrb[0].mxu0
    %v1097 = vpop.f32.mrb[0].mxu0
    %1098 = vdwg.mxu0
    %v1099 = vadd.f32 %v972, %v1053
    %v1100 = vxor.u32 %v1099, 2147483648
    %v1101 = vmul.f32 %v1100, 1.442695
    %v1102 = vpow.pop %v1101
    %v1103 = vadd.f32 %v1102, 1.0
    %v1104 = vrcp.pop %v1103
    %v1105 = vmul.f32 1.0, %v1104
    %v1106 = vadd.f32 %v974, %v1055
    %v1107 = vxor.u32 %v1106, 2147483648
    %v1108 = vmul.f32 %v1107, 1.442695
    %v1109 = vpow.pop %v1108
    %v1110 = vadd.f32 %v1109, 1.0
    %v1111 = vrcp.pop %v1110
    %v1112 = vmul.f32 1.0, %v1111
    %v1113 = vadd.f32 %v1094, %v735
    %v1114 = vmul.f32 %v1105, %v1113
    %v1115 = vadd.f32 %v1013, %v1114
    %v1116 = vtanh.pop %v1115
    %v1117 = vsub.f32 1.0, %v1112
    %v1118 = vmul.f32 %v1117, %v1116
    %v1119 = vmul.f32 %v1112, %v744
    %v1120 = vadd.f32 %v1118, %v1119
    %1121 = vst [vmem:[#allocation7] sm:$0xff] %v1120
    %s1122 = scalar_lea.vmem %s0, 8
    %v1123 = vld [vmem:[%s1122] sm:$0xff]
    %1124 = vset.pattern.permute.xlu0 0
    %1125 = vperm.xlu0 %1124, %v1123
    %v1126 = vpop.permute.xlu0 %1125
    %vm1127 = vcmp.eq.s32.totalorder %v60, %v1126
    %v1128 = vsel %vm1127, 1, 0
    %v1129 = vcvt.s32.f32 %v1128
    %v1130 = vpack.c.bf16 %v1129, %v1129
    %v1131 = vld [vmem:[%s1] sm:$0xf]
    %v1132 = vld [vmem:[%s1 + $0x4] sm:$0xf]
    %v1133 = vld [vmem:[%s1 + $0x8] sm:$0xf]
    %v1134 = vld [vmem:[%s1 + $0xc] sm:$0xf]
    %v1135 = vld [vmem:[%s1 + $0x10] sm:$0xf]
    %v1136 = vld [vmem:[%s1 + $0x14] sm:$0xf]
    %v1137 = vld [vmem:[%s1 + $0x18] sm:$0xf]
    %v1138 = vld [vmem:[%s1 + $0x1c] sm:$0xf]
    %v1147 = vunpack.c.l.b16 %v1131
    %v1148 = vunpack.c.l.b16 %v1132
    %v1149 = vunpack.c.l.b16 %v1133
    %v1150 = vunpack.c.l.b16 %v1134
    %v1151 = vunpack.c.l.b16 %v1135
    %v1152 = vunpack.c.l.b16 %v1136
    %v1153 = vunpack.c.l.b16 %v1137
    %v1154 = vunpack.c.l.b16 %v1138
    %v1155 = vpack.c.b16 %v1148, %v1147
    %v1156 = vpack.c.b16 %v1150, %v1149
    %v1157 = vpack.c.b16 %v1152, %v1151
    %v1158 = vpack.c.b16 %v1154, %v1153
    %v1164 = vsel %vm104, %v1130, 0
    %1166 = vmatprep.subr.bf16.mxu0 0
    %1167 = vmatpush1.bf16.msra.mxu0 %v1155
    %1168 = vmatprep.subr.bf16.mxu0 0
    %1169 = vmatpush1.bf16.msra.mxu0 %v1156
    %1170 = vmatprep.subr.bf16.mxu0 0
    %1171 = vmatpush1.bf16.msra.mxu0 %v1157
    %1172 = vmatprep.subr.bf16.mxu0 0
    %1173 = vmatpush1.bf16.msra.mxu0 %v1158
    %1174 = vmatprep.subr.bf16.mxu0 0
    %1175 = vmatpush1.bf16.msra.mxu0 0
    %1176 = vmatprep.subr.bf16.mxu0 0
    %1177 = vmatpush1.bf16.msra.mxu0 0
    %1178 = vmatprep.subr.bf16.mxu0 0
    %1179 = vmatpush1.bf16.msra.mxu0 0
    %1180 = vmatprep.subr.bf16.mxu0 0
    %1181 = vmatpush1.bf16.msra.mxu0 0
    %1182 = vmatprep.subr.bf16.mxu0 0
    %1183 = vmatpush1.bf16.msra.mxu0 0
    %1184 = vmatprep.subr.bf16.mxu0 0
    %1185 = vmatpush1.bf16.msra.mxu0 0
    %1186 = vmatprep.subr.bf16.mxu0 0
    %1187 = vmatpush1.bf16.msra.mxu0 0
    %1188 = vmatprep.subr.bf16.mxu0 0
    %1189 = vmatpush1.bf16.msra.mxu0 0
    %1190 = vmatprep.subr.bf16.mxu0 0
    %1191 = vmatpush1.bf16.msra.mxu0 0
    %1192 = vmatprep.subr.bf16.mxu0 0
    %1193 = vmatpush1.bf16.msra.mxu0 0
    %1194 = vmatprep.subr.bf16.mxu0 0
    %1195 = vmatpush1.bf16.msra.mxu0 0
    %1196 = vmatprep.subr.bf16.mxu0 0
    %1197 = vmatpush1.bf16.msra.mxu0 0
    %1198 = vmatprep.mubr.bf16.mxu0 0
    %1199 = vmatmul.mubr.bf16.gmra.mrb[0].mxu0 %v1164
    %v1200 = vpop.f32.mrb[0].mxu0
    %v1201 = vadd.f32 0.0, %v1200
    %v1202 = vpop.f32.mrb[0].mxu0
    %v1203 = vpop.f32.mrb[0].mxu0
    %v1204 = vpop.f32.mrb[0].mxu0
    %1205 = vdwg.mxu0
    %v1206 = vpack.c.bf16 %v1201, %v1201
    %v1207 = vld [vmem:[%s2] sm:$0xff]
    %v1208 = vld [vmem:[%s2 + $0x8] sm:$0xf]
    %v1209 = vld [vmem:[%s2 + $0xc] sm:$0xff]
    %v1210 = vld [vmem:[%s2 + $0x14] sm:$0xf]
    %v1211 = vld [vmem:[%s2 + $0x18] sm:$0xff]
    %v1212 = vld [vmem:[%s2 + $0x20] sm:$0xf]
    %v1213 = vld [vmem:[%s2 + $0x24] sm:$0xff]
    %v1214 = vld [vmem:[%s2 + $0x2c] sm:$0xf]
    %v1215 = vld [vmem:[%s4] sm:$0x7]
    %v1217 = vlaneseq
    %v1218 = vshrl.u32 %v1217, 7
    %v1219 = vsub.s32 0, %v1218
    %v1220 = vrot.slane %v1215, %v1219
    %v1221 = vlaneseq
    %v1222 = vshrl.u32 %v1221, 7
    %v1223 = vsub.s32 1, %v1222
    %v1224 = vrot.slane %v1215, %v1223
    %v1225 = vlaneseq
    %v1226 = vshrl.u32 %v1225, 7
    %v1227 = vsub.s32 2, %v1226
    %v1228 = vrot.slane %v1215, %v1227
    %v1240 = vunpack.c.l.b16 %v1207
    %v1241 = vunpack.c.h.b16 %v1207
    %v1242 = vunpack.c.l.b16 %v1208
    %v1243 = vunpack.c.l.b16 %v1209
    %v1244 = vunpack.c.h.b16 %v1209
    %v1245 = vunpack.c.l.b16 %v1210
    %v1246 = vunpack.c.l.b16 %v1211
    %v1247 = vunpack.c.h.b16 %v1211
    %v1248 = vunpack.c.l.b16 %v1212
    %v1249 = vunpack.c.l.b16 %v1213
    %v1250 = vunpack.c.h.b16 %v1213
    %v1251 = vunpack.c.l.b16 %v1214
    %v1252 = vpack.c.b16 %v1243, %v1240
    %v1253 = vpack.c.b16 %v1244, %v1241
    %v1254 = vpack.c.b16 %v1245, %v1242
    %v1255 = vpack.c.b16 %v1249, %v1246
    %v1256 = vpack.c.b16 %v1250, %v1247
    %v1257 = vpack.c.b16 %v1251, %v1248
    %v1265 = vsel %vm207, %v1206, 0
    %1267 = vmatprep.subr.bf16.mxu0 %v1253
    %1268 = vmatpush1.bf16.msra.mxu0 %v1252
    %1269 = vmatprep.subr.bf16.mxu0 %v1256
    %1270 = vmatpush1.bf16.msra.mxu0 %v1255
    %1271 = vmatprep.subr.bf16.mxu0 0
    %1272 = vmatpush1.bf16.msra.mxu0 0
    %1273 = vmatprep.subr.bf16.mxu0 0
    %1274 = vmatpush1.bf16.msra.mxu0 0
    %1275 = vmatprep.subr.bf16.mxu0 0
    %1276 = vmatpush1.bf16.msra.mxu0 0
    %1277 = vmatprep.subr.bf16.mxu0 0
    %1278 = vmatpush1.bf16.msra.mxu0 0
    %1279 = vmatprep.subr.bf16.mxu0 0
    %1280 = vmatpush1.bf16.msra.mxu0 0
    %1281 = vmatprep.subr.bf16.mxu0 0
    %1282 = vmatpush1.bf16.msra.mxu0 0
    %1283 = vmatprep.subr.bf16.mxu0 0
    %1284 = vmatpush1.bf16.msra.mxu0 0
    %1285 = vmatprep.subr.bf16.mxu0 0
    %1286 = vmatpush1.bf16.msra.mxu0 0
    %1287 = vmatprep.subr.bf16.mxu0 0
    %1288 = vmatpush1.bf16.msra.mxu0 0
    %1289 = vmatprep.subr.bf16.mxu0 0
    %1290 = vmatpush1.bf16.msra.mxu0 0
    %1291 = vmatprep.subr.bf16.mxu0 0
    %1292 = vmatpush1.bf16.msra.mxu0 0
    %1293 = vmatprep.subr.bf16.mxu0 0
    %1294 = vmatpush1.bf16.msra.mxu0 0
    %1295 = vmatprep.subr.bf16.mxu0 0
    %1296 = vmatpush1.bf16.msra.mxu0 0
    %1297 = vmatprep.subr.bf16.mxu0 0
    %1298 = vmatpush1.bf16.msra.mxu0 0
    %1299 = vmatprep.mubr.bf16.mxu0 0
    %1300 = vmatmul.mubr.bf16.gmra.mrb[0].mxu0 %v1265
    %v1301 = vpop.f32.mrb[0].mxu0
    %v1302 = vadd.f32 %v1220, %v1301
    %v1303 = vpop.f32.mrb[0].mxu0
    %v1304 = vadd.f32 %v1224, %v1303
    %v1305 = vpop.f32.mrb[0].mxu0
    %v1306 = vpop.f32.mrb[0].mxu0
    %1307 = vdwg.mxu0
    %1308 = vmatprep.subr.bf16.mxu0 0
    %1309 = vmatpush1.bf16.msra.mxu0 %v1254
    %1310 = vmatprep.subr.bf16.mxu0 0
    %1311 = vmatpush1.bf16.msra.mxu0 %v1257
    %1312 = vmatprep.subr.bf16.mxu0 0
    %1313 = vmatpush1.bf16.msra.mxu0 0
    %1314 = vmatprep.subr.bf16.mxu0 0
    %1315 = vmatpush1.bf16.msra.mxu0 0
    %1316 = vmatprep.subr.bf16.mxu0 0
    %1317 = vmatpush1.bf16.msra.mxu0 0
    %1318 = vmatprep.subr.bf16.mxu0 0
    %1319 = vmatpush1.bf16.msra.mxu0 0
    %1320 = vmatprep.subr.bf16.mxu0 0
    %1321 = vmatpush1.bf16.msra.mxu0 0
    %1322 = vmatprep.subr.bf16.mxu0 0
    %1323 = vmatpush1.bf16.msra.mxu0 0
    %1324 = vmatprep.subr.bf16.mxu0 0
    %1325 = vmatpush1.bf16.msra.mxu0 0
    %1326 = vmatprep.subr.bf16.mxu0 0
    %1327 = vmatpush1.bf16.msra.mxu0 0
    %1328 = vmatprep.subr.bf16.mxu0 0
    %1329 = vmatpush1.bf16.msra.mxu0 0
    %1330 = vmatprep.subr.bf16.mxu0 0
    %1331 = vmatpush1.bf16.msra.mxu0 0
    %1332 = vmatprep.subr.bf16.mxu0 0
    %1333 = vmatpush1.bf16.msra.mxu0 0
    %1334 = vmatprep.subr.bf16.mxu0 0
    %1335 = vmatpush1.bf16.msra.mxu0 0
    %1336 = vmatprep.subr.bf16.mxu0 0
    %1337 = vmatpush1.bf16.msra.mxu0 0
    %1338 = vmatprep.subr.bf16.mxu0 0
    %1339 = vmatpush1.bf16.msra.mxu0 0
    %1340 = vmatprep.mubr.bf16.mxu0 0
    %1341 = vmatmul.mubr.bf16.gmra.mrb[0].mxu0 %v1265
    %v1342 = vpop.f32.mrb[0].mxu0
    %v1343 = vadd.f32 %v1228, %v1342
    %v1344 = vpop.f32.mrb[0].mxu0
    %v1345 = vpop.f32.mrb[0].mxu0
    %v1346 = vpop.f32.mrb[0].mxu0
    %1347 = vdwg.mxu0
    %v1348 = vld [vmem:[#allocation2] sm:$0xff]
    %v1349 = vld [vmem:[#allocation2 + $0x8] sm:$0xf]
    %v1350 = vld [vmem:[#allocation2 + $0xc] sm:$0xff]
    %v1351 = vld [vmem:[#allocation2 + $0x14] sm:$0xf]
    %v1352 = vld [vmem:[#allocation2 + $0x18] sm:$0xff]
    %v1353 = vld [vmem:[#allocation2 + $0x20] sm:$0xf]
    %v1354 = vld [vmem:[#allocation2 + $0x24] sm:$0xff]
    %v1355 = vld [vmem:[#allocation2 + $0x2c] sm:$0xf]
    %v1364 = vunpack.c.l.b16 %v1348
    %v1365 = vunpack.c.h.b16 %v1348
    %v1366 = vunpack.c.l.b16 %v1349
    %v1367 = vunpack.c.l.b16 %v1350
    %v1368 = vunpack.c.h.b16 %v1350
    %v1369 = vunpack.c.l.b16 %v1351
    %v1370 = vunpack.c.l.b16 %v1352
    %v1371 = vunpack.c.h.b16 %v1352
    %v1372 = vunpack.c.l.b16 %v1353
    %v1373 = vunpack.c.l.b16 %v1354
    %v1374 = vunpack.c.h.b16 %v1354
    %v1375 = vunpack.c.l.b16 %v1355
    %v1376 = vpack.c.b16 %v1367, %v1364
    %v1377 = vpack.c.b16 %v1368, %v1365
    %v1378 = vpack.c.b16 %v1369, %v1366
    %v1379 = vpack.c.b16 %v1373, %v1370
    %v1380 = vpack.c.b16 %v1374, %v1371
    %v1381 = vpack.c.b16 %v1375, %v1372
    %1388 = vmatprep.subr.bf16.mxu0 %v1377
    %1389 = vmatpush1.bf16.msra.mxu0 %v1376
    %1390 = vmatprep.subr.bf16.mxu0 %v1380
    %1391 = vmatpush1.bf16.msra.mxu0 %v1379
    %1392 = vmatprep.subr.bf16.mxu0 0
    %1393 = vmatpush1.bf16.msra.mxu0 0
    %1394 = vmatprep.subr.bf16.mxu0 0
    %1395 = vmatpush1.bf16.msra.mxu0 0
    %1396 = vmatprep.subr.bf16.mxu0 0
    %1397 = vmatpush1.bf16.msra.mxu0 0
    %1398 = vmatprep.subr.bf16.mxu0 0
    %1399 = vmatpush1.bf16.msra.mxu0 0
    %1400 = vmatprep.subr.bf16.mxu0 0
    %1401 = vmatpush1.bf16.msra.mxu0 0
    %1402 = vmatprep.subr.bf16.mxu0 0
    %1403 = vmatpush1.bf16.msra.mxu0 0
    %1404 = vmatprep.subr.bf16.mxu0 0
    %1405 = vmatpush1.bf16.msra.mxu0 0
    %1406 = vmatprep.subr.bf16.mxu0 0
    %1407 = vmatpush1.bf16.msra.mxu0 0
    %1408 = vmatprep.subr.bf16.mxu0 0
    %1409 = vmatpush1.bf16.msra.mxu0 0
    %1410 = vmatprep.subr.bf16.mxu0 0
    %1411 = vmatpush1.bf16.msra.mxu0 0
    %1412 = vmatprep.subr.bf16.mxu0 0
    %1413 = vmatpush1.bf16.msra.mxu0 0
    %1414 = vmatprep.subr.bf16.mxu0 0
    %1415 = vmatpush1.bf16.msra.mxu0 0
    %1416 = vmatprep.subr.bf16.mxu0 0
    %1417 = vmatpush1.bf16.msra.mxu0 0
    %1418 = vmatprep.subr.bf16.mxu0 0
    %1419 = vmatpush1.bf16.msra.mxu0 0
    %1420 = vmatprep.mubr.bf16.mxu0 0
    %1421 = vmatmul.mubr.bf16.gmra.mrb[0].mxu0 %v935
    %v1422 = vpop.f32.mrb[0].mxu0
    %v1423 = vadd.f32 0.0, %v1422
    %v1424 = vpop.f32.mrb[0].mxu0
    %v1425 = vadd.f32 0.0, %v1424
    %v1426 = vpop.f32.mrb[0].mxu0
    %v1427 = vpop.f32.mrb[0].mxu0
    %1428 = vdwg.mxu0
    %1429 = vmatprep.subr.bf16.mxu0 0
    %1430 = vmatpush1.bf16.msra.mxu0 %v1378
    %1431 = vmatprep.subr.bf16.mxu0 0
    %1432 = vmatpush1.bf16.msra.mxu0 %v1381
    %1433 = vmatprep.subr.bf16.mxu0 0
    %1434 = vmatpush1.bf16.msra.mxu0 0
    %1435 = vmatprep.subr.bf16.mxu0 0
    %1436 = vmatpush1.bf16.msra.mxu0 0
    %1437 = vmatprep.subr.bf16.mxu0 0
    %1438 = vmatpush1.bf16.msra.mxu0 0
    %1439 = vmatprep.subr.bf16.mxu0 0
    %1440 = vmatpush1.bf16.msra.mxu0 0
    %1441 = vmatprep.subr.bf16.mxu0 0
    %1442 = vmatpush1.bf16.msra.mxu0 0
    %1443 = vmatprep.subr.bf16.mxu0 0
    %1444 = vmatpush1.bf16.msra.mxu0 0
    %1445 = vmatprep.subr.bf16.mxu0 0
    %1446 = vmatpush1.bf16.msra.mxu0 0
    %1447 = vmatprep.subr.bf16.mxu0 0
    %1448 = vmatpush1.bf16.msra.mxu0 0
    %1449 = vmatprep.subr.bf16.mxu0 0
    %1450 = vmatpush1.bf16.msra.mxu0 0
    %1451 = vmatprep.subr.bf16.mxu0 0
    %1452 = vmatpush1.bf16.msra.mxu0 0
    %1453 = vmatprep.subr.bf16.mxu0 0
    %1454 = vmatpush1.bf16.msra.mxu0 0
    %1455 = vmatprep.subr.bf16.mxu0 0
    %1456 = vmatpush1.bf16.msra.mxu0 0
    %1457 = vmatprep.subr.bf16.mxu0 0
    %1458 = vmatpush1.bf16.msra.mxu0 0
    %1459 = vmatprep.subr.bf16.mxu0 0
    %1460 = vmatpush1.bf16.msra.mxu0 0
    %1461 = vmatprep.mubr.bf16.mxu0 0
    %1462 = vmatmul.mubr.bf16.gmra.mrb[0].mxu0 %v935
    %v1463 = vpop.f32.mrb[0].mxu0
    %v1464 = vadd.f32 0.0, %v1463
    %v1465 = vpop.f32.mrb[0].mxu0
    %v1466 = vpop.f32.mrb[0].mxu0
    %v1467 = vpop.f32.mrb[0].mxu0
    %1468 = vdwg.mxu0
    %v1469 = vadd.f32 %v1302, %v1423
    %v1470 = vxor.u32 %v1469, 2147483648
    %v1471 = vmul.f32 %v1470, 1.442695
    %v1472 = vpow.pop %v1471
    %v1473 = vadd.f32 %v1472, 1.0
    %v1474 = vrcp.pop %v1473
    %v1475 = vmul.f32 1.0, %v1474
    %v1476 = vadd.f32 %v1304, %v1425
    %v1477 = vxor.u32 %v1476, 2147483648
    %v1478 = vmul.f32 %v1477, 1.442695
    %v1479 = vpow.pop %v1478
    %v1480 = vadd.f32 %v1479, 1.0
    %v1481 = vrcp.pop %v1480
    %v1482 = vmul.f32 1.0, %v1481
    %v1483 = vld [vmem:[%s5] sm:$0x1]
    %v1485 = vlaneseq
    %v1486 = vshrl.u32 %v1485, 7
    %v1487 = vsub.s32 0, %v1486
    %v1488 = vrot.slane %v1483, %v1487
    %v1490 = vadd.f32 %v1464, %v1488
    %v1491 = vmul.f32 %v1475, %v1490
    %v1492 = vadd.f32 %v1343, %v1491
    %v1493 = vtanh.pop %v1492
    %v1494 = vsub.f32 1.0, %v1482
    %v1495 = vmul.f32 %v1494, %v1493
    %v1496 = vmul.f32 %v1482, %v932
    %v1497 = vadd.f32 %v1495, %v1496
    %v1498 = vpack.c.bf16 %v1497, %v1497
    %v1499 = vpack.c.bf16 %v1120, %v1120
    %v1500 = vld [vmem:[%s447] sm:$0xff]
    %v1501 = vld [vmem:[%s447 + $0x8] sm:$0xf]
    %v1502 = vld [vmem:[%s447 + $0xc] sm:$0xff]
    %v1503 = vld [vmem:[%s447 + $0x14] sm:$0xf]
    %v1504 = vld [vmem:[%s447 + $0x18] sm:$0xff]
    %v1505 = vld [vmem:[%s447 + $0x20] sm:$0xf]
    %v1506 = vld [vmem:[%s447 + $0x24] sm:$0xff]
    %v1507 = vld [vmem:[%s447 + $0x2c] sm:$0xf]
    %v1508 = vld [vmem:[%s456] sm:$0x7]
    %v1510 = vlaneseq
    %v1511 = vshrl.u32 %v1510, 7
    %v1512 = vsub.s32 0, %v1511
    %v1513 = vrot.slane %v1508, %v1512
    %v1514 = vlaneseq
    %v1515 = vshrl.u32 %v1514, 7
    %v1516 = vsub.s32 1, %v1515
    %v1517 = vrot.slane %v1508, %v1516
    %v1518 = vlaneseq
    %v1519 = vshrl.u32 %v1518, 7
    %v1520 = vsub.s32 2, %v1519
    %v1521 = vrot.slane %v1508, %v1520
    %v1533 = vunpack.c.l.b16 %v1500
    %v1534 = vunpack.c.h.b16 %v1500
    %v1535 = vunpack.c.l.b16 %v1501
    %v1536 = vunpack.c.l.b16 %v1502
    %v1537 = vunpack.c.h.b16 %v1502
    %v1538 = vunpack.c.l.b16 %v1503
    %v1539 = vunpack.c.l.b16 %v1504
    %v1540 = vunpack.c.h.b16 %v1504
    %v1541 = vunpack.c.l.b16 %v1505
    %v1542 = vunpack.c.l.b16 %v1506
    %v1543 = vunpack.c.h.b16 %v1506
    %v1544 = vunpack.c.l.b16 %v1507
    %v1545 = vpack.c.b16 %v1536, %v1533
    %v1546 = vpack.c.b16 %v1537, %v1534
    %v1547 = vpack.c.b16 %v1538, %v1535
    %v1548 = vpack.c.b16 %v1542, %v1539
    %v1549 = vpack.c.b16 %v1543, %v1540
    %v1550 = vpack.c.b16 %v1544, %v1541
    %v1558 = vsel %vm207, %v1498, 0
    %1560 = vmatprep.subr.bf16.mxu0 %v1546
    %1561 = vmatpush1.bf16.msra.mxu0 %v1545
    %1562 = vmatprep.subr.bf16.mxu0 %v1549
    %1563 = vmatpush1.bf16.msra.mxu0 %v1548
    %1564 = vmatprep.subr.bf16.mxu0 0
    %1565 = vmatpush1.bf16.msra.mxu0 0
    %1566 = vmatprep.subr.bf16.mxu0 0
    %1567 = vmatpush1.bf16.msra.mxu0 0
    %1568 = vmatprep.subr.bf16.mxu0 0
    %1569 = vmatpush1.bf16.msra.mxu0 0
    %1570 = vmatprep.subr.bf16.mxu0 0
    %1571 = vmatpush1.bf16.msra.mxu0 0
    %1572 = vmatprep.subr.bf16.mxu0 0
    %1573 = vmatpush1.bf16.msra.mxu0 0
    %1574 = vmatprep.subr.bf16.mxu0 0
    %1575 = vmatpush1.bf16.msra.mxu0 0
    %1576 = vmatprep.subr.bf16.mxu0 0
    %1577 = vmatpush1.bf16.msra.mxu0 0
    %1578 = vmatprep.subr.bf16.mxu0 0
    %1579 = vmatpush1.bf16.msra.mxu0 0
    %1580 = vmatprep.subr.bf16.mxu0 0
    %1581 = vmatpush1.bf16.msra.mxu0 0
    %1582 = vmatprep.subr.bf16.mxu0 0
    %1583 = vmatpush1.bf16.msra.mxu0 0
    %1584 = vmatprep.subr.bf16.mxu0 0
    %1585 = vmatpush1.bf16.msra.mxu0 0
    %1586 = vmatprep.subr.bf16.mxu0 0
    %1587 = vmatpush1.bf16.msra.mxu0 0
    %1588 = vmatprep.subr.bf16.mxu0 0
    %1589 = vmatpush1.bf16.msra.mxu0 0
    %1590 = vmatprep.subr.bf16.mxu0 0
    %1591 = vmatpush1.bf16.msra.mxu0 0
    %1592 = vmatprep.mubr.bf16.mxu0 0
    %1593 = vmatmul.mubr.bf16.gmra.mrb[0].mxu0 %v1558
    %v1594 = vpop.f32.mrb[0].mxu0
    %v1595 = vadd.f32 %v1513, %v1594
    %v1596 = vpop.f32.mrb[0].mxu0
    %v1597 = vadd.f32 %v1517, %v1596
    %v1598 = vpop.f32.mrb[0].mxu0
    %v1599 = vpop.f32.mrb[0].mxu0
    %1600 = vdwg.mxu0
    %1601 = vmatprep.subr.bf16.mxu0 0
    %1602 = vmatpush1.bf16.msra.mxu0 %v1547
    %1603 = vmatprep.subr.bf16.mxu0 0
    %1604 = vmatpush1.bf16.msra.mxu0 %v1550
    %1605 = vmatprep.subr.bf16.mxu0 0
    %1606 = vmatpush1.bf16.msra.mxu0 0
    %1607 = vmatprep.subr.bf16.mxu0 0
    %1608 = vmatpush1.bf16.msra.mxu0 0
    %1609 = vmatprep.subr.bf16.mxu0 0
    %1610 = vmatpush1.bf16.msra.mxu0 0
    %1611 = vmatprep.subr.bf16.mxu0 0
    %1612 = vmatpush1.bf16.msra.mxu0 0
    %1613 = vmatprep.subr.bf16.mxu0 0
    %1614 = vmatpush1.bf16.msra.mxu0 0
    %1615 = vmatprep.subr.bf16.mxu0 0
    %1616 = vmatpush1.bf16.msra.mxu0 0
    %1617 = vmatprep.subr.bf16.mxu0 0
    %1618 = vmatpush1.bf16.msra.mxu0 0
    %1619 = vmatprep.subr.bf16.mxu0 0
    %1620 = vmatpush1.bf16.msra.mxu0 0
    %1621 = vmatprep.subr.bf16.mxu0 0
    %1622 = vmatpush1.bf16.msra.mxu0 0
    %1623 = vmatprep.subr.bf16.mxu0 0
    %1624 = vmatpush1.bf16.msra.mxu0 0
    %1625 = vmatprep.subr.bf16.mxu0 0
    %1626 = vmatpush1.bf16.msra.mxu0 0
    %1627 = vmatprep.subr.bf16.mxu0 0
    %1628 = vmatpush1.bf16.msra.mxu0 0
    %1629 = vmatprep.subr.bf16.mxu0 0
    %1630 = vmatpush1.bf16.msra.mxu0 0
    %1631 = vmatprep.subr.bf16.mxu0 0
    %1632 = vmatpush1.bf16.msra.mxu0 0
    %1633 = vmatprep.mubr.bf16.mxu0 0
    %1634 = vmatmul.mubr.bf16.gmra.mrb[0].mxu0 %v1558
    %v1635 = vpop.f32.mrb[0].mxu0
    %v1636 = vadd.f32 %v1521, %v1635
    %v1637 = vpop.f32.mrb[0].mxu0
    %v1638 = vpop.f32.mrb[0].mxu0
    %v1639 = vpop.f32.mrb[0].mxu0
    %1640 = vdwg.mxu0
    %v1641 = vld [vmem:[%s590] sm:$0xff]
    %v1642 = vld [vmem:[%s590 + $0x8] sm:$0xf]
    %v1643 = vld [vmem:[%s590 + $0xc] sm:$0xff]
    %v1644 = vld [vmem:[%s590 + $0x14] sm:$0xf]
    %v1645 = vld [vmem:[%s590 + $0x18] sm:$0xff]
    %v1646 = vld [vmem:[%s590 + $0x20] sm:$0xf]
    %v1647 = vld [vmem:[%s590 + $0x24] sm:$0xff]
    %v1648 = vld [vmem:[%s590 + $0x2c] sm:$0xf]
    %v1657 = vunpack.c.l.b16 %v1641
    %v1658 = vunpack.c.h.b16 %v1641
    %v1659 = vunpack.c.l.b16 %v1642
    %v1660 = vunpack.c.l.b16 %v1643
    %v1661 = vunpack.c.h.b16 %v1643
    %v1662 = vunpack.c.l.b16 %v1644
    %v1663 = vunpack.c.l.b16 %v1645
    %v1664 = vunpack.c.h.b16 %v1645
    %v1665 = vunpack.c.l.b16 %v1646
    %v1666 = vunpack.c.l.b16 %v1647
    %v1667 = vunpack.c.h.b16 %v1647
    %v1668 = vunpack.c.l.b16 %v1648
    %v1669 = vpack.c.b16 %v1660, %v1657
    %v1670 = vpack.c.b16 %v1661, %v1658
    %v1671 = vpack.c.b16 %v1662, %v1659
    %v1672 = vpack.c.b16 %v1666, %v1663
    %v1673 = vpack.c.b16 %v1667, %v1664
    %v1674 = vpack.c.b16 %v1668, %v1665
    %v1682 = vsel %vm207, %v1499, 0
    %1684 = vmatprep.subr.bf16.mxu0 %v1670
    %1685 = vmatpush1.bf16.msra.mxu0 %v1669
    %1686 = vmatprep.subr.bf16.mxu0 %v1673
    %1687 = vmatpush1.bf16.msra.mxu0 %v1672
    %1688 = vmatprep.subr.bf16.mxu0 0
    %1689 = vmatpush1.bf16.msra.mxu0 0
    %1690 = vmatprep.subr.bf16.mxu0 0
    %1691 = vmatpush1.bf16.msra.mxu0 0
    %1692 = vmatprep.subr.bf16.mxu0 0
    %1693 = vmatpush1.bf16.msra.mxu0 0
    %1694 = vmatprep.subr.bf16.mxu0 0
    %1695 = vmatpush1.bf16.msra.mxu0 0
    %1696 = vmatprep.subr.bf16.mxu0 0
    %1697 = vmatpush1.bf16.msra.mxu0 0
    %1698 = vmatprep.subr.bf16.mxu0 0
    %1699 = vmatpush1.bf16.msra.mxu0 0
    %1700 = vmatprep.subr.bf16.mxu0 0
    %1701 = vmatpush1.bf16.msra.mxu0 0
    %1702 = vmatprep.subr.bf16.mxu0 0
    %1703 = vmatpush1.bf16.msra.mxu0 0
    %1704 = vmatprep.subr.bf16.mxu0 0
    %1705 = vmatpush1.bf16.msra.mxu0 0
    %1706 = vmatprep.subr.bf16.mxu0 0
    %1707 = vmatpush1.bf16.msra.mxu0 0
    %1708 = vmatprep.subr.bf16.mxu0 0
    %1709 = vmatpush1.bf16.msra.mxu0 0
    %1710 = vmatprep.subr.bf16.mxu0 0
    %1711 = vmatpush1.bf16.msra.mxu0 0
    %1712 = vmatprep.subr.bf16.mxu0 0
    %1713 = vmatpush1.bf16.msra.mxu0 0
    %1714 = vmatprep.subr.bf16.mxu0 0
    %1715 = vmatpush1.bf16.msra.mxu0 0
    %1716 = vmatprep.mubr.bf16.mxu0 0
    %1717 = vmatmul.mubr.bf16.gmra.mrb[0].mxu0 %v1682
    %v1718 = vpop.f32.mrb[0].mxu0
    %v1719 = vadd.f32 0.0, %v1718
    %v1720 = vpop.f32.mrb[0].mxu0
    %v1721 = vadd.f32 0.0, %v1720
    %v1722 = vpop.f32.mrb[0].mxu0
    %v1723 = vpop.f32.mrb[0].mxu0
    %1724 = vdwg.mxu0
    %1725 = vmatprep.subr.bf16.mxu0 0
    %1726 = vmatpush1.bf16.msra.mxu0 %v1671
    %1727 = vmatprep.subr.bf16.mxu0 0
    %1728 = vmatpush1.bf16.msra.mxu0 %v1674
    %1729 = vmatprep.subr.bf16.mxu0 0
    %1730 = vmatpush1.bf16.msra.mxu0 0
    %1731 = vmatprep.subr.bf16.mxu0 0
    %1732 = vmatpush1.bf16.msra.mxu0 0
    %1733 = vmatprep.subr.bf16.mxu0 0
    %1734 = vmatpush1.bf16.msra.mxu0 0
    %1735 = vmatprep.subr.bf16.mxu0 0
    %1736 = vmatpush1.bf16.msra.mxu0 0
    %1737 = vmatprep.subr.bf16.mxu0 0
    %1738 = vmatpush1.bf16.msra.mxu0 0
    %1739 = vmatprep.subr.bf16.mxu0 0
    %1740 = vmatpush1.bf16.msra.mxu0 0
    %1741 = vmatprep.subr.bf16.mxu0 0
    %1742 = vmatpush1.bf16.msra.mxu0 0
    %1743 = vmatprep.subr.bf16.mxu0 0
    %1744 = vmatpush1.bf16.msra.mxu0 0
    %1745 = vmatprep.subr.bf16.mxu0 0
    %1746 = vmatpush1.bf16.msra.mxu0 0
    %1747 = vmatprep.subr.bf16.mxu0 0
    %1748 = vmatpush1.bf16.msra.mxu0 0
    %1749 = vmatprep.subr.bf16.mxu0 0
    %1750 = vmatpush1.bf16.msra.mxu0 0
    %1751 = vmatprep.subr.bf16.mxu0 0
    %1752 = vmatpush1.bf16.msra.mxu0 0
    %1753 = vmatprep.subr.bf16.mxu0 0
    %1754 = vmatpush1.bf16.msra.mxu0 0
    %1755 = vmatprep.subr.bf16.mxu0 0
    %1756 = vmatpush1.bf16.msra.mxu0 0
    %1757 = vmatprep.mubr.bf16.mxu0 0
    %1758 = vmatmul.mubr.bf16.gmra.mrb[0].mxu0 %v1682
    %v1759 = vpop.f32.mrb[0].mxu0
    %v1760 = vadd.f32 0.0, %v1759
    %v1761 = vpop.f32.mrb[0].mxu0
    %v1762 = vpop.f32.mrb[0].mxu0
    %v1763 = vpop.f32.mrb[0].mxu0
    %1764 = vdwg.mxu0
    %v1765 = vadd.f32 %v1595, %v1719
    %v1766 = vxor.u32 %v1765, 2147483648
    %v1767 = vmul.f32 %v1766, 1.442695
    %v1768 = vpow.pop %v1767
    %v1769 = vadd.f32 %v1768, 1.0
    %v1770 = vrcp.pop %v1769
    %v1771 = vmul.f32 1.0, %v1770
    %v1772 = vadd.f32 %v1597, %v1721
    %v1773 = vxor.u32 %v1772, 2147483648
    %v1774 = vmul.f32 %v1773, 1.442695
    %v1775 = vpow.pop %v1774
    %v1776 = vadd.f32 %v1775, 1.0
    %v1777 = vrcp.pop %v1776
    %v1778 = vmul.f32 1.0, %v1777
    %v1779 = vld [vmem:[%s729] sm:$0x1]
    %v1781 = vlaneseq
    %v1782 = vshrl.u32 %v1781, 7
    %v1783 = vsub.s32 0, %v1782
    %v1784 = vrot.slane %v1779, %v1783
    %v1786 = vadd.f32 %v1760, %v1784
    %v1787 = vmul.f32 %v1771, %v1786
    %v1788 = vadd.f32 %v1636, %v1787
    %v1789 = vtanh.pop %v1788
    %v1790 = vsub.f32 1.0, %v1778
    %v1791 = vmul.f32 %v1790, %v1789
    %v1792 = vmul.f32 %v1778, %v1120
    %v1793 = vadd.f32 %v1791, %v1792
    %v1794 = vpack.c.bf16 %v1793, %v1793
    %v1796 = vsel %vm207, %v1794, 0
    %1798 = vmatprep.subr.bf16.mxu0 %v1253
    %1799 = vmatpush1.bf16.msra.mxu0 %v1252
    %1800 = vmatprep.subr.bf16.mxu0 %v1256
    %1801 = vmatpush1.bf16.msra.mxu0 %v1255
    %1802 = vmatprep.subr.bf16.mxu0 0
    %1803 = vmatpush1.bf16.msra.mxu0 0
    %1804 = vmatprep.subr.bf16.mxu0 0
    %1805 = vmatpush1.bf16.msra.mxu0 0
    %1806 = vmatprep.subr.bf16.mxu0 0
    %1807 = vmatpush1.bf16.msra.mxu0 0
    %1808 = vmatprep.subr.bf16.mxu0 0
    %1809 = vmatpush1.bf16.msra.mxu0 0
    %1810 = vmatprep.subr.bf16.mxu0 0
    %1811 = vmatpush1.bf16.msra.mxu0 0
    %1812 = vmatprep.subr.bf16.mxu0 0
    %1813 = vmatpush1.bf16.msra.mxu0 0
    %1814 = vmatprep.subr.bf16.mxu0 0
    %1815 = vmatpush1.bf16.msra.mxu0 0
    %1816 = vmatprep.subr.bf16.mxu0 0
    %1817 = vmatpush1.bf16.msra.mxu0 0
    %1818 = vmatprep.subr.bf16.mxu0 0
    %1819 = vmatpush1.bf16.msra.mxu0 0
    %1820 = vmatprep.subr.bf16.mxu0 0
    %1821 = vmatpush1.bf16.msra.mxu0 0
    %1822 = vmatprep.subr.bf16.mxu0 0
    %1823 = vmatpush1.bf16.msra.mxu0 0
    %1824 = vmatprep.subr.bf16.mxu0 0
    %1825 = vmatpush1.bf16.msra.mxu0 0
    %1826 = vmatprep.subr.bf16.mxu0 0
    %1827 = vmatpush1.bf16.msra.mxu0 0
    %1828 = vmatprep.subr.bf16.mxu0 0
    %1829 = vmatpush1.bf16.msra.mxu0 0
    %1830 = vmatprep.mubr.bf16.mxu0 0
    %1831 = vmatmul.mubr.bf16.gmra.mrb[0].mxu0 %v1796
    %v1832 = vpop.f32.mrb[0].mxu0
    %v1833 = vadd.f32 %v1220, %v1832
    %v1834 = vpop.f32.mrb[0].mxu0
    %v1835 = vadd.f32 %v1224, %v1834
    %v1836 = vpop.f32.mrb[0].mxu0
    %v1837 = vpop.f32.mrb[0].mxu0
    %1838 = vdwg.mxu0
    %1839 = vmatprep.subr.bf16.mxu0 0
    %1840 = vmatpush1.bf16.msra.mxu0 %v1254
    %1841 = vmatprep.subr.bf16.mxu0 0
    %1842 = vmatpush1.bf16.msra.mxu0 %v1257
    %1843 = vmatprep.subr.bf16.mxu0 0
    %1844 = vmatpush1.bf16.msra.mxu0 0
    %1845 = vmatprep.subr.bf16.mxu0 0
    %1846 = vmatpush1.bf16.msra.mxu0 0
    %1847 = vmatprep.subr.bf16.mxu0 0
    %1848 = vmatpush1.bf16.msra.mxu0 0
    %1849 = vmatprep.subr.bf16.mxu0 0
    %1850 = vmatpush1.bf16.msra.mxu0 0
    %1851 = vmatprep.subr.bf16.mxu0 0
    %1852 = vmatpush1.bf16.msra.mxu0 0
    %1853 = vmatprep.subr.bf16.mxu0 0
    %1854 = vmatpush1.bf16.msra.mxu0 0
    %1855 = vmatprep.subr.bf16.mxu0 0
    %1856 = vmatpush1.bf16.msra.mxu0 0
    %1857 = vmatprep.subr.bf16.mxu0 0
    %1858 = vmatpush1.bf16.msra.mxu0 0
    %1859 = vmatprep.subr.bf16.mxu0 0
    %1860 = vmatpush1.bf16.msra.mxu0 0
    %1861 = vmatprep.subr.bf16.mxu0 0
    %1862 = vmatpush1.bf16.msra.mxu0 0
    %1863 = vmatprep.subr.bf16.mxu0 0
    %1864 = vmatpush1.bf16.msra.mxu0 0
    %1865 = vmatprep.subr.bf16.mxu0 0
    %1866 = vmatpush1.bf16.msra.mxu0 0
    %1867 = vmatprep.subr.bf16.mxu0 0
    %1868 = vmatpush1.bf16.msra.mxu0 0
    %1869 = vmatprep.subr.bf16.mxu0 0
    %1870 = vmatpush1.bf16.msra.mxu0 0
    %1871 = vmatprep.mubr.bf16.mxu0 0
    %1872 = vmatmul.mubr.bf16.gmra.mrb[0].mxu0 %v1796
    %v1873 = vpop.f32.mrb[0].mxu0
    %v1874 = vadd.f32 %v1228, %v1873
    %v1875 = vpop.f32.mrb[0].mxu0
    %v1876 = vpop.f32.mrb[0].mxu0
    %v1877 = vpop.f32.mrb[0].mxu0
    %1878 = vdwg.mxu0
    %1879 = vmatprep.subr.bf16.mxu0 %v1377
    %1880 = vmatpush1.bf16.msra.mxu0 %v1376
    %1881 = vmatprep.subr.bf16.mxu0 %v1380
    %1882 = vmatpush1.bf16.msra.mxu0 %v1379
    %1883 = vmatprep.subr.bf16.mxu0 0
    %1884 = vmatpush1.bf16.msra.mxu0 0
    %1885 = vmatprep.subr.bf16.mxu0 0
    %1886 = vmatpush1.bf16.msra.mxu0 0
    %1887 = vmatprep.subr.bf16.mxu0 0
    %1888 = vmatpush1.bf16.msra.mxu0 0
    %1889 = vmatprep.subr.bf16.mxu0 0
    %1890 = vmatpush1.bf16.msra.mxu0 0
    %1891 = vmatprep.subr.bf16.mxu0 0
    %1892 = vmatpush1.bf16.msra.mxu0 0
    %1893 = vmatprep.subr.bf16.mxu0 0
    %1894 = vmatpush1.bf16.msra.mxu0 0
    %1895 = vmatprep.subr.bf16.mxu0 0
    %1896 = vmatpush1.bf16.msra.mxu0 0
    %1897 = vmatprep.subr.bf16.mxu0 0
    %1898 = vmatpush1.bf16.msra.mxu0 0
    %1899 = vmatprep.subr.bf16.mxu0 0
    %1900 = vmatpush1.bf16.msra.mxu0 0
    %1901 = vmatprep.subr.bf16.mxu0 0
    %1902 = vmatpush1.bf16.msra.mxu0 0
    %1903 = vmatprep.subr.bf16.mxu0 0
    %1904 = vmatpush1.bf16.msra.mxu0 0
    %1905 = vmatprep.subr.bf16.mxu0 0
    %1906 = vmatpush1.bf16.msra.mxu0 0
    %1907 = vmatprep.subr.bf16.mxu0 0
    %1908 = vmatpush1.bf16.msra.mxu0 0
    %1909 = vmatprep.subr.bf16.mxu0 0
    %1910 = vmatpush1.bf16.msra.mxu0 0
    %1911 = vmatprep.mubr.bf16.mxu0 0
    %1912 = vmatmul.mubr.bf16.gmra.mrb[0].mxu0 %v1558
    %v1913 = vpop.f32.mrb[0].mxu0
    %v1914 = vadd.f32 0.0, %v1913
    %v1915 = vpop.f32.mrb[0].mxu0
    %v1916 = vadd.f32 0.0, %v1915
    %v1917 = vpop.f32.mrb[0].mxu0
    %v1918 = vpop.f32.mrb[0].mxu0
    %1919 = vdwg.mxu0
    %1920 = vmatprep.subr.bf16.mxu0 0
    %1921 = vmatpush1.bf16.msra.mxu0 %v1378
    %1922 = vmatprep.subr.bf16.mxu0 0
    %1923 = vmatpush1.bf16.msra.mxu0 %v1381
    %1924 = vmatprep.subr.bf16.mxu0 0
    %1925 = vmatpush1.bf16.msra.mxu0 0
    %1926 = vmatprep.subr.bf16.mxu0 0
    %1927 = vmatpush1.bf16.msra.mxu0 0
    %1928 = vmatprep.subr.bf16.mxu0 0
    %1929 = vmatpush1.bf16.msra.mxu0 0
    %1930 = vmatprep.subr.bf16.mxu0 0
    %1931 = vmatpush1.bf16.msra.mxu0 0
    %1932 = vmatprep.subr.bf16.mxu0 0
    %1933 = vmatpush1.bf16.msra.mxu0 0
    %1934 = vmatprep.subr.bf16.mxu0 0
    %1935 = vmatpush1.bf16.msra.mxu0 0
    %1936 = vmatprep.subr.bf16.mxu0 0
    %1937 = vmatpush1.bf16.msra.mxu0 0
    %1938 = vmatprep.subr.bf16.mxu0 0
    %1939 = vmatpush1.bf16.msra.mxu0 0
    %1940 = vmatprep.subr.bf16.mxu0 0
    %1941 = vmatpush1.bf16.msra.mxu0 0
    %1942 = vmatprep.subr.bf16.mxu0 0
    %1943 = vmatpush1.bf16.msra.mxu0 0
    %1944 = vmatprep.subr.bf16.mxu0 0
    %1945 = vmatpush1.bf16.msra.mxu0 0
    %1946 = vmatprep.subr.bf16.mxu0 0
    %1947 = vmatpush1.bf16.msra.mxu0 0
    %1948 = vmatprep.subr.bf16.mxu0 0
    %1949 = vmatpush1.bf16.msra.mxu0 0
    %1950 = vmatprep.subr.bf16.mxu0 0
    %1951 = vmatpush1.bf16.msra.mxu0 0
    %1952 = vmatprep.mubr.bf16.mxu0 0
    %1953 = vmatmul.mubr.bf16.gmra.mrb[0].mxu0 %v1558
    %v1954 = vpop.f32.mrb[0].mxu0
    %v1955 = vadd.f32 0.0, %v1954
    %v1956 = vpop.f32.mrb[0].mxu0
    %v1957 = vpop.f32.mrb[0].mxu0
    %v1958 = vpop.f32.mrb[0].mxu0
    %1959 = vdwg.mxu0
    %v1960 = vadd.f32 %v1833, %v1914
    %v1961 = vxor.u32 %v1960, 2147483648
    %v1962 = vmul.f32 %v1961, 1.442695
    %v1963 = vpow.pop %v1962
    %v1964 = vadd.f32 %v1963, 1.0
    %v1965 = vrcp.pop %v1964
    %v1966 = vmul.f32 1.0, %v1965
    %v1967 = vadd.f32 %v1835, %v1916
    %v1968 = vxor.u32 %v1967, 2147483648
    %v1969 = vmul.f32 %v1968, 1.442695
    %v1970 = vpow.pop %v1969
    %v1971 = vadd.f32 %v1970, 1.0
    %v1972 = vrcp.pop %v1971
    %v1973 = vmul.f32 1.0, %v1972
    %v1974 = vadd.f32 %v1955, %v1488
    %v1975 = vmul.f32 %v1966, %v1974
    %v1976 = vadd.f32 %v1874, %v1975
    %v1977 = vtanh.pop %v1976
    %v1978 = vsub.f32 1.0, %v1973
    %v1979 = vmul.f32 %v1978, %v1977
    %v1980 = vmul.f32 %v1973, %v1497
    %v1981 = vadd.f32 %v1979, %v1980
    %v1982 = vpack.c.bf16 %v1981, %v1981
    %v1984 = vsel %vm207, %v1982, 0
    %1986 = vmatprep.subr.bf16.mxu0 %v1546
    %1987 = vmatpush1.bf16.msra.mxu0 %v1545
    %1988 = vmatprep.subr.bf16.mxu0 %v1549
    %1989 = vmatpush1.bf16.msra.mxu0 %v1548
    %1990 = vmatprep.subr.bf16.mxu0 0
    %1991 = vmatpush1.bf16.msra.mxu0 0
    %1992 = vmatprep.subr.bf16.mxu0 0
    %1993 = vmatpush1.bf16.msra.mxu0 0
    %1994 = vmatprep.subr.bf16.mxu0 0
    %1995 = vmatpush1.bf16.msra.mxu0 0
    %1996 = vmatprep.subr.bf16.mxu0 0
    %1997 = vmatpush1.bf16.msra.mxu0 0
    %1998 = vmatprep.subr.bf16.mxu0 0
    %1999 = vmatpush1.bf16.msra.mxu0 0
    %2000 = vmatprep.subr.bf16.mxu0 0
    %2001 = vmatpush1.bf16.msra.mxu0 0
    %2002 = vmatprep.subr.bf16.mxu0 0
    %2003 = vmatpush1.bf16.msra.mxu0 0
    %2004 = vmatprep.subr.bf16.mxu0 0
    %2005 = vmatpush1.bf16.msra.mxu0 0
    %2006 = vmatprep.subr.bf16.mxu0 0
    %2007 = vmatpush1.bf16.msra.mxu0 0
    %2008 = vmatprep.subr.bf16.mxu0 0
    %2009 = vmatpush1.bf16.msra.mxu0 0
    %2010 = vmatprep.subr.bf16.mxu0 0
    %2011 = vmatpush1.bf16.msra.mxu0 0
    %2012 = vmatprep.subr.bf16.mxu0 0
    %2013 = vmatpush1.bf16.msra.mxu0 0
    %2014 = vmatprep.subr.bf16.mxu0 0
    %2015 = vmatpush1.bf16.msra.mxu0 0
    %2016 = vmatprep.subr.bf16.mxu0 0
    %2017 = vmatpush1.bf16.msra.mxu0 0
    %2018 = vmatprep.mubr.bf16.mxu0 0
    %2019 = vmatmul.mubr.bf16.gmra.mrb[0].mxu0 %v1984
    %v2020 = vpop.f32.mrb[0].mxu0
    %v2021 = vadd.f32 %v1513, %v2020
    %v2022 = vpop.f32.mrb[0].mxu0
    %v2023 = vadd.f32 %v1517, %v2022
    %v2024 = vpop.f32.mrb[0].mxu0
    %v2025 = vpop.f32.mrb[0].mxu0
    %2026 = vdwg.mxu0
    %2027 = vmatprep.subr.bf16.mxu0 0
    %2028 = vmatpush1.bf16.msra.mxu0 %v1547
    %2029 = vmatprep.subr.bf16.mxu0 0
    %2030 = vmatpush1.bf16.msra.mxu0 %v1550
    %2031 = vmatprep.subr.bf16.mxu0 0
    %2032 = vmatpush1.bf16.msra.mxu0 0
    %2033 = vmatprep.subr.bf16.mxu0 0
    %2034 = vmatpush1.bf16.msra.mxu0 0
    %2035 = vmatprep.subr.bf16.mxu0 0
    %2036 = vmatpush1.bf16.msra.mxu0 0
    %2037 = vmatprep.subr.bf16.mxu0 0
    %2038 = vmatpush1.bf16.msra.mxu0 0
    %2039 = vmatprep.subr.bf16.mxu0 0
    %2040 = vmatpush1.bf16.msra.mxu0 0
    %2041 = vmatprep.subr.bf16.mxu0 0
    %2042 = vmatpush1.bf16.msra.mxu0 0
    %2043 = vmatprep.subr.bf16.mxu0 0
    %2044 = vmatpush1.bf16.msra.mxu0 0
    %2045 = vmatprep.subr.bf16.mxu0 0
    %2046 = vmatpush1.bf16.msra.mxu0 0
    %2047 = vmatprep.subr.bf16.mxu0 0
    %2048 = vmatpush1.bf16.msra.mxu0 0
    %2049 = vmatprep.subr.bf16.mxu0 0
    %2050 = vmatpush1.bf16.msra.mxu0 0
    %2051 = vmatprep.subr.bf16.mxu0 0
    %2052 = vmatpush1.bf16.msra.mxu0 0
    %2053 = vmatprep.subr.bf16.mxu0 0
    %2054 = vmatpush1.bf16.msra.mxu0 0
    %2055 = vmatprep.subr.bf16.mxu0 0
    %2056 = vmatpush1.bf16.msra.mxu0 0
    %2057 = vmatprep.subr.bf16.mxu0 0
    %2058 = vmatpush1.bf16.msra.mxu0 0
    %2059 = vmatprep.mubr.bf16.mxu0 0
    %2060 = vmatmul.mubr.bf16.gmra.mrb[0].mxu0 %v1984
    %v2061 = vpop.f32.mrb[0].mxu0
    %v2062 = vadd.f32 %v1521, %v2061
    %v2063 = vpop.f32.mrb[0].mxu0
    %v2064 = vpop.f32.mrb[0].mxu0
    %v2065 = vpop.f32.mrb[0].mxu0
    %2066 = vdwg.mxu0
    %2067 = vmatprep.subr.bf16.mxu0 %v1670
    %2068 = vmatpush1.bf16.msra.mxu0 %v1669
    %2069 = vmatprep.subr.bf16.mxu0 %v1673
    %2070 = vmatpush1.bf16.msra.mxu0 %v1672
    %2071 = vmatprep.subr.bf16.mxu0 0
    %2072 = vmatpush1.bf16.msra.mxu0 0
    %2073 = vmatprep.subr.bf16.mxu0 0
    %2074 = vmatpush1.bf16.msra.mxu0 0
    %2075 = vmatprep.subr.bf16.mxu0 0
    %2076 = vmatpush1.bf16.msra.mxu0 0
    %2077 = vmatprep.subr.bf16.mxu0 0
    %2078 = vmatpush1.bf16.msra.mxu0 0
    %2079 = vmatprep.subr.bf16.mxu0 0
    %2080 = vmatpush1.bf16.msra.mxu0 0
    %2081 = vmatprep.subr.bf16.mxu0 0
    %2082 = vmatpush1.bf16.msra.mxu0 0
    %2083 = vmatprep.subr.bf16.mxu0 0
    %2084 = vmatpush1.bf16.msra.mxu0 0
    %2085 = vmatprep.subr.bf16.mxu0 0
    %2086 = vmatpush1.bf16.msra.mxu0 0
    %2087 = vmatprep.subr.bf16.mxu0 0
    %2088 = vmatpush1.bf16.msra.mxu0 0
    %2089 = vmatprep.subr.bf16.mxu0 0
    %2090 = vmatpush1.bf16.msra.mxu0 0
    %2091 = vmatprep.subr.bf16.mxu0 0
    %2092 = vmatpush1.bf16.msra.mxu0 0
    %2093 = vmatprep.subr.bf16.mxu0 0
    %2094 = vmatpush1.bf16.msra.mxu0 0
    %2095 = vmatprep.subr.bf16.mxu0 0
    %2096 = vmatpush1.bf16.msra.mxu0 0
    %2097 = vmatprep.subr.bf16.mxu0 0
    %2098 = vmatpush1.bf16.msra.mxu0 0
    %2099 = vmatprep.mubr.bf16.mxu0 0
    %2100 = vmatmul.mubr.bf16.gmra.mrb[0].mxu0 %v1796
    %v2101 = vpop.f32.mrb[0].mxu0
    %v2102 = vadd.f32 0.0, %v2101
    %v2103 = vpop.f32.mrb[0].mxu0
    %v2104 = vadd.f32 0.0, %v2103
    %v2105 = vpop.f32.mrb[0].mxu0
    %v2106 = vpop.f32.mrb[0].mxu0
    %2107 = vdwg.mxu0
    %2108 = vmatprep.subr.bf16.mxu0 0
    %2109 = vmatpush1.bf16.msra.mxu0 %v1671
    %2110 = vmatprep.subr.bf16.mxu0 0
    %2111 = vmatpush1.bf16.msra.mxu0 %v1674
    %2112 = vmatprep.subr.bf16.mxu0 0
    %2113 = vmatpush1.bf16.msra.mxu0 0
    %2114 = vmatprep.subr.bf16.mxu0 0
    %2115 = vmatpush1.bf16.msra.mxu0 0
    %2116 = vmatprep.subr.bf16.mxu0 0
    %2117 = vmatpush1.bf16.msra.mxu0 0
    %2118 = vmatprep.subr.bf16.mxu0 0
    %2119 = vmatpush1.bf16.msra.mxu0 0
    %2120 = vmatprep.subr.bf16.mxu0 0
    %2121 = vmatpush1.bf16.msra.mxu0 0
    %2122 = vmatprep.subr.bf16.mxu0 0
    %2123 = vmatpush1.bf16.msra.mxu0 0
    %2124 = vmatprep.subr.bf16.mxu0 0
    %2125 = vmatpush1.bf16.msra.mxu0 0
    %2126 = vmatprep.subr.bf16.mxu0 0
    %2127 = vmatpush1.bf16.msra.mxu0 0
    %2128 = vmatprep.subr.bf16.mxu0 0
    %2129 = vmatpush1.bf16.msra.mxu0 0
    %2130 = vmatprep.subr.bf16.mxu0 0
    %2131 = vmatpush1.bf16.msra.mxu0 0
    %2132 = vmatprep.subr.bf16.mxu0 0
    %2133 = vmatpush1.bf16.msra.mxu0 0
    %2134 = vmatprep.subr.bf16.mxu0 0
    %2135 = vmatpush1.bf16.msra.mxu0 0
    %2136 = vmatprep.subr.bf16.mxu0 0
    %2137 = vmatpush1.bf16.msra.mxu0 0
    %2138 = vmatprep.subr.bf16.mxu0 0
    %2139 = vmatpush1.bf16.msra.mxu0 0
    %2140 = vmatprep.mubr.bf16.mxu0 0
    %2141 = vmatmul.mubr.bf16.gmra.mrb[0].mxu0 %v1796
    %v2142 = vpop.f32.mrb[0].mxu0
    %v2143 = vadd.f32 0.0, %v2142
    %v2144 = vpop.f32.mrb[0].mxu0
    %v2145 = vpop.f32.mrb[0].mxu0
    %v2146 = vpop.f32.mrb[0].mxu0
    %2147 = vdwg.mxu0
    %v2148 = vadd.f32 %v2021, %v2102
    %v2149 = vxor.u32 %v2148, 2147483648
    %v2150 = vmul.f32 %v2149, 1.442695
    %v2151 = vpow.pop %v2150
    %v2152 = vadd.f32 %v2151, 1.0
    %v2153 = vrcp.pop %v2152
    %v2154 = vmul.f32 1.0, %v2153
    %v2155 = vadd.f32 %v2023, %v2104
    %v2156 = vxor.u32 %v2155, 2147483648
    %v2157 = vmul.f32 %v2156, 1.442695
    %v2158 = vpow.pop %v2157
    %v2159 = vadd.f32 %v2158, 1.0
    %v2160 = vrcp.pop %v2159
    %v2161 = vmul.f32 1.0, %v2160
    %v2162 = vadd.f32 %v2143, %v1784
    %v2163 = vmul.f32 %v2154, %v2162
    %v2164 = vadd.f32 %v2062, %v2163
    %v2165 = vtanh.pop %v2164
    %v2166 = vsub.f32 1.0, %v2161
    %v2167 = vmul.f32 %v2166, %v2165
    %v2168 = vmul.f32 %v2161, %v1793
    %v2169 = vadd.f32 %v2167, %v2168
    %s2170 = scalar_lea.vmem [#allocation7], 8
    %2171 = vst [vmem:[%s2170] sm:$0xff] %v2169
    %s2172 = scalar_lea.vmem %s0, 16
    %v2173 = vld [vmem:[%s2172] sm:$0xff]
    %2174 = vset.pattern.permute.xlu0 0
    %2175 = vperm.xlu0 %2174, %v2173
    %v2176 = vpop.permute.xlu0 %2175
    %vm2177 = vcmp.eq.s32.totalorder %v60, %v2176
    %v2178 = vsel %vm2177, 1, 0
    %v2179 = vcvt.s32.f32 %v2178
    %v2180 = vpack.c.bf16 %v2179, %v2179
    %v2181 = vld [vmem:[%s1] sm:$0xf]
    %v2182 = vld [vmem:[%s1 + $0x4] sm:$0xf]
    %v2183 = vld [vmem:[%s1 + $0x8] sm:$0xf]
    %v2184 = vld [vmem:[%s1 + $0xc] sm:$0xf]
    %v2185 = vld [vmem:[%s1 + $0x10] sm:$0xf]
    %v2186 = vld [vmem:[%s1 + $0x14] sm:$0xf]
    %v2187 = vld [vmem:[%s1 + $0x18] sm:$0xf]
    %v2188 = vld [vmem:[%s1 + $0x1c] sm:$0xf]
    %v2197 = vunpack.c.l.b16 %v2181
    %v2198 = vunpack.c.l.b16 %v2182
    %v2199 = vunpack.c.l.b16 %v2183
    %v2200 = vunpack.c.l.b16 %v2184
    %v2201 = vunpack.c.l.b16 %v2185
    %v2202 = vunpack.c.l.b16 %v2186
    %v2203 = vunpack.c.l.b16 %v2187
    %v2204 = vunpack.c.l.b16 %v2188
    %v2205 = vpack.c.b16 %v2198, %v2197
    %v2206 = vpack.c.b16 %v2200, %v2199
    %v2207 = vpack.c.b16 %v2202, %v2201
    %v2208 = vpack.c.b16 %v2204, %v2203
    %v2214 = vsel %vm104, %v2180, 0
    %2216 = vmatprep.subr.bf16.mxu0 0
    %2217 = vmatpush1.bf16.msra.mxu0 %v2205
    %2218 = vmatprep.subr.bf16.mxu0 0
    %2219 = vmatpush1.bf16.msra.mxu0 %v2206
    %2220 = vmatprep.subr.bf16.mxu0 0
    %2221 = vmatpush1.bf16.msra.mxu0 %v2207
    %2222 = vmatprep.subr.bf16.mxu0 0
    %2223 = vmatpush1.bf16.msra.mxu0 %v2208
    %2224 = vmatprep.subr.bf16.mxu0 0
    %2225 = vmatpush1.bf16.msra.mxu0 0
    %2226 = vmatprep.subr.bf16.mxu0 0
    %2227 = vmatpush1.bf16.msra.mxu0 0
    %2228 = vmatprep.subr.bf16.mxu0 0
    %2229 = vmatpush1.bf16.msra.mxu0 0
    %2230 = vmatprep.subr.bf16.mxu0 0
    %2231 = vmatpush1.bf16.msra.mxu0 0
    %2232 = vmatprep.subr.bf16.mxu0 0
    %2233 = vmatpush1.bf16.msra.mxu0 0
    %2234 = vmatprep.subr.bf16.mxu0 0
    %2235 = vmatpush1.bf16.msra.mxu0 0
    %2236 = vmatprep.subr.bf16.mxu0 0
    %2237 = vmatpush1.bf16.msra.mxu0 0
    %2238 = vmatprep.subr.bf16.mxu0 0
    %2239 = vmatpush1.bf16.msra.mxu0 0
    %2240 = vmatprep.subr.bf16.mxu0 0
    %2241 = vmatpush1.bf16.msra.mxu0 0
    %2242 = vmatprep.subr.bf16.mxu0 0
    %2243 = vmatpush1.bf16.msra.mxu0 0
    %2244 = vmatprep.subr.bf16.mxu0 0
    %2245 = vmatpush1.bf16.msra.mxu0 0
    %2246 = vmatprep.subr.bf16.mxu0 0
    %2247 = vmatpush1.bf16.msra.mxu0 0
    %2248 = vmatprep.mubr.bf16.mxu0 0
    %2249 = vmatmul.mubr.bf16.gmra.mrb[0].mxu0 %v2214
    %v2250 = vpop.f32.mrb[0].mxu0
    %v2251 = vadd.f32 0.0, %v2250
    %v2252 = vpop.f32.mrb[0].mxu0
    %v2253 = vpop.f32.mrb[0].mxu0
    %v2254 = vpop.f32.mrb[0].mxu0
    %2255 = vdwg.mxu0
    %v2256 = vpack.c.bf16 %v2251, %v2251
    %v2257 = vld [vmem:[%s2] sm:$0xff]
    %v2258 = vld [vmem:[%s2 + $0x8] sm:$0xf]
    %v2259 = vld [vmem:[%s2 + $0xc] sm:$0xff]
    %v2260 = vld [vmem:[%s2 + $0x14] sm:$0xf]
    %v2261 = vld [vmem:[%s2 + $0x18] sm:$0xff]
    %v2262 = vld [vmem:[%s2 + $0x20] sm:$0xf]
    %v2263 = vld [vmem:[%s2 + $0x24] sm:$0xff]
    %v2264 = vld [vmem:[%s2 + $0x2c] sm:$0xf]
    %v2265 = vld [vmem:[%s4] sm:$0x7]
    %v2267 = vlaneseq
    %v2268 = vshrl.u32 %v2267, 7
    %v2269 = vsub.s32 0, %v2268
    %v2270 = vrot.slane %v2265, %v2269
    %v2271 = vlaneseq
    %v2272 = vshrl.u32 %v2271, 7
    %v2273 = vsub.s32 1, %v2272
    %v2274 = vrot.slane %v2265, %v2273
    %v2275 = vlaneseq
    %v2276 = vshrl.u32 %v2275, 7
    %v2277 = vsub.s32 2, %v2276
    %v2278 = vrot.slane %v2265, %v2277
    %v2290 = vunpack.c.l.b16 %v2257
    %v2291 = vunpack.c.h.b16 %v2257
    %v2292 = vunpack.c.l.b16 %v2258
    %v2293 = vunpack.c.l.b16 %v2259
    %v2294 = vunpack.c.h.b16 %v2259
    %v2295 = vunpack.c.l.b16 %v2260
    %v2296 = vunpack.c.l.b16 %v2261
    %v2297 = vunpack.c.h.b16 %v2261
    %v2298 = vunpack.c.l.b16 %v2262
    %v2299 = vunpack.c.l.b16 %v2263
    %v2300 = vunpack.c.h.b16 %v2263
    %v2301 = vunpack.c.l.b16 %v2264
    %v2302 = vpack.c.b16 %v2293, %v2290
    %v2303 = vpack.c.b16 %v2294, %v2291
    %v2304 = vpack.c.b16 %v2295, %v2292
    %v2305 = vpack.c.b16 %v2299, %v2296
    %v2306 = vpack.c.b16 %v2300, %v2297
    %v2307 = vpack.c.b16 %v2301, %v2298
    %v2315 = vsel %vm207, %v2256, 0
    %2317 = vmatprep.subr.bf16.mxu0 %v2303
    %2318 = vmatpush1.bf16.msra.mxu0 %v2302
    %2319 = vmatprep.subr.bf16.mxu0 %v2306
    %2320 = vmatpush1.bf16.msra.mxu0 %v2305
    %2321 = vmatprep.subr.bf16.mxu0 0
    %2322 = vmatpush1.bf16.msra.mxu0 0
    %2323 = vmatprep.subr.bf16.mxu0 0
    %2324 = vmatpush1.bf16.msra.mxu0 0
    %2325 = vmatprep.subr.bf16.mxu0 0
    %2326 = vmatpush1.bf16.msra.mxu0 0
    %2327 = vmatprep.subr.bf16.mxu0 0
    %2328 = vmatpush1.bf16.msra.mxu0 0
    %2329 = vmatprep.subr.bf16.mxu0 0
    %2330 = vmatpush1.bf16.msra.mxu0 0
    %2331 = vmatprep.subr.bf16.mxu0 0
    %2332 = vmatpush1.bf16.msra.mxu0 0
    %2333 = vmatprep.subr.bf16.mxu0 0
    %2334 = vmatpush1.bf16.msra.mxu0 0
    %2335 = vmatprep.subr.bf16.mxu0 0
    %2336 = vmatpush1.bf16.msra.mxu0 0
    %2337 = vmatprep.subr.bf16.mxu0 0
    %2338 = vmatpush1.bf16.msra.mxu0 0
    %2339 = vmatprep.subr.bf16.mxu0 0
    %2340 = vmatpush1.bf16.msra.mxu0 0
    %2341 = vmatprep.subr.bf16.mxu0 0
    %2342 = vmatpush1.bf16.msra.mxu0 0
    %2343 = vmatprep.subr.bf16.mxu0 0
    %2344 = vmatpush1.bf16.msra.mxu0 0
    %2345 = vmatprep.subr.bf16.mxu0 0
    %2346 = vmatpush1.bf16.msra.mxu0 0
    %2347 = vmatprep.subr.bf16.mxu0 0
    %2348 = vmatpush1.bf16.msra.mxu0 0
    %2349 = vmatprep.mubr.bf16.mxu0 0
    %2350 = vmatmul.mubr.bf16.gmra.mrb[0].mxu0 %v2315
    %v2351 = vpop.f32.mrb[0].mxu0
    %v2352 = vadd.f32 %v2270, %v2351
    %v2353 = vpop.f32.mrb[0].mxu0
    %v2354 = vadd.f32 %v2274, %v2353
    %v2355 = vpop.f32.mrb[0].mxu0
    %v2356 = vpop.f32.mrb[0].mxu0
    %2357 = vdwg.mxu0
    %2358 = vmatprep.subr.bf16.mxu0 0
    %2359 = vmatpush1.bf16.msra.mxu0 %v2304
    %2360 = vmatprep.subr.bf16.mxu0 0
    %2361 = vmatpush1.bf16.msra.mxu0 %v2307
    %2362 = vmatprep.subr.bf16.mxu0 0
    %2363 = vmatpush1.bf16.msra.mxu0 0
    %2364 = vmatprep.subr.bf16.mxu0 0
    %2365 = vmatpush1.bf16.msra.mxu0 0
    %2366 = vmatprep.subr.bf16.mxu0 0
    %2367 = vmatpush1.bf16.msra.mxu0 0
    %2368 = vmatprep.subr.bf16.mxu0 0
    %2369 = vmatpush1.bf16.msra.mxu0 0
    %2370 = vmatprep.subr.bf16.mxu0 0
    %2371 = vmatpush1.bf16.msra.mxu0 0
    %2372 = vmatprep.subr.bf16.mxu0 0
    %2373 = vmatpush1.bf16.msra.mxu0 0
    %2374 = vmatprep.subr.bf16.mxu0 0
    %2375 = vmatpush1.bf16.msra.mxu0 0
    %2376 = vmatprep.subr.bf16.mxu0 0
    %2377 = vmatpush1.bf16.msra.mxu0 0
    %2378 = vmatprep.subr.bf16.mxu0 0
    %2379 = vmatpush1.bf16.msra.mxu0 0
    %2380 = vmatprep.subr.bf16.mxu0 0
    %2381 = vmatpush1.bf16.msra.mxu0 0
    %2382 = vmatprep.subr.bf16.mxu0 0
    %2383 = vmatpush1.bf16.msra.mxu0 0
    %2384 = vmatprep.subr.bf16.mxu0 0
    %2385 = vmatpush1.bf16.msra.mxu0 0
    %2386 = vmatprep.subr.bf16.mxu0 0
    %2387 = vmatpush1.bf16.msra.mxu0 0
    %2388 = vmatprep.subr.bf16.mxu0 0
    %2389 = vmatpush1.bf16.msra.mxu0 0
    %2390 = vmatprep.mubr.bf16.mxu0 0
    %2391 = vmatmul.mubr.bf16.gmra.mrb[0].mxu0 %v2315
    %v2392 = vpop.f32.mrb[0].mxu0
    %v2393 = vadd.f32 %v2278, %v2392
    %v2394 = vpop.f32.mrb[0].mxu0
    %v2395 = vpop.f32.mrb[0].mxu0
    %v2396 = vpop.f32.mrb[0].mxu0
    %2397 = vdwg.mxu0
    %v2398 = vld [vmem:[#allocation2] sm:$0xff]
    %v2399 = vld [vmem:[#allocation2 + $0x8] sm:$0xf]
    %v2400 = vld [vmem:[#allocation2 + $0xc] sm:$0xff]
    %v2401 = vld [vmem:[#allocation2 + $0x14] sm:$0xf]
    %v2402 = vld [vmem:[#allocation2 + $0x18] sm:$0xff]
    %v2403 = vld [vmem:[#allocation2 + $0x20] sm:$0xf]
    %v2404 = vld [vmem:[#allocation2 + $0x24] sm:$0xff]
    %v2405 = vld [vmem:[#allocation2 + $0x2c] sm:$0xf]
    %v2414 = vunpack.c.l.b16 %v2398
    %v2415 = vunpack.c.h.b16 %v2398
    %v2416 = vunpack.c.l.b16 %v2399
    %v2417 = vunpack.c.l.b16 %v2400
    %v2418 = vunpack.c.h.b16 %v2400
    %v2419 = vunpack.c.l.b16 %v2401
    %v2420 = vunpack.c.l.b16 %v2402
    %v2421 = vunpack.c.h.b16 %v2402
    %v2422 = vunpack.c.l.b16 %v2403
    %v2423 = vunpack.c.l.b16 %v2404
    %v2424 = vunpack.c.h.b16 %v2404
    %v2425 = vunpack.c.l.b16 %v2405
    %v2426 = vpack.c.b16 %v2417, %v2414
    %v2427 = vpack.c.b16 %v2418, %v2415
    %v2428 = vpack.c.b16 %v2419, %v2416
    %v2429 = vpack.c.b16 %v2423, %v2420
    %v2430 = vpack.c.b16 %v2424, %v2421
    %v2431 = vpack.c.b16 %v2425, %v2422
    %2438 = vmatprep.subr.bf16.mxu0 %v2427
    %2439 = vmatpush1.bf16.msra.mxu0 %v2426
    %2440 = vmatprep.subr.bf16.mxu0 %v2430
    %2441 = vmatpush1.bf16.msra.mxu0 %v2429
    %2442 = vmatprep.subr.bf16.mxu0 0
    %2443 = vmatpush1.bf16.msra.mxu0 0
    %2444 = vmatprep.subr.bf16.mxu0 0
    %2445 = vmatpush1.bf16.msra.mxu0 0
    %2446 = vmatprep.subr.bf16.mxu0 0
    %2447 = vmatpush1.bf16.msra.mxu0 0
    %2448 = vmatprep.subr.bf16.mxu0 0
    %2449 = vmatpush1.bf16.msra.mxu0 0
    %2450 = vmatprep.subr.bf16.mxu0 0
    %2451 = vmatpush1.bf16.msra.mxu0 0
    %2452 = vmatprep.subr.bf16.mxu0 0
    %2453 = vmatpush1.bf16.msra.mxu0 0
    %2454 = vmatprep.subr.bf16.mxu0 0
    %2455 = vmatpush1.bf16.msra.mxu0 0
    %2456 = vmatprep.subr.bf16.mxu0 0
    %2457 = vmatpush1.bf16.msra.mxu0 0
    %2458 = vmatprep.subr.bf16.mxu0 0
    %2459 = vmatpush1.bf16.msra.mxu0 0
    %2460 = vmatprep.subr.bf16.mxu0 0
    %2461 = vmatpush1.bf16.msra.mxu0 0
    %2462 = vmatprep.subr.bf16.mxu0 0
    %2463 = vmatpush1.bf16.msra.mxu0 0
    %2464 = vmatprep.subr.bf16.mxu0 0
    %2465 = vmatpush1.bf16.msra.mxu0 0
    %2466 = vmatprep.subr.bf16.mxu0 0
    %2467 = vmatpush1.bf16.msra.mxu0 0
    %2468 = vmatprep.subr.bf16.mxu0 0
    %2469 = vmatpush1.bf16.msra.mxu0 0
    %2470 = vmatprep.mubr.bf16.mxu0 0
    %2471 = vmatmul.mubr.bf16.gmra.mrb[0].mxu0 %v1984
    %v2472 = vpop.f32.mrb[0].mxu0
    %v2473 = vadd.f32 0.0, %v2472
    %v2474 = vpop.f32.mrb[0].mxu0
    %v2475 = vadd.f32 0.0, %v2474
    %v2476 = vpop.f32.mrb[0].mxu0
    %v2477 = vpop.f32.mrb[0].mxu0
    %2478 = vdwg.mxu0
    %2479 = vmatprep.subr.bf16.mxu0 0
    %2480 = vmatpush1.bf16.msra.mxu0 %v2428
    %2481 = vmatprep.subr.bf16.mxu0 0
    %2482 = vmatpush1.bf16.msra.mxu0 %v2431
    %2483 = vmatprep.subr.bf16.mxu0 0
    %2484 = vmatpush1.bf16.msra.mxu0 0
    %2485 = vmatprep.subr.bf16.mxu0 0
    %2486 = vmatpush1.bf16.msra.mxu0 0
    %2487 = vmatprep.subr.bf16.mxu0 0
    %2488 = vmatpush1.bf16.msra.mxu0 0
    %2489 = vmatprep.subr.bf16.mxu0 0
    %2490 = vmatpush1.bf16.msra.mxu0 0
    %2491 = vmatprep.subr.bf16.mxu0 0
    %2492 = vmatpush1.bf16.msra.mxu0 0
    %2493 = vmatprep.subr.bf16.mxu0 0
    %2494 = vmatpush1.bf16.msra.mxu0 0
    %2495 = vmatprep.subr.bf16.mxu0 0
    %2496 = vmatpush1.bf16.msra.mxu0 0
    %2497 = vmatprep.subr.bf16.mxu0 0
    %2498 = vmatpush1.bf16.msra.mxu0 0
    %2499 = vmatprep.subr.bf16.mxu0 0
    %2500 = vmatpush1.bf16.msra.mxu0 0
    %2501 = vmatprep.subr.bf16.mxu0 0
    %2502 = vmatpush1.bf16.msra.mxu0 0
    %2503 = vmatprep.subr.bf16.mxu0 0
    %2504 = vmatpush1.bf16.msra.mxu0 0
    %2505 = vmatprep.subr.bf16.mxu0 0
    %2506 = vmatpush1.bf16.msra.mxu0 0
    %2507 = vmatprep.subr.bf16.mxu0 0
    %2508 = vmatpush1.bf16.msra.mxu0 0
    %2509 = vmatprep.subr.bf16.mxu0 0
    %2510 = vmatpush1.bf16.msra.mxu0 0
    %2511 = vmatprep.mubr.bf16.mxu0 0
    %2512 = vmatmul.mubr.bf16.gmra.mrb[0].mxu0 %v1984
    %v2513 = vpop.f32.mrb[0].mxu0
    %v2514 = vadd.f32 0.0, %v2513
    %v2515 = vpop.f32.mrb[0].mxu0
    %v2516 = vpop.f32.mrb[0].mxu0
    %v2517 = vpop.f32.mrb[0].mxu0
    %2518 = vdwg.mxu0
    %v2519 = vadd.f32 %v2352, %v2473
    %v2520 = vxor.u32 %v2519, 2147483648
    %v2521 = vmul.f32 %v2520, 1.442695
    %v2522 = vpow.pop %v2521
    %v2523 = vadd.f32 %v2522, 1.0
    %v2524 = vrcp.pop %v2523
    %v2525 = vmul.f32 1.0, %v2524
    %v2526 = vadd.f32 %v2354, %v2475
    %v2527 = vxor.u32 %v2526, 2147483648
    %v2528 = vmul.f32 %v2527, 1.442695
    %v2529 = vpow.pop %v2528
    %v2530 = vadd.f32 %v2529, 1.0
    %v2531 = vrcp.pop %v2530
    %v2532 = vmul.f32 1.0, %v2531
    %v2533 = vld [vmem:[%s5] sm:$0x1]
    %v2535 = vlaneseq
    %v2536 = vshrl.u32 %v2535, 7
    %v2537 = vsub.s32 0, %v2536
    %v2538 = vrot.slane %v2533, %v2537
    %v2540 = vadd.f32 %v2514, %v2538
    %v2541 = vmul.f32 %v2525, %v2540
    %v2542 = vadd.f32 %v2393, %v2541
    %v2543 = vtanh.pop %v2542
    %v2544 = vsub.f32 1.0, %v2532
    %v2545 = vmul.f32 %v2544, %v2543
    %v2546 = vmul.f32 %v2532, %v1981
    %v2547 = vadd.f32 %v2545, %v2546
    %v2548 = vpack.c.bf16 %v2547, %v2547
    %v2549 = vpack.c.bf16 %v2169, %v2169
    %v2550 = vld [vmem:[%s447] sm:$0xff]
    %v2551 = vld [vmem:[%s447 + $0x8] sm:$0xf]
    %v2552 = vld [vmem:[%s447 + $0xc] sm:$0xff]
    %v2553 = vld [vmem:[%s447 + $0x14] sm:$0xf]
    %v2554 = vld [vmem:[%s447 + $0x18] sm:$0xff]
    %v2555 = vld [vmem:[%s447 + $0x20] sm:$0xf]
    %v2556 = vld [vmem:[%s447 + $0x24] sm:$0xff]
    %v2557 = vld [vmem:[%s447 + $0x2c] sm:$0xf]
    %v2558 = vld [vmem:[%s456] sm:$0x7]
    %v2560 = vlaneseq
    %v2561 = vshrl.u32 %v2560, 7
    %v2562 = vsub.s32 0, %v2561
    %v2563 = vrot.slane %v2558, %v2562
    %v2564 = vlaneseq
    %v2565 = vshrl.u32 %v2564, 7
    %v2566 = vsub.s32 1, %v2565
    %v2567 = vrot.slane %v2558, %v2566
    %v2568 = vlaneseq
    %v2569 = vshrl.u32 %v2568, 7
    %v2570 = vsub.s32 2, %v2569
    %v2571 = vrot.slane %v2558, %v2570
    %v2583 = vunpack.c.l.b16 %v2550
    %v2584 = vunpack.c.h.b16 %v2550
    %v2585 = vunpack.c.l.b16 %v2551
    %v2586 = vunpack.c.l.b16 %v2552
    %v2587 = vunpack.c.h.b16 %v2552
    %v2588 = vunpack.c.l.b16 %v2553
    %v2589 = vunpack.c.l.b16 %v2554
    %v2590 = vunpack.c.h.b16 %v2554
    %v2591 = vunpack.c.l.b16 %v2555
    %v2592 = vunpack.c.l.b16 %v2556
    %v2593 = vunpack.c.h.b16 %v2556
    %v2594 = vunpack.c.l.b16 %v2557
    %v2595 = vpack.c.b16 %v2586, %v2583
    %v2596 = vpack.c.b16 %v2587, %v2584
    %v2597 = vpack.c.b16 %v2588, %v2585
    %v2598 = vpack.c.b16 %v2592, %v2589
    %v2599 = vpack.c.b16 %v2593, %v2590
    %v2600 = vpack.c.b16 %v2594, %v2591
    %v2608 = vsel %vm207, %v2548, 0
    %2610 = vmatprep.subr.bf16.mxu0 %v2596
    %2611 = vmatpush1.bf16.msra.mxu0 %v2595
    %2612 = vmatprep.subr.bf16.mxu0 %v2599
    %2613 = vmatpush1.bf16.msra.mxu0 %v2598
    %2614 = vmatprep.subr.bf16.mxu0 0
    %2615 = vmatpush1.bf16.msra.mxu0 0
    %2616 = vmatprep.subr.bf16.mxu0 0
    %2617 = vmatpush1.bf16.msra.mxu0 0
    %2618 = vmatprep.subr.bf16.mxu0 0
    %2619 = vmatpush1.bf16.msra.mxu0 0
    %2620 = vmatprep.subr.bf16.mxu0 0
    %2621 = vmatpush1.bf16.msra.mxu0 0
    %2622 = vmatprep.subr.bf16.mxu0 0
    %2623 = vmatpush1.bf16.msra.mxu0 0
    %2624 = vmatprep.subr.bf16.mxu0 0
    %2625 = vmatpush1.bf16.msra.mxu0 0
    %2626 = vmatprep.subr.bf16.mxu0 0
    %2627 = vmatpush1.bf16.msra.mxu0 0
    %2628 = vmatprep.subr.bf16.mxu0 0
    %2629 = vmatpush1.bf16.msra.mxu0 0
    %2630 = vmatprep.subr.bf16.mxu0 0
    %2631 = vmatpush1.bf16.msra.mxu0 0
    %2632 = vmatprep.subr.bf16.mxu0 0
    %2633 = vmatpush1.bf16.msra.mxu0 0
    %2634 = vmatprep.subr.bf16.mxu0 0
    %2635 = vmatpush1.bf16.msra.mxu0 0
    %2636 = vmatprep.subr.bf16.mxu0 0
    %2637 = vmatpush1.bf16.msra.mxu0 0
    %2638 = vmatprep.subr.bf16.mxu0 0
    %2639 = vmatpush1.bf16.msra.mxu0 0
    %2640 = vmatprep.subr.bf16.mxu0 0
    %2641 = vmatpush1.bf16.msra.mxu0 0
    %2642 = vmatprep.mubr.bf16.mxu0 0
    %2643 = vmatmul.mubr.bf16.gmra.mrb[0].mxu0 %v2608
    %v2644 = vpop.f32.mrb[0].mxu0
    %v2645 = vadd.f32 %v2563, %v2644
    %v2646 = vpop.f32.mrb[0].mxu0
    %v2647 = vadd.f32 %v2567, %v2646
    %v2648 = vpop.f32.mrb[0].mxu0
    %v2649 = vpop.f32.mrb[0].mxu0
    %2650 = vdwg.mxu0
    %2651 = vmatprep.subr.bf16.mxu0 0
    %2652 = vmatpush1.bf16.msra.mxu0 %v2597
    %2653 = vmatprep.subr.bf16.mxu0 0
    %2654 = vmatpush1.bf16.msra.mxu0 %v2600
    %2655 = vmatprep.subr.bf16.mxu0 0
    %2656 = vmatpush1.bf16.msra.mxu0 0
    %2657 = vmatprep.subr.bf16.mxu0 0
    %2658 = vmatpush1.bf16.msra.mxu0 0
    %2659 = vmatprep.subr.bf16.mxu0 0
    %2660 = vmatpush1.bf16.msra.mxu0 0
    %2661 = vmatprep.subr.bf16.mxu0 0
    %2662 = vmatpush1.bf16.msra.mxu0 0
    %2663 = vmatprep.subr.bf16.mxu0 0
    %2664 = vmatpush1.bf16.msra.mxu0 0
    %2665 = vmatprep.subr.bf16.mxu0 0
    %2666 = vmatpush1.bf16.msra.mxu0 0
    %2667 = vmatprep.subr.bf16.mxu0 0
    %2668 = vmatpush1.bf16.msra.mxu0 0
    %2669 = vmatprep.subr.bf16.mxu0 0
    %2670 = vmatpush1.bf16.msra.mxu0 0
    %2671 = vmatprep.subr.bf16.mxu0 0
    %2672 = vmatpush1.bf16.msra.mxu0 0
    %2673 = vmatprep.subr.bf16.mxu0 0
    %2674 = vmatpush1.bf16.msra.mxu0 0
    %2675 = vmatprep.subr.bf16.mxu0 0
    %2676 = vmatpush1.bf16.msra.mxu0 0
    %2677 = vmatprep.subr.bf16.mxu0 0
    %2678 = vmatpush1.bf16.msra.mxu0 0
    %2679 = vmatprep.subr.bf16.mxu0 0
    %2680 = vmatpush1.bf16.msra.mxu0 0
    %2681 = vmatprep.subr.bf16.mxu0 0
    %2682 = vmatpush1.bf16.msra.mxu0 0
    %2683 = vmatprep.mubr.bf16.mxu0 0
    %2684 = vmatmul.mubr.bf16.gmra.mrb[0].mxu0 %v2608
    %v2685 = vpop.f32.mrb[0].mxu0
    %v2686 = vadd.f32 %v2571, %v2685
    %v2687 = vpop.f32.mrb[0].mxu0
    %v2688 = vpop.f32.mrb[0].mxu0
    %v2689 = vpop.f32.mrb[0].mxu0
    %2690 = vdwg.mxu0
    %v2691 = vld [vmem:[%s590] sm:$0xff]
    %v2692 = vld [vmem:[%s590 + $0x8] sm:$0xf]
    %v2693 = vld [vmem:[%s590 + $0xc] sm:$0xff]
    %v2694 = vld [vmem:[%s590 + $0x14] sm:$0xf]
    %v2695 = vld [vmem:[%s590 + $0x18] sm:$0xff]
    %v2696 = vld [vmem:[%s590 + $0x20] sm:$0xf]
    %v2697 = vld [vmem:[%s590 + $0x24] sm:$0xff]
    %v2698 = vld [vmem:[%s590 + $0x2c] sm:$0xf]
    %v2707 = vunpack.c.l.b16 %v2691
    %v2708 = vunpack.c.h.b16 %v2691
    %v2709 = vunpack.c.l.b16 %v2692
    %v2710 = vunpack.c.l.b16 %v2693
    %v2711 = vunpack.c.h.b16 %v2693
    %v2712 = vunpack.c.l.b16 %v2694
    %v2713 = vunpack.c.l.b16 %v2695
    %v2714 = vunpack.c.h.b16 %v2695
    %v2715 = vunpack.c.l.b16 %v2696
    %v2716 = vunpack.c.l.b16 %v2697
    %v2717 = vunpack.c.h.b16 %v2697
    %v2718 = vunpack.c.l.b16 %v2698
    %v2719 = vpack.c.b16 %v2710, %v2707
    %v2720 = vpack.c.b16 %v2711, %v2708
    %v2721 = vpack.c.b16 %v2712, %v2709
    %v2722 = vpack.c.b16 %v2716, %v2713
    %v2723 = vpack.c.b16 %v2717, %v2714
    %v2724 = vpack.c.b16 %v2718, %v2715
    %v2732 = vsel %vm207, %v2549, 0
    %2734 = vmatprep.subr.bf16.mxu0 %v2720
    %2735 = vmatpush1.bf16.msra.mxu0 %v2719
    %2736 = vmatprep.subr.bf16.mxu0 %v2723
    %2737 = vmatpush1.bf16.msra.mxu0 %v2722
    %2738 = vmatprep.subr.bf16.mxu0 0
    %2739 = vmatpush1.bf16.msra.mxu0 0
    %2740 = vmatprep.subr.bf16.mxu0 0
    %2741 = vmatpush1.bf16.msra.mxu0 0
    %2742 = vmatprep.subr.bf16.mxu0 0
    %2743 = vmatpush1.bf16.msra.mxu0 0
    %2744 = vmatprep.subr.bf16.mxu0 0
    %2745 = vmatpush1.bf16.msra.mxu0 0
    %2746 = vmatprep.subr.bf16.mxu0 0
    %2747 = vmatpush1.bf16.msra.mxu0 0
    %2748 = vmatprep.subr.bf16.mxu0 0
    %2749 = vmatpush1.bf16.msra.mxu0 0
    %2750 = vmatprep.subr.bf16.mxu0 0
    %2751 = vmatpush1.bf16.msra.mxu0 0
    %2752 = vmatprep.subr.bf16.mxu0 0
    %2753 = vmatpush1.bf16.msra.mxu0 0
    %2754 = vmatprep.subr.bf16.mxu0 0
    %2755 = vmatpush1.bf16.msra.mxu0 0
    %2756 = vmatprep.subr.bf16.mxu0 0
    %2757 = vmatpush1.bf16.msra.mxu0 0
    %2758 = vmatprep.subr.bf16.mxu0 0
    %2759 = vmatpush1.bf16.msra.mxu0 0
    %2760 = vmatprep.subr.bf16.mxu0 0
    %2761 = vmatpush1.bf16.msra.mxu0 0
    %2762 = vmatprep.subr.bf16.mxu0 0
    %2763 = vmatpush1.bf16.msra.mxu0 0
    %2764 = vmatprep.subr.bf16.mxu0 0
    %2765 = vmatpush1.bf16.msra.mxu0 0
    %2766 = vmatprep.mubr.bf16.mxu0 0
    %2767 = vmatmul.mubr.bf16.gmra.mrb[0].mxu0 %v2732
    %v2768 = vpop.f32.mrb[0].mxu0
    %v2769 = vadd.f32 0.0, %v2768
    %v2770 = vpop.f32.mrb[0].mxu0
    %v2771 = vadd.f32 0.0, %v2770
    %v2772 = vpop.f32.mrb[0].mxu0
    %v2773 = vpop.f32.mrb[0].mxu0
    %2774 = vdwg.mxu0
    %2775 = vmatprep.subr.bf16.mxu0 0
    %2776 = vmatpush1.bf16.msra.mxu0 %v2721
    %2777 = vmatprep.subr.bf16.mxu0 0
    %2778 = vmatpush1.bf16.msra.mxu0 %v2724
    %2779 = vmatprep.subr.bf16.mxu0 0
    %2780 = vmatpush1.bf16.msra.mxu0 0
    %2781 = vmatprep.subr.bf16.mxu0 0
    %2782 = vmatpush1.bf16.msra.mxu0 0
    %2783 = vmatprep.subr.bf16.mxu0 0
    %2784 = vmatpush1.bf16.msra.mxu0 0
    %2785 = vmatprep.subr.bf16.mxu0 0
    %2786 = vmatpush1.bf16.msra.mxu0 0
    %2787 = vmatprep.subr.bf16.mxu0 0
    %2788 = vmatpush1.bf16.msra.mxu0 0
    %2789 = vmatprep.subr.bf16.mxu0 0
    %2790 = vmatpush1.bf16.msra.mxu0 0
    %2791 = vmatprep.subr.bf16.mxu0 0
    %2792 = vmatpush1.bf16.msra.mxu0 0
    %2793 = vmatprep.subr.bf16.mxu0 0
    %2794 = vmatpush1.bf16.msra.mxu0 0
    %2795 = vmatprep.subr.bf16.mxu0 0
    %2796 = vmatpush1.bf16.msra.mxu0 0
    %2797 = vmatprep.subr.bf16.mxu0 0
    %2798 = vmatpush1.bf16.msra.mxu0 0
    %2799 = vmatprep.subr.bf16.mxu0 0
    %2800 = vmatpush1.bf16.msra.mxu0 0
    %2801 = vmatprep.subr.bf16.mxu0 0
    %2802 = vmatpush1.bf16.msra.mxu0 0
    %2803 = vmatprep.subr.bf16.mxu0 0
    %2804 = vmatpush1.bf16.msra.mxu0 0
    %2805 = vmatprep.subr.bf16.mxu0 0
    %2806 = vmatpush1.bf16.msra.mxu0 0
    %2807 = vmatprep.mubr.bf16.mxu0 0
    %2808 = vmatmul.mubr.bf16.gmra.mrb[0].mxu0 %v2732
    %v2809 = vpop.f32.mrb[0].mxu0
    %v2810 = vadd.f32 0.0, %v2809
    %v2811 = vpop.f32.mrb[0].mxu0
    %v2812 = vpop.f32.mrb[0].mxu0
    %v2813 = vpop.f32.mrb[0].mxu0
    %2814 = vdwg.mxu0
    %v2815 = vadd.f32 %v2645, %v2769
    %v2816 = vxor.u32 %v2815, 2147483648
    %v2817 = vmul.f32 %v2816, 1.442695
    %v2818 = vpow.pop %v2817
    %v2819 = vadd.f32 %v2818, 1.0
    %v2820 = vrcp.pop %v2819
    %v2821 = vmul.f32 1.0, %v2820
    %v2822 = vadd.f32 %v2647, %v2771
    %v2823 = vxor.u32 %v2822, 2147483648
    %v2824 = vmul.f32 %v2823, 1.442695
    %v2825 = vpow.pop %v2824
    %v2826 = vadd.f32 %v2825, 1.0
    %v2827 = vrcp.pop %v2826
    %v2828 = vmul.f32 1.0, %v2827
    %v2829 = vld [vmem:[%s729] sm:$0x1]
    %v2831 = vlaneseq
    %v2832 = vshrl.u32 %v2831, 7
    %v2833 = vsub.s32 0, %v2832
    %v2834 = vrot.slane %v2829, %v2833
    %v2836 = vadd.f32 %v2810, %v2834
    %v2837 = vmul.f32 %v2821, %v2836
    %v2838 = vadd.f32 %v2686, %v2837
    %v2839 = vtanh.pop %v2838
    %v2840 = vsub.f32 1.0, %v2828
    %v2841 = vmul.f32 %v2840, %v2839
    %v2842 = vmul.f32 %v2828, %v2169
    %v2843 = vadd.f32 %v2841, %v2842
    %v2844 = vpack.c.bf16 %v2843, %v2843
    %v2846 = vsel %vm207, %v2844, 0
    %2848 = vmatprep.subr.bf16.mxu0 %v2303
    %2849 = vmatpush1.bf16.msra.mxu0 %v2302
    %2850 = vmatprep.subr.bf16.mxu0 %v2306
    %2851 = vmatpush1.bf16.msra.mxu0 %v2305
    %2852 = vmatprep.subr.bf16.mxu0 0
    %2853 = vmatpush1.bf16.msra.mxu0 0
    %2854 = vmatprep.subr.bf16.mxu0 0
    %2855 = vmatpush1.bf16.msra.mxu0 0
    %2856 = vmatprep.subr.bf16.mxu0 0
    %2857 = vmatpush1.bf16.msra.mxu0 0
    %2858 = vmatprep.subr.bf16.mxu0 0
    %2859 = vmatpush1.bf16.msra.mxu0 0
    %2860 = vmatprep.subr.bf16.mxu0 0
    %2861 = vmatpush1.bf16.msra.mxu0 0
    %2862 = vmatprep.subr.bf16.mxu0 0
    %2863 = vmatpush1.bf16.msra.mxu0 0
    %2864 = vmatprep.subr.bf16.mxu0 0
    %2865 = vmatpush1.bf16.msra.mxu0 0
    %2866 = vmatprep.subr.bf16.mxu0 0
    %2867 = vmatpush1.bf16.msra.mxu0 0
    %2868 = vmatprep.subr.bf16.mxu0 0
    %2869 = vmatpush1.bf16.msra.mxu0 0
    %2870 = vmatprep.subr.bf16.mxu0 0
    %2871 = vmatpush1.bf16.msra.mxu0 0
    %2872 = vmatprep.subr.bf16.mxu0 0
    %2873 = vmatpush1.bf16.msra.mxu0 0
    %2874 = vmatprep.subr.bf16.mxu0 0
    %2875 = vmatpush1.bf16.msra.mxu0 0
    %2876 = vmatprep.subr.bf16.mxu0 0
    %2877 = vmatpush1.bf16.msra.mxu0 0
    %2878 = vmatprep.subr.bf16.mxu0 0
    %2879 = vmatpush1.bf16.msra.mxu0 0
    %2880 = vmatprep.mubr.bf16.mxu0 0
    %2881 = vmatmul.mubr.bf16.gmra.mrb[0].mxu0 %v2846
    %v2882 = vpop.f32.mrb[0].mxu0
    %v2883 = vadd.f32 %v2270, %v2882
    %v2884 = vpop.f32.mrb[0].mxu0
    %v2885 = vadd.f32 %v2274, %v2884
    %v2886 = vpop.f32.mrb[0].mxu0
    %v2887 = vpop.f32.mrb[0].mxu0
    %2888 = vdwg.mxu0
    %2889 = vmatprep.subr.bf16.mxu0 0
    %2890 = vmatpush1.bf16.msra.mxu0 %v2304
    %2891 = vmatprep.subr.bf16.mxu0 0
    %2892 = vmatpush1.bf16.msra.mxu0 %v2307
    %2893 = vmatprep.subr.bf16.mxu0 0
    %2894 = vmatpush1.bf16.msra.mxu0 0
    %2895 = vmatprep.subr.bf16.mxu0 0
    %2896 = vmatpush1.bf16.msra.mxu0 0
    %2897 = vmatprep.subr.bf16.mxu0 0
    %2898 = vmatpush1.bf16.msra.mxu0 0
    %2899 = vmatprep.subr.bf16.mxu0 0
    %2900 = vmatpush1.bf16.msra.mxu0 0
    %2901 = vmatprep.subr.bf16.mxu0 0
    %2902 = vmatpush1.bf16.msra.mxu0 0
    %2903 = vmatprep.subr.bf16.mxu0 0
    %2904 = vmatpush1.bf16.msra.mxu0 0
    %2905 = vmatprep.subr.bf16.mxu0 0
    %2906 = vmatpush1.bf16.msra.mxu0 0
    %2907 = vmatprep.subr.bf16.mxu0 0
    %2908 = vmatpush1.bf16.msra.mxu0 0
    %2909 = vmatprep.subr.bf16.mxu0 0
    %2910 = vmatpush1.bf16.msra.mxu0 0
    %2911 = vmatprep.subr.bf16.mxu0 0
    %2912 = vmatpush1.bf16.msra.mxu0 0
    %2913 = vmatprep.subr.bf16.mxu0 0
    %2914 = vmatpush1.bf16.msra.mxu0 0
    %2915 = vmatprep.subr.bf16.mxu0 0
    %2916 = vmatpush1.bf16.msra.mxu0 0
    %2917 = vmatprep.subr.bf16.mxu0 0
    %2918 = vmatpush1.bf16.msra.mxu0 0
    %2919 = vmatprep.subr.bf16.mxu0 0
    %2920 = vmatpush1.bf16.msra.mxu0 0
    %2921 = vmatprep.mubr.bf16.mxu0 0
    %2922 = vmatmul.mubr.bf16.gmra.mrb[0].mxu0 %v2846
    %v2923 = vpop.f32.mrb[0].mxu0
    %v2924 = vadd.f32 %v2278, %v2923
    %v2925 = vpop.f32.mrb[0].mxu0
    %v2926 = vpop.f32.mrb[0].mxu0
    %v2927 = vpop.f32.mrb[0].mxu0
    %2928 = vdwg.mxu0
    %2929 = vmatprep.subr.bf16.mxu0 %v2427
    %2930 = vmatpush1.bf16.msra.mxu0 %v2426
    %2931 = vmatprep.subr.bf16.mxu0 %v2430
    %2932 = vmatpush1.bf16.msra.mxu0 %v2429
    %2933 = vmatprep.subr.bf16.mxu0 0
    %2934 = vmatpush1.bf16.msra.mxu0 0
    %2935 = vmatprep.subr.bf16.mxu0 0
    %2936 = vmatpush1.bf16.msra.mxu0 0
    %2937 = vmatprep.subr.bf16.mxu0 0
    %2938 = vmatpush1.bf16.msra.mxu0 0
    %2939 = vmatprep.subr.bf16.mxu0 0
    %2940 = vmatpush1.bf16.msra.mxu0 0
    %2941 = vmatprep.subr.bf16.mxu0 0
    %2942 = vmatpush1.bf16.msra.mxu0 0
    %2943 = vmatprep.subr.bf16.mxu0 0
    %2944 = vmatpush1.bf16.msra.mxu0 0
    %2945 = vmatprep.subr.bf16.mxu0 0
    %2946 = vmatpush1.bf16.msra.mxu0 0
    %2947 = vmatprep.subr.bf16.mxu0 0
    %2948 = vmatpush1.bf16.msra.mxu0 0
    %2949 = vmatprep.subr.bf16.mxu0 0
    %2950 = vmatpush1.bf16.msra.mxu0 0
    %2951 = vmatprep.subr.bf16.mxu0 0
    %2952 = vmatpush1.bf16.msra.mxu0 0
    %2953 = vmatprep.subr.bf16.mxu0 0
    %2954 = vmatpush1.bf16.msra.mxu0 0
    %2955 = vmatprep.subr.bf16.mxu0 0
    %2956 = vmatpush1.bf16.msra.mxu0 0
    %2957 = vmatprep.subr.bf16.mxu0 0
    %2958 = vmatpush1.bf16.msra.mxu0 0
    %2959 = vmatprep.subr.bf16.mxu0 0
    %2960 = vmatpush1.bf16.msra.mxu0 0
    %2961 = vmatprep.mubr.bf16.mxu0 0
    %2962 = vmatmul.mubr.bf16.gmra.mrb[0].mxu0 %v2608
    %v2963 = vpop.f32.mrb[0].mxu0
    %v2964 = vadd.f32 0.0, %v2963
    %v2965 = vpop.f32.mrb[0].mxu0
    %v2966 = vadd.f32 0.0, %v2965
    %v2967 = vpop.f32.mrb[0].mxu0
    %v2968 = vpop.f32.mrb[0].mxu0
    %2969 = vdwg.mxu0
    %2970 = vmatprep.subr.bf16.mxu0 0
    %2971 = vmatpush1.bf16.msra.mxu0 %v2428
    %2972 = vmatprep.subr.bf16.mxu0 0
    %2973 = vmatpush1.bf16.msra.mxu0 %v2431
    %2974 = vmatprep.subr.bf16.mxu0 0
    %2975 = vmatpush1.bf16.msra.mxu0 0
    %2976 = vmatprep.subr.bf16.mxu0 0
    %2977 = vmatpush1.bf16.msra.mxu0 0
    %2978 = vmatprep.subr.bf16.mxu0 0
    %2979 = vmatpush1.bf16.msra.mxu0 0
    %2980 = vmatprep.subr.bf16.mxu0 0
    %2981 = vmatpush1.bf16.msra.mxu0 0
    %2982 = vmatprep.subr.bf16.mxu0 0
    %2983 = vmatpush1.bf16.msra.mxu0 0
    %2984 = vmatprep.subr.bf16.mxu0 0
    %2985 = vmatpush1.bf16.msra.mxu0 0
    %2986 = vmatprep.subr.bf16.mxu0 0
    %2987 = vmatpush1.bf16.msra.mxu0 0
    %2988 = vmatprep.subr.bf16.mxu0 0
    %2989 = vmatpush1.bf16.msra.mxu0 0
    %2990 = vmatprep.subr.bf16.mxu0 0
    %2991 = vmatpush1.bf16.msra.mxu0 0
    %2992 = vmatprep.subr.bf16.mxu0 0
    %2993 = vmatpush1.bf16.msra.mxu0 0
    %2994 = vmatprep.subr.bf16.mxu0 0
    %2995 = vmatpush1.bf16.msra.mxu0 0
    %2996 = vmatprep.subr.bf16.mxu0 0
    %2997 = vmatpush1.bf16.msra.mxu0 0
    %2998 = vmatprep.subr.bf16.mxu0 0
    %2999 = vmatpush1.bf16.msra.mxu0 0
    %3000 = vmatprep.subr.bf16.mxu0 0
    %3001 = vmatpush1.bf16.msra.mxu0 0
    %3002 = vmatprep.mubr.bf16.mxu0 0
    %3003 = vmatmul.mubr.bf16.gmra.mrb[0].mxu0 %v2608
    %v3004 = vpop.f32.mrb[0].mxu0
    %v3005 = vadd.f32 0.0, %v3004
    %v3006 = vpop.f32.mrb[0].mxu0
    %v3007 = vpop.f32.mrb[0].mxu0
    %v3008 = vpop.f32.mrb[0].mxu0
    %3009 = vdwg.mxu0
    %v3010 = vadd.f32 %v2883, %v2964
    %v3011 = vxor.u32 %v3010, 2147483648
    %v3012 = vmul.f32 %v3011, 1.442695
    %v3013 = vpow.pop %v3012
    %v3014 = vadd.f32 %v3013, 1.0
    %v3015 = vrcp.pop %v3014
    %v3016 = vmul.f32 1.0, %v3015
    %v3017 = vadd.f32 %v2885, %v2966
    %v3018 = vxor.u32 %v3017, 2147483648
    %v3019 = vmul.f32 %v3018, 1.442695
    %v3020 = vpow.pop %v3019
    %v3021 = vadd.f32 %v3020, 1.0
    %v3022 = vrcp.pop %v3021
    %v3023 = vmul.f32 1.0, %v3022
    %v3024 = vadd.f32 %v3005, %v2538
    %v3025 = vmul.f32 %v3016, %v3024
    %v3026 = vadd.f32 %v2924, %v3025
    %v3027 = vtanh.pop %v3026
    %v3028 = vsub.f32 1.0, %v3023
    %v3029 = vmul.f32 %v3028, %v3027
    %v3030 = vmul.f32 %v3023, %v2547
    %v3031 = vadd.f32 %v3029, %v3030
    %v3032 = vpack.c.bf16 %v3031, %v3031
    %v3034 = vsel %vm207, %v3032, 0
    %3036 = vmatprep.subr.bf16.mxu0 %v2596
    %3037 = vmatpush1.bf16.msra.mxu0 %v2595
    %3038 = vmatprep.subr.bf16.mxu0 %v2599
    %3039 = vmatpush1.bf16.msra.mxu0 %v2598
    %3040 = vmatprep.subr.bf16.mxu0 0
    %3041 = vmatpush1.bf16.msra.mxu0 0
    %3042 = vmatprep.subr.bf16.mxu0 0
    %3043 = vmatpush1.bf16.msra.mxu0 0
    %3044 = vmatprep.subr.bf16.mxu0 0
    %3045 = vmatpush1.bf16.msra.mxu0 0
    %3046 = vmatprep.subr.bf16.mxu0 0
    %3047 = vmatpush1.bf16.msra.mxu0 0
    %3048 = vmatprep.subr.bf16.mxu0 0
    %3049 = vmatpush1.bf16.msra.mxu0 0
    %3050 = vmatprep.subr.bf16.mxu0 0
    %3051 = vmatpush1.bf16.msra.mxu0 0
    %3052 = vmatprep.subr.bf16.mxu0 0
    %3053 = vmatpush1.bf16.msra.mxu0 0
    %3054 = vmatprep.subr.bf16.mxu0 0
    %3055 = vmatpush1.bf16.msra.mxu0 0
    %3056 = vmatprep.subr.bf16.mxu0 0
    %3057 = vmatpush1.bf16.msra.mxu0 0
    %3058 = vmatprep.subr.bf16.mxu0 0
    %3059 = vmatpush1.bf16.msra.mxu0 0
    %3060 = vmatprep.subr.bf16.mxu0 0
    %3061 = vmatpush1.bf16.msra.mxu0 0
    %3062 = vmatprep.subr.bf16.mxu0 0
    %3063 = vmatpush1.bf16.msra.mxu0 0
    %3064 = vmatprep.subr.bf16.mxu0 0
    %3065 = vmatpush1.bf16.msra.mxu0 0
    %3066 = vmatprep.subr.bf16.mxu0 0
    %3067 = vmatpush1.bf16.msra.mxu0 0
    %3068 = vmatprep.mubr.bf16.mxu0 0
    %3069 = vmatmul.mubr.bf16.gmra.mrb[0].mxu0 %v3034
    %v3070 = vpop.f32.mrb[0].mxu0
    %v3071 = vadd.f32 %v2563, %v3070
    %v3072 = vpop.f32.mrb[0].mxu0
    %v3073 = vadd.f32 %v2567, %v3072
    %v3074 = vpop.f32.mrb[0].mxu0
    %v3075 = vpop.f32.mrb[0].mxu0
    %3076 = vdwg.mxu0
    %3077 = vmatprep.subr.bf16.mxu0 0
    %3078 = vmatpush1.bf16.msra.mxu0 %v2597
    %3079 = vmatprep.subr.bf16.mxu0 0
    %3080 = vmatpush1.bf16.msra.mxu0 %v2600
    %3081 = vmatprep.subr.bf16.mxu0 0
    %3082 = vmatpush1.bf16.msra.mxu0 0
    %3083 = vmatprep.subr.bf16.mxu0 0
    %3084 = vmatpush1.bf16.msra.mxu0 0
    %3085 = vmatprep.subr.bf16.mxu0 0
    %3086 = vmatpush1.bf16.msra.mxu0 0
    %3087 = vmatprep.subr.bf16.mxu0 0
    %3088 = vmatpush1.bf16.msra.mxu0 0
    %3089 = vmatprep.subr.bf16.mxu0 0
    %3090 = vmatpush1.bf16.msra.mxu0 0
    %3091 = vmatprep.subr.bf16.mxu0 0
    %3092 = vmatpush1.bf16.msra.mxu0 0
    %3093 = vmatprep.subr.bf16.mxu0 0
    %3094 = vmatpush1.bf16.msra.mxu0 0
    %3095 = vmatprep.subr.bf16.mxu0 0
    %3096 = vmatpush1.bf16.msra.mxu0 0
    %3097 = vmatprep.subr.bf16.mxu0 0
    %3098 = vmatpush1.bf16.msra.mxu0 0
    %3099 = vmatprep.subr.bf16.mxu0 0
    %3100 = vmatpush1.bf16.msra.mxu0 0
    %3101 = vmatprep.subr.bf16.mxu0 0
    %3102 = vmatpush1.bf16.msra.mxu0 0
    %3103 = vmatprep.subr.bf16.mxu0 0
    %3104 = vmatpush1.bf16.msra.mxu0 0
    %3105 = vmatprep.subr.bf16.mxu0 0
    %3106 = vmatpush1.bf16.msra.mxu0 0
    %3107 = vmatprep.subr.bf16.mxu0 0
    %3108 = vmatpush1.bf16.msra.mxu0 0
    %3109 = vmatprep.mubr.bf16.mxu0 0
    %3110 = vmatmul.mubr.bf16.gmra.mrb[0].mxu0 %v3034
    %v3111 = vpop.f32.mrb[0].mxu0
    %v3112 = vadd.f32 %v2571, %v3111
    %v3113 = vpop.f32.mrb[0].mxu0
    %v3114 = vpop.f32.mrb[0].mxu0
    %v3115 = vpop.f32.mrb[0].mxu0
    %3116 = vdwg.mxu0
    %3117 = vmatprep.subr.bf16.mxu0 %v2720
    %3118 = vmatpush1.bf16.msra.mxu0 %v2719
    %3119 = vmatprep.subr.bf16.mxu0 %v2723
    %3120 = vmatpush1.bf16.msra.mxu0 %v2722
    %3121 = vmatprep.subr.bf16.mxu0 0
    %3122 = vmatpush1.bf16.msra.mxu0 0
    %3123 = vmatprep.subr.bf16.mxu0 0
    %3124 = vmatpush1.bf16.msra.mxu0 0
    %3125 = vmatprep.subr.bf16.mxu0 0
    %3126 = vmatpush1.bf16.msra.mxu0 0
    %3127 = vmatprep.subr.bf16.mxu0 0
    %3128 = vmatpush1.bf16.msra.mxu0 0
    %3129 = vmatprep.subr.bf16.mxu0 0
    %3130 = vmatpush1.bf16.msra.mxu0 0
    %3131 = vmatprep.subr.bf16.mxu0 0
    %3132 = vmatpush1.bf16.msra.mxu0 0
    %3133 = vmatprep.subr.bf16.mxu0 0
    %3134 = vmatpush1.bf16.msra.mxu0 0
    %3135 = vmatprep.subr.bf16.mxu0 0
    %3136 = vmatpush1.bf16.msra.mxu0 0
    %3137 = vmatprep.subr.bf16.mxu0 0
    %3138 = vmatpush1.bf16.msra.mxu0 0
    %3139 = vmatprep.subr.bf16.mxu0 0
    %3140 = vmatpush1.bf16.msra.mxu0 0
    %3141 = vmatprep.subr.bf16.mxu0 0
    %3142 = vmatpush1.bf16.msra.mxu0 0
    %3143 = vmatprep.subr.bf16.mxu0 0
    %3144 = vmatpush1.bf16.msra.mxu0 0
    %3145 = vmatprep.subr.bf16.mxu0 0
    %3146 = vmatpush1.bf16.msra.mxu0 0
    %3147 = vmatprep.subr.bf16.mxu0 0
    %3148 = vmatpush1.bf16.msra.mxu0 0
    %3149 = vmatprep.mubr.bf16.mxu0 0
    %3150 = vmatmul.mubr.bf16.gmra.mrb[0].mxu0 %v2846
    %v3151 = vpop.f32.mrb[0].mxu0
    %v3152 = vadd.f32 0.0, %v3151
    %v3153 = vpop.f32.mrb[0].mxu0
    %v3154 = vadd.f32 0.0, %v3153
    %v3155 = vpop.f32.mrb[0].mxu0
    %v3156 = vpop.f32.mrb[0].mxu0
    %3157 = vdwg.mxu0
    %3158 = vmatprep.subr.bf16.mxu0 0
    %3159 = vmatpush1.bf16.msra.mxu0 %v2721
    %3160 = vmatprep.subr.bf16.mxu0 0
    %3161 = vmatpush1.bf16.msra.mxu0 %v2724
    %3162 = vmatprep.subr.bf16.mxu0 0
    %3163 = vmatpush1.bf16.msra.mxu0 0
    %3164 = vmatprep.subr.bf16.mxu0 0
    %3165 = vmatpush1.bf16.msra.mxu0 0
    %3166 = vmatprep.subr.bf16.mxu0 0
    %3167 = vmatpush1.bf16.msra.mxu0 0
    %3168 = vmatprep.subr.bf16.mxu0 0
    %3169 = vmatpush1.bf16.msra.mxu0 0
    %3170 = vmatprep.subr.bf16.mxu0 0
    %3171 = vmatpush1.bf16.msra.mxu0 0
    %3172 = vmatprep.subr.bf16.mxu0 0
    %3173 = vmatpush1.bf16.msra.mxu0 0
    %3174 = vmatprep.subr.bf16.mxu0 0
    %3175 = vmatpush1.bf16.msra.mxu0 0
    %3176 = vmatprep.subr.bf16.mxu0 0
    %3177 = vmatpush1.bf16.msra.mxu0 0
    %3178 = vmatprep.subr.bf16.mxu0 0
    %3179 = vmatpush1.bf16.msra.mxu0 0
    %3180 = vmatprep.subr.bf16.mxu0 0
    %3181 = vmatpush1.bf16.msra.mxu0 0
    %3182 = vmatprep.subr.bf16.mxu0 0
    %3183 = vmatpush1.bf16.msra.mxu0 0
    %3184 = vmatprep.subr.bf16.mxu0 0
    %3185 = vmatpush1.bf16.msra.mxu0 0
    %3186 = vmatprep.subr.bf16.mxu0 0
    %3187 = vmatpush1.bf16.msra.mxu0 0
    %3188 = vmatprep.subr.bf16.mxu0 0
    %3189 = vmatpush1.bf16.msra.mxu0 0
    %3190 = vmatprep.mubr.bf16.mxu0 0
    %3191 = vmatmul.mubr.bf16.gmra.mrb[0].mxu0 %v2846
    %v3192 = vpop.f32.mrb[0].mxu0
    %v3193 = vadd.f32 0.0, %v3192
    %v3194 = vpop.f32.mrb[0].mxu0
    %v3195 = vpop.f32.mrb[0].mxu0
    %v3196 = vpop.f32.mrb[0].mxu0
    %3197 = vdwg.mxu0
    %v3198 = vadd.f32 %v3071, %v3152
    %v3199 = vxor.u32 %v3198, 2147483648
    %v3200 = vmul.f32 %v3199, 1.442695
    %v3201 = vpow.pop %v3200
    %v3202 = vadd.f32 %v3201, 1.0
    %v3203 = vrcp.pop %v3202
    %v3204 = vmul.f32 1.0, %v3203
    %v3205 = vadd.f32 %v3073, %v3154
    %v3206 = vxor.u32 %v3205, 2147483648
    %v3207 = vmul.f32 %v3206, 1.442695
    %v3208 = vpow.pop %v3207
    %v3209 = vadd.f32 %v3208, 1.0
    %v3210 = vrcp.pop %v3209
    %v3211 = vmul.f32 1.0, %v3210
    %v3212 = vadd.f32 %v3193, %v2834
    %v3213 = vmul.f32 %v3204, %v3212
    %v3214 = vadd.f32 %v3112, %v3213
    %v3215 = vtanh.pop %v3214
    %v3216 = vsub.f32 1.0, %v3211
    %v3217 = vmul.f32 %v3216, %v3215
    %v3218 = vmul.f32 %v3211, %v2843
    %v3219 = vadd.f32 %v3217, %v3218
    %s3220 = scalar_lea.vmem [#allocation7], 16
    %3221 = vst [vmem:[%s3220] sm:$0xff] %v3219
    %s3222 = scalar_lea.vmem %s0, 24
    %v3223 = vld [vmem:[%s3222] sm:$0xff]
    %3224 = vset.pattern.permute.xlu0 0
    %3225 = vperm.xlu0 %3224, %v3223
    %v3226 = vpop.permute.xlu0 %3225
    %vm3227 = vcmp.eq.s32.totalorder %v60, %v3226
    %v3228 = vsel %vm3227, 1, 0
    %v3229 = vcvt.s32.f32 %v3228
    %v3230 = vpack.c.bf16 %v3229, %v3229
    %v3231 = vld [vmem:[%s1] sm:$0xf]
    %v3232 = vld [vmem:[%s1 + $0x4] sm:$0xf]
    %v3233 = vld [vmem:[%s1 + $0x8] sm:$0xf]
    %v3234 = vld [vmem:[%s1 + $0xc] sm:$0xf]
    %v3235 = vld [vmem:[%s1 + $0x10] sm:$0xf]
    %v3236 = vld [vmem:[%s1 + $0x14] sm:$0xf]
    %v3237 = vld [vmem:[%s1 + $0x18] sm:$0xf]
    %v3238 = vld [vmem:[%s1 + $0x1c] sm:$0xf]
    %v3247 = vunpack.c.l.b16 %v3231
    %v3248 = vunpack.c.l.b16 %v3232
    %v3249 = vunpack.c.l.b16 %v3233
    %v3250 = vunpack.c.l.b16 %v3234
    %v3251 = vunpack.c.l.b16 %v3235
    %v3252 = vunpack.c.l.b16 %v3236
    %v3253 = vunpack.c.l.b16 %v3237
    %v3254 = vunpack.c.l.b16 %v3238
    %v3255 = vpack.c.b16 %v3248, %v3247
    %v3256 = vpack.c.b16 %v3250, %v3249
    %v3257 = vpack.c.b16 %v3252, %v3251
    %v3258 = vpack.c.b16 %v3254, %v3253
    %v3264 = vsel %vm104, %v3230, 0
    %3266 = vmatprep.subr.bf16.mxu0 0
    %3267 = vmatpush1.bf16.msra.mxu0 %v3255
    %3268 = vmatprep.subr.bf16.mxu0 0
    %3269 = vmatpush1.bf16.msra.mxu0 %v3256
    %3270 = vmatprep.subr.bf16.mxu0 0
    %3271 = vmatpush1.bf16.msra.mxu0 %v3257
    %3272 = vmatprep.subr.bf16.mxu0 0
    %3273 = vmatpush1.bf16.msra.mxu0 %v3258
    %3274 = vmatprep.subr.bf16.mxu0 0
    %3275 = vmatpush1.bf16.msra.mxu0 0
    %3276 = vmatprep.subr.bf16.mxu0 0
    %3277 = vmatpush1.bf16.msra.mxu0 0
    %3278 = vmatprep.subr.bf16.mxu0 0
    %3279 = vmatpush1.bf16.msra.mxu0 0
    %3280 = vmatprep.subr.bf16.mxu0 0
    %3281 = vmatpush1.bf16.msra.mxu0 0
    %3282 = vmatprep.subr.bf16.mxu0 0
    %3283 = vmatpush1.bf16.msra.mxu0 0
    %3284 = vmatprep.subr.bf16.mxu0 0
    %3285 = vmatpush1.bf16.msra.mxu0 0
    %3286 = vmatprep.subr.bf16.mxu0 0
    %3287 = vmatpush1.bf16.msra.mxu0 0
    %3288 = vmatprep.subr.bf16.mxu0 0
    %3289 = vmatpush1.bf16.msra.mxu0 0
    %3290 = vmatprep.subr.bf16.mxu0 0
    %3291 = vmatpush1.bf16.msra.mxu0 0
    %3292 = vmatprep.subr.bf16.mxu0 0
    %3293 = vmatpush1.bf16.msra.mxu0 0
    %3294 = vmatprep.subr.bf16.mxu0 0
    %3295 = vmatpush1.bf16.msra.mxu0 0
    %3296 = vmatprep.subr.bf16.mxu0 0
    %3297 = vmatpush1.bf16.msra.mxu0 0
    %3298 = vmatprep.mubr.bf16.mxu0 0
    %3299 = vmatmul.mubr.bf16.gmra.mrb[0].mxu0 %v3264
    %v3300 = vpop.f32.mrb[0].mxu0
    %v3301 = vadd.f32 0.0, %v3300
    %v3302 = vpop.f32.mrb[0].mxu0
    %v3303 = vpop.f32.mrb[0].mxu0
    %v3304 = vpop.f32.mrb[0].mxu0
    %3305 = vdwg.mxu0
    %v3306 = vpack.c.bf16 %v3301, %v3301
    %v3307 = vld [vmem:[%s2] sm:$0xff]
    %v3308 = vld [vmem:[%s2 + $0x8] sm:$0xf]
    %v3309 = vld [vmem:[%s2 + $0xc] sm:$0xff]
    %v3310 = vld [vmem:[%s2 + $0x14] sm:$0xf]
    %v3311 = vld [vmem:[%s2 + $0x18] sm:$0xff]
    %v3312 = vld [vmem:[%s2 + $0x20] sm:$0xf]
    %v3313 = vld [vmem:[%s2 + $0x24] sm:$0xff]
    %v3314 = vld [vmem:[%s2 + $0x2c] sm:$0xf]
    %v3315 = vld [vmem:[%s4] sm:$0x7]
    %v3317 = vlaneseq
    %v3318 = vshrl.u32 %v3317, 7
    %v3319 = vsub.s32 0, %v3318
    %v3320 = vrot.slane %v3315, %v3319
    %v3321 = vlaneseq
    %v3322 = vshrl.u32 %v3321, 7
    %v3323 = vsub.s32 1, %v3322
    %v3324 = vrot.slane %v3315, %v3323
    %v3325 = vlaneseq
    %v3326 = vshrl.u32 %v3325, 7
    %v3327 = vsub.s32 2, %v3326
    %v3328 = vrot.slane %v3315, %v3327
    %v3340 = vunpack.c.l.b16 %v3307
    %v3341 = vunpack.c.h.b16 %v3307
    %v3342 = vunpack.c.l.b16 %v3308
    %v3343 = vunpack.c.l.b16 %v3309
    %v3344 = vunpack.c.h.b16 %v3309
    %v3345 = vunpack.c.l.b16 %v3310
    %v3346 = vunpack.c.l.b16 %v3311
    %v3347 = vunpack.c.h.b16 %v3311
    %v3348 = vunpack.c.l.b16 %v3312
    %v3349 = vunpack.c.l.b16 %v3313
    %v3350 = vunpack.c.h.b16 %v3313
    %v3351 = vunpack.c.l.b16 %v3314
    %v3352 = vpack.c.b16 %v3343, %v3340
    %v3353 = vpack.c.b16 %v3344, %v3341
    %v3354 = vpack.c.b16 %v3345, %v3342
    %v3355 = vpack.c.b16 %v3349, %v3346
    %v3356 = vpack.c.b16 %v3350, %v3347
    %v3357 = vpack.c.b16 %v3351, %v3348
    %v3365 = vsel %vm207, %v3306, 0
    %3367 = vmatprep.subr.bf16.mxu0 %v3353
    %3368 = vmatpush1.bf16.msra.mxu0 %v3352
    %3369 = vmatprep.subr.bf16.mxu0 %v3356
    %3370 = vmatpush1.bf16.msra.mxu0 %v3355
    %3371 = vmatprep.subr.bf16.mxu0 0
    %3372 = vmatpush1.bf16.msra.mxu0 0
    %3373 = vmatprep.subr.bf16.mxu0 0
    %3374 = vmatpush1.bf16.msra.mxu0 0
    %3375 = vmatprep.subr.bf16.mxu0 0
    %3376 = vmatpush1.bf16.msra.mxu0 0
    %3377 = vmatprep.subr.bf16.mxu0 0
    %3378 = vmatpush1.bf16.msra.mxu0 0
    %3379 = vmatprep.subr.bf16.mxu0 0
    %3380 = vmatpush1.bf16.msra.mxu0 0
    %3381 = vmatprep.subr.bf16.mxu0 0
    %3382 = vmatpush1.bf16.msra.mxu0 0
    %3383 = vmatprep.subr.bf16.mxu0 0
    %3384 = vmatpush1.bf16.msra.mxu0 0
    %3385 = vmatprep.subr.bf16.mxu0 0
    %3386 = vmatpush1.bf16.msra.mxu0 0
    %3387 = vmatprep.subr.bf16.mxu0 0
    %3388 = vmatpush1.bf16.msra.mxu0 0
    %3389 = vmatprep.subr.bf16.mxu0 0
    %3390 = vmatpush1.bf16.msra.mxu0 0
    %3391 = vmatprep.subr.bf16.mxu0 0
    %3392 = vmatpush1.bf16.msra.mxu0 0
    %3393 = vmatprep.subr.bf16.mxu0 0
    %3394 = vmatpush1.bf16.msra.mxu0 0
    %3395 = vmatprep.subr.bf16.mxu0 0
    %3396 = vmatpush1.bf16.msra.mxu0 0
    %3397 = vmatprep.subr.bf16.mxu0 0
    %3398 = vmatpush1.bf16.msra.mxu0 0
    %3399 = vmatprep.mubr.bf16.mxu0 0
    %3400 = vmatmul.mubr.bf16.gmra.mrb[0].mxu0 %v3365
    %v3401 = vpop.f32.mrb[0].mxu0
    %v3402 = vadd.f32 %v3320, %v3401
    %v3403 = vpop.f32.mrb[0].mxu0
    %v3404 = vadd.f32 %v3324, %v3403
    %v3405 = vpop.f32.mrb[0].mxu0
    %v3406 = vpop.f32.mrb[0].mxu0
    %3407 = vdwg.mxu0
    %3408 = vmatprep.subr.bf16.mxu0 0
    %3409 = vmatpush1.bf16.msra.mxu0 %v3354
    %3410 = vmatprep.subr.bf16.mxu0 0
    %3411 = vmatpush1.bf16.msra.mxu0 %v3357
    %3412 = vmatprep.subr.bf16.mxu0 0
    %3413 = vmatpush1.bf16.msra.mxu0 0
    %3414 = vmatprep.subr.bf16.mxu0 0
    %3415 = vmatpush1.bf16.msra.mxu0 0
    %3416 = vmatprep.subr.bf16.mxu0 0
    %3417 = vmatpush1.bf16.msra.mxu0 0
    %3418 = vmatprep.subr.bf16.mxu0 0
    %3419 = vmatpush1.bf16.msra.mxu0 0
    %3420 = vmatprep.subr.bf16.mxu0 0
    %3421 = vmatpush1.bf16.msra.mxu0 0
    %3422 = vmatprep.subr.bf16.mxu0 0
    %3423 = vmatpush1.bf16.msra.mxu0 0
    %3424 = vmatprep.subr.bf16.mxu0 0
    %3425 = vmatpush1.bf16.msra.mxu0 0
    %3426 = vmatprep.subr.bf16.mxu0 0
    %3427 = vmatpush1.bf16.msra.mxu0 0
    %3428 = vmatprep.subr.bf16.mxu0 0
    %3429 = vmatpush1.bf16.msra.mxu0 0
    %3430 = vmatprep.subr.bf16.mxu0 0
    %3431 = vmatpush1.bf16.msra.mxu0 0
    %3432 = vmatprep.subr.bf16.mxu0 0
    %3433 = vmatpush1.bf16.msra.mxu0 0
    %3434 = vmatprep.subr.bf16.mxu0 0
    %3435 = vmatpush1.bf16.msra.mxu0 0
    %3436 = vmatprep.subr.bf16.mxu0 0
    %3437 = vmatpush1.bf16.msra.mxu0 0
    %3438 = vmatprep.subr.bf16.mxu0 0
    %3439 = vmatpush1.bf16.msra.mxu0 0
    %3440 = vmatprep.mubr.bf16.mxu0 0
    %3441 = vmatmul.mubr.bf16.gmra.mrb[0].mxu0 %v3365
    %v3442 = vpop.f32.mrb[0].mxu0
    %v3443 = vadd.f32 %v3328, %v3442
    %v3444 = vpop.f32.mrb[0].mxu0
    %v3445 = vpop.f32.mrb[0].mxu0
    %v3446 = vpop.f32.mrb[0].mxu0
    %3447 = vdwg.mxu0
    %v3448 = vld [vmem:[#allocation2] sm:$0xff]
    %v3449 = vld [vmem:[#allocation2 + $0x8] sm:$0xf]
    %v3450 = vld [vmem:[#allocation2 + $0xc] sm:$0xff]
    %v3451 = vld [vmem:[#allocation2 + $0x14] sm:$0xf]
    %v3452 = vld [vmem:[#allocation2 + $0x18] sm:$0xff]
    %v3453 = vld [vmem:[#allocation2 + $0x20] sm:$0xf]
    %v3454 = vld [vmem:[#allocation2 + $0x24] sm:$0xff]
    %v3455 = vld [vmem:[#allocation2 + $0x2c] sm:$0xf]
    %v3464 = vunpack.c.l.b16 %v3448
    %v3465 = vunpack.c.h.b16 %v3448
    %v3466 = vunpack.c.l.b16 %v3449
    %v3467 = vunpack.c.l.b16 %v3450
    %v3468 = vunpack.c.h.b16 %v3450
    %v3469 = vunpack.c.l.b16 %v3451
    %v3470 = vunpack.c.l.b16 %v3452
    %v3471 = vunpack.c.h.b16 %v3452
    %v3472 = vunpack.c.l.b16 %v3453
    %v3473 = vunpack.c.l.b16 %v3454
    %v3474 = vunpack.c.h.b16 %v3454
    %v3475 = vunpack.c.l.b16 %v3455
    %v3476 = vpack.c.b16 %v3467, %v3464
    %v3477 = vpack.c.b16 %v3468, %v3465
    %v3478 = vpack.c.b16 %v3469, %v3466
    %v3479 = vpack.c.b16 %v3473, %v3470
    %v3480 = vpack.c.b16 %v3474, %v3471
    %v3481 = vpack.c.b16 %v3475, %v3472
    %3488 = vmatprep.subr.bf16.mxu0 %v3477
    %3489 = vmatpush1.bf16.msra.mxu0 %v3476
    %3490 = vmatprep.subr.bf16.mxu0 %v3480
    %3491 = vmatpush1.bf16.msra.mxu0 %v3479
    %3492 = vmatprep.subr.bf16.mxu0 0
    %3493 = vmatpush1.bf16.msra.mxu0 0
    %3494 = vmatprep.subr.bf16.mxu0 0
    %3495 = vmatpush1.bf16.msra.mxu0 0
    %3496 = vmatprep.subr.bf16.mxu0 0
    %3497 = vmatpush1.bf16.msra.mxu0 0
    %3498 = vmatprep.subr.bf16.mxu0 0
    %3499 = vmatpush1.bf16.msra.mxu0 0
    %3500 = vmatprep.subr.bf16.mxu0 0
    %3501 = vmatpush1.bf16.msra.mxu0 0
    %3502 = vmatprep.subr.bf16.mxu0 0
    %3503 = vmatpush1.bf16.msra.mxu0 0
    %3504 = vmatprep.subr.bf16.mxu0 0
    %3505 = vmatpush1.bf16.msra.mxu0 0
    %3506 = vmatprep.subr.bf16.mxu0 0
    %3507 = vmatpush1.bf16.msra.mxu0 0
    %3508 = vmatprep.subr.bf16.mxu0 0
    %3509 = vmatpush1.bf16.msra.mxu0 0
    %3510 = vmatprep.subr.bf16.mxu0 0
    %3511 = vmatpush1.bf16.msra.mxu0 0
    %3512 = vmatprep.subr.bf16.mxu0 0
    %3513 = vmatpush1.bf16.msra.mxu0 0
    %3514 = vmatprep.subr.bf16.mxu0 0
    %3515 = vmatpush1.bf16.msra.mxu0 0
    %3516 = vmatprep.subr.bf16.mxu0 0
    %3517 = vmatpush1.bf16.msra.mxu0 0
    %3518 = vmatprep.subr.bf16.mxu0 0
    %3519 = vmatpush1.bf16.msra.mxu0 0
    %3520 = vmatprep.mubr.bf16.mxu0 0
    %3521 = vmatmul.mubr.bf16.gmra.mrb[0].mxu0 %v3034
    %v3522 = vpop.f32.mrb[0].mxu0
    %v3523 = vadd.f32 0.0, %v3522
    %v3524 = vpop.f32.mrb[0].mxu0
    %v3525 = vadd.f32 0.0, %v3524
    %v3526 = vpop.f32.mrb[0].mxu0
    %v3527 = vpop.f32.mrb[0].mxu0
    %3528 = vdwg.mxu0
    %3529 = vmatprep.subr.bf16.mxu0 0
    %3530 = vmatpush1.bf16.msra.mxu0 %v3478
    %3531 = vmatprep.subr.bf16.mxu0 0
    %3532 = vmatpush1.bf16.msra.mxu0 %v3481
    %3533 = vmatprep.subr.bf16.mxu0 0
    %3534 = vmatpush1.bf16.msra.mxu0 0
    %3535 = vmatprep.subr.bf16.mxu0 0
    %3536 = vmatpush1.bf16.msra.mxu0 0
    %3537 = vmatprep.subr.bf16.mxu0 0
    %3538 = vmatpush1.bf16.msra.mxu0 0
    %3539 = vmatprep.subr.bf16.mxu0 0
    %3540 = vmatpush1.bf16.msra.mxu0 0
    %3541 = vmatprep.subr.bf16.mxu0 0
    %3542 = vmatpush1.bf16.msra.mxu0 0
    %3543 = vmatprep.subr.bf16.mxu0 0
    %3544 = vmatpush1.bf16.msra.mxu0 0
    %3545 = vmatprep.subr.bf16.mxu0 0
    %3546 = vmatpush1.bf16.msra.mxu0 0
    %3547 = vmatprep.subr.bf16.mxu0 0
    %3548 = vmatpush1.bf16.msra.mxu0 0
    %3549 = vmatprep.subr.bf16.mxu0 0
    %3550 = vmatpush1.bf16.msra.mxu0 0
    %3551 = vmatprep.subr.bf16.mxu0 0
    %3552 = vmatpush1.bf16.msra.mxu0 0
    %3553 = vmatprep.subr.bf16.mxu0 0
    %3554 = vmatpush1.bf16.msra.mxu0 0
    %3555 = vmatprep.subr.bf16.mxu0 0
    %3556 = vmatpush1.bf16.msra.mxu0 0
    %3557 = vmatprep.subr.bf16.mxu0 0
    %3558 = vmatpush1.bf16.msra.mxu0 0
    %3559 = vmatprep.subr.bf16.mxu0 0
    %3560 = vmatpush1.bf16.msra.mxu0 0
    %3561 = vmatprep.mubr.bf16.mxu0 0
    %3562 = vmatmul.mubr.bf16.gmra.mrb[0].mxu0 %v3034
    %v3563 = vpop.f32.mrb[0].mxu0
    %v3564 = vadd.f32 0.0, %v3563
    %v3565 = vpop.f32.mrb[0].mxu0
    %v3566 = vpop.f32.mrb[0].mxu0
    %v3567 = vpop.f32.mrb[0].mxu0
    %3568 = vdwg.mxu0
    %v3569 = vadd.f32 %v3402, %v3523
    %v3570 = vxor.u32 %v3569, 2147483648
    %v3571 = vmul.f32 %v3570, 1.442695
    %v3572 = vpow.pop %v3571
    %v3573 = vadd.f32 %v3572, 1.0
    %v3574 = vrcp.pop %v3573
    %v3575 = vmul.f32 1.0, %v3574
    %v3576 = vadd.f32 %v3404, %v3525
    %v3577 = vxor.u32 %v3576, 2147483648
    %v3578 = vmul.f32 %v3577, 1.442695
    %v3579 = vpow.pop %v3578
    %v3580 = vadd.f32 %v3579, 1.0
    %v3581 = vrcp.pop %v3580
    %v3582 = vmul.f32 1.0, %v3581
    %v3583 = vld [vmem:[%s5] sm:$0x1]
    %v3585 = vlaneseq
    %v3586 = vshrl.u32 %v3585, 7
    %v3587 = vsub.s32 0, %v3586
    %v3588 = vrot.slane %v3583, %v3587
    %v3590 = vadd.f32 %v3564, %v3588
    %v3591 = vmul.f32 %v3575, %v3590
    %v3592 = vadd.f32 %v3443, %v3591
    %v3593 = vtanh.pop %v3592
    %v3594 = vsub.f32 1.0, %v3582
    %v3595 = vmul.f32 %v3594, %v3593
    %v3596 = vmul.f32 %v3582, %v3031
    %v3597 = vadd.f32 %v3595, %v3596
    %v3598 = vpack.c.bf16 %v3597, %v3597
    %v3599 = vpack.c.bf16 %v3219, %v3219
    %v3600 = vld [vmem:[%s447] sm:$0xff]
    %v3601 = vld [vmem:[%s447 + $0x8] sm:$0xf]
    %v3602 = vld [vmem:[%s447 + $0xc] sm:$0xff]
    %v3603 = vld [vmem:[%s447 + $0x14] sm:$0xf]
    %v3604 = vld [vmem:[%s447 + $0x18] sm:$0xff]
    %v3605 = vld [vmem:[%s447 + $0x20] sm:$0xf]
    %v3606 = vld [vmem:[%s447 + $0x24] sm:$0xff]
    %v3607 = vld [vmem:[%s447 + $0x2c] sm:$0xf]
    %v3608 = vld [vmem:[%s456] sm:$0x7]
    %v3610 = vlaneseq
    %v3611 = vshrl.u32 %v3610, 7
    %v3612 = vsub.s32 0, %v3611
    %v3613 = vrot.slane %v3608, %v3612
    %v3614 = vlaneseq
    %v3615 = vshrl.u32 %v3614, 7
    %v3616 = vsub.s32 1, %v3615
    %v3617 = vrot.slane %v3608, %v3616
    %v3618 = vlaneseq
    %v3619 = vshrl.u32 %v3618, 7
    %v3620 = vsub.s32 2, %v3619
    %v3621 = vrot.slane %v3608, %v3620
    %v3633 = vunpack.c.l.b16 %v3600
    %v3634 = vunpack.c.h.b16 %v3600
    %v3635 = vunpack.c.l.b16 %v3601
    %v3636 = vunpack.c.l.b16 %v3602
    %v3637 = vunpack.c.h.b16 %v3602
    %v3638 = vunpack.c.l.b16 %v3603
    %v3639 = vunpack.c.l.b16 %v3604
    %v3640 = vunpack.c.h.b16 %v3604
    %v3641 = vunpack.c.l.b16 %v3605
    %v3642 = vunpack.c.l.b16 %v3606
    %v3643 = vunpack.c.h.b16 %v3606
    %v3644 = vunpack.c.l.b16 %v3607
    %v3645 = vpack.c.b16 %v3636, %v3633
    %v3646 = vpack.c.b16 %v3637, %v3634
    %v3647 = vpack.c.b16 %v3638, %v3635
    %v3648 = vpack.c.b16 %v3642, %v3639
    %v3649 = vpack.c.b16 %v3643, %v3640
    %v3650 = vpack.c.b16 %v3644, %v3641
    %v3658 = vsel %vm207, %v3598, 0
    %3660 = vmatprep.subr.bf16.mxu0 %v3646
    %3661 = vmatpush1.bf16.msra.mxu0 %v3645
    %3662 = vmatprep.subr.bf16.mxu0 %v3649
    %3663 = vmatpush1.bf16.msra.mxu0 %v3648
    %3664 = vmatprep.subr.bf16.mxu0 0
    %3665 = vmatpush1.bf16.msra.mxu0 0
    %3666 = vmatprep.subr.bf16.mxu0 0
    %3667 = vmatpush1.bf16.msra.mxu0 0
    %3668 = vmatprep.subr.bf16.mxu0 0
    %3669 = vmatpush1.bf16.msra.mxu0 0
    %3670 = vmatprep.subr.bf16.mxu0 0
    %3671 = vmatpush1.bf16.msra.mxu0 0
    %3672 = vmatprep.subr.bf16.mxu0 0
    %3673 = vmatpush1.bf16.msra.mxu0 0
    %3674 = vmatprep.subr.bf16.mxu0 0
    %3675 = vmatpush1.bf16.msra.mxu0 0
    %3676 = vmatprep.subr.bf16.mxu0 0
    %3677 = vmatpush1.bf16.msra.mxu0 0
    %3678 = vmatprep.subr.bf16.mxu0 0
    %3679 = vmatpush1.bf16.msra.mxu0 0
    %3680 = vmatprep.subr.bf16.mxu0 0
    %3681 = vmatpush1.bf16.msra.mxu0 0
    %3682 = vmatprep.subr.bf16.mxu0 0
    %3683 = vmatpush1.bf16.msra.mxu0 0
    %3684 = vmatprep.subr.bf16.mxu0 0
    %3685 = vmatpush1.bf16.msra.mxu0 0
    %3686 = vmatprep.subr.bf16.mxu0 0
    %3687 = vmatpush1.bf16.msra.mxu0 0
    %3688 = vmatprep.subr.bf16.mxu0 0
    %3689 = vmatpush1.bf16.msra.mxu0 0
    %3690 = vmatprep.subr.bf16.mxu0 0
    %3691 = vmatpush1.bf16.msra.mxu0 0
    %3692 = vmatprep.mubr.bf16.mxu0 0
    %3693 = vmatmul.mubr.bf16.gmra.mrb[0].mxu0 %v3658
    %v3694 = vpop.f32.mrb[0].mxu0
    %v3695 = vadd.f32 %v3613, %v3694
    %v3696 = vpop.f32.mrb[0].mxu0
    %v3697 = vadd.f32 %v3617, %v3696
    %v3698 = vpop.f32.mrb[0].mxu0
    %v3699 = vpop.f32.mrb[0].mxu0
    %3700 = vdwg.mxu0
    %3701 = vmatprep.subr.bf16.mxu0 0
    %3702 = vmatpush1.bf16.msra.mxu0 %v3647
    %3703 = vmatprep.subr.bf16.mxu0 0
    %3704 = vmatpush1.bf16.msra.mxu0 %v3650
    %3705 = vmatprep.subr.bf16.mxu0 0
    %3706 = vmatpush1.bf16.msra.mxu0 0
    %3707 = vmatprep.subr.bf16.mxu0 0
    %3708 = vmatpush1.bf16.msra.mxu0 0
    %3709 = vmatprep.subr.bf16.mxu0 0
    %3710 = vmatpush1.bf16.msra.mxu0 0
    %3711 = vmatprep.subr.bf16.mxu0 0
    %3712 = vmatpush1.bf16.msra.mxu0 0
    %3713 = vmatprep.subr.bf16.mxu0 0
    %3714 = vmatpush1.bf16.msra.mxu0 0
    %3715 = vmatprep.subr.bf16.mxu0 0
    %3716 = vmatpush1.bf16.msra.mxu0 0
    %3717 = vmatprep.subr.bf16.mxu0 0
    %3718 = vmatpush1.bf16.msra.mxu0 0
    %3719 = vmatprep.subr.bf16.mxu0 0
    %3720 = vmatpush1.bf16.msra.mxu0 0
    %3721 = vmatprep.subr.bf16.mxu0 0
    %3722 = vmatpush1.bf16.msra.mxu0 0
    %3723 = vmatprep.subr.bf16.mxu0 0
    %3724 = vmatpush1.bf16.msra.mxu0 0
    %3725 = vmatprep.subr.bf16.mxu0 0
    %3726 = vmatpush1.bf16.msra.mxu0 0
    %3727 = vmatprep.subr.bf16.mxu0 0
    %3728 = vmatpush1.bf16.msra.mxu0 0
    %3729 = vmatprep.subr.bf16.mxu0 0
    %3730 = vmatpush1.bf16.msra.mxu0 0
    %3731 = vmatprep.subr.bf16.mxu0 0
    %3732 = vmatpush1.bf16.msra.mxu0 0
    %3733 = vmatprep.mubr.bf16.mxu0 0
    %3734 = vmatmul.mubr.bf16.gmra.mrb[0].mxu0 %v3658
    %v3735 = vpop.f32.mrb[0].mxu0
    %v3736 = vadd.f32 %v3621, %v3735
    %v3737 = vpop.f32.mrb[0].mxu0
    %v3738 = vpop.f32.mrb[0].mxu0
    %v3739 = vpop.f32.mrb[0].mxu0
    %3740 = vdwg.mxu0
    %v3741 = vld [vmem:[%s590] sm:$0xff]
    %v3742 = vld [vmem:[%s590 + $0x8] sm:$0xf]
    %v3743 = vld [vmem:[%s590 + $0xc] sm:$0xff]
    %v3744 = vld [vmem:[%s590 + $0x14] sm:$0xf]
    %v3745 = vld [vmem:[%s590 + $0x18] sm:$0xff]
    %v3746 = vld [vmem:[%s590 + $0x20] sm:$0xf]
    %v3747 = vld [vmem:[%s590 + $0x24] sm:$0xff]
    %v3748 = vld [vmem:[%s590 + $0x2c] sm:$0xf]
    %v3757 = vunpack.c.l.b16 %v3741
    %v3758 = vunpack.c.h.b16 %v3741
    %v3759 = vunpack.c.l.b16 %v3742
    %v3760 = vunpack.c.l.b16 %v3743
    %v3761 = vunpack.c.h.b16 %v3743
    %v3762 = vunpack.c.l.b16 %v3744
    %v3763 = vunpack.c.l.b16 %v3745
    %v3764 = vunpack.c.h.b16 %v3745
    %v3765 = vunpack.c.l.b16 %v3746
    %v3766 = vunpack.c.l.b16 %v3747
    %v3767 = vunpack.c.h.b16 %v3747
    %v3768 = vunpack.c.l.b16 %v3748
    %v3769 = vpack.c.b16 %v3760, %v3757
    %v3770 = vpack.c.b16 %v3761, %v3758
    %v3771 = vpack.c.b16 %v3762, %v3759
    %v3772 = vpack.c.b16 %v3766, %v3763
    %v3773 = vpack.c.b16 %v3767, %v3764
    %v3774 = vpack.c.b16 %v3768, %v3765
    %v3782 = vsel %vm207, %v3599, 0
    %3784 = vmatprep.subr.bf16.mxu0 %v3770
    %3785 = vmatpush1.bf16.msra.mxu0 %v3769
    %3786 = vmatprep.subr.bf16.mxu0 %v3773
    %3787 = vmatpush1.bf16.msra.mxu0 %v3772
    %3788 = vmatprep.subr.bf16.mxu0 0
    %3789 = vmatpush1.bf16.msra.mxu0 0
    %3790 = vmatprep.subr.bf16.mxu0 0
    %3791 = vmatpush1.bf16.msra.mxu0 0
    %3792 = vmatprep.subr.bf16.mxu0 0
    %3793 = vmatpush1.bf16.msra.mxu0 0
    %3794 = vmatprep.subr.bf16.mxu0 0
    %3795 = vmatpush1.bf16.msra.mxu0 0
    %3796 = vmatprep.subr.bf16.mxu0 0
    %3797 = vmatpush1.bf16.msra.mxu0 0
    %3798 = vmatprep.subr.bf16.mxu0 0
    %3799 = vmatpush1.bf16.msra.mxu0 0
    %3800 = vmatprep.subr.bf16.mxu0 0
    %3801 = vmatpush1.bf16.msra.mxu0 0
    %3802 = vmatprep.subr.bf16.mxu0 0
    %3803 = vmatpush1.bf16.msra.mxu0 0
    %3804 = vmatprep.subr.bf16.mxu0 0
    %3805 = vmatpush1.bf16.msra.mxu0 0
    %3806 = vmatprep.subr.bf16.mxu0 0
    %3807 = vmatpush1.bf16.msra.mxu0 0
    %3808 = vmatprep.subr.bf16.mxu0 0
    %3809 = vmatpush1.bf16.msra.mxu0 0
    %3810 = vmatprep.subr.bf16.mxu0 0
    %3811 = vmatpush1.bf16.msra.mxu0 0
    %3812 = vmatprep.subr.bf16.mxu0 0
    %3813 = vmatpush1.bf16.msra.mxu0 0
    %3814 = vmatprep.subr.bf16.mxu0 0
    %3815 = vmatpush1.bf16.msra.mxu0 0
    %3816 = vmatprep.mubr.bf16.mxu0 0
    %3817 = vmatmul.mubr.bf16.gmra.mrb[0].mxu0 %v3782
    %v3818 = vpop.f32.mrb[0].mxu0
    %v3819 = vadd.f32 0.0, %v3818
    %v3820 = vpop.f32.mrb[0].mxu0
    %v3821 = vadd.f32 0.0, %v3820
    %v3822 = vpop.f32.mrb[0].mxu0
    %v3823 = vpop.f32.mrb[0].mxu0
    %3824 = vdwg.mxu0
    %3825 = vmatprep.subr.bf16.mxu0 0
    %3826 = vmatpush1.bf16.msra.mxu0 %v3771
    %3827 = vmatprep.subr.bf16.mxu0 0
    %3828 = vmatpush1.bf16.msra.mxu0 %v3774
    %3829 = vmatprep.subr.bf16.mxu0 0
    %3830 = vmatpush1.bf16.msra.mxu0 0
    %3831 = vmatprep.subr.bf16.mxu0 0
    %3832 = vmatpush1.bf16.msra.mxu0 0
    %3833 = vmatprep.subr.bf16.mxu0 0
    %3834 = vmatpush1.bf16.msra.mxu0 0
    %3835 = vmatprep.subr.bf16.mxu0 0
    %3836 = vmatpush1.bf16.msra.mxu0 0
    %3837 = vmatprep.subr.bf16.mxu0 0
    %3838 = vmatpush1.bf16.msra.mxu0 0
    %3839 = vmatprep.subr.bf16.mxu0 0
    %3840 = vmatpush1.bf16.msra.mxu0 0
    %3841 = vmatprep.subr.bf16.mxu0 0
    %3842 = vmatpush1.bf16.msra.mxu0 0
    %3843 = vmatprep.subr.bf16.mxu0 0
    %3844 = vmatpush1.bf16.msra.mxu0 0
    %3845 = vmatprep.subr.bf16.mxu0 0
    %3846 = vmatpush1.bf16.msra.mxu0 0
    %3847 = vmatprep.subr.bf16.mxu0 0
    %3848 = vmatpush1.bf16.msra.mxu0 0
    %3849 = vmatprep.subr.bf16.mxu0 0
    %3850 = vmatpush1.bf16.msra.mxu0 0
    %3851 = vmatprep.subr.bf16.mxu0 0
    %3852 = vmatpush1.bf16.msra.mxu0 0
    %3853 = vmatprep.subr.bf16.mxu0 0
    %3854 = vmatpush1.bf16.msra.mxu0 0
    %3855 = vmatprep.subr.bf16.mxu0 0
    %3856 = vmatpush1.bf16.msra.mxu0 0
    %3857 = vmatprep.mubr.bf16.mxu0 0
    %3858 = vmatmul.mubr.bf16.gmra.mrb[0].mxu0 %v3782
    %v3859 = vpop.f32.mrb[0].mxu0
    %v3860 = vadd.f32 0.0, %v3859
    %v3861 = vpop.f32.mrb[0].mxu0
    %v3862 = vpop.f32.mrb[0].mxu0
    %v3863 = vpop.f32.mrb[0].mxu0
    %3864 = vdwg.mxu0
    %v3865 = vadd.f32 %v3695, %v3819
    %v3866 = vxor.u32 %v3865, 2147483648
    %v3867 = vmul.f32 %v3866, 1.442695
    %v3868 = vpow.pop %v3867
    %v3869 = vadd.f32 %v3868, 1.0
    %v3870 = vrcp.pop %v3869
    %v3871 = vmul.f32 1.0, %v3870
    %v3872 = vadd.f32 %v3697, %v3821
    %v3873 = vxor.u32 %v3872, 2147483648
    %v3874 = vmul.f32 %v3873, 1.442695
    %v3875 = vpow.pop %v3874
    %v3876 = vadd.f32 %v3875, 1.0
    %v3877 = vrcp.pop %v3876
    %v3878 = vmul.f32 1.0, %v3877
    %v3879 = vld [vmem:[%s729] sm:$0x1]
    %v3881 = vlaneseq
    %v3882 = vshrl.u32 %v3881, 7
    %v3883 = vsub.s32 0, %v3882
    %v3884 = vrot.slane %v3879, %v3883
    %v3886 = vadd.f32 %v3860, %v3884
    %v3887 = vmul.f32 %v3871, %v3886
    %v3888 = vadd.f32 %v3736, %v3887
    %v3889 = vtanh.pop %v3888
    %v3890 = vsub.f32 1.0, %v3878
    %v3891 = vmul.f32 %v3890, %v3889
    %v3892 = vmul.f32 %v3878, %v3219
    %v3893 = vadd.f32 %v3891, %v3892
    %v3894 = vpack.c.bf16 %v3893, %v3893
    %v3896 = vsel %vm207, %v3894, 0
    %3898 = vmatprep.subr.bf16.mxu0 %v3353
    %3899 = vmatpush1.bf16.msra.mxu0 %v3352
    %3900 = vmatprep.subr.bf16.mxu0 %v3356
    %3901 = vmatpush1.bf16.msra.mxu0 %v3355
    %3902 = vmatprep.subr.bf16.mxu0 0
    %3903 = vmatpush1.bf16.msra.mxu0 0
    %3904 = vmatprep.subr.bf16.mxu0 0
    %3905 = vmatpush1.bf16.msra.mxu0 0
    %3906 = vmatprep.subr.bf16.mxu0 0
    %3907 = vmatpush1.bf16.msra.mxu0 0
    %3908 = vmatprep.subr.bf16.mxu0 0
    %3909 = vmatpush1.bf16.msra.mxu0 0
    %3910 = vmatprep.subr.bf16.mxu0 0
    %3911 = vmatpush1.bf16.msra.mxu0 0
    %3912 = vmatprep.subr.bf16.mxu0 0
    %3913 = vmatpush1.bf16.msra.mxu0 0
    %3914 = vmatprep.subr.bf16.mxu0 0
    %3915 = vmatpush1.bf16.msra.mxu0 0
    %3916 = vmatprep.subr.bf16.mxu0 0
    %3917 = vmatpush1.bf16.msra.mxu0 0
    %3918 = vmatprep.subr.bf16.mxu0 0
    %3919 = vmatpush1.bf16.msra.mxu0 0
    %3920 = vmatprep.subr.bf16.mxu0 0
    %3921 = vmatpush1.bf16.msra.mxu0 0
    %3922 = vmatprep.subr.bf16.mxu0 0
    %3923 = vmatpush1.bf16.msra.mxu0 0
    %3924 = vmatprep.subr.bf16.mxu0 0
    %3925 = vmatpush1.bf16.msra.mxu0 0
    %3926 = vmatprep.subr.bf16.mxu0 0
    %3927 = vmatpush1.bf16.msra.mxu0 0
    %3928 = vmatprep.subr.bf16.mxu0 0
    %3929 = vmatpush1.bf16.msra.mxu0 0
    %3930 = vmatprep.mubr.bf16.mxu0 0
    %3931 = vmatmul.mubr.bf16.gmra.mrb[0].mxu0 %v3896
    %v3932 = vpop.f32.mrb[0].mxu0
    %v3933 = vadd.f32 %v3320, %v3932
    %v3934 = vpop.f32.mrb[0].mxu0
    %v3935 = vadd.f32 %v3324, %v3934
    %v3936 = vpop.f32.mrb[0].mxu0
    %v3937 = vpop.f32.mrb[0].mxu0
    %3938 = vdwg.mxu0
    %3939 = vmatprep.subr.bf16.mxu0 0
    %3940 = vmatpush1.bf16.msra.mxu0 %v3354
    %3941 = vmatprep.subr.bf16.mxu0 0
    %3942 = vmatpush1.bf16.msra.mxu0 %v3357
    %3943 = vmatprep.subr.bf16.mxu0 0
    %3944 = vmatpush1.bf16.msra.mxu0 0
    %3945 = vmatprep.subr.bf16.mxu0 0
    %3946 = vmatpush1.bf16.msra.mxu0 0
    %3947 = vmatprep.subr.bf16.mxu0 0
    %3948 = vmatpush1.bf16.msra.mxu0 0
    %3949 = vmatprep.subr.bf16.mxu0 0
    %3950 = vmatpush1.bf16.msra.mxu0 0
    %3951 = vmatprep.subr.bf16.mxu0 0
    %3952 = vmatpush1.bf16.msra.mxu0 0
    %3953 = vmatprep.subr.bf16.mxu0 0
    %3954 = vmatpush1.bf16.msra.mxu0 0
    %3955 = vmatprep.subr.bf16.mxu0 0
    %3956 = vmatpush1.bf16.msra.mxu0 0
    %3957 = vmatprep.subr.bf16.mxu0 0
    %3958 = vmatpush1.bf16.msra.mxu0 0
    %3959 = vmatprep.subr.bf16.mxu0 0
    %3960 = vmatpush1.bf16.msra.mxu0 0
    %3961 = vmatprep.subr.bf16.mxu0 0
    %3962 = vmatpush1.bf16.msra.mxu0 0
    %3963 = vmatprep.subr.bf16.mxu0 0
    %3964 = vmatpush1.bf16.msra.mxu0 0
    %3965 = vmatprep.subr.bf16.mxu0 0
    %3966 = vmatpush1.bf16.msra.mxu0 0
    %3967 = vmatprep.subr.bf16.mxu0 0
    %3968 = vmatpush1.bf16.msra.mxu0 0
    %3969 = vmatprep.subr.bf16.mxu0 0
    %3970 = vmatpush1.bf16.msra.mxu0 0
    %3971 = vmatprep.mubr.bf16.mxu0 0
    %3972 = vmatmul.mubr.bf16.gmra.mrb[0].mxu0 %v3896
    %v3973 = vpop.f32.mrb[0].mxu0
    %v3974 = vadd.f32 %v3328, %v3973
    %v3975 = vpop.f32.mrb[0].mxu0
    %v3976 = vpop.f32.mrb[0].mxu0
    %v3977 = vpop.f32.mrb[0].mxu0
    %3978 = vdwg.mxu0
    %3979 = vmatprep.subr.bf16.mxu0 %v3477
    %3980 = vmatpush1.bf16.msra.mxu0 %v3476
    %3981 = vmatprep.subr.bf16.mxu0 %v3480
    %3982 = vmatpush1.bf16.msra.mxu0 %v3479
    %3983 = vmatprep.subr.bf16.mxu0 0
    %3984 = vmatpush1.bf16.msra.mxu0 0
    %3985 = vmatprep.subr.bf16.mxu0 0
    %3986 = vmatpush1.bf16.msra.mxu0 0
    %3987 = vmatprep.subr.bf16.mxu0 0
    %3988 = vmatpush1.bf16.msra.mxu0 0
    %3989 = vmatprep.subr.bf16.mxu0 0
    %3990 = vmatpush1.bf16.msra.mxu0 0
    %3991 = vmatprep.subr.bf16.mxu0 0
    %3992 = vmatpush1.bf16.msra.mxu0 0
    %3993 = vmatprep.subr.bf16.mxu0 0
    %3994 = vmatpush1.bf16.msra.mxu0 0
    %3995 = vmatprep.subr.bf16.mxu0 0
    %3996 = vmatpush1.bf16.msra.mxu0 0
    %3997 = vmatprep.subr.bf16.mxu0 0
    %3998 = vmatpush1.bf16.msra.mxu0 0
    %3999 = vmatprep.subr.bf16.mxu0 0
    %4000 = vmatpush1.bf16.msra.mxu0 0
    %4001 = vmatprep.subr.bf16.mxu0 0
    %4002 = vmatpush1.bf16.msra.mxu0 0
    %4003 = vmatprep.subr.bf16.mxu0 0
    %4004 = vmatpush1.bf16.msra.mxu0 0
    %4005 = vmatprep.subr.bf16.mxu0 0
    %4006 = vmatpush1.bf16.msra.mxu0 0
    %4007 = vmatprep.subr.bf16.mxu0 0
    %4008 = vmatpush1.bf16.msra.mxu0 0
    %4009 = vmatprep.subr.bf16.mxu0 0
    %4010 = vmatpush1.bf16.msra.mxu0 0
    %4011 = vmatprep.mubr.bf16.mxu0 0
    %4012 = vmatmul.mubr.bf16.gmra.mrb[0].mxu0 %v3658
    %v4013 = vpop.f32.mrb[0].mxu0
    %v4014 = vadd.f32 0.0, %v4013
    %v4015 = vpop.f32.mrb[0].mxu0
    %v4016 = vadd.f32 0.0, %v4015
    %v4017 = vpop.f32.mrb[0].mxu0
    %v4018 = vpop.f32.mrb[0].mxu0
    %4019 = vdwg.mxu0
    %4020 = vmatprep.subr.bf16.mxu0 0
    %4021 = vmatpush1.bf16.msra.mxu0 %v3478
    %4022 = vmatprep.subr.bf16.mxu0 0
    %4023 = vmatpush1.bf16.msra.mxu0 %v3481
    %4024 = vmatprep.subr.bf16.mxu0 0
    %4025 = vmatpush1.bf16.msra.mxu0 0
    %4026 = vmatprep.subr.bf16.mxu0 0
    %4027 = vmatpush1.bf16.msra.mxu0 0
    %4028 = vmatprep.subr.bf16.mxu0 0
    %4029 = vmatpush1.bf16.msra.mxu0 0
    %4030 = vmatprep.subr.bf16.mxu0 0
    %4031 = vmatpush1.bf16.msra.mxu0 0
    %4032 = vmatprep.subr.bf16.mxu0 0
    %4033 = vmatpush1.bf16.msra.mxu0 0
    %4034 = vmatprep.subr.bf16.mxu0 0
    %4035 = vmatpush1.bf16.msra.mxu0 0
    %4036 = vmatprep.subr.bf16.mxu0 0
    %4037 = vmatpush1.bf16.msra.mxu0 0
    %4038 = vmatprep.subr.bf16.mxu0 0
    %4039 = vmatpush1.bf16.msra.mxu0 0
    %4040 = vmatprep.subr.bf16.mxu0 0
    %4041 = vmatpush1.bf16.msra.mxu0 0
    %4042 = vmatprep.subr.bf16.mxu0 0
    %4043 = vmatpush1.bf16.msra.mxu0 0
    %4044 = vmatprep.subr.bf16.mxu0 0
    %4045 = vmatpush1.bf16.msra.mxu0 0
    %4046 = vmatprep.subr.bf16.mxu0 0
    %4047 = vmatpush1.bf16.msra.mxu0 0
    %4048 = vmatprep.subr.bf16.mxu0 0
    %4049 = vmatpush1.bf16.msra.mxu0 0
    %4050 = vmatprep.subr.bf16.mxu0 0
    %4051 = vmatpush1.bf16.msra.mxu0 0
    %4052 = vmatprep.mubr.bf16.mxu0 0
    %4053 = vmatmul.mubr.bf16.gmra.mrb[0].mxu0 %v3658
    %v4054 = vpop.f32.mrb[0].mxu0
    %v4055 = vadd.f32 0.0, %v4054
    %v4056 = vpop.f32.mrb[0].mxu0
    %v4057 = vpop.f32.mrb[0].mxu0
    %v4058 = vpop.f32.mrb[0].mxu0
    %4059 = vdwg.mxu0
    %v4060 = vadd.f32 %v3933, %v4014
    %v4061 = vxor.u32 %v4060, 2147483648
    %v4062 = vmul.f32 %v4061, 1.442695
    %v4063 = vpow.pop %v4062
    %v4064 = vadd.f32 %v4063, 1.0
    %v4065 = vrcp.pop %v4064
    %v4066 = vmul.f32 1.0, %v4065
    %v4067 = vadd.f32 %v3935, %v4016
    %v4068 = vxor.u32 %v4067, 2147483648
    %v4069 = vmul.f32 %v4068, 1.442695
    %v4070 = vpow.pop %v4069
    %v4071 = vadd.f32 %v4070, 1.0
    %v4072 = vrcp.pop %v4071
    %v4073 = vmul.f32 1.0, %v4072
    %v4074 = vadd.f32 %v4055, %v3588
    %v4075 = vmul.f32 %v4066, %v4074
    %v4076 = vadd.f32 %v3974, %v4075
    %v4077 = vtanh.pop %v4076
    %v4078 = vsub.f32 1.0, %v4073
    %v4079 = vmul.f32 %v4078, %v4077
    %v4080 = vmul.f32 %v4073, %v3597
    %v4081 = vadd.f32 %v4079, %v4080
    %v4082 = vpack.c.bf16 %v4081, %v4081
    %v4084 = vsel %vm207, %v4082, 0
    %4086 = vmatprep.subr.bf16.mxu0 %v3646
    %4087 = vmatpush1.bf16.msra.mxu0 %v3645
    %4088 = vmatprep.subr.bf16.mxu0 %v3649
    %4089 = vmatpush1.bf16.msra.mxu0 %v3648
    %4090 = vmatprep.subr.bf16.mxu0 0
    %4091 = vmatpush1.bf16.msra.mxu0 0
    %4092 = vmatprep.subr.bf16.mxu0 0
    %4093 = vmatpush1.bf16.msra.mxu0 0
    %4094 = vmatprep.subr.bf16.mxu0 0
    %4095 = vmatpush1.bf16.msra.mxu0 0
    %4096 = vmatprep.subr.bf16.mxu0 0
    %4097 = vmatpush1.bf16.msra.mxu0 0
    %4098 = vmatprep.subr.bf16.mxu0 0
    %4099 = vmatpush1.bf16.msra.mxu0 0
    %4100 = vmatprep.subr.bf16.mxu0 0
    %4101 = vmatpush1.bf16.msra.mxu0 0
    %4102 = vmatprep.subr.bf16.mxu0 0
    %4103 = vmatpush1.bf16.msra.mxu0 0
    %4104 = vmatprep.subr.bf16.mxu0 0
    %4105 = vmatpush1.bf16.msra.mxu0 0
    %4106 = vmatprep.subr.bf16.mxu0 0
    %4107 = vmatpush1.bf16.msra.mxu0 0
    %4108 = vmatprep.subr.bf16.mxu0 0
    %4109 = vmatpush1.bf16.msra.mxu0 0
    %4110 = vmatprep.subr.bf16.mxu0 0
    %4111 = vmatpush1.bf16.msra.mxu0 0
    %4112 = vmatprep.subr.bf16.mxu0 0
    %4113 = vmatpush1.bf16.msra.mxu0 0
    %4114 = vmatprep.subr.bf16.mxu0 0
    %4115 = vmatpush1.bf16.msra.mxu0 0
    %4116 = vmatprep.subr.bf16.mxu0 0
    %4117 = vmatpush1.bf16.msra.mxu0 0
    %4118 = vmatprep.mubr.bf16.mxu0 0
    %4119 = vmatmul.mubr.bf16.gmra.mrb[0].mxu0 %v4084
    %v4120 = vpop.f32.mrb[0].mxu0
    %v4121 = vadd.f32 %v3613, %v4120
    %v4122 = vpop.f32.mrb[0].mxu0
    %v4123 = vadd.f32 %v3617, %v4122
    %v4124 = vpop.f32.mrb[0].mxu0
    %v4125 = vpop.f32.mrb[0].mxu0
    %4126 = vdwg.mxu0
    %4127 = vmatprep.subr.bf16.mxu0 0
    %4128 = vmatpush1.bf16.msra.mxu0 %v3647
    %4129 = vmatprep.subr.bf16.mxu0 0
    %4130 = vmatpush1.bf16.msra.mxu0 %v3650
    %4131 = vmatprep.subr.bf16.mxu0 0
    %4132 = vmatpush1.bf16.msra.mxu0 0
    %4133 = vmatprep.subr.bf16.mxu0 0
    %4134 = vmatpush1.bf16.msra.mxu0 0
    %4135 = vmatprep.subr.bf16.mxu0 0
    %4136 = vmatpush1.bf16.msra.mxu0 0
    %4137 = vmatprep.subr.bf16.mxu0 0
    %4138 = vmatpush1.bf16.msra.mxu0 0
    %4139 = vmatprep.subr.bf16.mxu0 0
    %4140 = vmatpush1.bf16.msra.mxu0 0
    %4141 = vmatprep.subr.bf16.mxu0 0
    %4142 = vmatpush1.bf16.msra.mxu0 0
    %4143 = vmatprep.subr.bf16.mxu0 0
    %4144 = vmatpush1.bf16.msra.mxu0 0
    %4145 = vmatprep.subr.bf16.mxu0 0
    %4146 = vmatpush1.bf16.msra.mxu0 0
    %4147 = vmatprep.subr.bf16.mxu0 0
    %4148 = vmatpush1.bf16.msra.mxu0 0
    %4149 = vmatprep.subr.bf16.mxu0 0
    %4150 = vmatpush1.bf16.msra.mxu0 0
    %4151 = vmatprep.subr.bf16.mxu0 0
    %4152 = vmatpush1.bf16.msra.mxu0 0
    %4153 = vmatprep.subr.bf16.mxu0 0
    %4154 = vmatpush1.bf16.msra.mxu0 0
    %4155 = vmatprep.subr.bf16.mxu0 0
    %4156 = vmatpush1.bf16.msra.mxu0 0
    %4157 = vmatprep.subr.bf16.mxu0 0
    %4158 = vmatpush1.bf16.msra.mxu0 0
    %4159 = vmatprep.mubr.bf16.mxu0 0
    %4160 = vmatmul.mubr.bf16.gmra.mrb[0].mxu0 %v4084
    %v4161 = vpop.f32.mrb[0].mxu0
    %v4162 = vadd.f32 %v3621, %v4161
    %v4163 = vpop.f32.mrb[0].mxu0
    %v4164 = vpop.f32.mrb[0].mxu0
    %v4165 = vpop.f32.mrb[0].mxu0
    %4166 = vdwg.mxu0
    %4167 = vmatprep.subr.bf16.mxu0 %v3770
    %4168 = vmatpush1.bf16.msra.mxu0 %v3769
    %4169 = vmatprep.subr.bf16.mxu0 %v3773
    %4170 = vmatpush1.bf16.msra.mxu0 %v3772
    %4171 = vmatprep.subr.bf16.mxu0 0
    %4172 = vmatpush1.bf16.msra.mxu0 0
    %4173 = vmatprep.subr.bf16.mxu0 0
    %4174 = vmatpush1.bf16.msra.mxu0 0
    %4175 = vmatprep.subr.bf16.mxu0 0
    %4176 = vmatpush1.bf16.msra.mxu0 0
    %4177 = vmatprep.subr.bf16.mxu0 0
    %4178 = vmatpush1.bf16.msra.mxu0 0
    %4179 = vmatprep.subr.bf16.mxu0 0
    %4180 = vmatpush1.bf16.msra.mxu0 0
    %4181 = vmatprep.subr.bf16.mxu0 0
    %4182 = vmatpush1.bf16.msra.mxu0 0
    %4183 = vmatprep.subr.bf16.mxu0 0
    %4184 = vmatpush1.bf16.msra.mxu0 0
    %4185 = vmatprep.subr.bf16.mxu0 0
    %4186 = vmatpush1.bf16.msra.mxu0 0
    %4187 = vmatprep.subr.bf16.mxu0 0
    %4188 = vmatpush1.bf16.msra.mxu0 0
    %4189 = vmatprep.subr.bf16.mxu0 0
    %4190 = vmatpush1.bf16.msra.mxu0 0
    %4191 = vmatprep.subr.bf16.mxu0 0
    %4192 = vmatpush1.bf16.msra.mxu0 0
    %4193 = vmatprep.subr.bf16.mxu0 0
    %4194 = vmatpush1.bf16.msra.mxu0 0
    %4195 = vmatprep.subr.bf16.mxu0 0
    %4196 = vmatpush1.bf16.msra.mxu0 0
    %4197 = vmatprep.subr.bf16.mxu0 0
    %4198 = vmatpush1.bf16.msra.mxu0 0
    %4199 = vmatprep.mubr.bf16.mxu0 0
    %4200 = vmatmul.mubr.bf16.gmra.mrb[0].mxu0 %v3896
    %v4201 = vpop.f32.mrb[0].mxu0
    %v4202 = vadd.f32 0.0, %v4201
    %v4203 = vpop.f32.mrb[0].mxu0
    %v4204 = vadd.f32 0.0, %v4203
    %v4205 = vpop.f32.mrb[0].mxu0
    %v4206 = vpop.f32.mrb[0].mxu0
    %4207 = vdwg.mxu0
    %4208 = vmatprep.subr.bf16.mxu0 0
    %4209 = vmatpush1.bf16.msra.mxu0 %v3771
    %4210 = vmatprep.subr.bf16.mxu0 0
    %4211 = vmatpush1.bf16.msra.mxu0 %v3774
    %4212 = vmatprep.subr.bf16.mxu0 0
    %4213 = vmatpush1.bf16.msra.mxu0 0
    %4214 = vmatprep.subr.bf16.mxu0 0
    %4215 = vmatpush1.bf16.msra.mxu0 0
    %4216 = vmatprep.subr.bf16.mxu0 0
    %4217 = vmatpush1.bf16.msra.mxu0 0
    %4218 = vmatprep.subr.bf16.mxu0 0
    %4219 = vmatpush1.bf16.msra.mxu0 0
    %4220 = vmatprep.subr.bf16.mxu0 0
    %4221 = vmatpush1.bf16.msra.mxu0 0
    %4222 = vmatprep.subr.bf16.mxu0 0
    %4223 = vmatpush1.bf16.msra.mxu0 0
    %4224 = vmatprep.subr.bf16.mxu0 0
    %4225 = vmatpush1.bf16.msra.mxu0 0
    %4226 = vmatprep.subr.bf16.mxu0 0
    %4227 = vmatpush1.bf16.msra.mxu0 0
    %4228 = vmatprep.subr.bf16.mxu0 0
    %4229 = vmatpush1.bf16.msra.mxu0 0
    %4230 = vmatprep.subr.bf16.mxu0 0
    %4231 = vmatpush1.bf16.msra.mxu0 0
    %4232 = vmatprep.subr.bf16.mxu0 0
    %4233 = vmatpush1.bf16.msra.mxu0 0
    %4234 = vmatprep.subr.bf16.mxu0 0
    %4235 = vmatpush1.bf16.msra.mxu0 0
    %4236 = vmatprep.subr.bf16.mxu0 0
    %4237 = vmatpush1.bf16.msra.mxu0 0
    %4238 = vmatprep.subr.bf16.mxu0 0
    %4239 = vmatpush1.bf16.msra.mxu0 0
    %4240 = vmatprep.mubr.bf16.mxu0 0
    %4241 = vmatmul.mubr.bf16.gmra.mrb[0].mxu0 %v3896
    %v4242 = vpop.f32.mrb[0].mxu0
    %v4243 = vadd.f32 0.0, %v4242
    %v4244 = vpop.f32.mrb[0].mxu0
    %v4245 = vpop.f32.mrb[0].mxu0
    %v4246 = vpop.f32.mrb[0].mxu0
    %4247 = vdwg.mxu0
    %v4248 = vadd.f32 %v4121, %v4202
    %v4249 = vxor.u32 %v4248, 2147483648
    %v4250 = vmul.f32 %v4249, 1.442695
    %v4251 = vpow.pop %v4250
    %v4252 = vadd.f32 %v4251, 1.0
    %v4253 = vrcp.pop %v4252
    %v4254 = vmul.f32 1.0, %v4253
    %v4255 = vadd.f32 %v4123, %v4204
    %v4256 = vxor.u32 %v4255, 2147483648
    %v4257 = vmul.f32 %v4256, 1.442695
    %v4258 = vpow.pop %v4257
    %v4259 = vadd.f32 %v4258, 1.0
    %v4260 = vrcp.pop %v4259
    %v4261 = vmul.f32 1.0, %v4260
    %v4262 = vadd.f32 %v4243, %v3884
    %v4263 = vmul.f32 %v4254, %v4262
    %v4264 = vadd.f32 %v4162, %v4263
    %v4265 = vtanh.pop %v4264
    %v4266 = vsub.f32 1.0, %v4261
    %v4267 = vmul.f32 %v4266, %v4265
    %v4268 = vmul.f32 %v4261, %v3893
    %v4269 = vadd.f32 %v4267, %v4268
    %s4270 = scalar_lea.vmem [#allocation7], 24
    %4271 = vst [vmem:[%s4270] sm:$0xff] %v4269
    %s4272 = scalar_lea.vmem %s0, 32
    %v4273 = vld [vmem:[%s4272] sm:$0xff]
    %4274 = vset.pattern.permute.xlu0 0
    %4275 = vperm.xlu0 %4274, %v4273
    %v4276 = vpop.permute.xlu0 %4275
    %vm4277 = vcmp.eq.s32.totalorder %v60, %v4276
    %v4278 = vsel %vm4277, 1, 0
    %v4279 = vcvt.s32.f32 %v4278
    %v4280 = vpack.c.bf16 %v4279, %v4279
    %v4281 = vld [vmem:[%s1] sm:$0xf]
    %v4282 = vld [vmem:[%s1 + $0x4] sm:$0xf]
    %v4283 = vld [vmem:[%s1 + $0x8] sm:$0xf]
    %v4284 = vld [vmem:[%s1 + $0xc] sm:$0xf]
    %v4285 = vld [vmem:[%s1 + $0x10] sm:$0xf]
    %v4286 = vld [vmem:[%s1 + $0x14] sm:$0xf]
    %v4287 = vld [vmem:[%s1 + $0x18] sm:$0xf]
    %v4288 = vld [vmem:[%s1 + $0x1c] sm:$0xf]
    %v4297 = vunpack.c.l.b16 %v4281
    %v4298 = vunpack.c.l.b16 %v4282
    %v4299 = vunpack.c.l.b16 %v4283
    %v4300 = vunpack.c.l.b16 %v4284
    %v4301 = vunpack.c.l.b16 %v4285
    %v4302 = vunpack.c.l.b16 %v4286
    %v4303 = vunpack.c.l.b16 %v4287
    %v4304 = vunpack.c.l.b16 %v4288
    %v4305 = vpack.c.b16 %v4298, %v4297
    %v4306 = vpack.c.b16 %v4300, %v4299
    %v4307 = vpack.c.b16 %v4302, %v4301
    %v4308 = vpack.c.b16 %v4304, %v4303
    %v4314 = vsel %vm104, %v4280, 0
    %4316 = vmatprep.subr.bf16.mxu0 0
    %4317 = vmatpush1.bf16.msra.mxu0 %v4305
    %4318 = vmatprep.subr.bf16.mxu0 0
    %4319 = vmatpush1.bf16.msra.mxu0 %v4306
    %4320 = vmatprep.subr.bf16.mxu0 0
    %4321 = vmatpush1.bf16.msra.mxu0 %v4307
    %4322 = vmatprep.subr.bf16.mxu0 0
    %4323 = vmatpush1.bf16.msra.mxu0 %v4308
    %4324 = vmatprep.subr.bf16.mxu0 0
    %4325 = vmatpush1.bf16.msra.mxu0 0
    %4326 = vmatprep.subr.bf16.mxu0 0
    %4327 = vmatpush1.bf16.msra.mxu0 0
    %4328 = vmatprep.subr.bf16.mxu0 0
    %4329 = vmatpush1.bf16.msra.mxu0 0
    %4330 = vmatprep.subr.bf16.mxu0 0
    %4331 = vmatpush1.bf16.msra.mxu0 0
    %4332 = vmatprep.subr.bf16.mxu0 0
    %4333 = vmatpush1.bf16.msra.mxu0 0
    %4334 = vmatprep.subr.bf16.mxu0 0
    %4335 = vmatpush1.bf16.msra.mxu0 0
    %4336 = vmatprep.subr.bf16.mxu0 0
    %4337 = vmatpush1.bf16.msra.mxu0 0
    %4338 = vmatprep.subr.bf16.mxu0 0
    %4339 = vmatpush1.bf16.msra.mxu0 0
    %4340 = vmatprep.subr.bf16.mxu0 0
    %4341 = vmatpush1.bf16.msra.mxu0 0
    %4342 = vmatprep.subr.bf16.mxu0 0
    %4343 = vmatpush1.bf16.msra.mxu0 0
    %4344 = vmatprep.subr.bf16.mxu0 0
    %4345 = vmatpush1.bf16.msra.mxu0 0
    %4346 = vmatprep.subr.bf16.mxu0 0
    %4347 = vmatpush1.bf16.msra.mxu0 0
    %4348 = vmatprep.mubr.bf16.mxu0 0
    %4349 = vmatmul.mubr.bf16.gmra.mrb[0].mxu0 %v4314
    %v4350 = vpop.f32.mrb[0].mxu0
    %v4351 = vadd.f32 0.0, %v4350
    %v4352 = vpop.f32.mrb[0].mxu0
    %v4353 = vpop.f32.mrb[0].mxu0
    %v4354 = vpop.f32.mrb[0].mxu0
    %4355 = vdwg.mxu0
    %v4356 = vpack.c.bf16 %v4351, %v4351
    %v4357 = vld [vmem:[%s2] sm:$0xff]
    %v4358 = vld [vmem:[%s2 + $0x8] sm:$0xf]
    %v4359 = vld [vmem:[%s2 + $0xc] sm:$0xff]
    %v4360 = vld [vmem:[%s2 + $0x14] sm:$0xf]
    %v4361 = vld [vmem:[%s2 + $0x18] sm:$0xff]
    %v4362 = vld [vmem:[%s2 + $0x20] sm:$0xf]
    %v4363 = vld [vmem:[%s2 + $0x24] sm:$0xff]
    %v4364 = vld [vmem:[%s2 + $0x2c] sm:$0xf]
    %v4365 = vld [vmem:[%s4] sm:$0x7]
    %v4367 = vlaneseq
    %v4368 = vshrl.u32 %v4367, 7
    %v4369 = vsub.s32 0, %v4368
    %v4370 = vrot.slane %v4365, %v4369
    %v4371 = vlaneseq
    %v4372 = vshrl.u32 %v4371, 7
    %v4373 = vsub.s32 1, %v4372
    %v4374 = vrot.slane %v4365, %v4373
    %v4375 = vlaneseq
    %v4376 = vshrl.u32 %v4375, 7
    %v4377 = vsub.s32 2, %v4376
    %v4378 = vrot.slane %v4365, %v4377
    %v4390 = vunpack.c.l.b16 %v4357
    %v4391 = vunpack.c.h.b16 %v4357
    %v4392 = vunpack.c.l.b16 %v4358
    %v4393 = vunpack.c.l.b16 %v4359
    %v4394 = vunpack.c.h.b16 %v4359
    %v4395 = vunpack.c.l.b16 %v4360
    %v4396 = vunpack.c.l.b16 %v4361
    %v4397 = vunpack.c.h.b16 %v4361
    %v4398 = vunpack.c.l.b16 %v4362
    %v4399 = vunpack.c.l.b16 %v4363
    %v4400 = vunpack.c.h.b16 %v4363
    %v4401 = vunpack.c.l.b16 %v4364
    %v4402 = vpack.c.b16 %v4393, %v4390
    %v4403 = vpack.c.b16 %v4394, %v4391
    %v4404 = vpack.c.b16 %v4395, %v4392
    %v4405 = vpack.c.b16 %v4399, %v4396
    %v4406 = vpack.c.b16 %v4400, %v4397
    %v4407 = vpack.c.b16 %v4401, %v4398
    %v4415 = vsel %vm207, %v4356, 0
    %4417 = vmatprep.subr.bf16.mxu0 %v4403
    %4418 = vmatpush1.bf16.msra.mxu0 %v4402
    %4419 = vmatprep.subr.bf16.mxu0 %v4406
    %4420 = vmatpush1.bf16.msra.mxu0 %v4405
    %4421 = vmatprep.subr.bf16.mxu0 0
    %4422 = vmatpush1.bf16.msra.mxu0 0
    %4423 = vmatprep.subr.bf16.mxu0 0
    %4424 = vmatpush1.bf16.msra.mxu0 0
    %4425 = vmatprep.subr.bf16.mxu0 0
    %4426 = vmatpush1.bf16.msra.mxu0 0
    %4427 = vmatprep.subr.bf16.mxu0 0
    %4428 = vmatpush1.bf16.msra.mxu0 0
    %4429 = vmatprep.subr.bf16.mxu0 0
    %4430 = vmatpush1.bf16.msra.mxu0 0
    %4431 = vmatprep.subr.bf16.mxu0 0
    %4432 = vmatpush1.bf16.msra.mxu0 0
    %4433 = vmatprep.subr.bf16.mxu0 0
    %4434 = vmatpush1.bf16.msra.mxu0 0
    %4435 = vmatprep.subr.bf16.mxu0 0
    %4436 = vmatpush1.bf16.msra.mxu0 0
    %4437 = vmatprep.subr.bf16.mxu0 0
    %4438 = vmatpush1.bf16.msra.mxu0 0
    %4439 = vmatprep.subr.bf16.mxu0 0
    %4440 = vmatpush1.bf16.msra.mxu0 0
    %4441 = vmatprep.subr.bf16.mxu0 0
    %4442 = vmatpush1.bf16.msra.mxu0 0
    %4443 = vmatprep.subr.bf16.mxu0 0
    %4444 = vmatpush1.bf16.msra.mxu0 0
    %4445 = vmatprep.subr.bf16.mxu0 0
    %4446 = vmatpush1.bf16.msra.mxu0 0
    %4447 = vmatprep.subr.bf16.mxu0 0
    %4448 = vmatpush1.bf16.msra.mxu0 0
    %4449 = vmatprep.mubr.bf16.mxu0 0
    %4450 = vmatmul.mubr.bf16.gmra.mrb[0].mxu0 %v4415
    %v4451 = vpop.f32.mrb[0].mxu0
    %v4452 = vadd.f32 %v4370, %v4451
    %v4453 = vpop.f32.mrb[0].mxu0
    %v4454 = vadd.f32 %v4374, %v4453
    %v4455 = vpop.f32.mrb[0].mxu0
    %v4456 = vpop.f32.mrb[0].mxu0
    %4457 = vdwg.mxu0
    %4458 = vmatprep.subr.bf16.mxu0 0
    %4459 = vmatpush1.bf16.msra.mxu0 %v4404
    %4460 = vmatprep.subr.bf16.mxu0 0
    %4461 = vmatpush1.bf16.msra.mxu0 %v4407
    %4462 = vmatprep.subr.bf16.mxu0 0
    %4463 = vmatpush1.bf16.msra.mxu0 0
    %4464 = vmatprep.subr.bf16.mxu0 0
    %4465 = vmatpush1.bf16.msra.mxu0 0
    %4466 = vmatprep.subr.bf16.mxu0 0
    %4467 = vmatpush1.bf16.msra.mxu0 0
    %4468 = vmatprep.subr.bf16.mxu0 0
    %4469 = vmatpush1.bf16.msra.mxu0 0
    %4470 = vmatprep.subr.bf16.mxu0 0
    %4471 = vmatpush1.bf16.msra.mxu0 0
    %4472 = vmatprep.subr.bf16.mxu0 0
    %4473 = vmatpush1.bf16.msra.mxu0 0
    %4474 = vmatprep.subr.bf16.mxu0 0
    %4475 = vmatpush1.bf16.msra.mxu0 0
    %4476 = vmatprep.subr.bf16.mxu0 0
    %4477 = vmatpush1.bf16.msra.mxu0 0
    %4478 = vmatprep.subr.bf16.mxu0 0
    %4479 = vmatpush1.bf16.msra.mxu0 0
    %4480 = vmatprep.subr.bf16.mxu0 0
    %4481 = vmatpush1.bf16.msra.mxu0 0
    %4482 = vmatprep.subr.bf16.mxu0 0
    %4483 = vmatpush1.bf16.msra.mxu0 0
    %4484 = vmatprep.subr.bf16.mxu0 0
    %4485 = vmatpush1.bf16.msra.mxu0 0
    %4486 = vmatprep.subr.bf16.mxu0 0
    %4487 = vmatpush1.bf16.msra.mxu0 0
    %4488 = vmatprep.subr.bf16.mxu0 0
    %4489 = vmatpush1.bf16.msra.mxu0 0
    %4490 = vmatprep.mubr.bf16.mxu0 0
    %4491 = vmatmul.mubr.bf16.gmra.mrb[0].mxu0 %v4415
    %v4492 = vpop.f32.mrb[0].mxu0
    %v4493 = vadd.f32 %v4378, %v4492
    %v4494 = vpop.f32.mrb[0].mxu0
    %v4495 = vpop.f32.mrb[0].mxu0
    %v4496 = vpop.f32.mrb[0].mxu0
    %4497 = vdwg.mxu0
    %v4498 = vld [vmem:[#allocation2] sm:$0xff]
    %v4499 = vld [vmem:[#allocation2 + $0x8] sm:$0xf]
    %v4500 = vld [vmem:[#allocation2 + $0xc] sm:$0xff]
    %v4501 = vld [vmem:[#allocation2 + $0x14] sm:$0xf]
    %v4502 = vld [vmem:[#allocation2 + $0x18] sm:$0xff]
    %v4503 = vld [vmem:[#allocation2 + $0x20] sm:$0xf]
    %v4504 = vld [vmem:[#allocation2 + $0x24] sm:$0xff]
    %v4505 = vld [vmem:[#allocation2 + $0x2c] sm:$0xf]
    %v4514 = vunpack.c.l.b16 %v4498
    %v4515 = vunpack.c.h.b16 %v4498
    %v4516 = vunpack.c.l.b16 %v4499
    %v4517 = vunpack.c.l.b16 %v4500
    %v4518 = vunpack.c.h.b16 %v4500
    %v4519 = vunpack.c.l.b16 %v4501
    %v4520 = vunpack.c.l.b16 %v4502
    %v4521 = vunpack.c.h.b16 %v4502
    %v4522 = vunpack.c.l.b16 %v4503
    %v4523 = vunpack.c.l.b16 %v4504
    %v4524 = vunpack.c.h.b16 %v4504
    %v4525 = vunpack.c.l.b16 %v4505
    %v4526 = vpack.c.b16 %v4517, %v4514
    %v4527 = vpack.c.b16 %v4518, %v4515
    %v4528 = vpack.c.b16 %v4519, %v4516
    %v4529 = vpack.c.b16 %v4523, %v4520
    %v4530 = vpack.c.b16 %v4524, %v4521
    %v4531 = vpack.c.b16 %v4525, %v4522
    %4538 = vmatprep.subr.bf16.mxu0 %v4527
    %4539 = vmatpush1.bf16.msra.mxu0 %v4526
    %4540 = vmatprep.subr.bf16.mxu0 %v4530
    %4541 = vmatpush1.bf16.msra.mxu0 %v4529
    %4542 = vmatprep.subr.bf16.mxu0 0
    %4543 = vmatpush1.bf16.msra.mxu0 0
    %4544 = vmatprep.subr.bf16.mxu0 0
    %4545 = vmatpush1.bf16.msra.mxu0 0
    %4546 = vmatprep.subr.bf16.mxu0 0
    %4547 = vmatpush1.bf16.msra.mxu0 0
    %4548 = vmatprep.subr.bf16.mxu0 0
    %4549 = vmatpush1.bf16.msra.mxu0 0
    %4550 = vmatprep.subr.bf16.mxu0 0
    %4551 = vmatpush1.bf16.msra.mxu0 0
    %4552 = vmatprep.subr.bf16.mxu0 0
    %4553 = vmatpush1.bf16.msra.mxu0 0
    %4554 = vmatprep.subr.bf16.mxu0 0
    %4555 = vmatpush1.bf16.msra.mxu0 0
    %4556 = vmatprep.subr.bf16.mxu0 0
    %4557 = vmatpush1.bf16.msra.mxu0 0
    %4558 = vmatprep.subr.bf16.mxu0 0
    %4559 = vmatpush1.bf16.msra.mxu0 0
    %4560 = vmatprep.subr.bf16.mxu0 0
    %4561 = vmatpush1.bf16.msra.mxu0 0
    %4562 = vmatprep.subr.bf16.mxu0 0
    %4563 = vmatpush1.bf16.msra.mxu0 0
    %4564 = vmatprep.subr.bf16.mxu0 0
    %4565 = vmatpush1.bf16.msra.mxu0 0
    %4566 = vmatprep.subr.bf16.mxu0 0
    %4567 = vmatpush1.bf16.msra.mxu0 0
    %4568 = vmatprep.subr.bf16.mxu0 0
    %4569 = vmatpush1.bf16.msra.mxu0 0
    %4570 = vmatprep.mubr.bf16.mxu0 0
    %4571 = vmatmul.mubr.bf16.gmra.mrb[0].mxu0 %v4084
    %v4572 = vpop.f32.mrb[0].mxu0
    %v4573 = vadd.f32 0.0, %v4572
    %v4574 = vpop.f32.mrb[0].mxu0
    %v4575 = vadd.f32 0.0, %v4574
    %v4576 = vpop.f32.mrb[0].mxu0
    %v4577 = vpop.f32.mrb[0].mxu0
    %4578 = vdwg.mxu0
    %4579 = vmatprep.subr.bf16.mxu0 0
    %4580 = vmatpush1.bf16.msra.mxu0 %v4528
    %4581 = vmatprep.subr.bf16.mxu0 0
    %4582 = vmatpush1.bf16.msra.mxu0 %v4531
    %4583 = vmatprep.subr.bf16.mxu0 0
    %4584 = vmatpush1.bf16.msra.mxu0 0
    %4585 = vmatprep.subr.bf16.mxu0 0
    %4586 = vmatpush1.bf16.msra.mxu0 0
    %4587 = vmatprep.subr.bf16.mxu0 0
    %4588 = vmatpush1.bf16.msra.mxu0 0
    %4589 = vmatprep.subr.bf16.mxu0 0
    %4590 = vmatpush1.bf16.msra.mxu0 0
    %4591 = vmatprep.subr.bf16.mxu0 0
    %4592 = vmatpush1.bf16.msra.mxu0 0
    %4593 = vmatprep.subr.bf16.mxu0 0
    %4594 = vmatpush1.bf16.msra.mxu0 0
    %4595 = vmatprep.subr.bf16.mxu0 0
    %4596 = vmatpush1.bf16.msra.mxu0 0
    %4597 = vmatprep.subr.bf16.mxu0 0
    %4598 = vmatpush1.bf16.msra.mxu0 0
    %4599 = vmatprep.subr.bf16.mxu0 0
    %4600 = vmatpush1.bf16.msra.mxu0 0
    %4601 = vmatprep.subr.bf16.mxu0 0
    %4602 = vmatpush1.bf16.msra.mxu0 0
    %4603 = vmatprep.subr.bf16.mxu0 0
    %4604 = vmatpush1.bf16.msra.mxu0 0
    %4605 = vmatprep.subr.bf16.mxu0 0
    %4606 = vmatpush1.bf16.msra.mxu0 0
    %4607 = vmatprep.subr.bf16.mxu0 0
    %4608 = vmatpush1.bf16.msra.mxu0 0
    %4609 = vmatprep.subr.bf16.mxu0 0
    %4610 = vmatpush1.bf16.msra.mxu0 0
    %4611 = vmatprep.mubr.bf16.mxu0 0
    %4612 = vmatmul.mubr.bf16.gmra.mrb[0].mxu0 %v4084
    %v4613 = vpop.f32.mrb[0].mxu0
    %v4614 = vadd.f32 0.0, %v4613
    %v4615 = vpop.f32.mrb[0].mxu0
    %v4616 = vpop.f32.mrb[0].mxu0
    %v4617 = vpop.f32.mrb[0].mxu0
    %4618 = vdwg.mxu0
    %v4619 = vadd.f32 %v4452, %v4573
    %v4620 = vxor.u32 %v4619, 2147483648
    %v4621 = vmul.f32 %v4620, 1.442695
    %v4622 = vpow.pop %v4621
    %v4623 = vadd.f32 %v4622, 1.0
    %v4624 = vrcp.pop %v4623
    %v4625 = vmul.f32 1.0, %v4624
    %v4626 = vadd.f32 %v4454, %v4575
    %v4627 = vxor.u32 %v4626, 2147483648
    %v4628 = vmul.f32 %v4627, 1.442695
    %v4629 = vpow.pop %v4628
    %v4630 = vadd.f32 %v4629, 1.0
    %v4631 = vrcp.pop %v4630
    %v4632 = vmul.f32 1.0, %v4631
    %v4633 = vld [vmem:[%s5] sm:$0x1]
    %v4635 = vlaneseq
    %v4636 = vshrl.u32 %v4635, 7
    %v4637 = vsub.s32 0, %v4636
    %v4638 = vrot.slane %v4633, %v4637
    %v4640 = vadd.f32 %v4614, %v4638
    %v4641 = vmul.f32 %v4625, %v4640
    %v4642 = vadd.f32 %v4493, %v4641
    %v4643 = vtanh.pop %v4642
    %v4644 = vsub.f32 1.0, %v4632
    %v4645 = vmul.f32 %v4644, %v4643
    %v4646 = vmul.f32 %v4632, %v4081
    %v4647 = vadd.f32 %v4645, %v4646
    %v4648 = vpack.c.bf16 %v4647, %v4647
    %v4649 = vpack.c.bf16 %v4269, %v4269
    %v4650 = vld [vmem:[%s447] sm:$0xff]
    %v4651 = vld [vmem:[%s447 + $0x8] sm:$0xf]
    %v4652 = vld [vmem:[%s447 + $0xc] sm:$0xff]
    %v4653 = vld [vmem:[%s447 + $0x14] sm:$0xf]
    %v4654 = vld [vmem:[%s447 + $0x18] sm:$0xff]
    %v4655 = vld [vmem:[%s447 + $0x20] sm:$0xf]
    %v4656 = vld [vmem:[%s447 + $0x24] sm:$0xff]
    %v4657 = vld [vmem:[%s447 + $0x2c] sm:$0xf]
    %v4658 = vld [vmem:[%s456] sm:$0x7]
    %v4660 = vlaneseq
    %v4661 = vshrl.u32 %v4660, 7
    %v4662 = vsub.s32 0, %v4661
    %v4663 = vrot.slane %v4658, %v4662
    %v4664 = vlaneseq
    %v4665 = vshrl.u32 %v4664, 7
    %v4666 = vsub.s32 1, %v4665
    %v4667 = vrot.slane %v4658, %v4666
    %v4668 = vlaneseq
    %v4669 = vshrl.u32 %v4668, 7
    %v4670 = vsub.s32 2, %v4669
    %v4671 = vrot.slane %v4658, %v4670
    %v4683 = vunpack.c.l.b16 %v4650
    %v4684 = vunpack.c.h.b16 %v4650
    %v4685 = vunpack.c.l.b16 %v4651
    %v4686 = vunpack.c.l.b16 %v4652
    %v4687 = vunpack.c.h.b16 %v4652
    %v4688 = vunpack.c.l.b16 %v4653
    %v4689 = vunpack.c.l.b16 %v4654
    %v4690 = vunpack.c.h.b16 %v4654
    %v4691 = vunpack.c.l.b16 %v4655
    %v4692 = vunpack.c.l.b16 %v4656
    %v4693 = vunpack.c.h.b16 %v4656
    %v4694 = vunpack.c.l.b16 %v4657
    %v4695 = vpack.c.b16 %v4686, %v4683
    %v4696 = vpack.c.b16 %v4687, %v4684
    %v4697 = vpack.c.b16 %v4688, %v4685
    %v4698 = vpack.c.b16 %v4692, %v4689
    %v4699 = vpack.c.b16 %v4693, %v4690
    %v4700 = vpack.c.b16 %v4694, %v4691
    %v4708 = vsel %vm207, %v4648, 0
    %4710 = vmatprep.subr.bf16.mxu0 %v4696
    %4711 = vmatpush1.bf16.msra.mxu0 %v4695
    %4712 = vmatprep.subr.bf16.mxu0 %v4699
    %4713 = vmatpush1.bf16.msra.mxu0 %v4698
    %4714 = vmatprep.subr.bf16.mxu0 0
    %4715 = vmatpush1.bf16.msra.mxu0 0
    %4716 = vmatprep.subr.bf16.mxu0 0
    %4717 = vmatpush1.bf16.msra.mxu0 0
    %4718 = vmatprep.subr.bf16.mxu0 0
    %4719 = vmatpush1.bf16.msra.mxu0 0
    %4720 = vmatprep.subr.bf16.mxu0 0
    %4721 = vmatpush1.bf16.msra.mxu0 0
    %4722 = vmatprep.subr.bf16.mxu0 0
    %4723 = vmatpush1.bf16.msra.mxu0 0
    %4724 = vmatprep.subr.bf16.mxu0 0
    %4725 = vmatpush1.bf16.msra.mxu0 0
    %4726 = vmatprep.subr.bf16.mxu0 0
    %4727 = vmatpush1.bf16.msra.mxu0 0
    %4728 = vmatprep.subr.bf16.mxu0 0
    %4729 = vmatpush1.bf16.msra.mxu0 0
    %4730 = vmatprep.subr.bf16.mxu0 0
    %4731 = vmatpush1.bf16.msra.mxu0 0
    %4732 = vmatprep.subr.bf16.mxu0 0
    %4733 = vmatpush1.bf16.msra.mxu0 0
    %4734 = vmatprep.subr.bf16.mxu0 0
    %4735 = vmatpush1.bf16.msra.mxu0 0
    %4736 = vmatprep.subr.bf16.mxu0 0
    %4737 = vmatpush1.bf16.msra.mxu0 0
    %4738 = vmatprep.subr.bf16.mxu0 0
    %4739 = vmatpush1.bf16.msra.mxu0 0
    %4740 = vmatprep.subr.bf16.mxu0 0
    %4741 = vmatpush1.bf16.msra.mxu0 0
    %4742 = vmatprep.mubr.bf16.mxu0 0
    %4743 = vmatmul.mubr.bf16.gmra.mrb[0].mxu0 %v4708
    %v4744 = vpop.f32.mrb[0].mxu0
    %v4745 = vadd.f32 %v4663, %v4744
    %v4746 = vpop.f32.mrb[0].mxu0
    %v4747 = vadd.f32 %v4667, %v4746
    %v4748 = vpop.f32.mrb[0].mxu0
    %v4749 = vpop.f32.mrb[0].mxu0
    %4750 = vdwg.mxu0
    %4751 = vmatprep.subr.bf16.mxu0 0
    %4752 = vmatpush1.bf16.msra.mxu0 %v4697
    %4753 = vmatprep.subr.bf16.mxu0 0
    %4754 = vmatpush1.bf16.msra.mxu0 %v4700
    %4755 = vmatprep.subr.bf16.mxu0 0
    %4756 = vmatpush1.bf16.msra.mxu0 0
    %4757 = vmatprep.subr.bf16.mxu0 0
    %4758 = vmatpush1.bf16.msra.mxu0 0
    %4759 = vmatprep.subr.bf16.mxu0 0
    %4760 = vmatpush1.bf16.msra.mxu0 0
    %4761 = vmatprep.subr.bf16.mxu0 0
    %4762 = vmatpush1.bf16.msra.mxu0 0
    %4763 = vmatprep.subr.bf16.mxu0 0
    %4764 = vmatpush1.bf16.msra.mxu0 0
    %4765 = vmatprep.subr.bf16.mxu0 0
    %4766 = vmatpush1.bf16.msra.mxu0 0
    %4767 = vmatprep.subr.bf16.mxu0 0
    %4768 = vmatpush1.bf16.msra.mxu0 0
    %4769 = vmatprep.subr.bf16.mxu0 0
    %4770 = vmatpush1.bf16.msra.mxu0 0
    %4771 = vmatprep.subr.bf16.mxu0 0
    %4772 = vmatpush1.bf16.msra.mxu0 0
    %4773 = vmatprep.subr.bf16.mxu0 0
    %4774 = vmatpush1.bf16.msra.mxu0 0
    %4775 = vmatprep.subr.bf16.mxu0 0
    %4776 = vmatpush1.bf16.msra.mxu0 0
    %4777 = vmatprep.subr.bf16.mxu0 0
    %4778 = vmatpush1.bf16.msra.mxu0 0
    %4779 = vmatprep.subr.bf16.mxu0 0
    %4780 = vmatpush1.bf16.msra.mxu0 0
    %4781 = vmatprep.subr.bf16.mxu0 0
    %4782 = vmatpush1.bf16.msra.mxu0 0
    %4783 = vmatprep.mubr.bf16.mxu0 0
    %4784 = vmatmul.mubr.bf16.gmra.mrb[0].mxu0 %v4708
    %v4785 = vpop.f32.mrb[0].mxu0
    %v4786 = vadd.f32 %v4671, %v4785
    %v4787 = vpop.f32.mrb[0].mxu0
    %v4788 = vpop.f32.mrb[0].mxu0
    %v4789 = vpop.f32.mrb[0].mxu0
    %4790 = vdwg.mxu0
    %v4791 = vld [vmem:[%s590] sm:$0xff]
    %v4792 = vld [vmem:[%s590 + $0x8] sm:$0xf]
    %v4793 = vld [vmem:[%s590 + $0xc] sm:$0xff]
    %v4794 = vld [vmem:[%s590 + $0x14] sm:$0xf]
    %v4795 = vld [vmem:[%s590 + $0x18] sm:$0xff]
    %v4796 = vld [vmem:[%s590 + $0x20] sm:$0xf]
    %v4797 = vld [vmem:[%s590 + $0x24] sm:$0xff]
    %v4798 = vld [vmem:[%s590 + $0x2c] sm:$0xf]
    %v4807 = vunpack.c.l.b16 %v4791
    %v4808 = vunpack.c.h.b16 %v4791
    %v4809 = vunpack.c.l.b16 %v4792
    %v4810 = vunpack.c.l.b16 %v4793
    %v4811 = vunpack.c.h.b16 %v4793
    %v4812 = vunpack.c.l.b16 %v4794
    %v4813 = vunpack.c.l.b16 %v4795
    %v4814 = vunpack.c.h.b16 %v4795
    %v4815 = vunpack.c.l.b16 %v4796
    %v4816 = vunpack.c.l.b16 %v4797
    %v4817 = vunpack.c.h.b16 %v4797
    %v4818 = vunpack.c.l.b16 %v4798
    %v4819 = vpack.c.b16 %v4810, %v4807
    %v4820 = vpack.c.b16 %v4811, %v4808
    %v4821 = vpack.c.b16 %v4812, %v4809
    %v4822 = vpack.c.b16 %v4816, %v4813
    %v4823 = vpack.c.b16 %v4817, %v4814
    %v4824 = vpack.c.b16 %v4818, %v4815
    %v4832 = vsel %vm207, %v4649, 0
    %4834 = vmatprep.subr.bf16.mxu0 %v4820
    %4835 = vmatpush1.bf16.msra.mxu0 %v4819
    %4836 = vmatprep.subr.bf16.mxu0 %v4823
    %4837 = vmatpush1.bf16.msra.mxu0 %v4822
    %4838 = vmatprep.subr.bf16.mxu0 0
    %4839 = vmatpush1.bf16.msra.mxu0 0
    %4840 = vmatprep.subr.bf16.mxu0 0
    %4841 = vmatpush1.bf16.msra.mxu0 0
    %4842 = vmatprep.subr.bf16.mxu0 0
    %4843 = vmatpush1.bf16.msra.mxu0 0
    %4844 = vmatprep.subr.bf16.mxu0 0
    %4845 = vmatpush1.bf16.msra.mxu0 0
    %4846 = vmatprep.subr.bf16.mxu0 0
    %4847 = vmatpush1.bf16.msra.mxu0 0
    %4848 = vmatprep.subr.bf16.mxu0 0
    %4849 = vmatpush1.bf16.msra.mxu0 0
    %4850 = vmatprep.subr.bf16.mxu0 0
    %4851 = vmatpush1.bf16.msra.mxu0 0
    %4852 = vmatprep.subr.bf16.mxu0 0
    %4853 = vmatpush1.bf16.msra.mxu0 0
    %4854 = vmatprep.subr.bf16.mxu0 0
    %4855 = vmatpush1.bf16.msra.mxu0 0
    %4856 = vmatprep.subr.bf16.mxu0 0
    %4857 = vmatpush1.bf16.msra.mxu0 0
    %4858 = vmatprep.subr.bf16.mxu0 0
    %4859 = vmatpush1.bf16.msra.mxu0 0
    %4860 = vmatprep.subr.bf16.mxu0 0
    %4861 = vmatpush1.bf16.msra.mxu0 0
    %4862 = vmatprep.subr.bf16.mxu0 0
    %4863 = vmatpush1.bf16.msra.mxu0 0
    %4864 = vmatprep.subr.bf16.mxu0 0
    %4865 = vmatpush1.bf16.msra.mxu0 0
    %4866 = vmatprep.mubr.bf16.mxu0 0
    %4867 = vmatmul.mubr.bf16.gmra.mrb[0].mxu0 %v4832
    %v4868 = vpop.f32.mrb[0].mxu0
    %v4869 = vadd.f32 0.0, %v4868
    %v4870 = vpop.f32.mrb[0].mxu0
    %v4871 = vadd.f32 0.0, %v4870
    %v4872 = vpop.f32.mrb[0].mxu0
    %v4873 = vpop.f32.mrb[0].mxu0
    %4874 = vdwg.mxu0
    %4875 = vmatprep.subr.bf16.mxu0 0
    %4876 = vmatpush1.bf16.msra.mxu0 %v4821
    %4877 = vmatprep.subr.bf16.mxu0 0
    %4878 = vmatpush1.bf16.msra.mxu0 %v4824
    %4879 = vmatprep.subr.bf16.mxu0 0
    %4880 = vmatpush1.bf16.msra.mxu0 0
    %4881 = vmatprep.subr.bf16.mxu0 0
    %4882 = vmatpush1.bf16.msra.mxu0 0
    %4883 = vmatprep.subr.bf16.mxu0 0
    %4884 = vmatpush1.bf16.msra.mxu0 0
    %4885 = vmatprep.subr.bf16.mxu0 0
    %4886 = vmatpush1.bf16.msra.mxu0 0
    %4887 = vmatprep.subr.bf16.mxu0 0
    %4888 = vmatpush1.bf16.msra.mxu0 0
    %4889 = vmatprep.subr.bf16.mxu0 0
    %4890 = vmatpush1.bf16.msra.mxu0 0
    %4891 = vmatprep.subr.bf16.mxu0 0
    %4892 = vmatpush1.bf16.msra.mxu0 0
    %4893 = vmatprep.subr.bf16.mxu0 0
    %4894 = vmatpush1.bf16.msra.mxu0 0
    %4895 = vmatprep.subr.bf16.mxu0 0
    %4896 = vmatpush1.bf16.msra.mxu0 0
    %4897 = vmatprep.subr.bf16.mxu0 0
    %4898 = vmatpush1.bf16.msra.mxu0 0
    %4899 = vmatprep.subr.bf16.mxu0 0
    %4900 = vmatpush1.bf16.msra.mxu0 0
    %4901 = vmatprep.subr.bf16.mxu0 0
    %4902 = vmatpush1.bf16.msra.mxu0 0
    %4903 = vmatprep.subr.bf16.mxu0 0
    %4904 = vmatpush1.bf16.msra.mxu0 0
    %4905 = vmatprep.subr.bf16.mxu0 0
    %4906 = vmatpush1.bf16.msra.mxu0 0
    %4907 = vmatprep.mubr.bf16.mxu0 0
    %4908 = vmatmul.mubr.bf16.gmra.mrb[0].mxu0 %v4832
    %v4909 = vpop.f32.mrb[0].mxu0
    %v4910 = vadd.f32 0.0, %v4909
    %v4911 = vpop.f32.mrb[0].mxu0
    %v4912 = vpop.f32.mrb[0].mxu0
    %v4913 = vpop.f32.mrb[0].mxu0
    %4914 = vdwg.mxu0
    %v4915 = vadd.f32 %v4745, %v4869
    %v4916 = vxor.u32 %v4915, 2147483648
    %v4917 = vmul.f32 %v4916, 1.442695
    %v4918 = vpow.pop %v4917
    %v4919 = vadd.f32 %v4918, 1.0
    %v4920 = vrcp.pop %v4919
    %v4921 = vmul.f32 1.0, %v4920
    %v4922 = vadd.f32 %v4747, %v4871
    %v4923 = vxor.u32 %v4922, 2147483648
    %v4924 = vmul.f32 %v4923, 1.442695
    %v4925 = vpow.pop %v4924
    %v4926 = vadd.f32 %v4925, 1.0
    %v4927 = vrcp.pop %v4926
    %v4928 = vmul.f32 1.0, %v4927
    %v4929 = vld [vmem:[%s729] sm:$0x1]
    %v4931 = vlaneseq
    %v4932 = vshrl.u32 %v4931, 7
    %v4933 = vsub.s32 0, %v4932
    %v4934 = vrot.slane %v4929, %v4933
    %v4936 = vadd.f32 %v4910, %v4934
    %v4937 = vmul.f32 %v4921, %v4936
    %v4938 = vadd.f32 %v4786, %v4937
    %v4939 = vtanh.pop %v4938
    %v4940 = vsub.f32 1.0, %v4928
    %v4941 = vmul.f32 %v4940, %v4939
    %v4942 = vmul.f32 %v4928, %v4269
    %v4943 = vadd.f32 %v4941, %v4942
    %v4944 = vpack.c.bf16 %v4943, %v4943
    %v4946 = vsel %vm207, %v4944, 0
    %4948 = vmatprep.subr.bf16.mxu0 %v4403
    %4949 = vmatpush1.bf16.msra.mxu0 %v4402
    %4950 = vmatprep.subr.bf16.mxu0 %v4406
    %4951 = vmatpush1.bf16.msra.mxu0 %v4405
    %4952 = vmatprep.subr.bf16.mxu0 0
    %4953 = vmatpush1.bf16.msra.mxu0 0
    %4954 = vmatprep.subr.bf16.mxu0 0
    %4955 = vmatpush1.bf16.msra.mxu0 0
    %4956 = vmatprep.subr.bf16.mxu0 0
    %4957 = vmatpush1.bf16.msra.mxu0 0
    %4958 = vmatprep.subr.bf16.mxu0 0
    %4959 = vmatpush1.bf16.msra.mxu0 0
    %4960 = vmatprep.subr.bf16.mxu0 0
    %4961 = vmatpush1.bf16.msra.mxu0 0
    %4962 = vmatprep.subr.bf16.mxu0 0
    %4963 = vmatpush1.bf16.msra.mxu0 0
    %4964 = vmatprep.subr.bf16.mxu0 0
    %4965 = vmatpush1.bf16.msra.mxu0 0
    %4966 = vmatprep.subr.bf16.mxu0 0
    %4967 = vmatpush1.bf16.msra.mxu0 0
    %4968 = vmatprep.subr.bf16.mxu0 0
    %4969 = vmatpush1.bf16.msra.mxu0 0
    %4970 = vmatprep.subr.bf16.mxu0 0
    %4971 = vmatpush1.bf16.msra.mxu0 0
    %4972 = vmatprep.subr.bf16.mxu0 0
    %4973 = vmatpush1.bf16.msra.mxu0 0
    %4974 = vmatprep.subr.bf16.mxu0 0
    %4975 = vmatpush1.bf16.msra.mxu0 0
    %4976 = vmatprep.subr.bf16.mxu0 0
    %4977 = vmatpush1.bf16.msra.mxu0 0
    %4978 = vmatprep.subr.bf16.mxu0 0
    %4979 = vmatpush1.bf16.msra.mxu0 0
    %4980 = vmatprep.mubr.bf16.mxu0 0
    %4981 = vmatmul.mubr.bf16.gmra.mrb[0].mxu0 %v4946
    %v4982 = vpop.f32.mrb[0].mxu0
    %v4983 = vadd.f32 %v4370, %v4982
    %v4984 = vpop.f32.mrb[0].mxu0
    %v4985 = vadd.f32 %v4374, %v4984
    %v4986 = vpop.f32.mrb[0].mxu0
    %v4987 = vpop.f32.mrb[0].mxu0
    %4988 = vdwg.mxu0
    %4989 = vmatprep.subr.bf16.mxu0 0
    %4990 = vmatpush1.bf16.msra.mxu0 %v4404
    %4991 = vmatprep.subr.bf16.mxu0 0
    %4992 = vmatpush1.bf16.msra.mxu0 %v4407
    %4993 = vmatprep.subr.bf16.mxu0 0
    %4994 = vmatpush1.bf16.msra.mxu0 0
    %4995 = vmatprep.subr.bf16.mxu0 0
    %4996 = vmatpush1.bf16.msra.mxu0 0
    %4997 = vmatprep.subr.bf16.mxu0 0
    %4998 = vmatpush1.bf16.msra.mxu0 0
    %4999 = vmatprep.subr.bf16.mxu0 0
    %5000 = vmatpush1.bf16.msra.mxu0 0
    %5001 = vmatprep.subr.bf16.mxu0 0
    %5002 = vmatpush1.bf16.msra.mxu0 0
    %5003 = vmatprep.subr.bf16.mxu0 0
    %5004 = vmatpush1.bf16.msra.mxu0 0
    %5005 = vmatprep.subr.bf16.mxu0 0
    %5006 = vmatpush1.bf16.msra.mxu0 0
    %5007 = vmatprep.subr.bf16.mxu0 0
    %5008 = vmatpush1.bf16.msra.mxu0 0
    %5009 = vmatprep.subr.bf16.mxu0 0
    %5010 = vmatpush1.bf16.msra.mxu0 0
    %5011 = vmatprep.subr.bf16.mxu0 0
    %5012 = vmatpush1.bf16.msra.mxu0 0
    %5013 = vmatprep.subr.bf16.mxu0 0
    %5014 = vmatpush1.bf16.msra.mxu0 0
    %5015 = vmatprep.subr.bf16.mxu0 0
    %5016 = vmatpush1.bf16.msra.mxu0 0
    %5017 = vmatprep.subr.bf16.mxu0 0
    %5018 = vmatpush1.bf16.msra.mxu0 0
    %5019 = vmatprep.subr.bf16.mxu0 0
    %5020 = vmatpush1.bf16.msra.mxu0 0
    %5021 = vmatprep.mubr.bf16.mxu0 0
    %5022 = vmatmul.mubr.bf16.gmra.mrb[0].mxu0 %v4946
    %v5023 = vpop.f32.mrb[0].mxu0
    %v5024 = vadd.f32 %v4378, %v5023
    %v5025 = vpop.f32.mrb[0].mxu0
    %v5026 = vpop.f32.mrb[0].mxu0
    %v5027 = vpop.f32.mrb[0].mxu0
    %5028 = vdwg.mxu0
    %5029 = vmatprep.subr.bf16.mxu0 %v4527
    %5030 = vmatpush1.bf16.msra.mxu0 %v4526
    %5031 = vmatprep.subr.bf16.mxu0 %v4530
    %5032 = vmatpush1.bf16.msra.mxu0 %v4529
    %5033 = vmatprep.subr.bf16.mxu0 0
    %5034 = vmatpush1.bf16.msra.mxu0 0
    %5035 = vmatprep.subr.bf16.mxu0 0
    %5036 = vmatpush1.bf16.msra.mxu0 0
    %5037 = vmatprep.subr.bf16.mxu0 0
    %5038 = vmatpush1.bf16.msra.mxu0 0
    %5039 = vmatprep.subr.bf16.mxu0 0
    %5040 = vmatpush1.bf16.msra.mxu0 0
    %5041 = vmatprep.subr.bf16.mxu0 0
    %5042 = vmatpush1.bf16.msra.mxu0 0
    %5043 = vmatprep.subr.bf16.mxu0 0
    %5044 = vmatpush1.bf16.msra.mxu0 0
    %5045 = vmatprep.subr.bf16.mxu0 0
    %5046 = vmatpush1.bf16.msra.mxu0 0
    %5047 = vmatprep.subr.bf16.mxu0 0
    %5048 = vmatpush1.bf16.msra.mxu0 0
    %5049 = vmatprep.subr.bf16.mxu0 0
    %5050 = vmatpush1.bf16.msra.mxu0 0
    %5051 = vmatprep.subr.bf16.mxu0 0
    %5052 = vmatpush1.bf16.msra.mxu0 0
    %5053 = vmatprep.subr.bf16.mxu0 0
    %5054 = vmatpush1.bf16.msra.mxu0 0
    %5055 = vmatprep.subr.bf16.mxu0 0
    %5056 = vmatpush1.bf16.msra.mxu0 0
    %5057 = vmatprep.subr.bf16.mxu0 0
    %5058 = vmatpush1.bf16.msra.mxu0 0
    %5059 = vmatprep.subr.bf16.mxu0 0
    %5060 = vmatpush1.bf16.msra.mxu0 0
    %5061 = vmatprep.mubr.bf16.mxu0 0
    %5062 = vmatmul.mubr.bf16.gmra.mrb[0].mxu0 %v4708
    %v5063 = vpop.f32.mrb[0].mxu0
    %v5064 = vadd.f32 0.0, %v5063
    %v5065 = vpop.f32.mrb[0].mxu0
    %v5066 = vadd.f32 0.0, %v5065
    %v5067 = vpop.f32.mrb[0].mxu0
    %v5068 = vpop.f32.mrb[0].mxu0
    %5069 = vdwg.mxu0
    %5070 = vmatprep.subr.bf16.mxu0 0
    %5071 = vmatpush1.bf16.msra.mxu0 %v4528
    %5072 = vmatprep.subr.bf16.mxu0 0
    %5073 = vmatpush1.bf16.msra.mxu0 %v4531
    %5074 = vmatprep.subr.bf16.mxu0 0
    %5075 = vmatpush1.bf16.msra.mxu0 0
    %5076 = vmatprep.subr.bf16.mxu0 0
    %5077 = vmatpush1.bf16.msra.mxu0 0
    %5078 = vmatprep.subr.bf16.mxu0 0
    %5079 = vmatpush1.bf16.msra.mxu0 0
    %5080 = vmatprep.subr.bf16.mxu0 0
    %5081 = vmatpush1.bf16.msra.mxu0 0
    %5082 = vmatprep.subr.bf16.mxu0 0
    %5083 = vmatpush1.bf16.msra.mxu0 0
    %5084 = vmatprep.subr.bf16.mxu0 0
    %5085 = vmatpush1.bf16.msra.mxu0 0
    %5086 = vmatprep.subr.bf16.mxu0 0
    %5087 = vmatpush1.bf16.msra.mxu0 0
    %5088 = vmatprep.subr.bf16.mxu0 0
    %5089 = vmatpush1.bf16.msra.mxu0 0
    %5090 = vmatprep.subr.bf16.mxu0 0
    %5091 = vmatpush1.bf16.msra.mxu0 0
    %5092 = vmatprep.subr.bf16.mxu0 0
    %5093 = vmatpush1.bf16.msra.mxu0 0
    %5094 = vmatprep.subr.bf16.mxu0 0
    %5095 = vmatpush1.bf16.msra.mxu0 0
    %5096 = vmatprep.subr.bf16.mxu0 0
    %5097 = vmatpush1.bf16.msra.mxu0 0
    %5098 = vmatprep.subr.bf16.mxu0 0
    %5099 = vmatpush1.bf16.msra.mxu0 0
    %5100 = vmatprep.subr.bf16.mxu0 0
    %5101 = vmatpush1.bf16.msra.mxu0 0
    %5102 = vmatprep.mubr.bf16.mxu0 0
    %5103 = vmatmul.mubr.bf16.gmra.mrb[0].mxu0 %v4708
    %v5104 = vpop.f32.mrb[0].mxu0
    %v5105 = vadd.f32 0.0, %v5104
    %v5106 = vpop.f32.mrb[0].mxu0
    %v5107 = vpop.f32.mrb[0].mxu0
    %v5108 = vpop.f32.mrb[0].mxu0
    %5109 = vdwg.mxu0
    %v5110 = vadd.f32 %v4983, %v5064
    %v5111 = vxor.u32 %v5110, 2147483648
    %v5112 = vmul.f32 %v5111, 1.442695
    %v5113 = vpow.pop %v5112
    %v5114 = vadd.f32 %v5113, 1.0
    %v5115 = vrcp.pop %v5114
    %v5116 = vmul.f32 1.0, %v5115
    %v5117 = vadd.f32 %v4985, %v5066
    %v5118 = vxor.u32 %v5117, 2147483648
    %v5119 = vmul.f32 %v5118, 1.442695
    %v5120 = vpow.pop %v5119
    %v5121 = vadd.f32 %v5120, 1.0
    %v5122 = vrcp.pop %v5121
    %v5123 = vmul.f32 1.0, %v5122
    %v5124 = vadd.f32 %v5105, %v4638
    %v5125 = vmul.f32 %v5116, %v5124
    %v5126 = vadd.f32 %v5024, %v5125
    %v5127 = vtanh.pop %v5126
    %v5128 = vsub.f32 1.0, %v5123
    %v5129 = vmul.f32 %v5128, %v5127
    %v5130 = vmul.f32 %v5123, %v4647
    %v5131 = vadd.f32 %v5129, %v5130
    %v5132 = vpack.c.bf16 %v5131, %v5131
    %v5134 = vsel %vm207, %v5132, 0
    %5136 = vmatprep.subr.bf16.mxu0 %v4696
    %5137 = vmatpush1.bf16.msra.mxu0 %v4695
    %5138 = vmatprep.subr.bf16.mxu0 %v4699
    %5139 = vmatpush1.bf16.msra.mxu0 %v4698
    %5140 = vmatprep.subr.bf16.mxu0 0
    %5141 = vmatpush1.bf16.msra.mxu0 0
    %5142 = vmatprep.subr.bf16.mxu0 0
    %5143 = vmatpush1.bf16.msra.mxu0 0
    %5144 = vmatprep.subr.bf16.mxu0 0
    %5145 = vmatpush1.bf16.msra.mxu0 0
    %5146 = vmatprep.subr.bf16.mxu0 0
    %5147 = vmatpush1.bf16.msra.mxu0 0
    %5148 = vmatprep.subr.bf16.mxu0 0
    %5149 = vmatpush1.bf16.msra.mxu0 0
    %5150 = vmatprep.subr.bf16.mxu0 0
    %5151 = vmatpush1.bf16.msra.mxu0 0
    %5152 = vmatprep.subr.bf16.mxu0 0
    %5153 = vmatpush1.bf16.msra.mxu0 0
    %5154 = vmatprep.subr.bf16.mxu0 0
    %5155 = vmatpush1.bf16.msra.mxu0 0
    %5156 = vmatprep.subr.bf16.mxu0 0
    %5157 = vmatpush1.bf16.msra.mxu0 0
    %5158 = vmatprep.subr.bf16.mxu0 0
    %5159 = vmatpush1.bf16.msra.mxu0 0
    %5160 = vmatprep.subr.bf16.mxu0 0
    %5161 = vmatpush1.bf16.msra.mxu0 0
    %5162 = vmatprep.subr.bf16.mxu0 0
    %5163 = vmatpush1.bf16.msra.mxu0 0
    %5164 = vmatprep.subr.bf16.mxu0 0
    %5165 = vmatpush1.bf16.msra.mxu0 0
    %5166 = vmatprep.subr.bf16.mxu0 0
    %5167 = vmatpush1.bf16.msra.mxu0 0
    %5168 = vmatprep.mubr.bf16.mxu0 0
    %5169 = vmatmul.mubr.bf16.gmra.mrb[0].mxu0 %v5134
    %v5170 = vpop.f32.mrb[0].mxu0
    %v5171 = vadd.f32 %v4663, %v5170
    %v5172 = vpop.f32.mrb[0].mxu0
    %v5173 = vadd.f32 %v4667, %v5172
    %v5174 = vpop.f32.mrb[0].mxu0
    %v5175 = vpop.f32.mrb[0].mxu0
    %5176 = vdwg.mxu0
    %5177 = vmatprep.subr.bf16.mxu0 0
    %5178 = vmatpush1.bf16.msra.mxu0 %v4697
    %5179 = vmatprep.subr.bf16.mxu0 0
    %5180 = vmatpush1.bf16.msra.mxu0 %v4700
    %5181 = vmatprep.subr.bf16.mxu0 0
    %5182 = vmatpush1.bf16.msra.mxu0 0
    %5183 = vmatprep.subr.bf16.mxu0 0
    %5184 = vmatpush1.bf16.msra.mxu0 0
    %5185 = vmatprep.subr.bf16.mxu0 0
    %5186 = vmatpush1.bf16.msra.mxu0 0
    %5187 = vmatprep.subr.bf16.mxu0 0
    %5188 = vmatpush1.bf16.msra.mxu0 0
    %5189 = vmatprep.subr.bf16.mxu0 0
    %5190 = vmatpush1.bf16.msra.mxu0 0
    %5191 = vmatprep.subr.bf16.mxu0 0
    %5192 = vmatpush1.bf16.msra.mxu0 0
    %5193 = vmatprep.subr.bf16.mxu0 0
    %5194 = vmatpush1.bf16.msra.mxu0 0
    %5195 = vmatprep.subr.bf16.mxu0 0
    %5196 = vmatpush1.bf16.msra.mxu0 0
    %5197 = vmatprep.subr.bf16.mxu0 0
    %5198 = vmatpush1.bf16.msra.mxu0 0
    %5199 = vmatprep.subr.bf16.mxu0 0
    %5200 = vmatpush1.bf16.msra.mxu0 0
    %5201 = vmatprep.subr.bf16.mxu0 0
    %5202 = vmatpush1.bf16.msra.mxu0 0
    %5203 = vmatprep.subr.bf16.mxu0 0
    %5204 = vmatpush1.bf16.msra.mxu0 0
    %5205 = vmatprep.subr.bf16.mxu0 0
    %5206 = vmatpush1.bf16.msra.mxu0 0
    %5207 = vmatprep.subr.bf16.mxu0 0
    %5208 = vmatpush1.bf16.msra.mxu0 0
    %5209 = vmatprep.mubr.bf16.mxu0 0
    %5210 = vmatmul.mubr.bf16.gmra.mrb[0].mxu0 %v5134
    %v5211 = vpop.f32.mrb[0].mxu0
    %v5212 = vadd.f32 %v4671, %v5211
    %v5213 = vpop.f32.mrb[0].mxu0
    %v5214 = vpop.f32.mrb[0].mxu0
    %v5215 = vpop.f32.mrb[0].mxu0
    %5216 = vdwg.mxu0
    %5217 = vmatprep.subr.bf16.mxu0 %v4820
    %5218 = vmatpush1.bf16.msra.mxu0 %v4819
    %5219 = vmatprep.subr.bf16.mxu0 %v4823
    %5220 = vmatpush1.bf16.msra.mxu0 %v4822
    %5221 = vmatprep.subr.bf16.mxu0 0
    %5222 = vmatpush1.bf16.msra.mxu0 0
    %5223 = vmatprep.subr.bf16.mxu0 0
    %5224 = vmatpush1.bf16.msra.mxu0 0
    %5225 = vmatprep.subr.bf16.mxu0 0
    %5226 = vmatpush1.bf16.msra.mxu0 0
    %5227 = vmatprep.subr.bf16.mxu0 0
    %5228 = vmatpush1.bf16.msra.mxu0 0
    %5229 = vmatprep.subr.bf16.mxu0 0
    %5230 = vmatpush1.bf16.msra.mxu0 0
    %5231 = vmatprep.subr.bf16.mxu0 0
    %5232 = vmatpush1.bf16.msra.mxu0 0
    %5233 = vmatprep.subr.bf16.mxu0 0
    %5234 = vmatpush1.bf16.msra.mxu0 0
    %5235 = vmatprep.subr.bf16.mxu0 0
    %5236 = vmatpush1.bf16.msra.mxu0 0
    %5237 = vmatprep.subr.bf16.mxu0 0
    %5238 = vmatpush1.bf16.msra.mxu0 0
    %5239 = vmatprep.subr.bf16.mxu0 0
    %5240 = vmatpush1.bf16.msra.mxu0 0
    %5241 = vmatprep.subr.bf16.mxu0 0
    %5242 = vmatpush1.bf16.msra.mxu0 0
    %5243 = vmatprep.subr.bf16.mxu0 0
    %5244 = vmatpush1.bf16.msra.mxu0 0
    %5245 = vmatprep.subr.bf16.mxu0 0
    %5246 = vmatpush1.bf16.msra.mxu0 0
    %5247 = vmatprep.subr.bf16.mxu0 0
    %5248 = vmatpush1.bf16.msra.mxu0 0
    %5249 = vmatprep.mubr.bf16.mxu0 0
    %5250 = vmatmul.mubr.bf16.gmra.mrb[0].mxu0 %v4946
    %v5251 = vpop.f32.mrb[0].mxu0
    %v5252 = vadd.f32 0.0, %v5251
    %v5253 = vpop.f32.mrb[0].mxu0
    %v5254 = vadd.f32 0.0, %v5253
    %v5255 = vpop.f32.mrb[0].mxu0
    %v5256 = vpop.f32.mrb[0].mxu0
    %5257 = vdwg.mxu0
    %5258 = vmatprep.subr.bf16.mxu0 0
    %5259 = vmatpush1.bf16.msra.mxu0 %v4821
    %5260 = vmatprep.subr.bf16.mxu0 0
    %5261 = vmatpush1.bf16.msra.mxu0 %v4824
    %5262 = vmatprep.subr.bf16.mxu0 0
    %5263 = vmatpush1.bf16.msra.mxu0 0
    %5264 = vmatprep.subr.bf16.mxu0 0
    %5265 = vmatpush1.bf16.msra.mxu0 0
    %5266 = vmatprep.subr.bf16.mxu0 0
    %5267 = vmatpush1.bf16.msra.mxu0 0
    %5268 = vmatprep.subr.bf16.mxu0 0
    %5269 = vmatpush1.bf16.msra.mxu0 0
    %5270 = vmatprep.subr.bf16.mxu0 0
    %5271 = vmatpush1.bf16.msra.mxu0 0
    %5272 = vmatprep.subr.bf16.mxu0 0
    %5273 = vmatpush1.bf16.msra.mxu0 0
    %5274 = vmatprep.subr.bf16.mxu0 0
    %5275 = vmatpush1.bf16.msra.mxu0 0
    %5276 = vmatprep.subr.bf16.mxu0 0
    %5277 = vmatpush1.bf16.msra.mxu0 0
    %5278 = vmatprep.subr.bf16.mxu0 0
    %5279 = vmatpush1.bf16.msra.mxu0 0
    %5280 = vmatprep.subr.bf16.mxu0 0
    %5281 = vmatpush1.bf16.msra.mxu0 0
    %5282 = vmatprep.subr.bf16.mxu0 0
    %5283 = vmatpush1.bf16.msra.mxu0 0
    %5284 = vmatprep.subr.bf16.mxu0 0
    %5285 = vmatpush1.bf16.msra.mxu0 0
    %5286 = vmatprep.subr.bf16.mxu0 0
    %5287 = vmatpush1.bf16.msra.mxu0 0
    %5288 = vmatprep.subr.bf16.mxu0 0
    %5289 = vmatpush1.bf16.msra.mxu0 0
    %5290 = vmatprep.mubr.bf16.mxu0 0
    %5291 = vmatmul.mubr.bf16.gmra.mrb[0].mxu0 %v4946
    %v5292 = vpop.f32.mrb[0].mxu0
    %v5293 = vadd.f32 0.0, %v5292
    %v5294 = vpop.f32.mrb[0].mxu0
    %v5295 = vpop.f32.mrb[0].mxu0
    %v5296 = vpop.f32.mrb[0].mxu0
    %5297 = vdwg.mxu0
    %v5298 = vadd.f32 %v5171, %v5252
    %v5299 = vxor.u32 %v5298, 2147483648
    %v5300 = vmul.f32 %v5299, 1.442695
    %v5301 = vpow.pop %v5300
    %v5302 = vadd.f32 %v5301, 1.0
    %v5303 = vrcp.pop %v5302
    %v5304 = vmul.f32 1.0, %v5303
    %v5305 = vadd.f32 %v5173, %v5254
    %v5306 = vxor.u32 %v5305, 2147483648
    %v5307 = vmul.f32 %v5306, 1.442695
    %v5308 = vpow.pop %v5307
    %v5309 = vadd.f32 %v5308, 1.0
    %v5310 = vrcp.pop %v5309
    %v5311 = vmul.f32 1.0, %v5310
    %v5312 = vadd.f32 %v5293, %v4934
    %v5313 = vmul.f32 %v5304, %v5312
    %v5314 = vadd.f32 %v5212, %v5313
    %v5315 = vtanh.pop %v5314
    %v5316 = vsub.f32 1.0, %v5311
    %v5317 = vmul.f32 %v5316, %v5315
    %v5318 = vmul.f32 %v5311, %v4943
    %v5319 = vadd.f32 %v5317, %v5318
    %s5320 = scalar_lea.vmem [#allocation7], 32
    %5321 = vst [vmem:[%s5320] sm:$0xff] %v5319
    %s5322 = scalar_lea.vmem %s0, 40
    %v5323 = vld [vmem:[%s5322] sm:$0xff]
    %5324 = vset.pattern.permute.xlu0 0
    %5325 = vperm.xlu0 %5324, %v5323
    %v5326 = vpop.permute.xlu0 %5325
    %vm5327 = vcmp.eq.s32.totalorder %v60, %v5326
    %v5328 = vsel %vm5327, 1, 0
    %v5329 = vcvt.s32.f32 %v5328
    %v5330 = vpack.c.bf16 %v5329, %v5329
    %v5331 = vld [vmem:[%s1] sm:$0xf]
    %v5332 = vld [vmem:[%s1 + $0x4] sm:$0xf]
    %v5333 = vld [vmem:[%s1 + $0x8] sm:$0xf]
    %v5334 = vld [vmem:[%s1 + $0xc] sm:$0xf]
    %v5335 = vld [vmem:[%s1 + $0x10] sm:$0xf]
    %v5336 = vld [vmem:[%s1 + $0x14] sm:$0xf]
    %v5337 = vld [vmem:[%s1 + $0x18] sm:$0xf]
    %v5338 = vld [vmem:[%s1 + $0x1c] sm:$0xf]
    %v5347 = vunpack.c.l.b16 %v5331
    %v5348 = vunpack.c.l.b16 %v5332
    %v5349 = vunpack.c.l.b16 %v5333
    %v5350 = vunpack.c.l.b16 %v5334
    %v5351 = vunpack.c.l.b16 %v5335
    %v5352 = vunpack.c.l.b16 %v5336
    %v5353 = vunpack.c.l.b16 %v5337
    %v5354 = vunpack.c.l.b16 %v5338
    %v5355 = vpack.c.b16 %v5348, %v5347
    %v5356 = vpack.c.b16 %v5350, %v5349
    %v5357 = vpack.c.b16 %v5352, %v5351
    %v5358 = vpack.c.b16 %v5354, %v5353
    %v5364 = vsel %vm104, %v5330, 0
    %5366 = vmatprep.subr.bf16.mxu0 0
    %5367 = vmatpush1.bf16.msra.mxu0 %v5355
    %5368 = vmatprep.subr.bf16.mxu0 0
    %5369 = vmatpush1.bf16.msra.mxu0 %v5356
    %5370 = vmatprep.subr.bf16.mxu0 0
    %5371 = vmatpush1.bf16.msra.mxu0 %v5357
    %5372 = vmatprep.subr.bf16.mxu0 0
    %5373 = vmatpush1.bf16.msra.mxu0 %v5358
    %5374 = vmatprep.subr.bf16.mxu0 0
    %5375 = vmatpush1.bf16.msra.mxu0 0
    %5376 = vmatprep.subr.bf16.mxu0 0
    %5377 = vmatpush1.bf16.msra.mxu0 0
    %5378 = vmatprep.subr.bf16.mxu0 0
    %5379 = vmatpush1.bf16.msra.mxu0 0
    %5380 = vmatprep.subr.bf16.mxu0 0
    %5381 = vmatpush1.bf16.msra.mxu0 0
    %5382 = vmatprep.subr.bf16.mxu0 0
    %5383 = vmatpush1.bf16.msra.mxu0 0
    %5384 = vmatprep.subr.bf16.mxu0 0
    %5385 = vmatpush1.bf16.msra.mxu0 0
    %5386 = vmatprep.subr.bf16.mxu0 0
    %5387 = vmatpush1.bf16.msra.mxu0 0
    %5388 = vmatprep.subr.bf16.mxu0 0
    %5389 = vmatpush1.bf16.msra.mxu0 0
    %5390 = vmatprep.subr.bf16.mxu0 0
    %5391 = vmatpush1.bf16.msra.mxu0 0
    %5392 = vmatprep.subr.bf16.mxu0 0
    %5393 = vmatpush1.bf16.msra.mxu0 0
    %5394 = vmatprep.subr.bf16.mxu0 0
    %5395 = vmatpush1.bf16.msra.mxu0 0
    %5396 = vmatprep.subr.bf16.mxu0 0
    %5397 = vmatpush1.bf16.msra.mxu0 0
    %5398 = vmatprep.mubr.bf16.mxu0 0
    %5399 = vmatmul.mubr.bf16.gmra.mrb[0].mxu0 %v5364
    %v5400 = vpop.f32.mrb[0].mxu0
    %v5401 = vadd.f32 0.0, %v5400
    %v5402 = vpop.f32.mrb[0].mxu0
    %v5403 = vpop.f32.mrb[0].mxu0
    %v5404 = vpop.f32.mrb[0].mxu0
    %5405 = vdwg.mxu0
    %v5406 = vpack.c.bf16 %v5401, %v5401
    %v5407 = vld [vmem:[%s2] sm:$0xff]
    %v5408 = vld [vmem:[%s2 + $0x8] sm:$0xf]
    %v5409 = vld [vmem:[%s2 + $0xc] sm:$0xff]
    %v5410 = vld [vmem:[%s2 + $0x14] sm:$0xf]
    %v5411 = vld [vmem:[%s2 + $0x18] sm:$0xff]
    %v5412 = vld [vmem:[%s2 + $0x20] sm:$0xf]
    %v5413 = vld [vmem:[%s2 + $0x24] sm:$0xff]
    %v5414 = vld [vmem:[%s2 + $0x2c] sm:$0xf]
    %v5415 = vld [vmem:[%s4] sm:$0x7]
    %v5417 = vlaneseq
    %v5418 = vshrl.u32 %v5417, 7
    %v5419 = vsub.s32 0, %v5418
    %v5420 = vrot.slane %v5415, %v5419
    %v5421 = vlaneseq
    %v5422 = vshrl.u32 %v5421, 7
    %v5423 = vsub.s32 1, %v5422
    %v5424 = vrot.slane %v5415, %v5423
    %v5425 = vlaneseq
    %v5426 = vshrl.u32 %v5425, 7
    %v5427 = vsub.s32 2, %v5426
    %v5428 = vrot.slane %v5415, %v5427
    %v5440 = vunpack.c.l.b16 %v5407
    %v5441 = vunpack.c.h.b16 %v5407
    %v5442 = vunpack.c.l.b16 %v5408
    %v5443 = vunpack.c.l.b16 %v5409
    %v5444 = vunpack.c.h.b16 %v5409
    %v5445 = vunpack.c.l.b16 %v5410
    %v5446 = vunpack.c.l.b16 %v5411
    %v5447 = vunpack.c.h.b16 %v5411
    %v5448 = vunpack.c.l.b16 %v5412
    %v5449 = vunpack.c.l.b16 %v5413
    %v5450 = vunpack.c.h.b16 %v5413
    %v5451 = vunpack.c.l.b16 %v5414
    %v5452 = vpack.c.b16 %v5443, %v5440
    %v5453 = vpack.c.b16 %v5444, %v5441
    %v5454 = vpack.c.b16 %v5445, %v5442
    %v5455 = vpack.c.b16 %v5449, %v5446
    %v5456 = vpack.c.b16 %v5450, %v5447
    %v5457 = vpack.c.b16 %v5451, %v5448
    %v5465 = vsel %vm207, %v5406, 0
    %5467 = vmatprep.subr.bf16.mxu0 %v5453
    %5468 = vmatpush1.bf16.msra.mxu0 %v5452
    %5469 = vmatprep.subr.bf16.mxu0 %v5456
    %5470 = vmatpush1.bf16.msra.mxu0 %v5455
    %5471 = vmatprep.subr.bf16.mxu0 0
    %5472 = vmatpush1.bf16.msra.mxu0 0
    %5473 = vmatprep.subr.bf16.mxu0 0
    %5474 = vmatpush1.bf16.msra.mxu0 0
    %5475 = vmatprep.subr.bf16.mxu0 0
    %5476 = vmatpush1.bf16.msra.mxu0 0
    %5477 = vmatprep.subr.bf16.mxu0 0
    %5478 = vmatpush1.bf16.msra.mxu0 0
    %5479 = vmatprep.subr.bf16.mxu0 0
    %5480 = vmatpush1.bf16.msra.mxu0 0
    %5481 = vmatprep.subr.bf16.mxu0 0
    %5482 = vmatpush1.bf16.msra.mxu0 0
    %5483 = vmatprep.subr.bf16.mxu0 0
    %5484 = vmatpush1.bf16.msra.mxu0 0
    %5485 = vmatprep.subr.bf16.mxu0 0
    %5486 = vmatpush1.bf16.msra.mxu0 0
    %5487 = vmatprep.subr.bf16.mxu0 0
    %5488 = vmatpush1.bf16.msra.mxu0 0
    %5489 = vmatprep.subr.bf16.mxu0 0
    %5490 = vmatpush1.bf16.msra.mxu0 0
    %5491 = vmatprep.subr.bf16.mxu0 0
    %5492 = vmatpush1.bf16.msra.mxu0 0
    %5493 = vmatprep.subr.bf16.mxu0 0
    %5494 = vmatpush1.bf16.msra.mxu0 0
    %5495 = vmatprep.subr.bf16.mxu0 0
    %5496 = vmatpush1.bf16.msra.mxu0 0
    %5497 = vmatprep.subr.bf16.mxu0 0
    %5498 = vmatpush1.bf16.msra.mxu0 0
    %5499 = vmatprep.mubr.bf16.mxu0 0
    %5500 = vmatmul.mubr.bf16.gmra.mrb[0].mxu0 %v5465
    %v5501 = vpop.f32.mrb[0].mxu0
    %v5502 = vadd.f32 %v5420, %v5501
    %v5503 = vpop.f32.mrb[0].mxu0
    %v5504 = vadd.f32 %v5424, %v5503
    %v5505 = vpop.f32.mrb[0].mxu0
    %v5506 = vpop.f32.mrb[0].mxu0
    %5507 = vdwg.mxu0
    %5508 = vmatprep.subr.bf16.mxu0 0
    %5509 = vmatpush1.bf16.msra.mxu0 %v5454
    %5510 = vmatprep.subr.bf16.mxu0 0
    %5511 = vmatpush1.bf16.msra.mxu0 %v5457
    %5512 = vmatprep.subr.bf16.mxu0 0
    %5513 = vmatpush1.bf16.msra.mxu0 0
    %5514 = vmatprep.subr.bf16.mxu0 0
    %5515 = vmatpush1.bf16.msra.mxu0 0
    %5516 = vmatprep.subr.bf16.mxu0 0
    %5517 = vmatpush1.bf16.msra.mxu0 0
    %5518 = vmatprep.subr.bf16.mxu0 0
    %5519 = vmatpush1.bf16.msra.mxu0 0
    %5520 = vmatprep.subr.bf16.mxu0 0
    %5521 = vmatpush1.bf16.msra.mxu0 0
    %5522 = vmatprep.subr.bf16.mxu0 0
    %5523 = vmatpush1.bf16.msra.mxu0 0
    %5524 = vmatprep.subr.bf16.mxu0 0
    %5525 = vmatpush1.bf16.msra.mxu0 0
    %5526 = vmatprep.subr.bf16.mxu0 0
    %5527 = vmatpush1.bf16.msra.mxu0 0
    %5528 = vmatprep.subr.bf16.mxu0 0
    %5529 = vmatpush1.bf16.msra.mxu0 0
    %5530 = vmatprep.subr.bf16.mxu0 0
    %5531 = vmatpush1.bf16.msra.mxu0 0
    %5532 = vmatprep.subr.bf16.mxu0 0
    %5533 = vmatpush1.bf16.msra.mxu0 0
    %5534 = vmatprep.subr.bf16.mxu0 0
    %5535 = vmatpush1.bf16.msra.mxu0 0
    %5536 = vmatprep.subr.bf16.mxu0 0
    %5537 = vmatpush1.bf16.msra.mxu0 0
    %5538 = vmatprep.subr.bf16.mxu0 0
    %5539 = vmatpush1.bf16.msra.mxu0 0
    %5540 = vmatprep.mubr.bf16.mxu0 0
    %5541 = vmatmul.mubr.bf16.gmra.mrb[0].mxu0 %v5465
    %v5542 = vpop.f32.mrb[0].mxu0
    %v5543 = vadd.f32 %v5428, %v5542
    %v5544 = vpop.f32.mrb[0].mxu0
    %v5545 = vpop.f32.mrb[0].mxu0
    %v5546 = vpop.f32.mrb[0].mxu0
    %5547 = vdwg.mxu0
    %v5548 = vld [vmem:[#allocation2] sm:$0xff]
    %v5549 = vld [vmem:[#allocation2 + $0x8] sm:$0xf]
    %v5550 = vld [vmem:[#allocation2 + $0xc] sm:$0xff]
    %v5551 = vld [vmem:[#allocation2 + $0x14] sm:$0xf]
    %v5552 = vld [vmem:[#allocation2 + $0x18] sm:$0xff]
    %v5553 = vld [vmem:[#allocation2 + $0x20] sm:$0xf]
    %v5554 = vld [vmem:[#allocation2 + $0x24] sm:$0xff]
    %v5555 = vld [vmem:[#allocation2 + $0x2c] sm:$0xf]
    %v5564 = vunpack.c.l.b16 %v5548
    %v5565 = vunpack.c.h.b16 %v5548
    %v5566 = vunpack.c.l.b16 %v5549
    %v5567 = vunpack.c.l.b16 %v5550
    %v5568 = vunpack.c.h.b16 %v5550
    %v5569 = vunpack.c.l.b16 %v5551
    %v5570 = vunpack.c.l.b16 %v5552
    %v5571 = vunpack.c.h.b16 %v5552
    %v5572 = vunpack.c.l.b16 %v5553
    %v5573 = vunpack.c.l.b16 %v5554
    %v5574 = vunpack.c.h.b16 %v5554
    %v5575 = vunpack.c.l.b16 %v5555
    %v5576 = vpack.c.b16 %v5567, %v5564
    %v5577 = vpack.c.b16 %v5568, %v5565
    %v5578 = vpack.c.b16 %v5569, %v5566
    %v5579 = vpack.c.b16 %v5573, %v5570
    %v5580 = vpack.c.b16 %v5574, %v5571
    %v5581 = vpack.c.b16 %v5575, %v5572
    %5588 = vmatprep.subr.bf16.mxu0 %v5577
    %5589 = vmatpush1.bf16.msra.mxu0 %v5576
    %5590 = vmatprep.subr.bf16.mxu0 %v5580
    %5591 = vmatpush1.bf16.msra.mxu0 %v5579
    %5592 = vmatprep.subr.bf16.mxu0 0
    %5593 = vmatpush1.bf16.msra.mxu0 0
    %5594 = vmatprep.subr.bf16.mxu0 0
    %5595 = vmatpush1.bf16.msra.mxu0 0
    %5596 = vmatprep.subr.bf16.mxu0 0
    %5597 = vmatpush1.bf16.msra.mxu0 0
    %5598 = vmatprep.subr.bf16.mxu0 0
    %5599 = vmatpush1.bf16.msra.mxu0 0
    %5600 = vmatprep.subr.bf16.mxu0 0
    %5601 = vmatpush1.bf16.msra.mxu0 0
    %5602 = vmatprep.subr.bf16.mxu0 0
    %5603 = vmatpush1.bf16.msra.mxu0 0
    %5604 = vmatprep.subr.bf16.mxu0 0
    %5605 = vmatpush1.bf16.msra.mxu0 0
    %5606 = vmatprep.subr.bf16.mxu0 0
    %5607 = vmatpush1.bf16.msra.mxu0 0
    %5608 = vmatprep.subr.bf16.mxu0 0
    %5609 = vmatpush1.bf16.msra.mxu0 0
    %5610 = vmatprep.subr.bf16.mxu0 0
    %5611 = vmatpush1.bf16.msra.mxu0 0
    %5612 = vmatprep.subr.bf16.mxu0 0
    %5613 = vmatpush1.bf16.msra.mxu0 0
    %5614 = vmatprep.subr.bf16.mxu0 0
    %5615 = vmatpush1.bf16.msra.mxu0 0
    %5616 = vmatprep.subr.bf16.mxu0 0
    %5617 = vmatpush1.bf16.msra.mxu0 0
    %5618 = vmatprep.subr.bf16.mxu0 0
    %5619 = vmatpush1.bf16.msra.mxu0 0
    %5620 = vmatprep.mubr.bf16.mxu0 0
    %5621 = vmatmul.mubr.bf16.gmra.mrb[0].mxu0 %v5134
    %v5622 = vpop.f32.mrb[0].mxu0
    %v5623 = vadd.f32 0.0, %v5622
    %v5624 = vpop.f32.mrb[0].mxu0
    %v5625 = vadd.f32 0.0, %v5624
    %v5626 = vpop.f32.mrb[0].mxu0
    %v5627 = vpop.f32.mrb[0].mxu0
    %5628 = vdwg.mxu0
    %5629 = vmatprep.subr.bf16.mxu0 0
    %5630 = vmatpush1.bf16.msra.mxu0 %v5578
    %5631 = vmatprep.subr.bf16.mxu0 0
    %5632 = vmatpush1.bf16.msra.mxu0 %v5581
    %5633 = vmatprep.subr.bf16.mxu0 0
    %5634 = vmatpush1.bf16.msra.mxu0 0
    %5635 = vmatprep.subr.bf16.mxu0 0
    %5636 = vmatpush1.bf16.msra.mxu0 0
    %5637 = vmatprep.subr.bf16.mxu0 0
    %5638 = vmatpush1.bf16.msra.mxu0 0
    %5639 = vmatprep.subr.bf16.mxu0 0
    %5640 = vmatpush1.bf16.msra.mxu0 0
    %5641 = vmatprep.subr.bf16.mxu0 0
    %5642 = vmatpush1.bf16.msra.mxu0 0
    %5643 = vmatprep.subr.bf16.mxu0 0
    %5644 = vmatpush1.bf16.msra.mxu0 0
    %5645 = vmatprep.subr.bf16.mxu0 0
    %5646 = vmatpush1.bf16.msra.mxu0 0
    %5647 = vmatprep.subr.bf16.mxu0 0
    %5648 = vmatpush1.bf16.msra.mxu0 0
    %5649 = vmatprep.subr.bf16.mxu0 0
    %5650 = vmatpush1.bf16.msra.mxu0 0
    %5651 = vmatprep.subr.bf16.mxu0 0
    %5652 = vmatpush1.bf16.msra.mxu0 0
    %5653 = vmatprep.subr.bf16.mxu0 0
    %5654 = vmatpush1.bf16.msra.mxu0 0
    %5655 = vmatprep.subr.bf16.mxu0 0
    %5656 = vmatpush1.bf16.msra.mxu0 0
    %5657 = vmatprep.subr.bf16.mxu0 0
    %5658 = vmatpush1.bf16.msra.mxu0 0
    %5659 = vmatprep.subr.bf16.mxu0 0
    %5660 = vmatpush1.bf16.msra.mxu0 0
    %5661 = vmatprep.mubr.bf16.mxu0 0
    %5662 = vmatmul.mubr.bf16.gmra.mrb[0].mxu0 %v5134
    %v5663 = vpop.f32.mrb[0].mxu0
    %v5664 = vadd.f32 0.0, %v5663
    %v5665 = vpop.f32.mrb[0].mxu0
    %v5666 = vpop.f32.mrb[0].mxu0
    %v5667 = vpop.f32.mrb[0].mxu0
    %5668 = vdwg.mxu0
    %v5669 = vadd.f32 %v5502, %v5623
    %v5670 = vxor.u32 %v5669, 2147483648
    %v5671 = vmul.f32 %v5670, 1.442695
    %v5672 = vpow.pop %v5671
    %v5673 = vadd.f32 %v5672, 1.0
    %v5674 = vrcp.pop %v5673
    %v5675 = vmul.f32 1.0, %v5674
    %v5676 = vadd.f32 %v5504, %v5625
    %v5677 = vxor.u32 %v5676, 2147483648
    %v5678 = vmul.f32 %v5677, 1.442695
    %v5679 = vpow.pop %v5678
    %v5680 = vadd.f32 %v5679, 1.0
    %v5681 = vrcp.pop %v5680
    %v5682 = vmul.f32 1.0, %v5681
    %v5683 = vld [vmem:[%s5] sm:$0x1]
    %v5685 = vlaneseq
    %v5686 = vshrl.u32 %v5685, 7
    %v5687 = vsub.s32 0, %v5686
    %v5688 = vrot.slane %v5683, %v5687
    %v5690 = vadd.f32 %v5664, %v5688
    %v5691 = vmul.f32 %v5675, %v5690
    %v5692 = vadd.f32 %v5543, %v5691
    %v5693 = vtanh.pop %v5692
    %v5694 = vsub.f32 1.0, %v5682
    %v5695 = vmul.f32 %v5694, %v5693
    %v5696 = vmul.f32 %v5682, %v5131
    %v5697 = vadd.f32 %v5695, %v5696
    %v5698 = vpack.c.bf16 %v5697, %v5697
    %v5699 = vpack.c.bf16 %v5319, %v5319
    %v5700 = vld [vmem:[%s447] sm:$0xff]
    %v5701 = vld [vmem:[%s447 + $0x8] sm:$0xf]
    %v5702 = vld [vmem:[%s447 + $0xc] sm:$0xff]
    %v5703 = vld [vmem:[%s447 + $0x14] sm:$0xf]
    %v5704 = vld [vmem:[%s447 + $0x18] sm:$0xff]
    %v5705 = vld [vmem:[%s447 + $0x20] sm:$0xf]
    %v5706 = vld [vmem:[%s447 + $0x24] sm:$0xff]
    %v5707 = vld [vmem:[%s447 + $0x2c] sm:$0xf]
    %v5708 = vld [vmem:[%s456] sm:$0x7]
    %v5710 = vlaneseq
    %v5711 = vshrl.u32 %v5710, 7
    %v5712 = vsub.s32 0, %v5711
    %v5713 = vrot.slane %v5708, %v5712
    %v5714 = vlaneseq
    %v5715 = vshrl.u32 %v5714, 7
    %v5716 = vsub.s32 1, %v5715
    %v5717 = vrot.slane %v5708, %v5716
    %v5718 = vlaneseq
    %v5719 = vshrl.u32 %v5718, 7
    %v5720 = vsub.s32 2, %v5719
    %v5721 = vrot.slane %v5708, %v5720
    %v5733 = vunpack.c.l.b16 %v5700
    %v5734 = vunpack.c.h.b16 %v5700
    %v5735 = vunpack.c.l.b16 %v5701
    %v5736 = vunpack.c.l.b16 %v5702
    %v5737 = vunpack.c.h.b16 %v5702
    %v5738 = vunpack.c.l.b16 %v5703
    %v5739 = vunpack.c.l.b16 %v5704
    %v5740 = vunpack.c.h.b16 %v5704
    %v5741 = vunpack.c.l.b16 %v5705
    %v5742 = vunpack.c.l.b16 %v5706
    %v5743 = vunpack.c.h.b16 %v5706
    %v5744 = vunpack.c.l.b16 %v5707
    %v5745 = vpack.c.b16 %v5736, %v5733
    %v5746 = vpack.c.b16 %v5737, %v5734
    %v5747 = vpack.c.b16 %v5738, %v5735
    %v5748 = vpack.c.b16 %v5742, %v5739
    %v5749 = vpack.c.b16 %v5743, %v5740
    %v5750 = vpack.c.b16 %v5744, %v5741
    %v5758 = vsel %vm207, %v5698, 0
    %5760 = vmatprep.subr.bf16.mxu0 %v5746
    %5761 = vmatpush1.bf16.msra.mxu0 %v5745
    %5762 = vmatprep.subr.bf16.mxu0 %v5749
    %5763 = vmatpush1.bf16.msra.mxu0 %v5748
    %5764 = vmatprep.subr.bf16.mxu0 0
    %5765 = vmatpush1.bf16.msra.mxu0 0
    %5766 = vmatprep.subr.bf16.mxu0 0
    %5767 = vmatpush1.bf16.msra.mxu0 0
    %5768 = vmatprep.subr.bf16.mxu0 0
    %5769 = vmatpush1.bf16.msra.mxu0 0
    %5770 = vmatprep.subr.bf16.mxu0 0
    %5771 = vmatpush1.bf16.msra.mxu0 0
    %5772 = vmatprep.subr.bf16.mxu0 0
    %5773 = vmatpush1.bf16.msra.mxu0 0
    %5774 = vmatprep.subr.bf16.mxu0 0
    %5775 = vmatpush1.bf16.msra.mxu0 0
    %5776 = vmatprep.subr.bf16.mxu0 0
    %5777 = vmatpush1.bf16.msra.mxu0 0
    %5778 = vmatprep.subr.bf16.mxu0 0
    %5779 = vmatpush1.bf16.msra.mxu0 0
    %5780 = vmatprep.subr.bf16.mxu0 0
    %5781 = vmatpush1.bf16.msra.mxu0 0
    %5782 = vmatprep.subr.bf16.mxu0 0
    %5783 = vmatpush1.bf16.msra.mxu0 0
    %5784 = vmatprep.subr.bf16.mxu0 0
    %5785 = vmatpush1.bf16.msra.mxu0 0
    %5786 = vmatprep.subr.bf16.mxu0 0
    %5787 = vmatpush1.bf16.msra.mxu0 0
    %5788 = vmatprep.subr.bf16.mxu0 0
    %5789 = vmatpush1.bf16.msra.mxu0 0
    %5790 = vmatprep.subr.bf16.mxu0 0
    %5791 = vmatpush1.bf16.msra.mxu0 0
    %5792 = vmatprep.mubr.bf16.mxu0 0
    %5793 = vmatmul.mubr.bf16.gmra.mrb[0].mxu0 %v5758
    %v5794 = vpop.f32.mrb[0].mxu0
    %v5795 = vadd.f32 %v5713, %v5794
    %v5796 = vpop.f32.mrb[0].mxu0
    %v5797 = vadd.f32 %v5717, %v5796
    %v5798 = vpop.f32.mrb[0].mxu0
    %v5799 = vpop.f32.mrb[0].mxu0
    %5800 = vdwg.mxu0
    %5801 = vmatprep.subr.bf16.mxu0 0
    %5802 = vmatpush1.bf16.msra.mxu0 %v5747
    %5803 = vmatprep.subr.bf16.mxu0 0
    %5804 = vmatpush1.bf16.msra.mxu0 %v5750
    %5805 = vmatprep.subr.bf16.mxu0 0
    %5806 = vmatpush1.bf16.msra.mxu0 0
    %5807 = vmatprep.subr.bf16.mxu0 0
    %5808 = vmatpush1.bf16.msra.mxu0 0
    %5809 = vmatprep.subr.bf16.mxu0 0
    %5810 = vmatpush1.bf16.msra.mxu0 0
    %5811 = vmatprep.subr.bf16.mxu0 0
    %5812 = vmatpush1.bf16.msra.mxu0 0
    %5813 = vmatprep.subr.bf16.mxu0 0
    %5814 = vmatpush1.bf16.msra.mxu0 0
    %5815 = vmatprep.subr.bf16.mxu0 0
    %5816 = vmatpush1.bf16.msra.mxu0 0
    %5817 = vmatprep.subr.bf16.mxu0 0
    %5818 = vmatpush1.bf16.msra.mxu0 0
    %5819 = vmatprep.subr.bf16.mxu0 0
    %5820 = vmatpush1.bf16.msra.mxu0 0
    %5821 = vmatprep.subr.bf16.mxu0 0
    %5822 = vmatpush1.bf16.msra.mxu0 0
    %5823 = vmatprep.subr.bf16.mxu0 0
    %5824 = vmatpush1.bf16.msra.mxu0 0
    %5825 = vmatprep.subr.bf16.mxu0 0
    %5826 = vmatpush1.bf16.msra.mxu0 0
    %5827 = vmatprep.subr.bf16.mxu0 0
    %5828 = vmatpush1.bf16.msra.mxu0 0
    %5829 = vmatprep.subr.bf16.mxu0 0
    %5830 = vmatpush1.bf16.msra.mxu0 0
    %5831 = vmatprep.subr.bf16.mxu0 0
    %5832 = vmatpush1.bf16.msra.mxu0 0
    %5833 = vmatprep.mubr.bf16.mxu0 0
    %5834 = vmatmul.mubr.bf16.gmra.mrb[0].mxu0 %v5758
    %v5835 = vpop.f32.mrb[0].mxu0
    %v5836 = vadd.f32 %v5721, %v5835
    %v5837 = vpop.f32.mrb[0].mxu0
    %v5838 = vpop.f32.mrb[0].mxu0
    %v5839 = vpop.f32.mrb[0].mxu0
    %5840 = vdwg.mxu0
    %v5841 = vld [vmem:[%s590] sm:$0xff]
    %v5842 = vld [vmem:[%s590 + $0x8] sm:$0xf]
    %v5843 = vld [vmem:[%s590 + $0xc] sm:$0xff]
    %v5844 = vld [vmem:[%s590 + $0x14] sm:$0xf]
    %v5845 = vld [vmem:[%s590 + $0x18] sm:$0xff]
    %v5846 = vld [vmem:[%s590 + $0x20] sm:$0xf]
    %v5847 = vld [vmem:[%s590 + $0x24] sm:$0xff]
    %v5848 = vld [vmem:[%s590 + $0x2c] sm:$0xf]
    %v5857 = vunpack.c.l.b16 %v5841
    %v5858 = vunpack.c.h.b16 %v5841
    %v5859 = vunpack.c.l.b16 %v5842
    %v5860 = vunpack.c.l.b16 %v5843
    %v5861 = vunpack.c.h.b16 %v5843
    %v5862 = vunpack.c.l.b16 %v5844
    %v5863 = vunpack.c.l.b16 %v5845
    %v5864 = vunpack.c.h.b16 %v5845
    %v5865 = vunpack.c.l.b16 %v5846
    %v5866 = vunpack.c.l.b16 %v5847
    %v5867 = vunpack.c.h.b16 %v5847
    %v5868 = vunpack.c.l.b16 %v5848
    %v5869 = vpack.c.b16 %v5860, %v5857
    %v5870 = vpack.c.b16 %v5861, %v5858
    %v5871 = vpack.c.b16 %v5862, %v5859
    %v5872 = vpack.c.b16 %v5866, %v5863
    %v5873 = vpack.c.b16 %v5867, %v5864
    %v5874 = vpack.c.b16 %v5868, %v5865
    %v5882 = vsel %vm207, %v5699, 0
    %5884 = vmatprep.subr.bf16.mxu0 %v5870
    %5885 = vmatpush1.bf16.msra.mxu0 %v5869
    %5886 = vmatprep.subr.bf16.mxu0 %v5873
    %5887 = vmatpush1.bf16.msra.mxu0 %v5872
    %5888 = vmatprep.subr.bf16.mxu0 0
    %5889 = vmatpush1.bf16.msra.mxu0 0
    %5890 = vmatprep.subr.bf16.mxu0 0
    %5891 = vmatpush1.bf16.msra.mxu0 0
    %5892 = vmatprep.subr.bf16.mxu0 0
    %5893 = vmatpush1.bf16.msra.mxu0 0
    %5894 = vmatprep.subr.bf16.mxu0 0
    %5895 = vmatpush1.bf16.msra.mxu0 0
    %5896 = vmatprep.subr.bf16.mxu0 0
    %5897 = vmatpush1.bf16.msra.mxu0 0
    %5898 = vmatprep.subr.bf16.mxu0 0
    %5899 = vmatpush1.bf16.msra.mxu0 0
    %5900 = vmatprep.subr.bf16.mxu0 0
    %5901 = vmatpush1.bf16.msra.mxu0 0
    %5902 = vmatprep.subr.bf16.mxu0 0
    %5903 = vmatpush1.bf16.msra.mxu0 0
    %5904 = vmatprep.subr.bf16.mxu0 0
    %5905 = vmatpush1.bf16.msra.mxu0 0
    %5906 = vmatprep.subr.bf16.mxu0 0
    %5907 = vmatpush1.bf16.msra.mxu0 0
    %5908 = vmatprep.subr.bf16.mxu0 0
    %5909 = vmatpush1.bf16.msra.mxu0 0
    %5910 = vmatprep.subr.bf16.mxu0 0
    %5911 = vmatpush1.bf16.msra.mxu0 0
    %5912 = vmatprep.subr.bf16.mxu0 0
    %5913 = vmatpush1.bf16.msra.mxu0 0
    %5914 = vmatprep.subr.bf16.mxu0 0
    %5915 = vmatpush1.bf16.msra.mxu0 0
    %5916 = vmatprep.mubr.bf16.mxu0 0
    %5917 = vmatmul.mubr.bf16.gmra.mrb[0].mxu0 %v5882
    %v5918 = vpop.f32.mrb[0].mxu0
    %v5919 = vadd.f32 0.0, %v5918
    %v5920 = vpop.f32.mrb[0].mxu0
    %v5921 = vadd.f32 0.0, %v5920
    %v5922 = vpop.f32.mrb[0].mxu0
    %v5923 = vpop.f32.mrb[0].mxu0
    %5924 = vdwg.mxu0
    %5925 = vmatprep.subr.bf16.mxu0 0
    %5926 = vmatpush1.bf16.msra.mxu0 %v5871
    %5927 = vmatprep.subr.bf16.mxu0 0
    %5928 = vmatpush1.bf16.msra.mxu0 %v5874
    %5929 = vmatprep.subr.bf16.mxu0 0
    %5930 = vmatpush1.bf16.msra.mxu0 0
    %5931 = vmatprep.subr.bf16.mxu0 0
    %5932 = vmatpush1.bf16.msra.mxu0 0
    %5933 = vmatprep.subr.bf16.mxu0 0
    %5934 = vmatpush1.bf16.msra.mxu0 0
    %5935 = vmatprep.subr.bf16.mxu0 0
    %5936 = vmatpush1.bf16.msra.mxu0 0
    %5937 = vmatprep.subr.bf16.mxu0 0
    %5938 = vmatpush1.bf16.msra.mxu0 0
    %5939 = vmatprep.subr.bf16.mxu0 0
    %5940 = vmatpush1.bf16.msra.mxu0 0
    %5941 = vmatprep.subr.bf16.mxu0 0
    %5942 = vmatpush1.bf16.msra.mxu0 0
    %5943 = vmatprep.subr.bf16.mxu0 0
    %5944 = vmatpush1.bf16.msra.mxu0 0
    %5945 = vmatprep.subr.bf16.mxu0 0
    %5946 = vmatpush1.bf16.msra.mxu0 0
    %5947 = vmatprep.subr.bf16.mxu0 0
    %5948 = vmatpush1.bf16.msra.mxu0 0
    %5949 = vmatprep.subr.bf16.mxu0 0
    %5950 = vmatpush1.bf16.msra.mxu0 0
    %5951 = vmatprep.subr.bf16.mxu0 0
    %5952 = vmatpush1.bf16.msra.mxu0 0
    %5953 = vmatprep.subr.bf16.mxu0 0
    %5954 = vmatpush1.bf16.msra.mxu0 0
    %5955 = vmatprep.subr.bf16.mxu0 0
    %5956 = vmatpush1.bf16.msra.mxu0 0
    %5957 = vmatprep.mubr.bf16.mxu0 0
    %5958 = vmatmul.mubr.bf16.gmra.mrb[0].mxu0 %v5882
    %v5959 = vpop.f32.mrb[0].mxu0
    %v5960 = vadd.f32 0.0, %v5959
    %v5961 = vpop.f32.mrb[0].mxu0
    %v5962 = vpop.f32.mrb[0].mxu0
    %v5963 = vpop.f32.mrb[0].mxu0
    %5964 = vdwg.mxu0
    %v5965 = vadd.f32 %v5795, %v5919
    %v5966 = vxor.u32 %v5965, 2147483648
    %v5967 = vmul.f32 %v5966, 1.442695
    %v5968 = vpow.pop %v5967
    %v5969 = vadd.f32 %v5968, 1.0
    %v5970 = vrcp.pop %v5969
    %v5971 = vmul.f32 1.0, %v5970
    %v5972 = vadd.f32 %v5797, %v5921
    %v5973 = vxor.u32 %v5972, 2147483648
    %v5974 = vmul.f32 %v5973, 1.442695
    %v5975 = vpow.pop %v5974
    %v5976 = vadd.f32 %v5975, 1.0
    %v5977 = vrcp.pop %v5976
    %v5978 = vmul.f32 1.0, %v5977
    %v5979 = vld [vmem:[%s729] sm:$0x1]
    %v5981 = vlaneseq
    %v5982 = vshrl.u32 %v5981, 7
    %v5983 = vsub.s32 0, %v5982
    %v5984 = vrot.slane %v5979, %v5983
    %v5986 = vadd.f32 %v5960, %v5984
    %v5987 = vmul.f32 %v5971, %v5986
    %v5988 = vadd.f32 %v5836, %v5987
    %v5989 = vtanh.pop %v5988
    %v5990 = vsub.f32 1.0, %v5978
    %v5991 = vmul.f32 %v5990, %v5989
    %v5992 = vmul.f32 %v5978, %v5319
    %v5993 = vadd.f32 %v5991, %v5992
    %v5994 = vpack.c.bf16 %v5993, %v5993
    %v5996 = vsel %vm207, %v5994, 0
    %5998 = vmatprep.subr.bf16.mxu0 %v5453
    %5999 = vmatpush1.bf16.msra.mxu0 %v5452
    %6000 = vmatprep.subr.bf16.mxu0 %v5456
    %6001 = vmatpush1.bf16.msra.mxu0 %v5455
    %6002 = vmatprep.subr.bf16.mxu0 0
    %6003 = vmatpush1.bf16.msra.mxu0 0
    %6004 = vmatprep.subr.bf16.mxu0 0
    %6005 = vmatpush1.bf16.msra.mxu0 0
    %6006 = vmatprep.subr.bf16.mxu0 0
    %6007 = vmatpush1.bf16.msra.mxu0 0
    %6008 = vmatprep.subr.bf16.mxu0 0
    %6009 = vmatpush1.bf16.msra.mxu0 0
    %6010 = vmatprep.subr.bf16.mxu0 0
    %6011 = vmatpush1.bf16.msra.mxu0 0
    %6012 = vmatprep.subr.bf16.mxu0 0
    %6013 = vmatpush1.bf16.msra.mxu0 0
    %6014 = vmatprep.subr.bf16.mxu0 0
    %6015 = vmatpush1.bf16.msra.mxu0 0
    %6016 = vmatprep.subr.bf16.mxu0 0
    %6017 = vmatpush1.bf16.msra.mxu0 0
    %6018 = vmatprep.subr.bf16.mxu0 0
    %6019 = vmatpush1.bf16.msra.mxu0 0
    %6020 = vmatprep.subr.bf16.mxu0 0
    %6021 = vmatpush1.bf16.msra.mxu0 0
    %6022 = vmatprep.subr.bf16.mxu0 0
    %6023 = vmatpush1.bf16.msra.mxu0 0
    %6024 = vmatprep.subr.bf16.mxu0 0
    %6025 = vmatpush1.bf16.msra.mxu0 0
    %6026 = vmatprep.subr.bf16.mxu0 0
    %6027 = vmatpush1.bf16.msra.mxu0 0
    %6028 = vmatprep.subr.bf16.mxu0 0
    %6029 = vmatpush1.bf16.msra.mxu0 0
    %6030 = vmatprep.mubr.bf16.mxu0 0
    %6031 = vmatmul.mubr.bf16.gmra.mrb[0].mxu0 %v5996
    %v6032 = vpop.f32.mrb[0].mxu0
    %v6033 = vadd.f32 %v5420, %v6032
    %v6034 = vpop.f32.mrb[0].mxu0
    %v6035 = vadd.f32 %v5424, %v6034
    %v6036 = vpop.f32.mrb[0].mxu0
    %v6037 = vpop.f32.mrb[0].mxu0
    %6038 = vdwg.mxu0
    %6039 = vmatprep.subr.bf16.mxu0 0
    %6040 = vmatpush1.bf16.msra.mxu0 %v5454
    %6041 = vmatprep.subr.bf16.mxu0 0
    %6042 = vmatpush1.bf16.msra.mxu0 %v5457
    %6043 = vmatprep.subr.bf16.mxu0 0
    %6044 = vmatpush1.bf16.msra.mxu0 0
    %6045 = vmatprep.subr.bf16.mxu0 0
    %6046 = vmatpush1.bf16.msra.mxu0 0
    %6047 = vmatprep.subr.bf16.mxu0 0
    %6048 = vmatpush1.bf16.msra.mxu0 0
    %6049 = vmatprep.subr.bf16.mxu0 0
    %6050 = vmatpush1.bf16.msra.mxu0 0
    %6051 = vmatprep.subr.bf16.mxu0 0
    %6052 = vmatpush1.bf16.msra.mxu0 0
    %6053 = vmatprep.subr.bf16.mxu0 0
    %6054 = vmatpush1.bf16.msra.mxu0 0
    %6055 = vmatprep.subr.bf16.mxu0 0
    %6056 = vmatpush1.bf16.msra.mxu0 0
    %6057 = vmatprep.subr.bf16.mxu0 0
    %6058 = vmatpush1.bf16.msra.mxu0 0
    %6059 = vmatprep.subr.bf16.mxu0 0
    %6060 = vmatpush1.bf16.msra.mxu0 0
    %6061 = vmatprep.subr.bf16.mxu0 0
    %6062 = vmatpush1.bf16.msra.mxu0 0
    %6063 = vmatprep.subr.bf16.mxu0 0
    %6064 = vmatpush1.bf16.msra.mxu0 0
    %6065 = vmatprep.subr.bf16.mxu0 0
    %6066 = vmatpush1.bf16.msra.mxu0 0
    %6067 = vmatprep.subr.bf16.mxu0 0
    %6068 = vmatpush1.bf16.msra.mxu0 0
    %6069 = vmatprep.subr.bf16.mxu0 0
    %6070 = vmatpush1.bf16.msra.mxu0 0
    %6071 = vmatprep.mubr.bf16.mxu0 0
    %6072 = vmatmul.mubr.bf16.gmra.mrb[0].mxu0 %v5996
    %v6073 = vpop.f32.mrb[0].mxu0
    %v6074 = vadd.f32 %v5428, %v6073
    %v6075 = vpop.f32.mrb[0].mxu0
    %v6076 = vpop.f32.mrb[0].mxu0
    %v6077 = vpop.f32.mrb[0].mxu0
    %6078 = vdwg.mxu0
    %6079 = vmatprep.subr.bf16.mxu0 %v5577
    %6080 = vmatpush1.bf16.msra.mxu0 %v5576
    %6081 = vmatprep.subr.bf16.mxu0 %v5580
    %6082 = vmatpush1.bf16.msra.mxu0 %v5579
    %6083 = vmatprep.subr.bf16.mxu0 0
    %6084 = vmatpush1.bf16.msra.mxu0 0
    %6085 = vmatprep.subr.bf16.mxu0 0
    %6086 = vmatpush1.bf16.msra.mxu0 0
    %6087 = vmatprep.subr.bf16.mxu0 0
    %6088 = vmatpush1.bf16.msra.mxu0 0
    %6089 = vmatprep.subr.bf16.mxu0 0
    %6090 = vmatpush1.bf16.msra.mxu0 0
    %6091 = vmatprep.subr.bf16.mxu0 0
    %6092 = vmatpush1.bf16.msra.mxu0 0
    %6093 = vmatprep.subr.bf16.mxu0 0
    %6094 = vmatpush1.bf16.msra.mxu0 0
    %6095 = vmatprep.subr.bf16.mxu0 0
    %6096 = vmatpush1.bf16.msra.mxu0 0
    %6097 = vmatprep.subr.bf16.mxu0 0
    %6098 = vmatpush1.bf16.msra.mxu0 0
    %6099 = vmatprep.subr.bf16.mxu0 0
    %6100 = vmatpush1.bf16.msra.mxu0 0
    %6101 = vmatprep.subr.bf16.mxu0 0
    %6102 = vmatpush1.bf16.msra.mxu0 0
    %6103 = vmatprep.subr.bf16.mxu0 0
    %6104 = vmatpush1.bf16.msra.mxu0 0
    %6105 = vmatprep.subr.bf16.mxu0 0
    %6106 = vmatpush1.bf16.msra.mxu0 0
    %6107 = vmatprep.subr.bf16.mxu0 0
    %6108 = vmatpush1.bf16.msra.mxu0 0
    %6109 = vmatprep.subr.bf16.mxu0 0
    %6110 = vmatpush1.bf16.msra.mxu0 0
    %6111 = vmatprep.mubr.bf16.mxu0 0
    %6112 = vmatmul.mubr.bf16.gmra.mrb[0].mxu0 %v5758
    %v6113 = vpop.f32.mrb[0].mxu0
    %v6114 = vadd.f32 0.0, %v6113
    %v6115 = vpop.f32.mrb[0].mxu0
    %v6116 = vadd.f32 0.0, %v6115
    %v6117 = vpop.f32.mrb[0].mxu0
    %v6118 = vpop.f32.mrb[0].mxu0
    %6119 = vdwg.mxu0
    %6120 = vmatprep.subr.bf16.mxu0 0
    %6121 = vmatpush1.bf16.msra.mxu0 %v5578
    %6122 = vmatprep.subr.bf16.mxu0 0
    %6123 = vmatpush1.bf16.msra.mxu0 %v5581
    %6124 = vmatprep.subr.bf16.mxu0 0
    %6125 = vmatpush1.bf16.msra.mxu0 0
    %6126 = vmatprep.subr.bf16.mxu0 0
    %6127 = vmatpush1.bf16.msra.mxu0 0
    %6128 = vmatprep.subr.bf16.mxu0 0
    %6129 = vmatpush1.bf16.msra.mxu0 0
    %6130 = vmatprep.subr.bf16.mxu0 0
    %6131 = vmatpush1.bf16.msra.mxu0 0
    %6132 = vmatprep.subr.bf16.mxu0 0
    %6133 = vmatpush1.bf16.msra.mxu0 0
    %6134 = vmatprep.subr.bf16.mxu0 0
    %6135 = vmatpush1.bf16.msra.mxu0 0
    %6136 = vmatprep.subr.bf16.mxu0 0
    %6137 = vmatpush1.bf16.msra.mxu0 0
    %6138 = vmatprep.subr.bf16.mxu0 0
    %6139 = vmatpush1.bf16.msra.mxu0 0
    %6140 = vmatprep.subr.bf16.mxu0 0
    %6141 = vmatpush1.bf16.msra.mxu0 0
    %6142 = vmatprep.subr.bf16.mxu0 0
    %6143 = vmatpush1.bf16.msra.mxu0 0
    %6144 = vmatprep.subr.bf16.mxu0 0
    %6145 = vmatpush1.bf16.msra.mxu0 0
    %6146 = vmatprep.subr.bf16.mxu0 0
    %6147 = vmatpush1.bf16.msra.mxu0 0
    %6148 = vmatprep.subr.bf16.mxu0 0
    %6149 = vmatpush1.bf16.msra.mxu0 0
    %6150 = vmatprep.subr.bf16.mxu0 0
    %6151 = vmatpush1.bf16.msra.mxu0 0
    %6152 = vmatprep.mubr.bf16.mxu0 0
    %6153 = vmatmul.mubr.bf16.gmra.mrb[0].mxu0 %v5758
    %v6154 = vpop.f32.mrb[0].mxu0
    %v6155 = vadd.f32 0.0, %v6154
    %v6156 = vpop.f32.mrb[0].mxu0
    %v6157 = vpop.f32.mrb[0].mxu0
    %v6158 = vpop.f32.mrb[0].mxu0
    %6159 = vdwg.mxu0
    %v6160 = vadd.f32 %v6033, %v6114
    %v6161 = vxor.u32 %v6160, 2147483648
    %v6162 = vmul.f32 %v6161, 1.442695
    %v6163 = vpow.pop %v6162
    %v6164 = vadd.f32 %v6163, 1.0
    %v6165 = vrcp.pop %v6164
    %v6166 = vmul.f32 1.0, %v6165
    %v6167 = vadd.f32 %v6035, %v6116
    %v6168 = vxor.u32 %v6167, 2147483648
    %v6169 = vmul.f32 %v6168, 1.442695
    %v6170 = vpow.pop %v6169
    %v6171 = vadd.f32 %v6170, 1.0
    %v6172 = vrcp.pop %v6171
    %v6173 = vmul.f32 1.0, %v6172
    %v6174 = vadd.f32 %v6155, %v5688
    %v6175 = vmul.f32 %v6166, %v6174
    %v6176 = vadd.f32 %v6074, %v6175
    %v6177 = vtanh.pop %v6176
    %v6178 = vsub.f32 1.0, %v6173
    %v6179 = vmul.f32 %v6178, %v6177
    %v6180 = vmul.f32 %v6173, %v5697
    %v6181 = vadd.f32 %v6179, %v6180
    %v6182 = vpack.c.bf16 %v6181, %v6181
    %v6184 = vsel %vm207, %v6182, 0
    %6186 = vmatprep.subr.bf16.mxu0 %v5746
    %6187 = vmatpush1.bf16.msra.mxu0 %v5745
    %6188 = vmatprep.subr.bf16.mxu0 %v5749
    %6189 = vmatpush1.bf16.msra.mxu0 %v5748
    %6190 = vmatprep.subr.bf16.mxu0 0
    %6191 = vmatpush1.bf16.msra.mxu0 0
    %6192 = vmatprep.subr.bf16.mxu0 0
    %6193 = vmatpush1.bf16.msra.mxu0 0
    %6194 = vmatprep.subr.bf16.mxu0 0
    %6195 = vmatpush1.bf16.msra.mxu0 0
    %6196 = vmatprep.subr.bf16.mxu0 0
    %6197 = vmatpush1.bf16.msra.mxu0 0
    %6198 = vmatprep.subr.bf16.mxu0 0
    %6199 = vmatpush1.bf16.msra.mxu0 0
    %6200 = vmatprep.subr.bf16.mxu0 0
    %6201 = vmatpush1.bf16.msra.mxu0 0
    %6202 = vmatprep.subr.bf16.mxu0 0
    %6203 = vmatpush1.bf16.msra.mxu0 0
    %6204 = vmatprep.subr.bf16.mxu0 0
    %6205 = vmatpush1.bf16.msra.mxu0 0
    %6206 = vmatprep.subr.bf16.mxu0 0
    %6207 = vmatpush1.bf16.msra.mxu0 0
    %6208 = vmatprep.subr.bf16.mxu0 0
    %6209 = vmatpush1.bf16.msra.mxu0 0
    %6210 = vmatprep.subr.bf16.mxu0 0
    %6211 = vmatpush1.bf16.msra.mxu0 0
    %6212 = vmatprep.subr.bf16.mxu0 0
    %6213 = vmatpush1.bf16.msra.mxu0 0
    %6214 = vmatprep.subr.bf16.mxu0 0
    %6215 = vmatpush1.bf16.msra.mxu0 0
    %6216 = vmatprep.subr.bf16.mxu0 0
    %6217 = vmatpush1.bf16.msra.mxu0 0
    %6218 = vmatprep.mubr.bf16.mxu0 0
    %6219 = vmatmul.mubr.bf16.gmra.mrb[0].mxu0 %v6184
    %v6220 = vpop.f32.mrb[0].mxu0
    %v6221 = vadd.f32 %v5713, %v6220
    %v6222 = vpop.f32.mrb[0].mxu0
    %v6223 = vadd.f32 %v5717, %v6222
    %v6224 = vpop.f32.mrb[0].mxu0
    %v6225 = vpop.f32.mrb[0].mxu0
    %6226 = vdwg.mxu0
    %6227 = vmatprep.subr.bf16.mxu0 0
    %6228 = vmatpush1.bf16.msra.mxu0 %v5747
    %6229 = vmatprep.subr.bf16.mxu0 0
    %6230 = vmatpush1.bf16.msra.mxu0 %v5750
    %6231 = vmatprep.subr.bf16.mxu0 0
    %6232 = vmatpush1.bf16.msra.mxu0 0
    %6233 = vmatprep.subr.bf16.mxu0 0
    %6234 = vmatpush1.bf16.msra.mxu0 0
    %6235 = vmatprep.subr.bf16.mxu0 0
    %6236 = vmatpush1.bf16.msra.mxu0 0
    %6237 = vmatprep.subr.bf16.mxu0 0
    %6238 = vmatpush1.bf16.msra.mxu0 0
    %6239 = vmatprep.subr.bf16.mxu0 0
    %6240 = vmatpush1.bf16.msra.mxu0 0
    %6241 = vmatprep.subr.bf16.mxu0 0
    %6242 = vmatpush1.bf16.msra.mxu0 0
    %6243 = vmatprep.subr.bf16.mxu0 0
    %6244 = vmatpush1.bf16.msra.mxu0 0
    %6245 = vmatprep.subr.bf16.mxu0 0
    %6246 = vmatpush1.bf16.msra.mxu0 0
    %6247 = vmatprep.subr.bf16.mxu0 0
    %6248 = vmatpush1.bf16.msra.mxu0 0
    %6249 = vmatprep.subr.bf16.mxu0 0
    %6250 = vmatpush1.bf16.msra.mxu0 0
    %6251 = vmatprep.subr.bf16.mxu0 0
    %6252 = vmatpush1.bf16.msra.mxu0 0
    %6253 = vmatprep.subr.bf16.mxu0 0
    %6254 = vmatpush1.bf16.msra.mxu0 0
    %6255 = vmatprep.subr.bf16.mxu0 0
    %6256 = vmatpush1.bf16.msra.mxu0 0
    %6257 = vmatprep.subr.bf16.mxu0 0
    %6258 = vmatpush1.bf16.msra.mxu0 0
    %6259 = vmatprep.mubr.bf16.mxu0 0
    %6260 = vmatmul.mubr.bf16.gmra.mrb[0].mxu0 %v6184
    %v6261 = vpop.f32.mrb[0].mxu0
    %v6262 = vadd.f32 %v5721, %v6261
    %v6263 = vpop.f32.mrb[0].mxu0
    %v6264 = vpop.f32.mrb[0].mxu0
    %v6265 = vpop.f32.mrb[0].mxu0
    %6266 = vdwg.mxu0
    %6267 = vmatprep.subr.bf16.mxu0 %v5870
    %6268 = vmatpush1.bf16.msra.mxu0 %v5869
    %6269 = vmatprep.subr.bf16.mxu0 %v5873
    %6270 = vmatpush1.bf16.msra.mxu0 %v5872
    %6271 = vmatprep.subr.bf16.mxu0 0
    %6272 = vmatpush1.bf16.msra.mxu0 0
    %6273 = vmatprep.subr.bf16.mxu0 0
    %6274 = vmatpush1.bf16.msra.mxu0 0
    %6275 = vmatprep.subr.bf16.mxu0 0
    %6276 = vmatpush1.bf16.msra.mxu0 0
    %6277 = vmatprep.subr.bf16.mxu0 0
    %6278 = vmatpush1.bf16.msra.mxu0 0
    %6279 = vmatprep.subr.bf16.mxu0 0
    %6280 = vmatpush1.bf16.msra.mxu0 0
    %6281 = vmatprep.subr.bf16.mxu0 0
    %6282 = vmatpush1.bf16.msra.mxu0 0
    %6283 = vmatprep.subr.bf16.mxu0 0
    %6284 = vmatpush1.bf16.msra.mxu0 0
    %6285 = vmatprep.subr.bf16.mxu0 0
    %6286 = vmatpush1.bf16.msra.mxu0 0
    %6287 = vmatprep.subr.bf16.mxu0 0
    %6288 = vmatpush1.bf16.msra.mxu0 0
    %6289 = vmatprep.subr.bf16.mxu0 0
    %6290 = vmatpush1.bf16.msra.mxu0 0
    %6291 = vmatprep.subr.bf16.mxu0 0
    %6292 = vmatpush1.bf16.msra.mxu0 0
    %6293 = vmatprep.subr.bf16.mxu0 0
    %6294 = vmatpush1.bf16.msra.mxu0 0
    %6295 = vmatprep.subr.bf16.mxu0 0
    %6296 = vmatpush1.bf16.msra.mxu0 0
    %6297 = vmatprep.subr.bf16.mxu0 0
    %6298 = vmatpush1.bf16.msra.mxu0 0
    %6299 = vmatprep.mubr.bf16.mxu0 0
    %6300 = vmatmul.mubr.bf16.gmra.mrb[0].mxu0 %v5996
    %v6301 = vpop.f32.mrb[0].mxu0
    %v6302 = vadd.f32 0.0, %v6301
    %v6303 = vpop.f32.mrb[0].mxu0
    %v6304 = vadd.f32 0.0, %v6303
    %v6305 = vpop.f32.mrb[0].mxu0
    %v6306 = vpop.f32.mrb[0].mxu0
    %6307 = vdwg.mxu0
    %6308 = vmatprep.subr.bf16.mxu0 0
    %6309 = vmatpush1.bf16.msra.mxu0 %v5871
    %6310 = vmatprep.subr.bf16.mxu0 0
    %6311 = vmatpush1.bf16.msra.mxu0 %v5874
    %6312 = vmatprep.subr.bf16.mxu0 0
    %6313 = vmatpush1.bf16.msra.mxu0 0
    %6314 = vmatprep.subr.bf16.mxu0 0
    %6315 = vmatpush1.bf16.msra.mxu0 0
    %6316 = vmatprep.subr.bf16.mxu0 0
    %6317 = vmatpush1.bf16.msra.mxu0 0
    %6318 = vmatprep.subr.bf16.mxu0 0
    %6319 = vmatpush1.bf16.msra.mxu0 0
    %6320 = vmatprep.subr.bf16.mxu0 0
    %6321 = vmatpush1.bf16.msra.mxu0 0
    %6322 = vmatprep.subr.bf16.mxu0 0
    %6323 = vmatpush1.bf16.msra.mxu0 0
    %6324 = vmatprep.subr.bf16.mxu0 0
    %6325 = vmatpush1.bf16.msra.mxu0 0
    %6326 = vmatprep.subr.bf16.mxu0 0
    %6327 = vmatpush1.bf16.msra.mxu0 0
    %6328 = vmatprep.subr.bf16.mxu0 0
    %6329 = vmatpush1.bf16.msra.mxu0 0
    %6330 = vmatprep.subr.bf16.mxu0 0
    %6331 = vmatpush1.bf16.msra.mxu0 0
    %6332 = vmatprep.subr.bf16.mxu0 0
    %6333 = vmatpush1.bf16.msra.mxu0 0
    %6334 = vmatprep.subr.bf16.mxu0 0
    %6335 = vmatpush1.bf16.msra.mxu0 0
    %6336 = vmatprep.subr.bf16.mxu0 0
    %6337 = vmatpush1.bf16.msra.mxu0 0
    %6338 = vmatprep.subr.bf16.mxu0 0
    %6339 = vmatpush1.bf16.msra.mxu0 0
    %6340 = vmatprep.mubr.bf16.mxu0 0
    %6341 = vmatmul.mubr.bf16.gmra.mrb[0].mxu0 %v5996
    %v6342 = vpop.f32.mrb[0].mxu0
    %v6343 = vadd.f32 0.0, %v6342
    %v6344 = vpop.f32.mrb[0].mxu0
    %v6345 = vpop.f32.mrb[0].mxu0
    %v6346 = vpop.f32.mrb[0].mxu0
    %6347 = vdwg.mxu0
    %v6348 = vadd.f32 %v6221, %v6302
    %v6349 = vxor.u32 %v6348, 2147483648
    %v6350 = vmul.f32 %v6349, 1.442695
    %v6351 = vpow.pop %v6350
    %v6352 = vadd.f32 %v6351, 1.0
    %v6353 = vrcp.pop %v6352
    %v6354 = vmul.f32 1.0, %v6353
    %v6355 = vadd.f32 %v6223, %v6304
    %v6356 = vxor.u32 %v6355, 2147483648
    %v6357 = vmul.f32 %v6356, 1.442695
    %v6358 = vpow.pop %v6357
    %v6359 = vadd.f32 %v6358, 1.0
    %v6360 = vrcp.pop %v6359
    %v6361 = vmul.f32 1.0, %v6360
    %v6362 = vadd.f32 %v6343, %v5984
    %v6363 = vmul.f32 %v6354, %v6362
    %v6364 = vadd.f32 %v6262, %v6363
    %v6365 = vtanh.pop %v6364
    %v6366 = vsub.f32 1.0, %v6361
    %v6367 = vmul.f32 %v6366, %v6365
    %v6368 = vmul.f32 %v6361, %v5993
    %v6369 = vadd.f32 %v6367, %v6368
    %s6370 = scalar_lea.vmem [#allocation7], 40
    %6371 = vst [vmem:[%s6370] sm:$0xff] %v6369
    %6372 = vst [vmem:[#allocation8] sm:$0xff] %v6181
    %s6373 = scalar_lea.vmem [#allocation8], 8
    %6374 = vst [vmem:[%s6373] sm:$0xff] %v6369
    // Predicated region
    $region38: #{_encoder_seq_impl.1} parent=1 // pred_check
      _
    $region39: #{_encoder_seq_impl.1} parent=1 // pred_check_branch
      %6376 = sbr.rel (0) target = $region41
    $region40: #{_encoder_seq_impl.1} parent=1 // pred_region
      %s6378 = ssub.s32 768, 768
      %6379 = vsyncadd [#allocation4], %s6378
      %s6380 = sshll.u32 [#allocation7], 4
      %s6381 = int_to_ptr.vmem [resolvable:$true] %s6380
      %6386 = dma.vmem_to_hbm [thread:$0]  %s6381, 768, %s7, [#allocation4], 128, 128, 8
    $region41: #{_encoder_seq_impl.1} parent=1 // pred_fallthru
      _
    // Predicated region
    $region42: #{_encoder_seq_impl.1} parent=1 // pred_check
      _
    $region43: #{_encoder_seq_impl.1} parent=1 // pred_check_branch
      %6388 = sbr.rel (0) target = $region45
    $region44: #{_encoder_seq_impl.1} parent=1 // pred_region
      %s6390 = ssub.s32 256, 256
      %6391 = vsyncadd [#allocation9], %s6390
      %s6392 = sshll.u32 [#allocation8], 4
      %s6393 = int_to_ptr.vmem [resolvable:$true] %s6392
      %6398 = dma.vmem_to_hbm [thread:$0]  %s6393, 256, %s8, [#allocation9], 128, 128, 8
    $region45: #{_encoder_seq_impl.1} parent=1 // pred_fallthru
      _
    // Predicated region
    $region46: #{_encoder_seq_impl.1} parent=1 // pred_check
      _
    $region47: #{_encoder_seq_impl.1} parent=1 // pred_check_branch
      %6400 = sbr.rel (0) target = $region49
    $region48: #{_encoder_seq_impl.1} parent=1 // pred_region
      %6401 = dma.done [#allocation4], 768
    $region49: #{_encoder_seq_impl.1} parent=1 // pred_fallthru
      _
    // Predicated region
    $region50: #{_encoder_seq_impl.1} parent=1 // pred_check
      _
    $region51: #{_encoder_seq_impl.1} parent=1 // pred_check_branch
      %6403 = sbr.rel (0) target = $region53
    $region52: #{_encoder_seq_impl.1} parent=1 // pred_region
      %6404 = dma.done [#allocation9], 256
    $region53: #{_encoder_seq_impl.1} parent=1 // pred_fallthru
      _
    %6405 = vsyncpa [#allocation3], 1
    %6406 = vsyncpa [#allocation6], 1
    %6407 = vsyncpa [#allocation4], 1
    %6408 = vsyncpa [#allocation9], 1

</llo_original>
